<compile_context>
chip_gen: v7x
topology: tpu7x:2x2x1
jax: 0.10.0
libtpu: 0.0.40
codegen_flags: <defaults>
</compile_context>

<pallas_src>
import math

import jax
import jax.numpy as jnp
from jax import lax
from jax.experimental import pallas as pl
from jax.experimental.pallas import tpu as pltpu

_EPS = 1e-5
_NUM_GROUPS = 32


# ------------------------------ kernel helpers -------------------------------

def _reflect_pad_hw(y):
    """1-pixel 'reflect' pad (torch padding_mode='reflect') of (H, W, C).

    Assembled as a value so the caller commits it to scratch with ONE full
    store instead of 5 masked edge stores.
    """
    y = jnp.concatenate([y[1:2], y, y[-2:-1]], axis=0)          # top/bottom rows
    y = jnp.concatenate([y[:, 1:2], y, y[:, -2:-1]], axis=1)    # cols (+ corners)
    return y


def _conv3x3(pad_ref, w_ref, H, W):
    """3x3 VALID conv over a reflect-padded (H+2, W+2, Cin) VMEM scratch.

    Nine accumulated MXU matmuls (one per tap) -- no (H*W, 9*Cin) im2col
    transient.  Returns (H*W, Cout) f32.
    """
    Cin = pad_ref.shape[2]
    acc = None
    for ky in range(3):
        for kx in range(3):
            tap = ky * 3 + kx
            win = pad_ref[ky:ky + H, kx:kx + W, :].reshape(H * W, Cin)  # bf16
            part = jnp.dot(win, w_ref[tap * Cin:(tap + 1) * Cin, :],
                           preferred_element_type=jnp.float32)
            acc = part if acc is None else acc + part
    return acc


def _gn_gelu(acc, gamma, beta):
    """GroupNorm(32) (biased var, eps=1e-5, per-channel affine) + exact GELU.

    acc: (N, C) f32 for one sample; gamma/beta: (1, C) f32.
    """
    N, C = acc.shape
    G = _NUM_GROUPS
    Cg = C // G
    if Cg == 1:                        # one channel per group (static branch)
        mean = jnp.mean(acc, axis=0, keepdims=True)
        var = jnp.mean((acc - mean) ** 2, axis=0, keepdims=True)
        xn = (acc - mean) * lax.rsqrt(var + _EPS)
    else:
        g = acc.reshape(N, G, Cg)
        mean = jnp.mean(g, axis=(0, 2), keepdims=True)
        var = jnp.mean((g - mean) ** 2, axis=(0, 2), keepdims=True)
        xn = ((g - mean) * lax.rsqrt(var + _EPS)).reshape(N, C)
    y = xn * gamma + beta
    # exact (erf-based) GELU = torch.nn.GELU() default
    return 0.5 * y * (1.0 + lax.erf(y * (1.0 / math.sqrt(2.0))))


# --------------------------------- kernel ------------------------------------

def _decoder_block_kernel(x_ref, w1_ref, b1_ref, g1_ref, be1_ref,
                          w2_ref, b2_ref, g2_ref, be2_ref,
                          o_ref, xpad_ref, mid_ref):
    """One batch element; both conv->GN->GELU stages fused.

    x_ref:     (1, Cin, H*W)    f32  raw NCHW tile (lane-dense DMA)
    w1_ref:    (9*Cin, Cmid)    bf16    w2_ref: (9*Cmid, Cout) bf16
    b*/g*/be*: (1, C)           f32
    o_ref:     (1, Cout, H*W)   f32  NCHW output (lane-dense store)
    xpad_ref:  (H+2, W+2, Cin)  bf16 VMEM scratch (reflect-padded input)
    mid_ref:   (H+2, W+2, Cmid) bf16 VMEM scratch (reflect-padded stage-1 act)
    """
    Hp, Wp, Cin = xpad_ref.shape
    H, W = Hp - 2, Wp - 2
    Cmid = mid_ref.shape[2]

    # NCHW -> HWC inside the kernel (XLU transpose), cast to bf16 for the MXU,
    # build the 1-px reflect halo and commit with one full store.
    x_hwc = (jnp.transpose(x_ref[0], (1, 0))
             .astype(jnp.bfloat16).reshape(H, W, Cin))
    xpad_ref[...] = _reflect_pad_hw(x_hwc)

    # ---- stage 1: conv3x3 (9 MXU taps) + GroupNorm + GELU ----
    acc1 = _conv3x3(xpad_ref, w1_ref, H, W) + b1_ref[...]
    y1 = _gn_gelu(acc1, g1_ref[...], be1_ref[...])              # (H*W, Cmid) f32

    # Stage-1 activation never leaves VMEM: rebuild reflect halo, one store.
    mid_ref[...] = _reflect_pad_hw(
        y1.astype(jnp.bfloat16).reshape(H, W, Cmid))

    # ---- stage 2: conv3x3 (9 MXU taps) + GroupNorm + GELU ----
    acc2 = _conv3x3(mid_ref, w2_ref, H, W) + b2_ref[...]
    y2 = _gn_gelu(acc2, g2_ref[...], be2_ref[...])              # (H*W, Cout) f32

    # Lane-dense NCHW writeback: (H*W, Cout) -> (Cout, H*W), last dim = H*W.
    o_ref[0] = jnp.transpose(y2, (1, 0))


# ------------------------- wrapper / param packing ---------------------------

def prepare_params(params):
    """One-time packing of torch-layout params into kernel layout."""
    def pack_w(w_oihw):
        cout, cin = w_oihw.shape[0], w_oihw.shape[1]
        # (Cout, Cin, ky, kx) -> (ky, kx, Cin, Cout) -> (9*Cin, Cout), bf16
        return (jnp.transpose(w_oihw, (2, 3, 1, 0))
                .reshape(9 * cin, cout).astype(jnp.bfloat16))

    def row(v):
        return v.reshape(1, -1).astype(jnp.float32)

    return {
        "w1": pack_w(params["w1"]), "b1": row(params["b1"]),
        "g1": row(params["g1"]), "be1": row(params["be1"]),
        "w2": pack_w(params["w2"]), "b2": row(params["b2"]),
        "g2": row(params["g2"]), "be2": row(params["be2"]),
    }


def decoder_block_forward(x_nchw, prep):
    """Fused Pallas implementation of _DecoderBlock.forward (bn=False path)."""
    B, Cin, H, W = x_nchw.shape
    Cmid = prep["w1"].shape[1]
    Cout = prep["w2"].shape[1]

    # Zero-copy reshape only -- no wrapper-side pad / im2col / transpose.
    x = x_nchw.reshape(B, Cin, H * W)

    out = pl.pallas_call(
        _decoder_block_kernel,
        out_shape=jax.ShapeDtypeStruct((B, Cout, H * W), jnp.float32),
        grid=(B,),
        in_specs=[
            pl.BlockSpec((1, Cin, H * W), lambda b: (b, 0, 0)),
            pl.BlockSpec((9 * Cin, Cmid), lambda b: (0, 0)),
            pl.BlockSpec((1, Cmid), lambda b: (0, 0)),
            pl.BlockSpec((1, Cmid), lambda b: (0, 0)),
            pl.BlockSpec((1, Cmid), lambda b: (0, 0)),
            pl.BlockSpec((9 * Cmid, Cout), lambda b: (0, 0)),
            pl.BlockSpec((1, Cout), lambda b: (0, 0)),
            pl.BlockSpec((1, Cout), lambda b: (0, 0)),
            pl.BlockSpec((1, Cout), lambda b: (0, 0)),
        ],
        out_specs=pl.BlockSpec((1, Cout, H * W), lambda b: (b, 0, 0)),
        scratch_shapes=[
            pltpu.VMEM((H + 2, W + 2, Cin), jnp.bfloat16),
            pltpu.VMEM((H + 2, W + 2, Cmid), jnp.bfloat16),
        ],
        compiler_params=pltpu.CompilerParams(
            dimension_semantics=("parallel",),
            vmem_limit_bytes=32 * 1024 * 1024,   # raise v5e's 16 MiB default
        ),
    )(x, prep["w1"], prep["b1"], prep["g1"], prep["be1"],
      prep["w2"], prep["b2"], prep["g2"], prep["be2"])

    return out.reshape(B, Cout, H, W)            # free reshape (already NCHW)


# ------------------------------ pure-JAX ref ----------------------------------

def _ref_conv_gn_gelu(x_nhwc, w_oihw, b, gamma, beta):
    x_pad = jnp.pad(x_nhwc, ((0, 0), (1, 1), (1, 1), (0, 0)), mode="reflect")
    w_hwio = jnp.transpose(w_oihw, (2, 3, 1, 0))
    y = lax.conv_general_dilated(
        x_pad, w_hwio, window_strides=(1, 1), padding="VALID",
        dimension_numbers=("NHWC", "HWIO", "NHWC")) + b[None, None, None, :]
    B, H, W, C = y.shape
    G = _NUM_GROUPS
    g = y.reshape(B, H, W, G, C // G)
    mean = jnp.mean(g, axis=(1, 2, 4), keepdims=True)
    var = jnp.mean((g - mean) ** 2, axis=(1, 2, 4), keepdims=True)
    yn = ((g - mean) * lax.rsqrt(var + _EPS)).reshape(B, H, W, C)
    yn = yn * gamma[None, None, None, :] + beta[None, None, None, :]
    return 0.5 * yn * (1.0 + lax.erf(yn / math.sqrt(2.0)))


def ref_forward(x_nchw, params):
    x = jnp.transpose(x_nchw, (0, 2, 3, 1))
    x = _ref_conv_gn_gelu(x, params["w1"], params["b1"],
                          params["g1"], params["be1"])
    x = _ref_conv_gn_gelu(x, params["w2"], params["b2"],
                          params["g2"], params["be2"])
    return jnp.transpose(x, (0, 3, 1, 2))


# ---------------------------------- main --------------------------------------

if __name__ == "__main__":
    # GroupNorm(32, C) requires C % 32 == 0, so channel counts are 32 here.
    B, Cin, Cmid, Cout, H, W = 2, 32, 32, 32, 16, 16

    key = jax.random.PRNGKey(0)
    k = jax.random.split(key, 5)

    def _uinit(kk, shape, fan_in):
        bound = 1.0 / math.sqrt(fan_in)
        return jax.random.uniform(kk, shape, jnp.float32, -bound, bound)

    params = {
        "w1": _uinit(k[0], (Cmid, Cin, 3, 3), Cin * 9),
        "b1": _uinit(k[1], (Cmid,), Cin * 9),
        "g1": jnp.ones((Cmid,), jnp.float32),
        "be1": jnp.zeros((Cmid,), jnp.float32),
        "w2": _uinit(k[2], (Cout, Cmid, 3, 3), Cmid * 9),
        "b2": _uinit(k[3], (Cout,), Cmid * 9),
        "g2": jnp.ones((Cout,), jnp.float32),
        "be2": jnp.zeros((Cout,), jnp.float32),
    }

    x = jax.random.normal(k[4], (B, Cin, H, W), jnp.float32)

    prep = prepare_params(params)            # one-time packing (bf16 weights)

    out = jax.block_until_ready(jax.jit(decoder_block_forward)(x, prep))
    ref = jax.block_until_ready(jax.jit(ref_forward)(x, params))

    assert out.shape == (B, Cout, H, W)
    # bf16 MXU operands in both stages -> slightly loosened tolerance vs f32 ref.
    assert jnp.allclose(out, ref, atol=8e-2, rtol=3e-2), (
        float(jnp.max(jnp.abs(out - ref))))

    print("KERNEL_OK")
</pallas_src>

<mosaic_0001>
module attributes {stable_mosaic.version = 11 : i64} {
  func.func @_decoder_block_kernel(%arg0: i32, %arg1: memref<1x32x256xf32, #tpu.memory_space<vmem>>, %arg2: memref<288x32xbf16, #tpu.memory_space<vmem>>, %arg3: memref<1x32xf32, #tpu.memory_space<vmem>>, %arg4: memref<1x32xf32, #tpu.memory_space<vmem>>, %arg5: memref<1x32xf32, #tpu.memory_space<vmem>>, %arg6: memref<288x32xbf16, #tpu.memory_space<vmem>>, %arg7: memref<1x32xf32, #tpu.memory_space<vmem>>, %arg8: memref<1x32xf32, #tpu.memory_space<vmem>>, %arg9: memref<1x32xf32, #tpu.memory_space<vmem>>, %arg10: memref<1x32x256xf32, #tpu.memory_space<vmem>>, %arg11: memref<18x18x32xbf16, #tpu.memory_space<vmem>>, %arg12: memref<18x18x32xbf16, #tpu.memory_space<vmem>>) attributes {dimension_semantics = [#tpu.dimension_semantics<parallel>], iteration_bounds = array<i64: 2>, scalar_prefetch = 0 : i64, scratch_operands = 2 : i64, tpu.core_type = #tpu.core_type<tc>, window_params = [{transform_indices = @transform_0, window_bounds = array<i64: 1, 32, 256>}, {pipeline_mode = #tpu.pipeline_mode<synchronous>, transform_indices = @transform_1, window_bounds = array<i64: 288, 32>}, {pipeline_mode = #tpu.pipeline_mode<synchronous>, transform_indices = @transform_2, window_bounds = array<i64: 1, 32>}, {pipeline_mode = #tpu.pipeline_mode<synchronous>, transform_indices = @transform_3, window_bounds = array<i64: 1, 32>}, {pipeline_mode = #tpu.pipeline_mode<synchronous>, transform_indices = @transform_4, window_bounds = array<i64: 1, 32>}, {pipeline_mode = #tpu.pipeline_mode<synchronous>, transform_indices = @transform_5, window_bounds = array<i64: 288, 32>}, {pipeline_mode = #tpu.pipeline_mode<synchronous>, transform_indices = @transform_6, window_bounds = array<i64: 1, 32>}, {pipeline_mode = #tpu.pipeline_mode<synchronous>, transform_indices = @transform_7, window_bounds = array<i64: 1, 32>}, {pipeline_mode = #tpu.pipeline_mode<synchronous>, transform_indices = @transform_8, window_bounds = array<i64: 1, 32>}, {transform_indices = @transform_9, window_bounds = array<i64: 1, 32, 256>}]} {
    %c0 = arith.constant 0 : index
    %c0_0 = arith.constant 0 : index
    %c0_1 = arith.constant 0 : index
    %0 = vector.load %arg1[%c0, %c0_0, %c0_1] : memref<1x32x256xf32, #tpu.memory_space<vmem>>, vector<1x32x256xf32>
    %1 = vector.shape_cast %0 : vector<1x32x256xf32> to vector<32x256xf32>
    %2 = tpu.transpose %1, [1, 0] : vector<32x256xf32> -> vector<256x32xf32>
    %3 = arith.truncf %2 : vector<256x32xf32> to vector<256x32xbf16>
    %4 = vector.shape_cast %3 : vector<256x32xbf16> to vector<16x16x32xbf16>
    %5 = vector.extract_strided_slice %4 {offsets = [1, 0, 0], sizes = [1, 16, 32], strides = [1, 1, 1]} : vector<16x16x32xbf16> to vector<1x16x32xbf16>
    %6 = vector.extract_strided_slice %4 {offsets = [14, 0, 0], sizes = [1, 16, 32], strides = [1, 1, 1]} : vector<16x16x32xbf16> to vector<1x16x32xbf16>
    %7 = tpu.concatenate %5, %4, %6 in 0 : vector<1x16x32xbf16>, vector<16x16x32xbf16>, vector<1x16x32xbf16> -> vector<18x16x32xbf16>
    %8 = vector.extract_strided_slice %7 {offsets = [0, 1, 0], sizes = [18, 1, 32], strides = [1, 1, 1]} : vector<18x16x32xbf16> to vector<18x1x32xbf16>
    %9 = vector.extract_strided_slice %7 {offsets = [0, 14, 0], sizes = [18, 1, 32], strides = [1, 1, 1]} : vector<18x16x32xbf16> to vector<18x1x32xbf16>
    %10 = tpu.concatenate %8, %7, %9 in 1 : vector<18x1x32xbf16>, vector<18x16x32xbf16>, vector<18x1x32xbf16> -> vector<18x18x32xbf16>
    %c0_2 = arith.constant 0 : index
    %c0_3 = arith.constant 0 : index
    %c0_4 = arith.constant 0 : index
    %11 = vector.load %arg11[%c0_2, %c0_3, %c0_4] : memref<18x18x32xbf16, #tpu.memory_space<vmem>>, vector<18x18x32xbf16>
    tpu.vector_store %arg11[%c0_2, %c0_3, %c0_4], %10 {strides = array<i32>} : memref<18x18x32xbf16, #tpu.memory_space<vmem>>, vector<18x18x32xbf16>,
    %c0_5 = arith.constant 0 : index
    %c0_6 = arith.constant 0 : index
    %c0_7 = arith.constant 0 : index
    %12 = vector.load %arg11[%c0_5, %c0_6, %c0_7] : memref<18x18x32xbf16, #tpu.memory_space<vmem>>, vector<16x16x32xbf16>
    %13 = vector.shape_cast %12 : vector<16x16x32xbf16> to vector<256x32xbf16>
    %c0_8 = arith.constant 0 : index
    %c0_9 = arith.constant 0 : index
    %14 = vector.load %arg2[%c0_8, %c0_9] : memref<288x32xbf16, #tpu.memory_space<vmem>>, vector<32x32xbf16>
    %cst = arith.constant dense<0.000000e+00> : vector<256x32xf32>
    %15 = tpu.matmul %13, %14, %cst {dimension_numbers = #tpu.dot_dimension_numbers<[1], [0], [0], [1], [0, 0, 1, 1], [], []>} : vector<256x32xbf16>, vector<32x32xbf16>, vector<256x32xf32> -> vector<256x32xf32>
    %c0_10 = arith.constant 0 : index
    %c1 = arith.constant 1 : index
    %c0_11 = arith.constant 0 : index
    %16 = vector.load %arg11[%c0_10, %c1, %c0_11] : memref<18x18x32xbf16, #tpu.memory_space<vmem>>, vector<16x16x32xbf16>
    %17 = vector.shape_cast %16 : vector<16x16x32xbf16> to vector<256x32xbf16>
    %c32 = arith.constant 32 : index
    %c0_12 = arith.constant 0 : index
    %18 = vector.load %arg2[%c32, %c0_12] : memref<288x32xbf16, #tpu.memory_space<vmem>>, vector<32x32xbf16>
    %cst_13 = arith.constant dense<0.000000e+00> : vector<256x32xf32>
    %19 = tpu.matmul %17, %18, %cst_13 {dimension_numbers = #tpu.dot_dimension_numbers<[1], [0], [0], [1], [0, 0, 1, 1], [], []>} : vector<256x32xbf16>, vector<32x32xbf16>, vector<256x32xf32> -> vector<256x32xf32>
    %20 = arith.addf %15, %19 : vector<256x32xf32>
    %c0_14 = arith.constant 0 : index
    %c2 = arith.constant 2 : index
    %c0_15 = arith.constant 0 : index
    %21 = vector.load %arg11[%c0_14, %c2, %c0_15] : memref<18x18x32xbf16, #tpu.memory_space<vmem>>, vector<16x16x32xbf16>
    %22 = vector.shape_cast %21 : vector<16x16x32xbf16> to vector<256x32xbf16>
    %c64 = arith.constant 64 : index
    %c0_16 = arith.constant 0 : index
    %23 = vector.load %arg2[%c64, %c0_16] : memref<288x32xbf16, #tpu.memory_space<vmem>>, vector<32x32xbf16>
    %cst_17 = arith.constant dense<0.000000e+00> : vector<256x32xf32>
    %24 = tpu.matmul %22, %23, %cst_17 {dimension_numbers = #tpu.dot_dimension_numbers<[1], [0], [0], [1], [0, 0, 1, 1], [], []>} : vector<256x32xbf16>, vector<32x32xbf16>, vector<256x32xf32> -> vector<256x32xf32>
    %25 = arith.addf %20, %24 : vector<256x32xf32>
    %c1_18 = arith.constant 1 : index
    %c0_19 = arith.constant 0 : index
    %c0_20 = arith.constant 0 : index
    %26 = vector.load %arg11[%c1_18, %c0_19, %c0_20] : memref<18x18x32xbf16, #tpu.memory_space<vmem>>, vector<16x16x32xbf16>
    %27 = vector.shape_cast %26 : vector<16x16x32xbf16> to vector<256x32xbf16>
    %c96 = arith.constant 96 : index
    %c0_21 = arith.constant 0 : index
    %28 = vector.load %arg2[%c96, %c0_21] : memref<288x32xbf16, #tpu.memory_space<vmem>>, vector<32x32xbf16>
    %cst_22 = arith.constant dense<0.000000e+00> : vector<256x32xf32>
    %29 = tpu.matmul %27, %28, %cst_22 {dimension_numbers = #tpu.dot_dimension_numbers<[1], [0], [0], [1], [0, 0, 1, 1], [], []>} : vector<256x32xbf16>, vector<32x32xbf16>, vector<256x32xf32> -> vector<256x32xf32>
    %30 = arith.addf %25, %29 : vector<256x32xf32>
    %c1_23 = arith.constant 1 : index
    %c1_24 = arith.constant 1 : index
    %c0_25 = arith.constant 0 : index
    %31 = vector.load %arg11[%c1_23, %c1_24, %c0_25] : memref<18x18x32xbf16, #tpu.memory_space<vmem>>, vector<16x16x32xbf16>
    %32 = vector.shape_cast %31 : vector<16x16x32xbf16> to vector<256x32xbf16>
    %c128 = arith.constant 128 : index
    %c0_26 = arith.constant 0 : index
    %33 = vector.load %arg2[%c128, %c0_26] : memref<288x32xbf16, #tpu.memory_space<vmem>>, vector<32x32xbf16>
    %cst_27 = arith.constant dense<0.000000e+00> : vector<256x32xf32>
    %34 = tpu.matmul %32, %33, %cst_27 {dimension_numbers = #tpu.dot_dimension_numbers<[1], [0], [0], [1], [0, 0, 1, 1], [], []>} : vector<256x32xbf16>, vector<32x32xbf16>, vector<256x32xf32> -> vector<256x32xf32>
    %35 = arith.addf %30, %34 : vector<256x32xf32>
    %c1_28 = arith.constant 1 : index
    %c2_29 = arith.constant 2 : index
    %c0_30 = arith.constant 0 : index
    %36 = vector.load %arg11[%c1_28, %c2_29, %c0_30] : memref<18x18x32xbf16, #tpu.memory_space<vmem>>, vector<16x16x32xbf16>
    %37 = vector.shape_cast %36 : vector<16x16x32xbf16> to vector<256x32xbf16>
    %c160 = arith.constant 160 : index
    %c0_31 = arith.constant 0 : index
    %38 = vector.load %arg2[%c160, %c0_31] : memref<288x32xbf16, #tpu.memory_space<vmem>>, vector<32x32xbf16>
    %cst_32 = arith.constant dense<0.000000e+00> : vector<256x32xf32>
    %39 = tpu.matmul %37, %38, %cst_32 {dimension_numbers = #tpu.dot_dimension_numbers<[1], [0], [0], [1], [0, 0, 1, 1], [], []>} : vector<256x32xbf16>, vector<32x32xbf16>, vector<256x32xf32> -> vector<256x32xf32>
    %40 = arith.addf %35, %39 : vector<256x32xf32>
    %c2_33 = arith.constant 2 : index
    %c0_34 = arith.constant 0 : index
    %c0_35 = arith.constant 0 : index
    %41 = vector.load %arg11[%c2_33, %c0_34, %c0_35] : memref<18x18x32xbf16, #tpu.memory_space<vmem>>, vector<16x16x32xbf16>
    %42 = vector.shape_cast %41 : vector<16x16x32xbf16> to vector<256x32xbf16>
    %c192 = arith.constant 192 : index
    %c0_36 = arith.constant 0 : index
    %43 = vector.load %arg2[%c192, %c0_36] : memref<288x32xbf16, #tpu.memory_space<vmem>>, vector<32x32xbf16>
    %cst_37 = arith.constant dense<0.000000e+00> : vector<256x32xf32>
    %44 = tpu.matmul %42, %43, %cst_37 {dimension_numbers = #tpu.dot_dimension_numbers<[1], [0], [0], [1], [0, 0, 1, 1], [], []>} : vector<256x32xbf16>, vector<32x32xbf16>, vector<256x32xf32> -> vector<256x32xf32>
    %45 = arith.addf %40, %44 : vector<256x32xf32>
    %c2_38 = arith.constant 2 : index
    %c1_39 = arith.constant 1 : index
    %c0_40 = arith.constant 0 : index
    %46 = vector.load %arg11[%c2_38, %c1_39, %c0_40] : memref<18x18x32xbf16, #tpu.memory_space<vmem>>, vector<16x16x32xbf16>
    %47 = vector.shape_cast %46 : vector<16x16x32xbf16> to vector<256x32xbf16>
    %c224 = arith.constant 224 : index
    %c0_41 = arith.constant 0 : index
    %48 = vector.load %arg2[%c224, %c0_41] : memref<288x32xbf16, #tpu.memory_space<vmem>>, vector<32x32xbf16>
    %cst_42 = arith.constant dense<0.000000e+00> : vector<256x32xf32>
    %49 = tpu.matmul %47, %48, %cst_42 {dimension_numbers = #tpu.dot_dimension_numbers<[1], [0], [0], [1], [0, 0, 1, 1], [], []>} : vector<256x32xbf16>, vector<32x32xbf16>, vector<256x32xf32> -> vector<256x32xf32>
    %50 = arith.addf %45, %49 : vector<256x32xf32>
    %c2_43 = arith.constant 2 : index
    %c2_44 = arith.constant 2 : index
    %c0_45 = arith.constant 0 : index
    %51 = vector.load %arg11[%c2_43, %c2_44, %c0_45] : memref<18x18x32xbf16, #tpu.memory_space<vmem>>, vector<16x16x32xbf16>
    %52 = vector.shape_cast %51 : vector<16x16x32xbf16> to vector<256x32xbf16>
    %c256 = arith.constant 256 : index
    %c0_46 = arith.constant 0 : index
    %53 = vector.load %arg2[%c256, %c0_46] : memref<288x32xbf16, #tpu.memory_space<vmem>>, vector<32x32xbf16>
    %cst_47 = arith.constant dense<0.000000e+00> : vector<256x32xf32>
    %54 = tpu.matmul %52, %53, %cst_47 {dimension_numbers = #tpu.dot_dimension_numbers<[1], [0], [0], [1], [0, 0, 1, 1], [], []>} : vector<256x32xbf16>, vector<32x32xbf16>, vector<256x32xf32> -> vector<256x32xf32>
    %55 = arith.addf %50, %54 : vector<256x32xf32>
    %c0_48 = arith.constant 0 : index
    %c0_49 = arith.constant 0 : index
    %56 = vector.load %arg3[%c0_48, %c0_49] : memref<1x32xf32, #tpu.memory_space<vmem>>, vector<1x32xf32>
    %57 = vector.broadcast %56 : vector<1x32xf32> to vector<256x32xf32>
    %58 = arith.addf %55, %57 : vector<256x32xf32>
    %c0_50 = arith.constant 0 : index
    %c0_51 = arith.constant 0 : index
    %59 = vector.load %arg4[%c0_50, %c0_51] : memref<1x32xf32, #tpu.memory_space<vmem>>, vector<1x32xf32>
    %c0_52 = arith.constant 0 : index
    %c0_53 = arith.constant 0 : index
    %60 = vector.load %arg5[%c0_52, %c0_53] : memref<1x32xf32, #tpu.memory_space<vmem>>, vector<1x32xf32>
    %cst_54 = arith.constant dense<0.000000e+00> : vector<32xf32>
    %61 = vector.multi_reduction <add>, %58, %cst_54 [0] : vector<256x32xf32> to vector<32xf32>
    %62 = vector.shape_cast %61 : vector<32xf32> to vector<1x32xf32>
    %cst_55 = arith.constant 2.560000e+02 : f32
    %63 = vector.broadcast %cst_55 : f32 to vector<1x32xf32>
    %64 = arith.divf %62, %63 : vector<1x32xf32>
    %65 = vector.broadcast %64 : vector<1x32xf32> to vector<256x32xf32>
    %66 = arith.subf %58, %65 : vector<256x32xf32>
    %67 = arith.mulf %66, %66 : vector<256x32xf32>
    %cst_56 = arith.constant dense<0.000000e+00> : vector<32xf32>
    %68 = vector.multi_reduction <add>, %67, %cst_56 [0] : vector<256x32xf32> to vector<32xf32>
    %69 = vector.shape_cast %68 : vector<32xf32> to vector<1x32xf32>
    %cst_57 = arith.constant 2.560000e+02 : f32
    %70 = vector.broadcast %cst_57 : f32 to vector<1x32xf32>
    %71 = arith.divf %69, %70 : vector<1x32xf32>
    %72 = vector.broadcast %64 : vector<1x32xf32> to vector<256x32xf32>
    %73 = arith.subf %58, %72 : vector<256x32xf32>
    %cst_58 = arith.constant 9.99999974E-6 : f32
    %74 = vector.broadcast %cst_58 : f32 to vector<1x32xf32>
    %75 = arith.addf %71, %74 : vector<1x32xf32>
    %76 = math.rsqrt %75 : vector<1x32xf32>
    %77 = vector.broadcast %76 : vector<1x32xf32> to vector<256x32xf32>
    %78 = arith.mulf %73, %77 : vector<256x32xf32>
    %79 = vector.broadcast %59 : vector<1x32xf32> to vector<256x32xf32>
    %80 = arith.mulf %78, %79 : vector<256x32xf32>
    %81 = vector.broadcast %60 : vector<1x32xf32> to vector<256x32xf32>
    %82 = arith.addf %80, %81 : vector<256x32xf32>
    %cst_59 = arith.constant 5.000000e-01 : f32
    %83 = vector.broadcast %cst_59 : f32 to vector<256x32xf32>
    %84 = arith.mulf %83, %82 : vector<256x32xf32>
    %cst_60 = arith.constant 0.707106769 : f32
    %85 = vector.broadcast %cst_60 : f32 to vector<256x32xf32>
    %86 = arith.mulf %82, %85 : vector<256x32xf32>
    %87 = math.erf %86 : vector<256x32xf32>
    %cst_61 = arith.constant 1.000000e+00 : f32
    %88 = vector.broadcast %cst_61 : f32 to vector<256x32xf32>
    %89 = arith.addf %88, %87 : vector<256x32xf32>
    %90 = arith.mulf %84, %89 : vector<256x32xf32>
    %91 = arith.truncf %90 : vector<256x32xf32> to vector<256x32xbf16>
    %92 = vector.shape_cast %91 : vector<256x32xbf16> to vector<16x16x32xbf16>
    %93 = vector.extract_strided_slice %92 {offsets = [1, 0, 0], sizes = [1, 16, 32], strides = [1, 1, 1]} : vector<16x16x32xbf16> to vector<1x16x32xbf16>
    %94 = vector.extract_strided_slice %92 {offsets = [14, 0, 0], sizes = [1, 16, 32], strides = [1, 1, 1]} : vector<16x16x32xbf16> to vector<1x16x32xbf16>
    %95 = tpu.concatenate %93, %92, %94 in 0 : vector<1x16x32xbf16>, vector<16x16x32xbf16>, vector<1x16x32xbf16> -> vector<18x16x32xbf16>
    %96 = vector.extract_strided_slice %95 {offsets = [0, 1, 0], sizes = [18, 1, 32], strides = [1, 1, 1]} : vector<18x16x32xbf16> to vector<18x1x32xbf16>
    %97 = vector.extract_strided_slice %95 {offsets = [0, 14, 0], sizes = [18, 1, 32], strides = [1, 1, 1]} : vector<18x16x32xbf16> to vector<18x1x32xbf16>
    %98 = tpu.concatenate %96, %95, %97 in 1 : vector<18x1x32xbf16>, vector<18x16x32xbf16>, vector<18x1x32xbf16> -> vector<18x18x32xbf16>
    %c0_62 = arith.constant 0 : index
    %c0_63 = arith.constant 0 : index
    %c0_64 = arith.constant 0 : index
    %99 = vector.load %arg12[%c0_62, %c0_63, %c0_64] : memref<18x18x32xbf16, #tpu.memory_space<vmem>>, vector<18x18x32xbf16>
    tpu.vector_store %arg12[%c0_62, %c0_63, %c0_64], %98 {strides = array<i32>} : memref<18x18x32xbf16, #tpu.memory_space<vmem>>, vector<18x18x32xbf16>,
    %c0_65 = arith.constant 0 : index
    %c0_66 = arith.constant 0 : index
    %c0_67 = arith.constant 0 : index
    %100 = vector.load %arg12[%c0_65, %c0_66, %c0_67] : memref<18x18x32xbf16, #tpu.memory_space<vmem>>, vector<16x16x32xbf16>
    %101 = vector.shape_cast %100 : vector<16x16x32xbf16> to vector<256x32xbf16>
    %c0_68 = arith.constant 0 : index
    %c0_69 = arith.constant 0 : index
    %102 = vector.load %arg6[%c0_68, %c0_69] : memref<288x32xbf16, #tpu.memory_space<vmem>>, vector<32x32xbf16>
    %cst_70 = arith.constant dense<0.000000e+00> : vector<256x32xf32>
    %103 = tpu.matmul %101, %102, %cst_70 {dimension_numbers = #tpu.dot_dimension_numbers<[1], [0], [0], [1], [0, 0, 1, 1], [], []>} : vector<256x32xbf16>, vector<32x32xbf16>, vector<256x32xf32> -> vector<256x32xf32>
    %c0_71 = arith.constant 0 : index
    %c1_72 = arith.constant 1 : index
    %c0_73 = arith.constant 0 : index
    %104 = vector.load %arg12[%c0_71, %c1_72, %c0_73] : memref<18x18x32xbf16, #tpu.memory_space<vmem>>, vector<16x16x32xbf16>
    %105 = vector.shape_cast %104 : vector<16x16x32xbf16> to vector<256x32xbf16>
    %c32_74 = arith.constant 32 : index
    %c0_75 = arith.constant 0 : index
    %106 = vector.load %arg6[%c32_74, %c0_75] : memref<288x32xbf16, #tpu.memory_space<vmem>>, vector<32x32xbf16>
    %cst_76 = arith.constant dense<0.000000e+00> : vector<256x32xf32>
    %107 = tpu.matmul %105, %106, %cst_76 {dimension_numbers = #tpu.dot_dimension_numbers<[1], [0], [0], [1], [0, 0, 1, 1], [], []>} : vector<256x32xbf16>, vector<32x32xbf16>, vector<256x32xf32> -> vector<256x32xf32>
    %108 = arith.addf %103, %107 : vector<256x32xf32>
    %c0_77 = arith.constant 0 : index
    %c2_78 = arith.constant 2 : index
    %c0_79 = arith.constant 0 : index
    %109 = vector.load %arg12[%c0_77, %c2_78, %c0_79] : memref<18x18x32xbf16, #tpu.memory_space<vmem>>, vector<16x16x32xbf16>
    %110 = vector.shape_cast %109 : vector<16x16x32xbf16> to vector<256x32xbf16>
    %c64_80 = arith.constant 64 : index
    %c0_81 = arith.constant 0 : index
    %111 = vector.load %arg6[%c64_80, %c0_81] : memref<288x32xbf16, #tpu.memory_space<vmem>>, vector<32x32xbf16>
    %cst_82 = arith.constant dense<0.000000e+00> : vector<256x32xf32>
    %112 = tpu.matmul %110, %111, %cst_82 {dimension_numbers = #tpu.dot_dimension_numbers<[1], [0], [0], [1], [0, 0, 1, 1], [], []>} : vector<256x32xbf16>, vector<32x32xbf16>, vector<256x32xf32> -> vector<256x32xf32>
    %113 = arith.addf %108, %112 : vector<256x32xf32>
    %c1_83 = arith.constant 1 : index
    %c0_84 = arith.constant 0 : index
    %c0_85 = arith.constant 0 : index
    %114 = vector.load %arg12[%c1_83, %c0_84, %c0_85] : memref<18x18x32xbf16, #tpu.memory_space<vmem>>, vector<16x16x32xbf16>
    %115 = vector.shape_cast %114 : vector<16x16x32xbf16> to vector<256x32xbf16>
    %c96_86 = arith.constant 96 : index
    %c0_87 = arith.constant 0 : index
    %116 = vector.load %arg6[%c96_86, %c0_87] : memref<288x32xbf16, #tpu.memory_space<vmem>>, vector<32x32xbf16>
    %cst_88 = arith.constant dense<0.000000e+00> : vector<256x32xf32>
    %117 = tpu.matmul %115, %116, %cst_88 {dimension_numbers = #tpu.dot_dimension_numbers<[1], [0], [0], [1], [0, 0, 1, 1], [], []>} : vector<256x32xbf16>, vector<32x32xbf16>, vector<256x32xf32> -> vector<256x32xf32>
    %118 = arith.addf %113, %117 : vector<256x32xf32>
    %c1_89 = arith.constant 1 : index
    %c1_90 = arith.constant 1 : index
    %c0_91 = arith.constant 0 : index
    %119 = vector.load %arg12[%c1_89, %c1_90, %c0_91] : memref<18x18x32xbf16, #tpu.memory_space<vmem>>, vector<16x16x32xbf16>
    %120 = vector.shape_cast %119 : vector<16x16x32xbf16> to vector<256x32xbf16>
    %c128_92 = arith.constant 128 : index
    %c0_93 = arith.constant 0 : index
    %121 = vector.load %arg6[%c128_92, %c0_93] : memref<288x32xbf16, #tpu.memory_space<vmem>>, vector<32x32xbf16>
    %cst_94 = arith.constant dense<0.000000e+00> : vector<256x32xf32>
    %122 = tpu.matmul %120, %121, %cst_94 {dimension_numbers = #tpu.dot_dimension_numbers<[1], [0], [0], [1], [0, 0, 1, 1], [], []>} : vector<256x32xbf16>, vector<32x32xbf16>, vector<256x32xf32> -> vector<256x32xf32>
    %123 = arith.addf %118, %122 : vector<256x32xf32>
    %c1_95 = arith.constant 1 : index
    %c2_96 = arith.constant 2 : index
    %c0_97 = arith.constant 0 : index
    %124 = vector.load %arg12[%c1_95, %c2_96, %c0_97] : memref<18x18x32xbf16, #tpu.memory_space<vmem>>, vector<16x16x32xbf16>
    %125 = vector.shape_cast %124 : vector<16x16x32xbf16> to vector<256x32xbf16>
    %c160_98 = arith.constant 160 : index
    %c0_99 = arith.constant 0 : index
    %126 = vector.load %arg6[%c160_98, %c0_99] : memref<288x32xbf16, #tpu.memory_space<vmem>>, vector<32x32xbf16>
    %cst_100 = arith.constant dense<0.000000e+00> : vector<256x32xf32>
    %127 = tpu.matmul %125, %126, %cst_100 {dimension_numbers = #tpu.dot_dimension_numbers<[1], [0], [0], [1], [0, 0, 1, 1], [], []>} : vector<256x32xbf16>, vector<32x32xbf16>, vector<256x32xf32> -> vector<256x32xf32>
    %128 = arith.addf %123, %127 : vector<256x32xf32>
    %c2_101 = arith.constant 2 : index
    %c0_102 = arith.constant 0 : index
    %c0_103 = arith.constant 0 : index
    %129 = vector.load %arg12[%c2_101, %c0_102, %c0_103] : memref<18x18x32xbf16, #tpu.memory_space<vmem>>, vector<16x16x32xbf16>
    %130 = vector.shape_cast %129 : vector<16x16x32xbf16> to vector<256x32xbf16>
    %c192_104 = arith.constant 192 : index
    %c0_105 = arith.constant 0 : index
    %131 = vector.load %arg6[%c192_104, %c0_105] : memref<288x32xbf16, #tpu.memory_space<vmem>>, vector<32x32xbf16>
    %cst_106 = arith.constant dense<0.000000e+00> : vector<256x32xf32>
    %132 = tpu.matmul %130, %131, %cst_106 {dimension_numbers = #tpu.dot_dimension_numbers<[1], [0], [0], [1], [0, 0, 1, 1], [], []>} : vector<256x32xbf16>, vector<32x32xbf16>, vector<256x32xf32> -> vector<256x32xf32>
    %133 = arith.addf %128, %132 : vector<256x32xf32>
    %c2_107 = arith.constant 2 : index
    %c1_108 = arith.constant 1 : index
    %c0_109 = arith.constant 0 : index
    %134 = vector.load %arg12[%c2_107, %c1_108, %c0_109] : memref<18x18x32xbf16, #tpu.memory_space<vmem>>, vector<16x16x32xbf16>
    %135 = vector.shape_cast %134 : vector<16x16x32xbf16> to vector<256x32xbf16>
    %c224_110 = arith.constant 224 : index
    %c0_111 = arith.constant 0 : index
    %136 = vector.load %arg6[%c224_110, %c0_111] : memref<288x32xbf16, #tpu.memory_space<vmem>>, vector<32x32xbf16>
    %cst_112 = arith.constant dense<0.000000e+00> : vector<256x32xf32>
    %137 = tpu.matmul %135, %136, %cst_112 {dimension_numbers = #tpu.dot_dimension_numbers<[1], [0], [0], [1], [0, 0, 1, 1], [], []>} : vector<256x32xbf16>, vector<32x32xbf16>, vector<256x32xf32> -> vector<256x32xf32>
    %138 = arith.addf %133, %137 : vector<256x32xf32>
    %c2_113 = arith.constant 2 : index
    %c2_114 = arith.constant 2 : index
    %c0_115 = arith.constant 0 : index
    %139 = vector.load %arg12[%c2_113, %c2_114, %c0_115] : memref<18x18x32xbf16, #tpu.memory_space<vmem>>, vector<16x16x32xbf16>
    %140 = vector.shape_cast %139 : vector<16x16x32xbf16> to vector<256x32xbf16>
    %c256_116 = arith.constant 256 : index
    %c0_117 = arith.constant 0 : index
    %141 = vector.load %arg6[%c256_116, %c0_117] : memref<288x32xbf16, #tpu.memory_space<vmem>>, vector<32x32xbf16>
    %cst_118 = arith.constant dense<0.000000e+00> : vector<256x32xf32>
    %142 = tpu.matmul %140, %141, %cst_118 {dimension_numbers = #tpu.dot_dimension_numbers<[1], [0], [0], [1], [0, 0, 1, 1], [], []>} : vector<256x32xbf16>, vector<32x32xbf16>, vector<256x32xf32> -> vector<256x32xf32>
    %143 = arith.addf %138, %142 : vector<256x32xf32>
    %c0_119 = arith.constant 0 : index
    %c0_120 = arith.constant 0 : index
    %144 = vector.load %arg7[%c0_119, %c0_120] : memref<1x32xf32, #tpu.memory_space<vmem>>, vector<1x32xf32>
    %145 = vector.broadcast %144 : vector<1x32xf32> to vector<256x32xf32>
    %146 = arith.addf %143, %145 : vector<256x32xf32>
    %c0_121 = arith.constant 0 : index
    %c0_122 = arith.constant 0 : index
    %147 = vector.load %arg8[%c0_121, %c0_122] : memref<1x32xf32, #tpu.memory_space<vmem>>, vector<1x32xf32>
    %c0_123 = arith.constant 0 : index
    %c0_124 = arith.constant 0 : index
    %148 = vector.load %arg9[%c0_123, %c0_124] : memref<1x32xf32, #tpu.memory_space<vmem>>, vector<1x32xf32>
    %cst_125 = arith.constant dense<0.000000e+00> : vector<32xf32>
    %149 = vector.multi_reduction <add>, %146, %cst_125 [0] : vector<256x32xf32> to vector<32xf32>
    %150 = vector.shape_cast %149 : vector<32xf32> to vector<1x32xf32>
    %cst_126 = arith.constant 2.560000e+02 : f32
    %151 = vector.broadcast %cst_126 : f32 to vector<1x32xf32>
    %152 = arith.divf %150, %151 : vector<1x32xf32>
    %153 = vector.broadcast %152 : vector<1x32xf32> to vector<256x32xf32>
    %154 = arith.subf %146, %153 : vector<256x32xf32>
    %155 = arith.mulf %154, %154 : vector<256x32xf32>
    %cst_127 = arith.constant dense<0.000000e+00> : vector<32xf32>
    %156 = vector.multi_reduction <add>, %155, %cst_127 [0] : vector<256x32xf32> to vector<32xf32>
    %157 = vector.shape_cast %156 : vector<32xf32> to vector<1x32xf32>
    %cst_128 = arith.constant 2.560000e+02 : f32
    %158 = vector.broadcast %cst_128 : f32 to vector<1x32xf32>
    %159 = arith.divf %157, %158 : vector<1x32xf32>
    %160 = vector.broadcast %152 : vector<1x32xf32> to vector<256x32xf32>
    %161 = arith.subf %146, %160 : vector<256x32xf32>
    %cst_129 = arith.constant 9.99999974E-6 : f32
    %162 = vector.broadcast %cst_129 : f32 to vector<1x32xf32>
    %163 = arith.addf %159, %162 : vector<1x32xf32>
    %164 = math.rsqrt %163 : vector<1x32xf32>
    %165 = vector.broadcast %164 : vector<1x32xf32> to vector<256x32xf32>
    %166 = arith.mulf %161, %165 : vector<256x32xf32>
    %167 = vector.broadcast %147 : vector<1x32xf32> to vector<256x32xf32>
    %168 = arith.mulf %166, %167 : vector<256x32xf32>
    %169 = vector.broadcast %148 : vector<1x32xf32> to vector<256x32xf32>
    %170 = arith.addf %168, %169 : vector<256x32xf32>
    %cst_130 = arith.constant 5.000000e-01 : f32
    %171 = vector.broadcast %cst_130 : f32 to vector<256x32xf32>
    %172 = arith.mulf %171, %170 : vector<256x32xf32>
    %cst_131 = arith.constant 0.707106769 : f32
    %173 = vector.broadcast %cst_131 : f32 to vector<256x32xf32>
    %174 = arith.mulf %170, %173 : vector<256x32xf32>
    %175 = math.erf %174 : vector<256x32xf32>
    %cst_132 = arith.constant 1.000000e+00 : f32
    %176 = vector.broadcast %cst_132 : f32 to vector<256x32xf32>
    %177 = arith.addf %176, %175 : vector<256x32xf32>
    %178 = arith.mulf %172, %177 : vector<256x32xf32>
    %179 = tpu.transpose %178, [1, 0] : vector<256x32xf32> -> vector<32x256xf32>
    %c0_133 = arith.constant 0 : index
    %c0_134 = arith.constant 0 : index
    %c0_135 = arith.constant 0 : index
    %180 = vector.load %arg10[%c0_133, %c0_134, %c0_135] : memref<1x32x256xf32, #tpu.memory_space<vmem>>, vector<1x32x256xf32>
    %181 = vector.shape_cast %180 : vector<1x32x256xf32> to vector<32x256xf32>
    %182 = vector.shape_cast %179 : vector<32x256xf32> to vector<1x32x256xf32>
    tpu.vector_store %arg10[%c0_133, %c0_134, %c0_135], %182 {strides = array<i32>} : memref<1x32x256xf32, #tpu.memory_space<vmem>>, vector<1x32x256xf32>,
    return
  }
  func.func @transform_0(%arg0: i32) -> (i32, i32, i32) {
    %c0_i32 = arith.constant 0 : i32
    %c0_i32_0 = arith.constant 0 : i32
    %c0_i32_1 = arith.constant 0 : i32
    return %arg0, %c0_i32, %c0_i32_0 : i32, i32, i32
  }
  func.func @transform_1(%arg0: i32) -> (i32, i32) {
    %c0_i32 = arith.constant 0 : i32
    %c0_i32_0 = arith.constant 0 : i32
    %c0_i32_1 = arith.constant 0 : i32
    return %c0_i32, %c0_i32_0 : i32, i32
  }
  func.func @transform_2(%arg0: i32) -> (i32, i32) {
    %c0_i32 = arith.constant 0 : i32
    %c0_i32_0 = arith.constant 0 : i32
    %c0_i32_1 = arith.constant 0 : i32
    return %c0_i32, %c0_i32_0 : i32, i32
  }
  func.func @transform_3(%arg0: i32) -> (i32, i32) {
    %c0_i32 = arith.constant 0 : i32
    %c0_i32_0 = arith.constant 0 : i32
    %c0_i32_1 = arith.constant 0 : i32
    return %c0_i32, %c0_i32_0 : i32, i32
  }
  func.func @transform_4(%arg0: i32) -> (i32, i32) {
    %c0_i32 = arith.constant 0 : i32
    %c0_i32_0 = arith.constant 0 : i32
    %c0_i32_1 = arith.constant 0 : i32
    return %c0_i32, %c0_i32_0 : i32, i32
  }
  func.func @transform_5(%arg0: i32) -> (i32, i32) {
    %c0_i32 = arith.constant 0 : i32
    %c0_i32_0 = arith.constant 0 : i32
    %c0_i32_1 = arith.constant 0 : i32
    return %c0_i32, %c0_i32_0 : i32, i32
  }
  func.func @transform_6(%arg0: i32) -> (i32, i32) {
    %c0_i32 = arith.constant 0 : i32
    %c0_i32_0 = arith.constant 0 : i32
    %c0_i32_1 = arith.constant 0 : i32
    return %c0_i32, %c0_i32_0 : i32, i32
  }
  func.func @transform_7(%arg0: i32) -> (i32, i32) {
    %c0_i32 = arith.constant 0 : i32
    %c0_i32_0 = arith.constant 0 : i32
    %c0_i32_1 = arith.constant 0 : i32
    return %c0_i32, %c0_i32_0 : i32, i32
  }
  func.func @transform_8(%arg0: i32) -> (i32, i32) {
    %c0_i32 = arith.constant 0 : i32
    %c0_i32_0 = arith.constant 0 : i32
    %c0_i32_1 = arith.constant 0 : i32
    return %c0_i32, %c0_i32_0 : i32, i32
  }
  func.func @transform_9(%arg0: i32) -> (i32, i32, i32) {
    %c0_i32 = arith.constant 0 : i32
    %c0_i32_0 = arith.constant 0 : i32
    %c0_i32_1 = arith.constant 0 : i32
    return %arg0, %c0_i32, %c0_i32_0 : i32, i32, i32
  }
}

</mosaic_0001>

<llo_original>
// kernel: decoder_block_forward.1
$region0: #{decoder_block_forward.1}
  #allocation0 [shape = 'u32[]', space=smem, size = 0x4, offset = 0x4, fixed_abs, tag = 'smem constant byte address 0x4 - core index']
  #allocation1 [shape = 'u32[144,128]{1,0:T(1,128)}', space=vmem, size = 0x12000, scoped, tag = 'internal scratch']
  #allocation2 [shape = 'bf16[18,18,32]{2,1,0:T(8,128)(2,1)}', space=vmem, size = 0x1b000, scoped, tag = 'scratch operand']
  #allocation3 [shape = 'bf16[18,18,32]{2,1,0:T(8,128)(2,1)}', space=vmem, size = 0x1b000, scoped, tag = 'scratch operand']
  %s0 = inlined_call_operand.vmem [shape: f32[2,32,256], index: 0, kind: input, shape index: {}]
  %s1 = inlined_call_operand.vmem [shape: bf16[288,32], index: 1, kind: input, shape index: {}]
  %s2 = inlined_call_operand.vmem [shape: f32[1,32], index: 2, kind: input, shape index: {}]
  %s3 = inlined_call_operand.vmem [shape: f32[1,32], index: 3, kind: input, shape index: {}]
  %s4 = inlined_call_operand.vmem [shape: f32[1,32], index: 4, kind: input, shape index: {}]
  %s5 = inlined_call_operand.vmem [shape: bf16[288,32], index: 5, kind: input, shape index: {}]
  %s6 = inlined_call_operand.vmem [shape: f32[1,32], index: 6, kind: input, shape index: {}]
  %s7 = inlined_call_operand.vmem [shape: f32[1,32], index: 7, kind: input, shape index: {}]
  %s8 = inlined_call_operand.vmem [shape: f32[1,32], index: 8, kind: input, shape index: {}]
  %s9 = inlined_call_operand.vmem [shape: f32[2,32,256], index: 9, kind: output, shape index: {}]
  %s10 = sld [smem:[#allocation0]]
  $region69: #{decoder_block_forward.1} parent=0
    _
  %s12 = ssub.s32 1, %s10
  %s13 = scalar_select 0, %s12, %s10
  loop: start=0, step=1, limit=4
  $region2: #{decoder_block_forward.1} parent=0 // loop_pre_header
    _
  $region3: #{decoder_block_forward.1} parent=0 // loop_header
    %s15 = sphi 0, %s19
    %p16 = scmp.ge.s32.totalorder %s15, 4
    %s25 = sphi 0, %s27
    %s28 = sphi 0, %s25
    %s29 = sphi 0, %s28
    %s45 = sphi 0, %s29
    %s49 = sphi 0, %s49
    %s51 = sphi 0, %s49
    %s52 = sphi 0, %s51
    %s66 = sphi 0, %s52
    %s70 = sphi 0, %s70
    %s72 = sphi 0, %s70
    %s73 = sphi 0, %s72
    %s87 = sphi 0, %s73
    %s91 = sphi 0, %s91
    %s93 = sphi 0, %s91
    %s94 = sphi 0, %s93
    %s108 = sphi 0, %s94
    %s112 = sphi 0, %s112
    %s114 = sphi 0, %s112
    %s115 = sphi 0, %s114
    %s129 = sphi 0, %s115
    %s133 = sphi 0, %s133
    %s135 = sphi 0, %s133
    %s136 = sphi 0, %s135
    %s150 = sphi 0, %s136
    %s154 = sphi 0, %s154
    %s156 = sphi 0, %s154
    %s157 = sphi 0, %s156
    %s171 = sphi 0, %s157
    %s175 = sphi 0, %s175
    %s177 = sphi 0, %s175
    %s178 = sphi 0, %s177
    %s192 = sphi 0, %s178
    %s196 = sphi 0, %s196
    %s198 = sphi 0, %s196
    %s199 = sphi 0, %s198
    %s213 = sphi 0, %s199
    %s219 = sphi 0, %s221
    %s222 = sphi 0, %s219
    %s223 = sphi 0, %s222
    %s239 = sphi 0, %s223
  $region4: #{decoder_block_forward.1} parent=0 // loop_header_branch
    %18 = sbr.rel (%p16) target = $region8
  $region5: #{decoder_block_forward.1} parent=0 // loop_body
    %s20 = ssub.s32 %s15, 1
    %s21 = ssub.s32 %s15, 2
    %s22 = sadd.s32 %s15, 1
    %s23 = ssub.s32 %s15, %s22
    %p24 = scmp.eq.s32.totalorder %s23, 0
    %s26 = sadd.s32 %s25, 1
    %s27 = scalar_select %p24, %s25, %s26
    %p30 = pneg %p24
    %p31 = scmp.eq.s32.totalorder %s15, 1
    %p32 = por %p30, %p31
    %p33 = scmp.ne.s32.totalorder %s25, %s28
    %p34 = scmp.eq.s32.totalorder %s15, 0
    %p35 = por %p33, %p34
    %p36 = scmp.ne.s32.totalorder %s25, %s28
    %p37 = scmp.eq.s32.totalorder %s20, 1
    %p38 = por %p36, %p37
    %p39 = scmp.ne.s32.totalorder %s28, %s29
    %p40 = scmp.eq.s32.totalorder %s20, 0
    %p41 = por %p39, %p40
    %p42 = scmp.ne.s32.totalorder %s28, %s29
    %p43 = scmp.eq.s32.totalorder %s21, 1
    %p44 = por %p42, %p43
    %p46 = scmp.ne.s32.totalorder %s29, %s45
    %p47 = scmp.eq.s32.totalorder %s21, 0
    %p48 = por %p46, %p47
    %s50 = sadd.s32 %s49, 1
    %p53 = scmp.eq.s32.totalorder %s15, 1
    %p54 = scmp.ne.s32.totalorder %s49, %s51
    %p55 = scmp.eq.s32.totalorder %s15, 0
    %p56 = por %p54, %p55
    %p57 = scmp.ne.s32.totalorder %s49, %s51
    %p58 = scmp.eq.s32.totalorder %s20, 1
    %p59 = por %p57, %p58
    %p60 = scmp.ne.s32.totalorder %s51, %s52
    %p61 = scmp.eq.s32.totalorder %s20, 0
    %p62 = por %p60, %p61
    %p63 = scmp.ne.s32.totalorder %s51, %s52
    %p64 = scmp.eq.s32.totalorder %s21, 1
    %p65 = por %p63, %p64
    %p67 = scmp.ne.s32.totalorder %s52, %s66
    %p68 = scmp.eq.s32.totalorder %s21, 0
    %p69 = por %p67, %p68
    %s71 = sadd.s32 %s70, 1
    %p74 = scmp.eq.s32.totalorder %s15, 1
    %p75 = scmp.ne.s32.totalorder %s70, %s72
    %p76 = scmp.eq.s32.totalorder %s15, 0
    %p77 = por %p75, %p76
    %p78 = scmp.ne.s32.totalorder %s70, %s72
    %p79 = scmp.eq.s32.totalorder %s20, 1
    %p80 = por %p78, %p79
    %p81 = scmp.ne.s32.totalorder %s72, %s73
    %p82 = scmp.eq.s32.totalorder %s20, 0
    %p83 = por %p81, %p82
    %p84 = scmp.ne.s32.totalorder %s72, %s73
    %p85 = scmp.eq.s32.totalorder %s21, 1
    %p86 = por %p84, %p85
    %p88 = scmp.ne.s32.totalorder %s73, %s87
    %p89 = scmp.eq.s32.totalorder %s21, 0
    %p90 = por %p88, %p89
    %s92 = sadd.s32 %s91, 1
    %p95 = scmp.eq.s32.totalorder %s15, 1
    %p96 = scmp.ne.s32.totalorder %s91, %s93
    %p97 = scmp.eq.s32.totalorder %s15, 0
    %p98 = por %p96, %p97
    %p99 = scmp.ne.s32.totalorder %s91, %s93
    %p100 = scmp.eq.s32.totalorder %s20, 1
    %p101 = por %p99, %p100
    %p102 = scmp.ne.s32.totalorder %s93, %s94
    %p103 = scmp.eq.s32.totalorder %s20, 0
    %p104 = por %p102, %p103
    %p105 = scmp.ne.s32.totalorder %s93, %s94
    %p106 = scmp.eq.s32.totalorder %s21, 1
    %p107 = por %p105, %p106
    %p109 = scmp.ne.s32.totalorder %s94, %s108
    %p110 = scmp.eq.s32.totalorder %s21, 0
    %p111 = por %p109, %p110
    %s113 = sadd.s32 %s112, 1
    %p116 = scmp.eq.s32.totalorder %s15, 1
    %p117 = scmp.ne.s32.totalorder %s112, %s114
    %p118 = scmp.eq.s32.totalorder %s15, 0
    %p119 = por %p117, %p118
    %p120 = scmp.ne.s32.totalorder %s112, %s114
    %p121 = scmp.eq.s32.totalorder %s20, 1
    %p122 = por %p120, %p121
    %p123 = scmp.ne.s32.totalorder %s114, %s115
    %p124 = scmp.eq.s32.totalorder %s20, 0
    %p125 = por %p123, %p124
    %p126 = scmp.ne.s32.totalorder %s114, %s115
    %p127 = scmp.eq.s32.totalorder %s21, 1
    %p128 = por %p126, %p127
    %p130 = scmp.ne.s32.totalorder %s115, %s129
    %p131 = scmp.eq.s32.totalorder %s21, 0
    %p132 = por %p130, %p131
    %s134 = sadd.s32 %s133, 1
    %p137 = scmp.eq.s32.totalorder %s15, 1
    %p138 = scmp.ne.s32.totalorder %s133, %s135
    %p139 = scmp.eq.s32.totalorder %s15, 0
    %p140 = por %p138, %p139
    %p141 = scmp.ne.s32.totalorder %s133, %s135
    %p142 = scmp.eq.s32.totalorder %s20, 1
    %p143 = por %p141, %p142
    %p144 = scmp.ne.s32.totalorder %s135, %s136
    %p145 = scmp.eq.s32.totalorder %s20, 0
    %p146 = por %p144, %p145
    %p147 = scmp.ne.s32.totalorder %s135, %s136
    %p148 = scmp.eq.s32.totalorder %s21, 1
    %p149 = por %p147, %p148
    %p151 = scmp.ne.s32.totalorder %s136, %s150
    %p152 = scmp.eq.s32.totalorder %s21, 0
    %p153 = por %p151, %p152
    %s155 = sadd.s32 %s154, 1
    %p158 = scmp.eq.s32.totalorder %s15, 1
    %p159 = scmp.ne.s32.totalorder %s154, %s156
    %p160 = scmp.eq.s32.totalorder %s15, 0
    %p161 = por %p159, %p160
    %p162 = scmp.ne.s32.totalorder %s154, %s156
    %p163 = scmp.eq.s32.totalorder %s20, 1
    %p164 = por %p162, %p163
    %p165 = scmp.ne.s32.totalorder %s156, %s157
    %p166 = scmp.eq.s32.totalorder %s20, 0
    %p167 = por %p165, %p166
    %p168 = scmp.ne.s32.totalorder %s156, %s157
    %p169 = scmp.eq.s32.totalorder %s21, 1
    %p170 = por %p168, %p169
    %p172 = scmp.ne.s32.totalorder %s157, %s171
    %p173 = scmp.eq.s32.totalorder %s21, 0
    %p174 = por %p172, %p173
    %s176 = sadd.s32 %s175, 1
    %p179 = scmp.eq.s32.totalorder %s15, 1
    %p180 = scmp.ne.s32.totalorder %s175, %s177
    %p181 = scmp.eq.s32.totalorder %s15, 0
    %p182 = por %p180, %p181
    %p183 = scmp.ne.s32.totalorder %s175, %s177
    %p184 = scmp.eq.s32.totalorder %s20, 1
    %p185 = por %p183, %p184
    %p186 = scmp.ne.s32.totalorder %s177, %s178
    %p187 = scmp.eq.s32.totalorder %s20, 0
    %p188 = por %p186, %p187
    %p189 = scmp.ne.s32.totalorder %s177, %s178
    %p190 = scmp.eq.s32.totalorder %s21, 1
    %p191 = por %p189, %p190
    %p193 = scmp.ne.s32.totalorder %s178, %s192
    %p194 = scmp.eq.s32.totalorder %s21, 0
    %p195 = por %p193, %p194
    %s197 = sadd.s32 %s196, 1
    %p200 = scmp.eq.s32.totalorder %s15, 1
    %p201 = scmp.ne.s32.totalorder %s196, %s198
    %p202 = scmp.eq.s32.totalorder %s15, 0
    %p203 = por %p201, %p202
    %p204 = scmp.ne.s32.totalorder %s196, %s198
    %p205 = scmp.eq.s32.totalorder %s20, 1
    %p206 = por %p204, %p205
    %p207 = scmp.ne.s32.totalorder %s198, %s199
    %p208 = scmp.eq.s32.totalorder %s20, 0
    %p209 = por %p207, %p208
    %p210 = scmp.ne.s32.totalorder %s198, %s199
    %p211 = scmp.eq.s32.totalorder %s21, 1
    %p212 = por %p210, %p211
    %p214 = scmp.ne.s32.totalorder %s199, %s213
    %p215 = scmp.eq.s32.totalorder %s21, 0
    %p216 = por %p214, %p215
    %s217 = ssub.s32 %s15, %s22
    %p218 = scmp.eq.s32.totalorder %s217, 0
    %s220 = sadd.s32 %s219, 1
    %s221 = scalar_select %p218, %s219, %s220
    %p224 = pneg %p218
    %p225 = scmp.eq.s32.totalorder %s15, 1
    %p226 = por %p224, %p225
    %p227 = scmp.ne.s32.totalorder %s219, %s222
    %p228 = scmp.eq.s32.totalorder %s15, 0
    %p229 = por %p227, %p228
    %p230 = scmp.ne.s32.totalorder %s219, %s222
    %p231 = scmp.eq.s32.totalorder %s20, 1
    %p232 = por %p230, %p231
    %p233 = scmp.ne.s32.totalorder %s222, %s223
    %p234 = scmp.eq.s32.totalorder %s20, 0
    %p235 = por %p233, %p234
    %p236 = scmp.ne.s32.totalorder %s222, %s223
    %p237 = scmp.eq.s32.totalorder %s21, 1
    %p238 = por %p236, %p237
    %p240 = scmp.ne.s32.totalorder %s223, %s239
    %p241 = scmp.eq.s32.totalorder %s21, 0
    %p242 = por %p240, %p241
    %p243 = scmp.le.s32.totalorder 1, %s15
    %p244 = scmp.lt.s32.totalorder %s15, 3
    %p245 = pnand %p243, %p244
    %p246 = pneg %p245
    // Predicated region
    $region9: #{decoder_block_forward.1} parent=5 // pred_check
      _
    $region10: #{decoder_block_forward.1} parent=5 // pred_check_branch
      %248 = sbr.rel (%p245) target = $region12
    $region11: #{decoder_block_forward.1} parent=5 // pred_region
      %s249 = ssub.s32 %s15, 1
      // Predicated region
      $region13: #{decoder_block_forward.1} parent=11 // pred_check
        %p250 = pneg %p62
      $region14: #{decoder_block_forward.1} parent=11 // pred_check_branch
        %252 = sbr.rel (%p250) target = $region16
      $region15: #{decoder_block_forward.1} parent=11 // pred_region
        _
      $region16: #{decoder_block_forward.1} parent=11 // pred_fallthru
        _
      // Predicated region
      $region17: #{decoder_block_forward.1} parent=11 // pred_check
        %p253 = pneg %p83
      $region18: #{decoder_block_forward.1} parent=11 // pred_check_branch
        %255 = sbr.rel (%p253) target = $region20
      $region19: #{decoder_block_forward.1} parent=11 // pred_region
        _
      $region20: #{decoder_block_forward.1} parent=11 // pred_fallthru
        _
      // Predicated region
      $region21: #{decoder_block_forward.1} parent=11 // pred_check
        %p256 = pneg %p104
      $region22: #{decoder_block_forward.1} parent=11 // pred_check_branch
        %258 = sbr.rel (%p256) target = $region24
      $region23: #{decoder_block_forward.1} parent=11 // pred_region
        _
      $region24: #{decoder_block_forward.1} parent=11 // pred_fallthru
        _
      // Predicated region
      $region25: #{decoder_block_forward.1} parent=11 // pred_check
        %p259 = pneg %p125
      $region26: #{decoder_block_forward.1} parent=11 // pred_check_branch
        %261 = sbr.rel (%p259) target = $region28
      $region27: #{decoder_block_forward.1} parent=11 // pred_region
        _
      $region28: #{decoder_block_forward.1} parent=11 // pred_fallthru
        _
      // Predicated region
      $region29: #{decoder_block_forward.1} parent=11 // pred_check
        %p262 = pneg %p146
      $region30: #{decoder_block_forward.1} parent=11 // pred_check_branch
        %264 = sbr.rel (%p262) target = $region32
      $region31: #{decoder_block_forward.1} parent=11 // pred_region
        _
      $region32: #{decoder_block_forward.1} parent=11 // pred_fallthru
        _
      // Predicated region
      $region33: #{decoder_block_forward.1} parent=11 // pred_check
        %p265 = pneg %p167
      $region34: #{decoder_block_forward.1} parent=11 // pred_check_branch
        %267 = sbr.rel (%p265) target = $region36
      $region35: #{decoder_block_forward.1} parent=11 // pred_region
        _
      $region36: #{decoder_block_forward.1} parent=11 // pred_fallthru
        _
      // Predicated region
      $region37: #{decoder_block_forward.1} parent=11 // pred_check
        %p268 = pneg %p188
      $region38: #{decoder_block_forward.1} parent=11 // pred_check_branch
        %270 = sbr.rel (%p268) target = $region40
      $region39: #{decoder_block_forward.1} parent=11 // pred_region
        _
      $region40: #{decoder_block_forward.1} parent=11 // pred_fallthru
        _
      // Predicated region
      $region41: #{decoder_block_forward.1} parent=11 // pred_check
        %p271 = pneg %p209
      $region42: #{decoder_block_forward.1} parent=11 // pred_check_branch
        %273 = sbr.rel (%p271) target = $region44
      $region43: #{decoder_block_forward.1} parent=11 // pred_region
        _
      $region44: #{decoder_block_forward.1} parent=11 // pred_fallthru
        _
    $region12: #{decoder_block_forward.1} parent=5 // pred_fallthru
      _
    %p274 = scmp.lt.s32.totalorder %s15, 2
    // Predicated region
    $region45: #{decoder_block_forward.1} parent=5 // pred_check
      %p275 = pneg %p274
    $region46: #{decoder_block_forward.1} parent=5 // pred_check_branch
      %277 = sbr.rel (%p275) target = $region48
    $region47: #{decoder_block_forward.1} parent=5 // pred_region
      // Predicated region
      $region49: #{decoder_block_forward.1} parent=47 // pred_check
        %p278 = pneg %p35
      $region50: #{decoder_block_forward.1} parent=47 // pred_check_branch
        %280 = sbr.rel (%p278) target = $region52
      $region51: #{decoder_block_forward.1} parent=47 // pred_region
        %p281 = scmp.lt.s32.totalorder %s15, 1
        %s282 = scalar_select %p281, %s15, 1
        %s283 = smul.addr %s282, 8
        %s284 = smul.addr %s283, 8
        %s285 = scalar_lea.vmem %s0, %s284
      $region52: #{decoder_block_forward.1} parent=47 // pred_fallthru
        _
    $region48: #{decoder_block_forward.1} parent=5 // pred_fallthru
      _
    %p286 = scmp.le.s32.totalorder 1, %s15
    %p287 = scmp.lt.s32.totalorder %s15, 3
    %p288 = pnand %p286, %p287
    %p289 = pneg %p288
    // Predicated region
    $region53: #{decoder_block_forward.1} parent=5 // pred_check
      _
    $region54: #{decoder_block_forward.1} parent=5 // pred_check_branch
      %291 = sbr.rel (%p288) target = $region56
    $region55: #{decoder_block_forward.1} parent=5 // pred_region
      %s292 = ssub.s32 %s15, 1
      %p293 = scmp.lt.s32.totalorder %s20, 1
      %s294 = scalar_select %p293, %s20, 1
      %s295 = smul.addr %s294, 8
      %s296 = smul.addr %s295, 8
      %s297 = scalar_lea.vmem %s0, %s296
      %p298 = pneg %p41
      %p299 = pneg %p38
      %p300 = pneg %p62
      %p301 = pneg %p59
      %p302 = pneg %p83
      %p303 = pneg %p80
      %p304 = pneg %p104
      %p305 = pneg %p101
      %p306 = pneg %p125
      %p307 = pneg %p122
      %p308 = pneg %p146
      %p309 = pneg %p143
      %p310 = pneg %p167
      %p311 = pneg %p164
      %p312 = pneg %p188
      %p313 = pneg %p185
      %p314 = pneg %p209
      %p315 = pneg %p206
      %p316 = pneg %p235
      %p317 = pneg %p232
      %p318 = scmp.lt.s32.totalorder %s20, 1
      %s319 = scalar_select %p318, %s20, 1
      %s320 = smul.addr %s319, 8
      %s321 = smul.addr %s320, 8
      %s322 = scalar_lea.vmem %s9, %s321
      %p323 = scmp.lt.s32.totalorder %s20, 1
      %s324 = scalar_select %p323, %s20, 1
      %s325 = smul.addr %s324, 8
      %s326 = smul.addr %s325, 8
      %s327 = scalar_lea.vmem %s0, %s326
      %p328 = scmp.lt.s32.totalorder %s20, 1
      %s329 = scalar_select %p328, %s20, 1
      %s330 = smul.addr %s329, 8
      %s331 = smul.addr %s330, 8
      %s332 = scalar_lea.vmem %s9, %s331
      %v334 = vld [vmem:[%s327] sm:$0xff]
      %v335 = vld [vmem:[%s327 + $0x8] sm:$0xff]
      %v336 = vld [vmem:[%s327 + $0x10] sm:$0xff]
      %v337 = vld [vmem:[%s327 + $0x18] sm:$0xff]
      %v338 = vld [vmem:[%s327 + $0x20] sm:$0xff]
      %v339 = vld [vmem:[%s327 + $0x28] sm:$0xff]
      %v340 = vld [vmem:[%s327 + $0x30] sm:$0xff]
      %v341 = vld [vmem:[%s327 + $0x38] sm:$0xff]
      %342 = vxpose.xlu0.b32.start [1/16] %v334, 128
      %343 = vxpose.xlu0.b32.cont [2/16] %v336, 128
      %344 = vxpose.xlu0.b32.cont [3/16] %v338, 128
      %345 = vxpose.xlu0.b32.cont [4/16] %v340, 128
      %346 = vxpose.xlu0.b32.cont [5/16] 0.0, 128
      %347 = vxpose.xlu0.b32.cont [6/16] 0.0, 128
      %348 = vxpose.xlu0.b32.cont [7/16] 0.0, 128
      %349 = vxpose.xlu0.b32.cont [8/16] 0.0, 128
      %350 = vxpose.xlu0.b32.cont [9/16] 0.0, 128
      %351 = vxpose.xlu0.b32.cont [10/16] 0.0, 128
      %352 = vxpose.xlu0.b32.cont [11/16] 0.0, 128
      %353 = vxpose.xlu0.b32.cont [12/16] 0.0, 128
      %354 = vxpose.xlu0.b32.cont [13/16] 0.0, 128
      %355 = vxpose.xlu0.b32.cont [14/16] 0.0, 128
      %356 = vxpose.xlu0.b32.cont [15/16] 0.0, 128
      %357 = vxpose.xlu0.b32.end [16/16] 0.0, 128
      %v358 = vpop.trf.xlu0
      %v359 = vpop.trf.xlu0
      %v360 = vpop.trf.xlu0
      %v361 = vpop.trf.xlu0
      %v362 = vpop.trf.xlu0
      %v363 = vpop.trf.xlu0
      %v364 = vpop.trf.xlu0
      %v365 = vpop.trf.xlu0
      %v366 = vpop.trf.xlu0
      %v367 = vpop.trf.xlu0
      %v368 = vpop.trf.xlu0
      %v369 = vpop.trf.xlu0
      %v370 = vpop.trf.xlu0
      %v371 = vpop.trf.xlu0
      %v372 = vpop.trf.xlu0
      %v373 = vpop.trf.xlu0
      %374 = vxpose.xlu0.b32.start [1/16] %v335, 128
      %375 = vxpose.xlu0.b32.cont [2/16] %v337, 128
      %376 = vxpose.xlu0.b32.cont [3/16] %v339, 128
      %377 = vxpose.xlu0.b32.cont [4/16] %v341, 128
      %378 = vxpose.xlu0.b32.cont [5/16] 0.0, 128
      %379 = vxpose.xlu0.b32.cont [6/16] 0.0, 128
      %380 = vxpose.xlu0.b32.cont [7/16] 0.0, 128
      %381 = vxpose.xlu0.b32.cont [8/16] 0.0, 128
      %382 = vxpose.xlu0.b32.cont [9/16] 0.0, 128
      %383 = vxpose.xlu0.b32.cont [10/16] 0.0, 128
      %384 = vxpose.xlu0.b32.cont [11/16] 0.0, 128
      %385 = vxpose.xlu0.b32.cont [12/16] 0.0, 128
      %386 = vxpose.xlu0.b32.cont [13/16] 0.0, 128
      %387 = vxpose.xlu0.b32.cont [14/16] 0.0, 128
      %388 = vxpose.xlu0.b32.cont [15/16] 0.0, 128
      %389 = vxpose.xlu0.b32.end [16/16] 0.0, 128
      %v390 = vpop.trf.xlu0
      %v391 = vpop.trf.xlu0
      %v392 = vpop.trf.xlu0
      %v393 = vpop.trf.xlu0
      %v394 = vpop.trf.xlu0
      %v395 = vpop.trf.xlu0
      %v396 = vpop.trf.xlu0
      %v397 = vpop.trf.xlu0
      %v398 = vpop.trf.xlu0
      %v399 = vpop.trf.xlu0
      %v400 = vpop.trf.xlu0
      %v401 = vpop.trf.xlu0
      %v402 = vpop.trf.xlu0
      %v403 = vpop.trf.xlu0
      %v404 = vpop.trf.xlu0
      %v405 = vpop.trf.xlu0
      %v406 = vpack.c.bf16 %v359, %v358
      %v407 = vpack.c.bf16 %v361, %v360
      %v408 = vpack.c.bf16 %v363, %v362
      %v409 = vpack.c.bf16 %v365, %v364
      %v410 = vpack.c.bf16 %v367, %v366
      %v411 = vpack.c.bf16 %v369, %v368
      %v412 = vpack.c.bf16 %v371, %v370
      %v413 = vpack.c.bf16 %v373, %v372
      %v414 = vpack.c.bf16 %v391, %v390
      %v415 = vpack.c.bf16 %v393, %v392
      %v416 = vpack.c.bf16 %v395, %v394
      %v417 = vpack.c.bf16 %v397, %v396
      %v418 = vpack.c.bf16 %v399, %v398
      %v419 = vpack.c.bf16 %v401, %v400
      %v420 = vpack.c.bf16 %v403, %v402
      %v421 = vpack.c.bf16 %v405, %v404
      %v423 = vshrl.u32 %v407, 16
      %v426 = vshrl.u32 %v406, 16
      %v429 = vshrl.u32 %v408, 16
      %v432 = vshrl.u32 %v409, 16
      %v435 = vshrl.u32 %v410, 16
      %v438 = vshrl.u32 %v411, 16
      %v441 = vshrl.u32 %v412, 16
      %v444 = vshrl.u32 %v413, 16
      %v447 = vshrl.u32 %v414, 16
      %v450 = vshrl.u32 %v415, 16
      %v453 = vshrl.u32 %v416, 16
      %v456 = vshrl.u32 %v417, 16
      %v459 = vshrl.u32 %v418, 16
      %v462 = vshrl.u32 %v419, 16
      %v465 = vshrl.u32 %v420, 16
      %v468 = vshrl.u32 %v421, 16
      %v486 = vrot.slane %v423, 7
      %v487 = vshll.u32 %v407, 16
      %v489 = vor.u32 %v486, %v487
      %v490 = vrot.slane %v426, 7
      %v491 = vshll.u32 %v406, 16
      %v493 = vor.u32 %v490, %v491
      %v494 = vrot.slane %v429, 7
      %v495 = vshll.u32 %v408, 16
      %v497 = vor.u32 %v494, %v495
      %v498 = vrot.slane %v432, 7
      %v499 = vshll.u32 %v409, 16
      %v501 = vor.u32 %v498, %v499
      %v502 = vrot.slane %v435, 7
      %v503 = vshll.u32 %v410, 16
      %v505 = vor.u32 %v502, %v503
      %v506 = vrot.slane %v438, 7
      %v507 = vshll.u32 %v411, 16
      %v509 = vor.u32 %v506, %v507
      %v510 = vrot.slane %v441, 7
      %v511 = vshll.u32 %v412, 16
      %v513 = vor.u32 %v510, %v511
      %v514 = vrot.slane %v444, 7
      %v515 = vshll.u32 %v413, 16
      %v517 = vor.u32 %v514, %v515
      %v518 = vrot.slane %v447, 7
      %v519 = vshll.u32 %v414, 16
      %v521 = vor.u32 %v518, %v519
      %v522 = vrot.slane %v450, 7
      %v523 = vshll.u32 %v415, 16
      %v525 = vor.u32 %v522, %v523
      %v526 = vrot.slane %v453, 7
      %v527 = vshll.u32 %v416, 16
      %v529 = vor.u32 %v526, %v527
      %v530 = vrot.slane %v456, 7
      %v531 = vshll.u32 %v417, 16
      %v533 = vor.u32 %v530, %v531
      %v534 = vrot.slane %v459, 7
      %v535 = vshll.u32 %v418, 16
      %v537 = vor.u32 %v534, %v535
      %v538 = vrot.slane %v462, 7
      %v539 = vshll.u32 %v419, 16
      %v541 = vor.u32 %v538, %v539
      %v542 = vrot.slane %v465, 7
      %v543 = vshll.u32 %v420, 16
      %v545 = vor.u32 %v542, %v543
      %v546 = vrot.slane %v468, 7
      %v547 = vshll.u32 %v421, 16
      %v549 = vor.u32 %v546, %v547
      %v582 = vrot.slane %v487, 7
      %v583 = vrot.slane %v491, 7
      %v584 = vrot.slane %v495, 7
      %v585 = vrot.slane %v499, 7
      %v586 = vrot.slane %v503, 7
      %v587 = vrot.slane %v507, 7
      %v588 = vrot.slane %v511, 7
      %v589 = vrot.slane %v515, 7
      %v590 = vrot.slane %v519, 7
      %v591 = vrot.slane %v523, 7
      %v592 = vrot.slane %v527, 7
      %v593 = vrot.slane %v531, 7
      %v594 = vrot.slane %v535, 7
      %v595 = vrot.slane %v539, 7
      %v596 = vrot.slane %v543, 7
      %v597 = vrot.slane %v547, 7
      %vm614 = vcmask 1040384
      %vm615 = vsmask.f32 256
      %vm616 = vmand %vm614, %vm615
      %v617 = vsel %vm616, %v423, %v489
      %v618 = vsel %vm616, %v426, %v493
      %v619 = vsel %vm616, %v429, %v497
      %v620 = vsel %vm616, %v432, %v501
      %v621 = vsel %vm616, %v435, %v505
      %v622 = vsel %vm616, %v438, %v509
      %v623 = vsel %vm616, %v441, %v513
      %v624 = vsel %vm616, %v444, %v517
      %v625 = vsel %vm616, %v447, %v521
      %v626 = vsel %vm616, %v450, %v525
      %v627 = vsel %vm616, %v453, %v529
      %v628 = vsel %vm616, %v456, %v533
      %v629 = vsel %vm616, %v459, %v537
      %v630 = vsel %vm616, %v462, %v541
      %v631 = vsel %vm616, %v465, %v545
      %v632 = vsel %vm616, %v468, %v549
      %v633 = vsel %vm616, %v486, %v582
      %v634 = vsel %vm616, %v490, %v583
      %v635 = vsel %vm616, %v494, %v584
      %v636 = vsel %vm616, %v498, %v585
      %v637 = vsel %vm616, %v502, %v586
      %v638 = vsel %vm616, %v506, %v587
      %v639 = vsel %vm616, %v510, %v588
      %v640 = vsel %vm616, %v514, %v589
      %v641 = vsel %vm616, %v518, %v590
      %v642 = vsel %vm616, %v522, %v591
      %v643 = vsel %vm616, %v526, %v592
      %v644 = vsel %vm616, %v530, %v593
      %v645 = vsel %vm616, %v534, %v594
      %v646 = vsel %vm616, %v538, %v595
      %v647 = vsel %vm616, %v542, %v596
      %v648 = vsel %vm616, %v546, %v597
      %v681 = vunpack.c.l.b16 %v617
      %v682 = vunpack.c.h.b16 %v617
      %v683 = vunpack.c.l.b16 %v633
      %v684 = vunpack.c.l.b16 %v618
      %v685 = vunpack.c.h.b16 %v618
      %v686 = vunpack.c.l.b16 %v634
      %v687 = vunpack.c.l.b16 %v619
      %v688 = vunpack.c.h.b16 %v619
      %v689 = vunpack.c.l.b16 %v635
      %v690 = vunpack.c.l.b16 %v620
      %v691 = vunpack.c.h.b16 %v620
      %v692 = vunpack.c.l.b16 %v636
      %v693 = vunpack.c.l.b16 %v621
      %v694 = vunpack.c.h.b16 %v621
      %v695 = vunpack.c.l.b16 %v637
      %v696 = vunpack.c.l.b16 %v622
      %v697 = vunpack.c.h.b16 %v622
      %v698 = vunpack.c.l.b16 %v638
      %v699 = vunpack.c.l.b16 %v623
      %v700 = vunpack.c.h.b16 %v623
      %v701 = vunpack.c.l.b16 %v639
      %v702 = vunpack.c.l.b16 %v624
      %v703 = vunpack.c.h.b16 %v624
      %v704 = vunpack.c.l.b16 %v640
      %v705 = vunpack.c.l.b16 %v625
      %v706 = vunpack.c.h.b16 %v625
      %v707 = vunpack.c.l.b16 %v641
      %v708 = vunpack.c.l.b16 %v626
      %v709 = vunpack.c.h.b16 %v626
      %v710 = vunpack.c.l.b16 %v642
      %v711 = vunpack.c.l.b16 %v627
      %v712 = vunpack.c.h.b16 %v627
      %v713 = vunpack.c.l.b16 %v643
      %v714 = vunpack.c.l.b16 %v628
      %v715 = vunpack.c.h.b16 %v628
      %v716 = vunpack.c.l.b16 %v644
      %v717 = vunpack.c.l.b16 %v629
      %v718 = vunpack.c.h.b16 %v629
      %v719 = vunpack.c.l.b16 %v645
      %v720 = vunpack.c.l.b16 %v630
      %v721 = vunpack.c.h.b16 %v630
      %v722 = vunpack.c.l.b16 %v646
      %v723 = vunpack.c.l.b16 %v631
      %v724 = vunpack.c.h.b16 %v631
      %v725 = vunpack.c.l.b16 %v647
      %v726 = vunpack.c.l.b16 %v632
      %v727 = vunpack.c.h.b16 %v632
      %v728 = vunpack.c.l.b16 %v648
      %v729 = vpack.c.b16 %v681, %v681
      %v730 = vpack.c.b16 %v682, %v682
      %v731 = vpack.c.b16 %v683, %v683
      %v732 = vpack.c.b16 %v684, %v684
      %v733 = vpack.c.b16 %v685, %v685
      %v734 = vpack.c.b16 %v686, %v686
      %v735 = vpack.c.b16 %v687, %v687
      %v736 = vpack.c.b16 %v688, %v688
      %v737 = vpack.c.b16 %v689, %v689
      %v738 = vpack.c.b16 %v690, %v690
      %v739 = vpack.c.b16 %v691, %v691
      %v740 = vpack.c.b16 %v692, %v692
      %v741 = vpack.c.b16 %v693, %v693
      %v742 = vpack.c.b16 %v694, %v694
      %v743 = vpack.c.b16 %v695, %v695
      %v744 = vpack.c.b16 %v696, %v696
      %v745 = vpack.c.b16 %v697, %v697
      %v746 = vpack.c.b16 %v698, %v698
      %v747 = vpack.c.b16 %v699, %v699
      %v748 = vpack.c.b16 %v700, %v700
      %v749 = vpack.c.b16 %v701, %v701
      %v750 = vpack.c.b16 %v702, %v702
      %v751 = vpack.c.b16 %v703, %v703
      %v752 = vpack.c.b16 %v704, %v704
      %v753 = vpack.c.b16 %v705, %v705
      %v754 = vpack.c.b16 %v706, %v706
      %v755 = vpack.c.b16 %v707, %v707
      %v756 = vpack.c.b16 %v708, %v708
      %v757 = vpack.c.b16 %v709, %v709
      %v758 = vpack.c.b16 %v710, %v710
      %v759 = vpack.c.b16 %v711, %v711
      %v760 = vpack.c.b16 %v712, %v712
      %v761 = vpack.c.b16 %v713, %v713
      %v762 = vpack.c.b16 %v714, %v714
      %v763 = vpack.c.b16 %v715, %v715
      %v764 = vpack.c.b16 %v716, %v716
      %v765 = vpack.c.b16 %v717, %v717
      %v766 = vpack.c.b16 %v718, %v718
      %v767 = vpack.c.b16 %v719, %v719
      %v768 = vpack.c.b16 %v720, %v720
      %v769 = vpack.c.b16 %v721, %v721
      %v770 = vpack.c.b16 %v722, %v722
      %v771 = vpack.c.b16 %v723, %v723
      %v772 = vpack.c.b16 %v724, %v724
      %v773 = vpack.c.b16 %v725, %v725
      %v774 = vpack.c.b16 %v726, %v726
      %v775 = vpack.c.b16 %v727, %v727
      %v776 = vpack.c.b16 %v728, %v728
      %vm825 = vcmask 257024
      %826 = vst.msk [vmem:[#allocation2] sm:$0xf] %vm825, %v729
      %827 = vst.msk [vmem:[#allocation2 + $0x4] sm:$0xf] %vm825, %v730
      %vm828 = vcmask 253952
      %829 = vst.msk [vmem:[#allocation2 + $0x8] sm:$0x1] %vm828, %v731
      %830 = vst.msk [vmem:[#allocation2 + $0xc] sm:$0xf] %vm825, %v732
      %831 = vst.msk [vmem:[#allocation2 + $0x10] sm:$0xf] %vm825, %v733
      %832 = vst.msk [vmem:[#allocation2 + $0x14] sm:$0x1] %vm828, %v734
      %833 = vst.msk [vmem:[#allocation2 + $0x18] sm:$0xf] %vm825, %v729
      %834 = vst.msk [vmem:[#allocation2 + $0x1c] sm:$0xf] %vm825, %v730
      %835 = vst.msk [vmem:[#allocation2 + $0x20] sm:$0x1] %vm828, %v731
      %836 = vst.msk [vmem:[#allocation2 + $0x24] sm:$0xf] %vm825, %v735
      %837 = vst.msk [vmem:[#allocation2 + $0x28] sm:$0xf] %vm825, %v736
      %838 = vst.msk [vmem:[#allocation2 + $0x2c] sm:$0x1] %vm828, %v737
      %839 = vst.msk [vmem:[#allocation2 + $0x30] sm:$0xf] %vm825, %v738
      %840 = vst.msk [vmem:[#allocation2 + $0x34] sm:$0xf] %vm825, %v739
      %841 = vst.msk [vmem:[#allocation2 + $0x38] sm:$0x1] %vm828, %v740
      %842 = vst.msk [vmem:[#allocation2 + $0x3c] sm:$0xf] %vm825, %v741
      %843 = vst.msk [vmem:[#allocation2 + $0x40] sm:$0xf] %vm825, %v742
      %844 = vst.msk [vmem:[#allocation2 + $0x44] sm:$0x1] %vm828, %v743
      %845 = vst.msk [vmem:[#allocation2 + $0x48] sm:$0xf] %vm825, %v744
      %846 = vst.msk [vmem:[#allocation2 + $0x4c] sm:$0xf] %vm825, %v745
      %847 = vst.msk [vmem:[#allocation2 + $0x50] sm:$0x1] %vm828, %v746
      %848 = vst.msk [vmem:[#allocation2 + $0x54] sm:$0xf] %vm825, %v747
      %849 = vst.msk [vmem:[#allocation2 + $0x58] sm:$0xf] %vm825, %v748
      %850 = vst.msk [vmem:[#allocation2 + $0x5c] sm:$0x1] %vm828, %v749
      %851 = vst.msk [vmem:[#allocation2 + $0x60] sm:$0xf] %vm825, %v750
      %852 = vst.msk [vmem:[#allocation2 + $0x64] sm:$0xf] %vm825, %v751
      %853 = vst.msk [vmem:[#allocation2 + $0x68] sm:$0x1] %vm828, %v752
      %854 = vst.msk [vmem:[#allocation2 + $0x6c] sm:$0xf] %vm825, %v753
      %855 = vst.msk [vmem:[#allocation2 + $0x70] sm:$0xf] %vm825, %v754
      %856 = vst.msk [vmem:[#allocation2 + $0x74] sm:$0x1] %vm828, %v755
      %857 = vst.msk [vmem:[#allocation2 + $0x78] sm:$0xf] %vm825, %v756
      %858 = vst.msk [vmem:[#allocation2 + $0x7c] sm:$0xf] %vm825, %v757
      %859 = vst.msk [vmem:[#allocation2 + $0x80] sm:$0x1] %vm828, %v758
      %860 = vst.msk [vmem:[#allocation2 + $0x84] sm:$0xf] %vm825, %v759
      %861 = vst.msk [vmem:[#allocation2 + $0x88] sm:$0xf] %vm825, %v760
      %862 = vst.msk [vmem:[#allocation2 + $0x8c] sm:$0x1] %vm828, %v761
      %863 = vst.msk [vmem:[#allocation2 + $0x90] sm:$0xf] %vm825, %v762
      %864 = vst.msk [vmem:[#allocation2 + $0x94] sm:$0xf] %vm825, %v763
      %865 = vst.msk [vmem:[#allocation2 + $0x98] sm:$0x1] %vm828, %v764
      %866 = vst.msk [vmem:[#allocation2 + $0x9c] sm:$0xf] %vm825, %v765
      %867 = vst.msk [vmem:[#allocation2 + $0xa0] sm:$0xf] %vm825, %v766
      %868 = vst.msk [vmem:[#allocation2 + $0xa4] sm:$0x1] %vm828, %v767
      %869 = vst.msk [vmem:[#allocation2 + $0xa8] sm:$0xf] %vm825, %v768
      %870 = vst.msk [vmem:[#allocation2 + $0xac] sm:$0xf] %vm825, %v769
      %871 = vst.msk [vmem:[#allocation2 + $0xb0] sm:$0x1] %vm828, %v770
      %872 = vst.msk [vmem:[#allocation2 + $0xb4] sm:$0xf] %vm825, %v771
      %873 = vst.msk [vmem:[#allocation2 + $0xb8] sm:$0xf] %vm825, %v772
      %874 = vst.msk [vmem:[#allocation2 + $0xbc] sm:$0x1] %vm828, %v773
      %875 = vst.msk [vmem:[#allocation2 + $0xc0] sm:$0xf] %vm825, %v774
      %876 = vst.msk [vmem:[#allocation2 + $0xc4] sm:$0xf] %vm825, %v775
      %877 = vst.msk [vmem:[#allocation2 + $0xc8] sm:$0x1] %vm828, %v776
      %878 = vst.msk [vmem:[#allocation2 + $0xcc] sm:$0xf] %vm825, %v771
      %879 = vst.msk [vmem:[#allocation2 + $0xd0] sm:$0xf] %vm825, %v772
      %880 = vst.msk [vmem:[#allocation2 + $0xd4] sm:$0x1] %vm828, %v773
      %v881 = vld [vmem:[#allocation2] sm:$0xf]
      %v882 = vld [vmem:[#allocation2 + $0x4] sm:$0xf]
      %v883 = vld [vmem:[#allocation2 + $0xc] sm:$0xf]
      %v884 = vld [vmem:[#allocation2 + $0x10] sm:$0xf]
      %v885 = vld [vmem:[#allocation2 + $0x18] sm:$0xf]
      %v886 = vld [vmem:[#allocation2 + $0x1c] sm:$0xf]
      %v887 = vld [vmem:[#allocation2 + $0x24] sm:$0xf]
      %v888 = vld [vmem:[#allocation2 + $0x28] sm:$0xf]
      %v889 = vld [vmem:[#allocation2 + $0x30] sm:$0xf]
      %v890 = vld [vmem:[#allocation2 + $0x34] sm:$0xf]
      %v891 = vld [vmem:[#allocation2 + $0x3c] sm:$0xf]
      %v892 = vld [vmem:[#allocation2 + $0x40] sm:$0xf]
      %v893 = vld [vmem:[#allocation2 + $0x48] sm:$0xf]
      %v894 = vld [vmem:[#allocation2 + $0x4c] sm:$0xf]
      %v895 = vld [vmem:[#allocation2 + $0x54] sm:$0xf]
      %v896 = vld [vmem:[#allocation2 + $0x58] sm:$0xf]
      %v897 = vld [vmem:[#allocation2 + $0x60] sm:$0xf]
      %v898 = vld [vmem:[#allocation2 + $0x64] sm:$0xf]
      %v899 = vld [vmem:[#allocation2 + $0x6c] sm:$0xf]
      %v900 = vld [vmem:[#allocation2 + $0x70] sm:$0xf]
      %v901 = vld [vmem:[#allocation2 + $0x78] sm:$0xf]
      %v902 = vld [vmem:[#allocation2 + $0x7c] sm:$0xf]
      %v903 = vld [vmem:[#allocation2 + $0x84] sm:$0xf]
      %v904 = vld [vmem:[#allocation2 + $0x88] sm:$0xf]
      %v905 = vld [vmem:[#allocation2 + $0x90] sm:$0xf]
      %v906 = vld [vmem:[#allocation2 + $0x94] sm:$0xf]
      %v907 = vld [vmem:[#allocation2 + $0x9c] sm:$0xf]
      %v908 = vld [vmem:[#allocation2 + $0xa0] sm:$0xf]
      %v909 = vld [vmem:[#allocation2 + $0xa8] sm:$0xf]
      %v910 = vld [vmem:[#allocation2 + $0xac] sm:$0xf]
      %v911 = vld [vmem:[#allocation2 + $0xb4] sm:$0xf]
      %v912 = vld [vmem:[#allocation2 + $0xb8] sm:$0xf]
      %v913 = vld [vmem:[%s1] sm:$0xf]
      %v914 = vld [vmem:[%s1 + $0x4] sm:$0xf]
      %v915 = vld [vmem:[%s1 + $0x8] sm:$0xf]
      %v916 = vld [vmem:[%s1 + $0xc] sm:$0xf]
      %v917 = vld [vmem:[#allocation2 + $0x8] sm:$0x1]
      %v918 = vld [vmem:[#allocation2 + $0x14] sm:$0x1]
      %v919 = vld [vmem:[#allocation2 + $0x20] sm:$0x1]
      %v920 = vld [vmem:[#allocation2 + $0x2c] sm:$0x1]
      %v921 = vld [vmem:[#allocation2 + $0x38] sm:$0x1]
      %v922 = vld [vmem:[#allocation2 + $0x44] sm:$0x1]
      %v923 = vld [vmem:[#allocation2 + $0x50] sm:$0x1]
      %v924 = vld [vmem:[#allocation2 + $0x5c] sm:$0x1]
      %v925 = vld [vmem:[#allocation2 + $0x68] sm:$0x1]
      %v926 = vld [vmem:[#allocation2 + $0x74] sm:$0x1]
      %v927 = vld [vmem:[#allocation2 + $0x80] sm:$0x1]
      %v928 = vld [vmem:[#allocation2 + $0x8c] sm:$0x1]
      %v929 = vld [vmem:[#allocation2 + $0x98] sm:$0x1]
      %v930 = vld [vmem:[#allocation2 + $0xa4] sm:$0x1]
      %v931 = vld [vmem:[#allocation2 + $0xb0] sm:$0x1]
      %v932 = vld [vmem:[#allocation2 + $0xbc] sm:$0x1]
      %vm933 = vsmask.f32 3328
      %vm934 = vsmask.f32 7440
      %vm935 = vmor %vm933, %vm934
      %v937 = vshrl.u32 %v881, 16
      %v939 = vrot.slane %v937, 4
      %v940 = vshll.u32 %v881, 16
      %v942 = vrot.slane %v940, 5
      %v943 = vor.u32 %v939, %v942
      %v944 = vrot.slane %v943, 4
      %v946 = vshll.u32 %v882, 16
      %v948 = vrot.slane %v946, 5
      %v949 = vsel %vm935, %v944, %v948
      %v950 = vshrl.u32 %v882, 16
      %v952 = vrot.slane %v950, 4
      %v953 = vor.u32 %v952, %v948
      %v954 = vrot.slane %v953, 4
      %v956 = vshll.u32 %v917, 16
      %v958 = vrot.slane %v956, 5
      %v959 = vsel %vm935, %v954, %v958
      %v961 = vshrl.u32 %v883, 16
      %v963 = vrot.slane %v961, 4
      %v964 = vshll.u32 %v883, 16
      %v966 = vrot.slane %v964, 5
      %v967 = vor.u32 %v963, %v966
      %v968 = vrot.slane %v967, 4
      %v970 = vshll.u32 %v884, 16
      %v972 = vrot.slane %v970, 5
      %v973 = vsel %vm935, %v968, %v972
      %v974 = vshrl.u32 %v884, 16
      %v976 = vrot.slane %v974, 4
      %v977 = vor.u32 %v976, %v972
      %v978 = vrot.slane %v977, 4
      %v980 = vshll.u32 %v918, 16
      %v982 = vrot.slane %v980, 5
      %v983 = vsel %vm935, %v978, %v982
      %v985 = vshrl.u32 %v885, 16
      %v987 = vrot.slane %v985, 4
      %v988 = vshll.u32 %v885, 16
      %v990 = vrot.slane %v988, 5
      %v991 = vor.u32 %v987, %v990
      %v992 = vrot.slane %v991, 4
      %v994 = vshll.u32 %v886, 16
      %v996 = vrot.slane %v994, 5
      %v997 = vsel %vm935, %v992, %v996
      %v998 = vshrl.u32 %v886, 16
      %v1000 = vrot.slane %v998, 4
      %v1001 = vor.u32 %v1000, %v996
      %v1002 = vrot.slane %v1001, 4
      %v1004 = vshll.u32 %v919, 16
      %v1006 = vrot.slane %v1004, 5
      %v1007 = vsel %vm935, %v1002, %v1006
      %v1009 = vshrl.u32 %v887, 16
      %v1011 = vrot.slane %v1009, 4
      %v1012 = vshll.u32 %v887, 16
      %v1014 = vrot.slane %v1012, 5
      %v1015 = vor.u32 %v1011, %v1014
      %v1016 = vrot.slane %v1015, 4
      %v1018 = vshll.u32 %v888, 16
      %v1020 = vrot.slane %v1018, 5
      %v1021 = vsel %vm935, %v1016, %v1020
      %v1022 = vshrl.u32 %v888, 16
      %v1024 = vrot.slane %v1022, 4
      %v1025 = vor.u32 %v1024, %v1020
      %v1026 = vrot.slane %v1025, 4
      %v1028 = vshll.u32 %v920, 16
      %v1030 = vrot.slane %v1028, 5
      %v1031 = vsel %vm935, %v1026, %v1030
      %v1033 = vshrl.u32 %v889, 16
      %v1035 = vrot.slane %v1033, 4
      %v1036 = vshll.u32 %v889, 16
      %v1038 = vrot.slane %v1036, 5
      %v1039 = vor.u32 %v1035, %v1038
      %v1040 = vrot.slane %v1039, 4
      %v1042 = vshll.u32 %v890, 16
      %v1044 = vrot.slane %v1042, 5
      %v1045 = vsel %vm935, %v1040, %v1044
      %v1046 = vshrl.u32 %v890, 16
      %v1048 = vrot.slane %v1046, 4
      %v1049 = vor.u32 %v1048, %v1044
      %v1050 = vrot.slane %v1049, 4
      %v1052 = vshll.u32 %v921, 16
      %v1054 = vrot.slane %v1052, 5
      %v1055 = vsel %vm935, %v1050, %v1054
      %v1057 = vshrl.u32 %v891, 16
      %v1059 = vrot.slane %v1057, 4
      %v1060 = vshll.u32 %v891, 16
      %v1062 = vrot.slane %v1060, 5
      %v1063 = vor.u32 %v1059, %v1062
      %v1064 = vrot.slane %v1063, 4
      %v1066 = vshll.u32 %v892, 16
      %v1068 = vrot.slane %v1066, 5
      %v1069 = vsel %vm935, %v1064, %v1068
      %v1070 = vshrl.u32 %v892, 16
      %v1072 = vrot.slane %v1070, 4
      %v1073 = vor.u32 %v1072, %v1068
      %v1074 = vrot.slane %v1073, 4
      %v1076 = vshll.u32 %v922, 16
      %v1078 = vrot.slane %v1076, 5
      %v1079 = vsel %vm935, %v1074, %v1078
      %v1081 = vshrl.u32 %v893, 16
      %v1083 = vrot.slane %v1081, 4
      %v1084 = vshll.u32 %v893, 16
      %v1086 = vrot.slane %v1084, 5
      %v1087 = vor.u32 %v1083, %v1086
      %v1088 = vrot.slane %v1087, 4
      %v1090 = vshll.u32 %v894, 16
      %v1092 = vrot.slane %v1090, 5
      %v1093 = vsel %vm935, %v1088, %v1092
      %v1094 = vshrl.u32 %v894, 16
      %v1096 = vrot.slane %v1094, 4
      %v1097 = vor.u32 %v1096, %v1092
      %v1098 = vrot.slane %v1097, 4
      %v1100 = vshll.u32 %v923, 16
      %v1102 = vrot.slane %v1100, 5
      %v1103 = vsel %vm935, %v1098, %v1102
      %v1105 = vshrl.u32 %v895, 16
      %v1107 = vrot.slane %v1105, 4
      %v1108 = vshll.u32 %v895, 16
      %v1110 = vrot.slane %v1108, 5
      %v1111 = vor.u32 %v1107, %v1110
      %v1112 = vrot.slane %v1111, 4
      %v1114 = vshll.u32 %v896, 16
      %v1116 = vrot.slane %v1114, 5
      %v1117 = vsel %vm935, %v1112, %v1116
      %v1118 = vshrl.u32 %v896, 16
      %v1120 = vrot.slane %v1118, 4
      %v1121 = vor.u32 %v1120, %v1116
      %v1122 = vrot.slane %v1121, 4
      %v1124 = vshll.u32 %v924, 16
      %v1126 = vrot.slane %v1124, 5
      %v1127 = vsel %vm935, %v1122, %v1126
      %v1129 = vshrl.u32 %v897, 16
      %v1131 = vrot.slane %v1129, 4
      %v1132 = vshll.u32 %v897, 16
      %v1134 = vrot.slane %v1132, 5
      %v1135 = vor.u32 %v1131, %v1134
      %v1136 = vrot.slane %v1135, 4
      %v1138 = vshll.u32 %v898, 16
      %v1140 = vrot.slane %v1138, 5
      %v1141 = vsel %vm935, %v1136, %v1140
      %v1142 = vshrl.u32 %v898, 16
      %v1144 = vrot.slane %v1142, 4
      %v1145 = vor.u32 %v1144, %v1140
      %v1146 = vrot.slane %v1145, 4
      %v1148 = vshll.u32 %v925, 16
      %v1150 = vrot.slane %v1148, 5
      %v1151 = vsel %vm935, %v1146, %v1150
      %v1153 = vshrl.u32 %v899, 16
      %v1155 = vrot.slane %v1153, 4
      %v1156 = vshll.u32 %v899, 16
      %v1158 = vrot.slane %v1156, 5
      %v1159 = vor.u32 %v1155, %v1158
      %v1160 = vrot.slane %v1159, 4
      %v1162 = vshll.u32 %v900, 16
      %v1164 = vrot.slane %v1162, 5
      %v1165 = vsel %vm935, %v1160, %v1164
      %v1166 = vshrl.u32 %v900, 16
      %v1168 = vrot.slane %v1166, 4
      %v1169 = vor.u32 %v1168, %v1164
      %v1170 = vrot.slane %v1169, 4
      %v1172 = vshll.u32 %v926, 16
      %v1174 = vrot.slane %v1172, 5
      %v1175 = vsel %vm935, %v1170, %v1174
      %v1177 = vshrl.u32 %v901, 16
      %v1179 = vrot.slane %v1177, 4
      %v1180 = vshll.u32 %v901, 16
      %v1182 = vrot.slane %v1180, 5
      %v1183 = vor.u32 %v1179, %v1182
      %v1184 = vrot.slane %v1183, 4
      %v1186 = vshll.u32 %v902, 16
      %v1188 = vrot.slane %v1186, 5
      %v1189 = vsel %vm935, %v1184, %v1188
      %v1190 = vshrl.u32 %v902, 16
      %v1192 = vrot.slane %v1190, 4
      %v1193 = vor.u32 %v1192, %v1188
      %v1194 = vrot.slane %v1193, 4
      %v1196 = vshll.u32 %v927, 16
      %v1198 = vrot.slane %v1196, 5
      %v1199 = vsel %vm935, %v1194, %v1198
      %v1201 = vshrl.u32 %v903, 16
      %v1203 = vrot.slane %v1201, 4
      %v1204 = vshll.u32 %v903, 16
      %v1206 = vrot.slane %v1204, 5
      %v1207 = vor.u32 %v1203, %v1206
      %v1208 = vrot.slane %v1207, 4
      %v1210 = vshll.u32 %v904, 16
      %v1212 = vrot.slane %v1210, 5
      %v1213 = vsel %vm935, %v1208, %v1212
      %v1214 = vshrl.u32 %v904, 16
      %v1216 = vrot.slane %v1214, 4
      %v1217 = vor.u32 %v1216, %v1212
      %v1218 = vrot.slane %v1217, 4
      %v1220 = vshll.u32 %v928, 16
      %v1222 = vrot.slane %v1220, 5
      %v1223 = vsel %vm935, %v1218, %v1222
      %v1225 = vshrl.u32 %v905, 16
      %v1227 = vrot.slane %v1225, 4
      %v1228 = vshll.u32 %v905, 16
      %v1230 = vrot.slane %v1228, 5
      %v1231 = vor.u32 %v1227, %v1230
      %v1232 = vrot.slane %v1231, 4
      %v1234 = vshll.u32 %v906, 16
      %v1236 = vrot.slane %v1234, 5
      %v1237 = vsel %vm935, %v1232, %v1236
      %v1238 = vshrl.u32 %v906, 16
      %v1240 = vrot.slane %v1238, 4
      %v1241 = vor.u32 %v1240, %v1236
      %v1242 = vrot.slane %v1241, 4
      %v1244 = vshll.u32 %v929, 16
      %v1246 = vrot.slane %v1244, 5
      %v1247 = vsel %vm935, %v1242, %v1246
      %v1249 = vshrl.u32 %v907, 16
      %v1251 = vrot.slane %v1249, 4
      %v1252 = vshll.u32 %v907, 16
      %v1254 = vrot.slane %v1252, 5
      %v1255 = vor.u32 %v1251, %v1254
      %v1256 = vrot.slane %v1255, 4
      %v1258 = vshll.u32 %v908, 16
      %v1260 = vrot.slane %v1258, 5
      %v1261 = vsel %vm935, %v1256, %v1260
      %v1262 = vshrl.u32 %v908, 16
      %v1264 = vrot.slane %v1262, 4
      %v1265 = vor.u32 %v1264, %v1260
      %v1266 = vrot.slane %v1265, 4
      %v1268 = vshll.u32 %v930, 16
      %v1270 = vrot.slane %v1268, 5
      %v1271 = vsel %vm935, %v1266, %v1270
      %v1273 = vshrl.u32 %v909, 16
      %v1275 = vrot.slane %v1273, 4
      %v1276 = vshll.u32 %v909, 16
      %v1278 = vrot.slane %v1276, 5
      %v1279 = vor.u32 %v1275, %v1278
      %v1280 = vrot.slane %v1279, 4
      %v1282 = vshll.u32 %v910, 16
      %v1284 = vrot.slane %v1282, 5
      %v1285 = vsel %vm935, %v1280, %v1284
      %v1286 = vshrl.u32 %v910, 16
      %v1288 = vrot.slane %v1286, 4
      %v1289 = vor.u32 %v1288, %v1284
      %v1290 = vrot.slane %v1289, 4
      %v1292 = vshll.u32 %v931, 16
      %v1294 = vrot.slane %v1292, 5
      %v1295 = vsel %vm935, %v1290, %v1294
      %v1297 = vshrl.u32 %v911, 16
      %v1299 = vrot.slane %v1297, 4
      %v1300 = vshll.u32 %v911, 16
      %v1302 = vrot.slane %v1300, 5
      %v1303 = vor.u32 %v1299, %v1302
      %v1304 = vrot.slane %v1303, 4
      %v1306 = vshll.u32 %v912, 16
      %v1308 = vrot.slane %v1306, 5
      %v1309 = vsel %vm935, %v1304, %v1308
      %v1310 = vshrl.u32 %v912, 16
      %v1312 = vrot.slane %v1310, 4
      %v1313 = vor.u32 %v1312, %v1308
      %v1314 = vrot.slane %v1313, 4
      %v1316 = vshll.u32 %v932, 16
      %v1318 = vrot.slane %v1316, 5
      %v1319 = vsel %vm935, %v1314, %v1318
      %v1320 = vld [vmem:[%s1 + $0x10] sm:$0xf]
      %v1321 = vld [vmem:[%s1 + $0x14] sm:$0xf]
      %v1322 = vld [vmem:[%s1 + $0x18] sm:$0xf]
      %v1323 = vld [vmem:[%s1 + $0x1c] sm:$0xf]
      %v1324 = vunpack.c.l.b16 %v949
      %v1325 = vunpack.c.l.b16 %v959
      %v1326 = vunpack.c.l.b16 %v973
      %v1327 = vunpack.c.l.b16 %v983
      %v1328 = vunpack.c.l.b16 %v997
      %v1329 = vunpack.c.l.b16 %v1007
      %v1330 = vunpack.c.l.b16 %v1021
      %v1331 = vunpack.c.l.b16 %v1031
      %v1332 = vunpack.c.l.b16 %v1045
      %v1333 = vunpack.c.l.b16 %v1055
      %v1334 = vunpack.c.l.b16 %v1069
      %v1335 = vunpack.c.l.b16 %v1079
      %v1336 = vunpack.c.l.b16 %v1093
      %v1337 = vunpack.c.l.b16 %v1103
      %v1338 = vunpack.c.l.b16 %v1117
      %v1339 = vunpack.c.l.b16 %v1127
      %v1340 = vunpack.c.l.b16 %v1141
      %v1341 = vunpack.c.l.b16 %v1151
      %v1342 = vunpack.c.l.b16 %v1165
      %v1343 = vunpack.c.l.b16 %v1175
      %v1344 = vunpack.c.l.b16 %v1189
      %v1345 = vunpack.c.l.b16 %v1199
      %v1346 = vunpack.c.l.b16 %v1213
      %v1347 = vunpack.c.l.b16 %v1223
      %v1348 = vunpack.c.l.b16 %v1237
      %v1349 = vunpack.c.l.b16 %v1247
      %v1350 = vunpack.c.l.b16 %v1261
      %v1351 = vunpack.c.l.b16 %v1271
      %v1352 = vunpack.c.l.b16 %v1285
      %v1353 = vunpack.c.l.b16 %v1295
      %v1354 = vunpack.c.l.b16 %v1309
      %v1355 = vunpack.c.l.b16 %v1319
      %v1356 = vpack.c.b16 %v1325, %v1324
      %v1357 = vpack.c.b16 %v1327, %v1326
      %v1358 = vpack.c.b16 %v1329, %v1328
      %v1359 = vpack.c.b16 %v1331, %v1330
      %v1360 = vpack.c.b16 %v1333, %v1332
      %v1361 = vpack.c.b16 %v1335, %v1334
      %v1362 = vpack.c.b16 %v1337, %v1336
      %v1363 = vpack.c.b16 %v1339, %v1338
      %v1364 = vpack.c.b16 %v1341, %v1340
      %v1365 = vpack.c.b16 %v1343, %v1342
      %v1366 = vpack.c.b16 %v1345, %v1344
      %v1367 = vpack.c.b16 %v1347, %v1346
      %v1368 = vpack.c.b16 %v1349, %v1348
      %v1369 = vpack.c.b16 %v1351, %v1350
      %v1370 = vpack.c.b16 %v1353, %v1352
      %v1371 = vpack.c.b16 %v1355, %v1354
      %v1376 = vunpack.c.l.b16 %v1320
      %v1377 = vunpack.c.l.b16 %v1321
      %v1378 = vunpack.c.l.b16 %v1322
      %v1379 = vunpack.c.l.b16 %v1323
      %v1380 = vpack.c.b16 %v1377, %v1376
      %v1381 = vpack.c.b16 %v1379, %v1378
      %vm1384 = vcmask 261120
      %v1386 = vsel %vm1384, %v1356, 0
      %v1389 = vsel %vm1384, %v1357, 0
      %v1392 = vsel %vm1384, %v1358, 0
      %v1395 = vsel %vm1384, %v1359, 0
      %v1398 = vsel %vm1384, %v1360, 0
      %v1401 = vsel %vm1384, %v1361, 0
      %v1404 = vsel %vm1384, %v1362, 0
      %v1407 = vsel %vm1384, %v1363, 0
      %v1410 = vsel %vm1384, %v1364, 0
      %v1413 = vsel %vm1384, %v1365, 0
      %v1416 = vsel %vm1384, %v1366, 0
      %v1419 = vsel %vm1384, %v1367, 0
      %v1422 = vsel %vm1384, %v1368, 0
      %v1425 = vsel %vm1384, %v1369, 0
      %v1428 = vsel %vm1384, %v1370, 0
      %v1431 = vsel %vm1384, %v1371, 0
      %1433 = vmatprep.subr.bf16.mxu0 0
      %1434 = vmatpush1.bf16.msra.mxu0 %v1380
      %1435 = vmatprep.subr.bf16.mxu0 0
      %1436 = vmatpush1.bf16.msra.mxu0 %v1381
      %1437 = vmatprep.subr.bf16.mxu0 0
      %1438 = vmatpush1.bf16.msra.mxu0 0
      %1439 = vmatprep.subr.bf16.mxu0 0
      %1440 = vmatpush1.bf16.msra.mxu0 0
      %1441 = vmatprep.subr.bf16.mxu0 0
      %1442 = vmatpush1.bf16.msra.mxu0 0
      %1443 = vmatprep.subr.bf16.mxu0 0
      %1444 = vmatpush1.bf16.msra.mxu0 0
      %1445 = vmatprep.subr.bf16.mxu0 0
      %1446 = vmatpush1.bf16.msra.mxu0 0
      %1447 = vmatprep.subr.bf16.mxu0 0
      %1448 = vmatpush1.bf16.msra.mxu0 0
      %1449 = vmatprep.subr.bf16.mxu0 0
      %1450 = vmatpush1.bf16.msra.mxu0 0
      %1451 = vmatprep.subr.bf16.mxu0 0
      %1452 = vmatpush1.bf16.msra.mxu0 0
      %1453 = vmatprep.subr.bf16.mxu0 0
      %1454 = vmatpush1.bf16.msra.mxu0 0
      %1455 = vmatprep.subr.bf16.mxu0 0
      %1456 = vmatpush1.bf16.msra.mxu0 0
      %1457 = vmatprep.subr.bf16.mxu0 0
      %1458 = vmatpush1.bf16.msra.mxu0 0
      %1459 = vmatprep.subr.bf16.mxu0 0
      %1460 = vmatpush1.bf16.msra.mxu0 0
      %1461 = vmatprep.subr.bf16.mxu0 0
      %1462 = vmatpush1.bf16.msra.mxu0 0
      %1463 = vmatprep.subr.bf16.mxu0 0
      %1464 = vmatpush1.bf16.msra.mxu0 0
      %1465 = vmatprep.mubr.bf16.mxu0 0
      %1466 = vmatmul.mubr.bf16.gmra.mrb[0].mxu0 %v1386
      %v1467 = vpop.f32.mrb[0].mxu0
      %v1468 = vadd.f32 0.0, %v1467
      %v1469 = vpop.f32.mrb[0].mxu0
      %v1470 = vpop.f32.mrb[0].mxu0
      %v1471 = vadd.f32 0.0, %v1470
      %v1472 = vpop.f32.mrb[0].mxu0
      %1473 = vmatprep.mubr.bf16.mxu0 0
      %1474 = vmatmul.mubr.bf16.gmra.mrb[0].mxu0 %v1389
      %v1475 = vpop.f32.mrb[0].mxu0
      %v1476 = vadd.f32 0.0, %v1475
      %v1477 = vpop.f32.mrb[0].mxu0
      %v1478 = vpop.f32.mrb[0].mxu0
      %v1479 = vadd.f32 0.0, %v1478
      %v1480 = vpop.f32.mrb[0].mxu0
      %1481 = vmatprep.mubr.bf16.mxu0 0
      %1482 = vmatmul.mubr.bf16.gmra.mrb[0].mxu0 %v1392
      %v1483 = vpop.f32.mrb[0].mxu0
      %v1484 = vadd.f32 0.0, %v1483
      %v1485 = vpop.f32.mrb[0].mxu0
      %v1486 = vpop.f32.mrb[0].mxu0
      %v1487 = vadd.f32 0.0, %v1486
      %v1488 = vpop.f32.mrb[0].mxu0
      %1489 = vmatprep.mubr.bf16.mxu0 0
      %1490 = vmatmul.mubr.bf16.gmra.mrb[0].mxu0 %v1395
      %v1491 = vpop.f32.mrb[0].mxu0
      %v1492 = vadd.f32 0.0, %v1491
      %v1493 = vpop.f32.mrb[0].mxu0
      %v1494 = vpop.f32.mrb[0].mxu0
      %v1495 = vadd.f32 0.0, %v1494
      %v1496 = vpop.f32.mrb[0].mxu0
      %1497 = vmatprep.mubr.bf16.mxu0 0
      %1498 = vmatmul.mubr.bf16.gmra.mrb[0].mxu0 %v1398
      %v1499 = vpop.f32.mrb[0].mxu0
      %v1500 = vadd.f32 0.0, %v1499
      %v1501 = vpop.f32.mrb[0].mxu0
      %v1502 = vpop.f32.mrb[0].mxu0
      %v1503 = vadd.f32 0.0, %v1502
      %v1504 = vpop.f32.mrb[0].mxu0
      %1505 = vmatprep.mubr.bf16.mxu0 0
      %1506 = vmatmul.mubr.bf16.gmra.mrb[0].mxu0 %v1401
      %v1507 = vpop.f32.mrb[0].mxu0
      %v1508 = vadd.f32 0.0, %v1507
      %v1509 = vpop.f32.mrb[0].mxu0
      %v1510 = vpop.f32.mrb[0].mxu0
      %v1511 = vadd.f32 0.0, %v1510
      %v1512 = vpop.f32.mrb[0].mxu0
      %1513 = vmatprep.mubr.bf16.mxu0 0
      %1514 = vmatmul.mubr.bf16.gmra.mrb[0].mxu0 %v1404
      %v1515 = vpop.f32.mrb[0].mxu0
      %v1516 = vadd.f32 0.0, %v1515
      %v1517 = vpop.f32.mrb[0].mxu0
      %v1518 = vpop.f32.mrb[0].mxu0
      %v1519 = vadd.f32 0.0, %v1518
      %v1520 = vpop.f32.mrb[0].mxu0
      %1521 = vmatprep.mubr.bf16.mxu0 0
      %1522 = vmatmul.mubr.bf16.gmra.mrb[0].mxu0 %v1407
      %v1523 = vpop.f32.mrb[0].mxu0
      %v1524 = vadd.f32 0.0, %v1523
      %v1525 = vpop.f32.mrb[0].mxu0
      %v1526 = vpop.f32.mrb[0].mxu0
      %v1527 = vadd.f32 0.0, %v1526
      %v1528 = vpop.f32.mrb[0].mxu0
      %1529 = vmatprep.mubr.bf16.mxu0 0
      %1530 = vmatmul.mubr.bf16.gmra.mrb[0].mxu0 %v1410
      %v1531 = vpop.f32.mrb[0].mxu0
      %v1532 = vadd.f32 0.0, %v1531
      %v1533 = vpop.f32.mrb[0].mxu0
      %v1534 = vpop.f32.mrb[0].mxu0
      %v1535 = vadd.f32 0.0, %v1534
      %v1536 = vpop.f32.mrb[0].mxu0
      %1537 = vmatprep.mubr.bf16.mxu0 0
      %1538 = vmatmul.mubr.bf16.gmra.mrb[0].mxu0 %v1413
      %v1539 = vpop.f32.mrb[0].mxu0
      %v1540 = vadd.f32 0.0, %v1539
      %v1541 = vpop.f32.mrb[0].mxu0
      %v1542 = vpop.f32.mrb[0].mxu0
      %v1543 = vadd.f32 0.0, %v1542
      %v1544 = vpop.f32.mrb[0].mxu0
      %1545 = vmatprep.mubr.bf16.mxu0 0
      %1546 = vmatmul.mubr.bf16.gmra.mrb[0].mxu0 %v1416
      %v1547 = vpop.f32.mrb[0].mxu0
      %v1548 = vadd.f32 0.0, %v1547
      %v1549 = vpop.f32.mrb[0].mxu0
      %v1550 = vpop.f32.mrb[0].mxu0
      %v1551 = vadd.f32 0.0, %v1550
      %v1552 = vpop.f32.mrb[0].mxu0
      %1553 = vmatprep.mubr.bf16.mxu0 0
      %1554 = vmatmul.mubr.bf16.gmra.mrb[0].mxu0 %v1419
      %v1555 = vpop.f32.mrb[0].mxu0
      %v1556 = vadd.f32 0.0, %v1555
      %v1557 = vpop.f32.mrb[0].mxu0
      %v1558 = vpop.f32.mrb[0].mxu0
      %v1559 = vadd.f32 0.0, %v1558
      %v1560 = vpop.f32.mrb[0].mxu0
      %1561 = vmatprep.mubr.bf16.mxu0 0
      %1562 = vmatmul.mubr.bf16.gmra.mrb[0].mxu0 %v1422
      %v1563 = vpop.f32.mrb[0].mxu0
      %v1564 = vadd.f32 0.0, %v1563
      %v1565 = vpop.f32.mrb[0].mxu0
      %v1566 = vpop.f32.mrb[0].mxu0
      %v1567 = vadd.f32 0.0, %v1566
      %v1568 = vpop.f32.mrb[0].mxu0
      %1569 = vmatprep.mubr.bf16.mxu0 0
      %1570 = vmatmul.mubr.bf16.gmra.mrb[0].mxu0 %v1425
      %v1571 = vpop.f32.mrb[0].mxu0
      %v1572 = vadd.f32 0.0, %v1571
      %v1573 = vpop.f32.mrb[0].mxu0
      %v1574 = vpop.f32.mrb[0].mxu0
      %v1575 = vadd.f32 0.0, %v1574
      %v1576 = vpop.f32.mrb[0].mxu0
      %1577 = vmatprep.mubr.bf16.mxu0 0
      %1578 = vmatmul.mubr.bf16.gmra.mrb[0].mxu0 %v1428
      %v1579 = vpop.f32.mrb[0].mxu0
      %v1580 = vadd.f32 0.0, %v1579
      %v1581 = vpop.f32.mrb[0].mxu0
      %v1582 = vpop.f32.mrb[0].mxu0
      %v1583 = vadd.f32 0.0, %v1582
      %v1584 = vpop.f32.mrb[0].mxu0
      %1585 = vmatprep.mubr.bf16.mxu0 0
      %1586 = vmatmul.mubr.bf16.gmra.mrb[0].mxu0 %v1431
      %v1587 = vpop.f32.mrb[0].mxu0
      %v1588 = vadd.f32 0.0, %v1587
      %v1589 = vpop.f32.mrb[0].mxu0
      %v1590 = vpop.f32.mrb[0].mxu0
      %v1591 = vadd.f32 0.0, %v1590
      %v1592 = vpop.f32.mrb[0].mxu0
      %1593 = vdwg.mxu0
      %v1626 = vunpack.c.l.b16 %v881
      %v1627 = vunpack.c.l.b16 %v882
      %v1628 = vunpack.c.l.b16 %v883
      %v1629 = vunpack.c.l.b16 %v884
      %v1630 = vunpack.c.l.b16 %v885
      %v1631 = vunpack.c.l.b16 %v886
      %v1632 = vunpack.c.l.b16 %v887
      %v1633 = vunpack.c.l.b16 %v888
      %v1634 = vunpack.c.l.b16 %v889
      %v1635 = vunpack.c.l.b16 %v890
      %v1636 = vunpack.c.l.b16 %v891
      %v1637 = vunpack.c.l.b16 %v892
      %v1638 = vunpack.c.l.b16 %v893
      %v1639 = vunpack.c.l.b16 %v894
      %v1640 = vunpack.c.l.b16 %v895
      %v1641 = vunpack.c.l.b16 %v896
      %v1642 = vunpack.c.l.b16 %v897
      %v1643 = vunpack.c.l.b16 %v898
      %v1644 = vunpack.c.l.b16 %v899
      %v1645 = vunpack.c.l.b16 %v900
      %v1646 = vunpack.c.l.b16 %v901
      %v1647 = vunpack.c.l.b16 %v902
      %v1648 = vunpack.c.l.b16 %v903
      %v1649 = vunpack.c.l.b16 %v904
      %v1650 = vunpack.c.l.b16 %v905
      %v1651 = vunpack.c.l.b16 %v906
      %v1652 = vunpack.c.l.b16 %v907
      %v1653 = vunpack.c.l.b16 %v908
      %v1654 = vunpack.c.l.b16 %v909
      %v1655 = vunpack.c.l.b16 %v910
      %v1656 = vunpack.c.l.b16 %v911
      %v1657 = vunpack.c.l.b16 %v912
      %v1658 = vpack.c.b16 %v1627, %v1626
      %v1659 = vpack.c.b16 %v1629, %v1628
      %v1660 = vpack.c.b16 %v1631, %v1630
      %v1661 = vpack.c.b16 %v1633, %v1632
      %v1662 = vpack.c.b16 %v1635, %v1634
      %v1663 = vpack.c.b16 %v1637, %v1636
      %v1664 = vpack.c.b16 %v1639, %v1638
      %v1665 = vpack.c.b16 %v1641, %v1640
      %v1666 = vpack.c.b16 %v1643, %v1642
      %v1667 = vpack.c.b16 %v1645, %v1644
      %v1668 = vpack.c.b16 %v1647, %v1646
      %v1669 = vpack.c.b16 %v1649, %v1648
      %v1670 = vpack.c.b16 %v1651, %v1650
      %v1671 = vpack.c.b16 %v1653, %v1652
      %v1672 = vpack.c.b16 %v1655, %v1654
      %v1673 = vpack.c.b16 %v1657, %v1656
      %v1678 = vunpack.c.l.b16 %v913
      %v1679 = vunpack.c.l.b16 %v914
      %v1680 = vunpack.c.l.b16 %v915
      %v1681 = vunpack.c.l.b16 %v916
      %v1682 = vpack.c.b16 %v1679, %v1678
      %v1683 = vpack.c.b16 %v1681, %v1680
      %v1687 = vsel %vm1384, %v1658, 0
      %v1690 = vsel %vm1384, %v1659, 0
      %v1693 = vsel %vm1384, %v1660, 0
      %v1696 = vsel %vm1384, %v1661, 0
      %v1699 = vsel %vm1384, %v1662, 0
      %v1702 = vsel %vm1384, %v1663, 0
      %v1705 = vsel %vm1384, %v1664, 0
      %v1708 = vsel %vm1384, %v1665, 0
      %v1711 = vsel %vm1384, %v1666, 0
      %v1714 = vsel %vm1384, %v1667, 0
      %v1717 = vsel %vm1384, %v1668, 0
      %v1720 = vsel %vm1384, %v1669, 0
      %v1723 = vsel %vm1384, %v1670, 0
      %v1726 = vsel %vm1384, %v1671, 0
      %v1729 = vsel %vm1384, %v1672, 0
      %v1732 = vsel %vm1384, %v1673, 0
      %1734 = vmatprep.subr.bf16.mxu0 0
      %1735 = vmatpush1.bf16.msra.mxu0 %v1682
      %1736 = vmatprep.subr.bf16.mxu0 0
      %1737 = vmatpush1.bf16.msra.mxu0 %v1683
      %1738 = vmatprep.subr.bf16.mxu0 0
      %1739 = vmatpush1.bf16.msra.mxu0 0
      %1740 = vmatprep.subr.bf16.mxu0 0
      %1741 = vmatpush1.bf16.msra.mxu0 0
      %1742 = vmatprep.subr.bf16.mxu0 0
      %1743 = vmatpush1.bf16.msra.mxu0 0
      %1744 = vmatprep.subr.bf16.mxu0 0
      %1745 = vmatpush1.bf16.msra.mxu0 0
      %1746 = vmatprep.subr.bf16.mxu0 0
      %1747 = vmatpush1.bf16.msra.mxu0 0
      %1748 = vmatprep.subr.bf16.mxu0 0
      %1749 = vmatpush1.bf16.msra.mxu0 0
      %1750 = vmatprep.subr.bf16.mxu0 0
      %1751 = vmatpush1.bf16.msra.mxu0 0
      %1752 = vmatprep.subr.bf16.mxu0 0
      %1753 = vmatpush1.bf16.msra.mxu0 0
      %1754 = vmatprep.subr.bf16.mxu0 0
      %1755 = vmatpush1.bf16.msra.mxu0 0
      %1756 = vmatprep.subr.bf16.mxu0 0
      %1757 = vmatpush1.bf16.msra.mxu0 0
      %1758 = vmatprep.subr.bf16.mxu0 0
      %1759 = vmatpush1.bf16.msra.mxu0 0
      %1760 = vmatprep.subr.bf16.mxu0 0
      %1761 = vmatpush1.bf16.msra.mxu0 0
      %1762 = vmatprep.subr.bf16.mxu0 0
      %1763 = vmatpush1.bf16.msra.mxu0 0
      %1764 = vmatprep.subr.bf16.mxu0 0
      %1765 = vmatpush1.bf16.msra.mxu0 0
      %1766 = vmatprep.mubr.bf16.mxu0 0
      %1767 = vmatmul.mubr.bf16.gmra.mrb[0].mxu0 %v1687
      %v1768 = vpop.f32.mrb[0].mxu0
      %v1769 = vadd.f32 %v1468, %v1768
      %v1770 = vpop.f32.mrb[0].mxu0
      %v1771 = vpop.f32.mrb[0].mxu0
      %v1772 = vadd.f32 %v1471, %v1771
      %v1773 = vpop.f32.mrb[0].mxu0
      %1774 = vmatprep.mubr.bf16.mxu0 0
      %1775 = vmatmul.mubr.bf16.gmra.mrb[0].mxu0 %v1690
      %v1776 = vpop.f32.mrb[0].mxu0
      %v1777 = vadd.f32 %v1476, %v1776
      %v1778 = vpop.f32.mrb[0].mxu0
      %v1779 = vpop.f32.mrb[0].mxu0
      %v1780 = vadd.f32 %v1479, %v1779
      %v1781 = vpop.f32.mrb[0].mxu0
      %1782 = vmatprep.mubr.bf16.mxu0 0
      %1783 = vmatmul.mubr.bf16.gmra.mrb[0].mxu0 %v1693
      %v1784 = vpop.f32.mrb[0].mxu0
      %v1785 = vadd.f32 %v1484, %v1784
      %v1786 = vpop.f32.mrb[0].mxu0
      %v1787 = vpop.f32.mrb[0].mxu0
      %v1788 = vadd.f32 %v1487, %v1787
      %v1789 = vpop.f32.mrb[0].mxu0
      %1790 = vmatprep.mubr.bf16.mxu0 0
      %1791 = vmatmul.mubr.bf16.gmra.mrb[0].mxu0 %v1696
      %v1792 = vpop.f32.mrb[0].mxu0
      %v1793 = vadd.f32 %v1492, %v1792
      %v1794 = vpop.f32.mrb[0].mxu0
      %v1795 = vpop.f32.mrb[0].mxu0
      %v1796 = vadd.f32 %v1495, %v1795
      %v1797 = vpop.f32.mrb[0].mxu0
      %1798 = vmatprep.mubr.bf16.mxu0 0
      %1799 = vmatmul.mubr.bf16.gmra.mrb[0].mxu0 %v1699
      %v1800 = vpop.f32.mrb[0].mxu0
      %v1801 = vadd.f32 %v1500, %v1800
      %v1802 = vpop.f32.mrb[0].mxu0
      %v1803 = vpop.f32.mrb[0].mxu0
      %v1804 = vadd.f32 %v1503, %v1803
      %v1805 = vpop.f32.mrb[0].mxu0
      %1806 = vmatprep.mubr.bf16.mxu0 0
      %1807 = vmatmul.mubr.bf16.gmra.mrb[0].mxu0 %v1702
      %v1808 = vpop.f32.mrb[0].mxu0
      %v1809 = vadd.f32 %v1508, %v1808
      %v1810 = vpop.f32.mrb[0].mxu0
      %v1811 = vpop.f32.mrb[0].mxu0
      %v1812 = vadd.f32 %v1511, %v1811
      %v1813 = vpop.f32.mrb[0].mxu0
      %1814 = vmatprep.mubr.bf16.mxu0 0
      %1815 = vmatmul.mubr.bf16.gmra.mrb[0].mxu0 %v1705
      %v1816 = vpop.f32.mrb[0].mxu0
      %v1817 = vadd.f32 %v1516, %v1816
      %v1818 = vpop.f32.mrb[0].mxu0
      %v1819 = vpop.f32.mrb[0].mxu0
      %v1820 = vadd.f32 %v1519, %v1819
      %v1821 = vpop.f32.mrb[0].mxu0
      %1822 = vmatprep.mubr.bf16.mxu0 0
      %1823 = vmatmul.mubr.bf16.gmra.mrb[0].mxu0 %v1708
      %v1824 = vpop.f32.mrb[0].mxu0
      %v1825 = vadd.f32 %v1524, %v1824
      %v1826 = vpop.f32.mrb[0].mxu0
      %v1827 = vpop.f32.mrb[0].mxu0
      %v1828 = vadd.f32 %v1527, %v1827
      %v1829 = vpop.f32.mrb[0].mxu0
      %1830 = vmatprep.mubr.bf16.mxu0 0
      %1831 = vmatmul.mubr.bf16.gmra.mrb[0].mxu0 %v1711
      %v1832 = vpop.f32.mrb[0].mxu0
      %v1833 = vadd.f32 %v1532, %v1832
      %v1834 = vpop.f32.mrb[0].mxu0
      %v1835 = vpop.f32.mrb[0].mxu0
      %v1836 = vadd.f32 %v1535, %v1835
      %v1837 = vpop.f32.mrb[0].mxu0
      %1838 = vmatprep.mubr.bf16.mxu0 0
      %1839 = vmatmul.mubr.bf16.gmra.mrb[0].mxu0 %v1714
      %v1840 = vpop.f32.mrb[0].mxu0
      %v1841 = vadd.f32 %v1540, %v1840
      %v1842 = vpop.f32.mrb[0].mxu0
      %v1843 = vpop.f32.mrb[0].mxu0
      %v1844 = vadd.f32 %v1543, %v1843
      %v1845 = vpop.f32.mrb[0].mxu0
      %1846 = vmatprep.mubr.bf16.mxu0 0
      %1847 = vmatmul.mubr.bf16.gmra.mrb[0].mxu0 %v1717
      %v1848 = vpop.f32.mrb[0].mxu0
      %v1849 = vadd.f32 %v1548, %v1848
      %v1850 = vpop.f32.mrb[0].mxu0
      %v1851 = vpop.f32.mrb[0].mxu0
      %v1852 = vadd.f32 %v1551, %v1851
      %v1853 = vpop.f32.mrb[0].mxu0
      %1854 = vmatprep.mubr.bf16.mxu0 0
      %1855 = vmatmul.mubr.bf16.gmra.mrb[0].mxu0 %v1720
      %v1856 = vpop.f32.mrb[0].mxu0
      %v1857 = vadd.f32 %v1556, %v1856
      %v1858 = vpop.f32.mrb[0].mxu0
      %v1859 = vpop.f32.mrb[0].mxu0
      %v1860 = vadd.f32 %v1559, %v1859
      %v1861 = vpop.f32.mrb[0].mxu0
      %1862 = vmatprep.mubr.bf16.mxu0 0
      %1863 = vmatmul.mubr.bf16.gmra.mrb[0].mxu0 %v1723
      %v1864 = vpop.f32.mrb[0].mxu0
      %v1865 = vadd.f32 %v1564, %v1864
      %v1866 = vpop.f32.mrb[0].mxu0
      %v1867 = vpop.f32.mrb[0].mxu0
      %v1868 = vadd.f32 %v1567, %v1867
      %v1869 = vpop.f32.mrb[0].mxu0
      %1870 = vmatprep.mubr.bf16.mxu0 0
      %1871 = vmatmul.mubr.bf16.gmra.mrb[0].mxu0 %v1726
      %v1872 = vpop.f32.mrb[0].mxu0
      %v1873 = vadd.f32 %v1572, %v1872
      %v1874 = vpop.f32.mrb[0].mxu0
      %v1875 = vpop.f32.mrb[0].mxu0
      %v1876 = vadd.f32 %v1575, %v1875
      %v1877 = vpop.f32.mrb[0].mxu0
      %1878 = vmatprep.mubr.bf16.mxu0 0
      %1879 = vmatmul.mubr.bf16.gmra.mrb[0].mxu0 %v1729
      %v1880 = vpop.f32.mrb[0].mxu0
      %v1881 = vadd.f32 %v1580, %v1880
      %v1882 = vpop.f32.mrb[0].mxu0
      %v1883 = vpop.f32.mrb[0].mxu0
      %v1884 = vadd.f32 %v1583, %v1883
      %v1885 = vpop.f32.mrb[0].mxu0
      %1886 = vmatprep.mubr.bf16.mxu0 0
      %1887 = vmatmul.mubr.bf16.gmra.mrb[0].mxu0 %v1732
      %v1888 = vpop.f32.mrb[0].mxu0
      %v1889 = vadd.f32 %v1588, %v1888
      %v1890 = vpop.f32.mrb[0].mxu0
      %v1891 = vpop.f32.mrb[0].mxu0
      %v1892 = vadd.f32 %v1591, %v1891
      %v1893 = vpop.f32.mrb[0].mxu0
      %1894 = vdwg.mxu0
      %v1895 = vld [vmem:[#allocation2] sm:$0xe]
      %v1896 = vld [vmem:[#allocation2 + $0xc] sm:$0xe]
      %v1897 = vld [vmem:[#allocation2 + $0x18] sm:$0xe]
      %v1898 = vld [vmem:[#allocation2 + $0x24] sm:$0xe]
      %v1899 = vld [vmem:[#allocation2 + $0x30] sm:$0xe]
      %v1900 = vld [vmem:[#allocation2 + $0x3c] sm:$0xe]
      %v1901 = vld [vmem:[#allocation2 + $0x48] sm:$0xe]
      %v1902 = vld [vmem:[#allocation2 + $0x54] sm:$0xe]
      %v1903 = vld [vmem:[#allocation2 + $0x60] sm:$0xe]
      %v1904 = vld [vmem:[#allocation2 + $0x6c] sm:$0xe]
      %v1905 = vld [vmem:[#allocation2 + $0x78] sm:$0xe]
      %v1906 = vld [vmem:[#allocation2 + $0x84] sm:$0xe]
      %v1907 = vld [vmem:[#allocation2 + $0x90] sm:$0xe]
      %v1908 = vld [vmem:[#allocation2 + $0x9c] sm:$0xe]
      %v1909 = vld [vmem:[#allocation2 + $0xa8] sm:$0xe]
      %v1910 = vld [vmem:[#allocation2 + $0xb4] sm:$0xe]
      %vm1943 = vcmask 1042432
      %vm1944 = vcmask 1046532
      %vm1945 = vmor %vm1943, %vm1944
      %v1946 = vrot.slane %v1895, 5
      %v1947 = vrot.slane %v1946, 4
      %v1948 = vrot.slane %v882, 5
      %v1949 = vsel %vm1945, %v1947, %v1948
      %v1950 = vrot.slane %v1948, 4
      %v1951 = vrot.slane %v917, 5
      %v1952 = vsel %vm1945, %v1950, %v1951
      %v1953 = vrot.slane %v1896, 5
      %v1954 = vrot.slane %v1953, 4
      %v1955 = vrot.slane %v884, 5
      %v1956 = vsel %vm1945, %v1954, %v1955
      %v1957 = vrot.slane %v1955, 4
      %v1958 = vrot.slane %v918, 5
      %v1959 = vsel %vm1945, %v1957, %v1958
      %v1960 = vrot.slane %v1897, 5
      %v1961 = vrot.slane %v1960, 4
      %v1962 = vrot.slane %v886, 5
      %v1963 = vsel %vm1945, %v1961, %v1962
      %v1964 = vrot.slane %v1962, 4
      %v1965 = vrot.slane %v919, 5
      %v1966 = vsel %vm1945, %v1964, %v1965
      %v1967 = vrot.slane %v1898, 5
      %v1968 = vrot.slane %v1967, 4
      %v1969 = vrot.slane %v888, 5
      %v1970 = vsel %vm1945, %v1968, %v1969
      %v1971 = vrot.slane %v1969, 4
      %v1972 = vrot.slane %v920, 5
      %v1973 = vsel %vm1945, %v1971, %v1972
      %v1974 = vrot.slane %v1899, 5
      %v1975 = vrot.slane %v1974, 4
      %v1976 = vrot.slane %v890, 5
      %v1977 = vsel %vm1945, %v1975, %v1976
      %v1978 = vrot.slane %v1976, 4
      %v1979 = vrot.slane %v921, 5
      %v1980 = vsel %vm1945, %v1978, %v1979
      %v1981 = vrot.slane %v1900, 5
      %v1982 = vrot.slane %v1981, 4
      %v1983 = vrot.slane %v892, 5
      %v1984 = vsel %vm1945, %v1982, %v1983
      %v1985 = vrot.slane %v1983, 4
      %v1986 = vrot.slane %v922, 5
      %v1987 = vsel %vm1945, %v1985, %v1986
      %v1988 = vrot.slane %v1901, 5
      %v1989 = vrot.slane %v1988, 4
      %v1990 = vrot.slane %v894, 5
      %v1991 = vsel %vm1945, %v1989, %v1990
      %v1992 = vrot.slane %v1990, 4
      %v1993 = vrot.slane %v923, 5
      %v1994 = vsel %vm1945, %v1992, %v1993
      %v1995 = vrot.slane %v1902, 5
      %v1996 = vrot.slane %v1995, 4
      %v1997 = vrot.slane %v896, 5
      %v1998 = vsel %vm1945, %v1996, %v1997
      %v1999 = vrot.slane %v1997, 4
      %v2000 = vrot.slane %v924, 5
      %v2001 = vsel %vm1945, %v1999, %v2000
      %v2002 = vrot.slane %v1903, 5
      %v2003 = vrot.slane %v2002, 4
      %v2004 = vrot.slane %v898, 5
      %v2005 = vsel %vm1945, %v2003, %v2004
      %v2006 = vrot.slane %v2004, 4
      %v2007 = vrot.slane %v925, 5
      %v2008 = vsel %vm1945, %v2006, %v2007
      %v2009 = vrot.slane %v1904, 5
      %v2010 = vrot.slane %v2009, 4
      %v2011 = vrot.slane %v900, 5
      %v2012 = vsel %vm1945, %v2010, %v2011
      %v2013 = vrot.slane %v2011, 4
      %v2014 = vrot.slane %v926, 5
      %v2015 = vsel %vm1945, %v2013, %v2014
      %v2016 = vrot.slane %v1905, 5
      %v2017 = vrot.slane %v2016, 4
      %v2018 = vrot.slane %v902, 5
      %v2019 = vsel %vm1945, %v2017, %v2018
      %v2020 = vrot.slane %v2018, 4
      %v2021 = vrot.slane %v927, 5
      %v2022 = vsel %vm1945, %v2020, %v2021
      %v2023 = vrot.slane %v1906, 5
      %v2024 = vrot.slane %v2023, 4
      %v2025 = vrot.slane %v904, 5
      %v2026 = vsel %vm1945, %v2024, %v2025
      %v2027 = vrot.slane %v2025, 4
      %v2028 = vrot.slane %v928, 5
      %v2029 = vsel %vm1945, %v2027, %v2028
      %v2030 = vrot.slane %v1907, 5
      %v2031 = vrot.slane %v2030, 4
      %v2032 = vrot.slane %v906, 5
      %v2033 = vsel %vm1945, %v2031, %v2032
      %v2034 = vrot.slane %v2032, 4
      %v2035 = vrot.slane %v929, 5
      %v2036 = vsel %vm1945, %v2034, %v2035
      %v2037 = vrot.slane %v1908, 5
      %v2038 = vrot.slane %v2037, 4
      %v2039 = vrot.slane %v908, 5
      %v2040 = vsel %vm1945, %v2038, %v2039
      %v2041 = vrot.slane %v2039, 4
      %v2042 = vrot.slane %v930, 5
      %v2043 = vsel %vm1945, %v2041, %v2042
      %v2044 = vrot.slane %v1909, 5
      %v2045 = vrot.slane %v2044, 4
      %v2046 = vrot.slane %v910, 5
      %v2047 = vsel %vm1945, %v2045, %v2046
      %v2048 = vrot.slane %v2046, 4
      %v2049 = vrot.slane %v931, 5
      %v2050 = vsel %vm1945, %v2048, %v2049
      %v2051 = vrot.slane %v1910, 5
      %v2052 = vrot.slane %v2051, 4
      %v2053 = vrot.slane %v912, 5
      %v2054 = vsel %vm1945, %v2052, %v2053
      %v2055 = vrot.slane %v2053, 4
      %v2056 = vrot.slane %v932, 5
      %v2057 = vsel %vm1945, %v2055, %v2056
      %v2058 = vld [vmem:[%s1 + $0x20] sm:$0xf]
      %v2059 = vld [vmem:[%s1 + $0x24] sm:$0xf]
      %v2060 = vld [vmem:[%s1 + $0x28] sm:$0xf]
      %v2061 = vld [vmem:[%s1 + $0x2c] sm:$0xf]
      %v2062 = vunpack.c.l.b16 %v1949
      %v2063 = vunpack.c.l.b16 %v1952
      %v2064 = vunpack.c.l.b16 %v1956
      %v2065 = vunpack.c.l.b16 %v1959
      %v2066 = vunpack.c.l.b16 %v1963
      %v2067 = vunpack.c.l.b16 %v1966
      %v2068 = vunpack.c.l.b16 %v1970
      %v2069 = vunpack.c.l.b16 %v1973
      %v2070 = vunpack.c.l.b16 %v1977
      %v2071 = vunpack.c.l.b16 %v1980
      %v2072 = vunpack.c.l.b16 %v1984
      %v2073 = vunpack.c.l.b16 %v1987
      %v2074 = vunpack.c.l.b16 %v1991
      %v2075 = vunpack.c.l.b16 %v1994
      %v2076 = vunpack.c.l.b16 %v1998
      %v2077 = vunpack.c.l.b16 %v2001
      %v2078 = vunpack.c.l.b16 %v2005
      %v2079 = vunpack.c.l.b16 %v2008
      %v2080 = vunpack.c.l.b16 %v2012
      %v2081 = vunpack.c.l.b16 %v2015
      %v2082 = vunpack.c.l.b16 %v2019
      %v2083 = vunpack.c.l.b16 %v2022
      %v2084 = vunpack.c.l.b16 %v2026
      %v2085 = vunpack.c.l.b16 %v2029
      %v2086 = vunpack.c.l.b16 %v2033
      %v2087 = vunpack.c.l.b16 %v2036
      %v2088 = vunpack.c.l.b16 %v2040
      %v2089 = vunpack.c.l.b16 %v2043
      %v2090 = vunpack.c.l.b16 %v2047
      %v2091 = vunpack.c.l.b16 %v2050
      %v2092 = vunpack.c.l.b16 %v2054
      %v2093 = vunpack.c.l.b16 %v2057
      %v2094 = vpack.c.b16 %v2063, %v2062
      %v2095 = vpack.c.b16 %v2065, %v2064
      %v2096 = vpack.c.b16 %v2067, %v2066
      %v2097 = vpack.c.b16 %v2069, %v2068
      %v2098 = vpack.c.b16 %v2071, %v2070
      %v2099 = vpack.c.b16 %v2073, %v2072
      %v2100 = vpack.c.b16 %v2075, %v2074
      %v2101 = vpack.c.b16 %v2077, %v2076
      %v2102 = vpack.c.b16 %v2079, %v2078
      %v2103 = vpack.c.b16 %v2081, %v2080
      %v2104 = vpack.c.b16 %v2083, %v2082
      %v2105 = vpack.c.b16 %v2085, %v2084
      %v2106 = vpack.c.b16 %v2087, %v2086
      %v2107 = vpack.c.b16 %v2089, %v2088
      %v2108 = vpack.c.b16 %v2091, %v2090
      %v2109 = vpack.c.b16 %v2093, %v2092
      %v2114 = vunpack.c.l.b16 %v2058
      %v2115 = vunpack.c.l.b16 %v2059
      %v2116 = vunpack.c.l.b16 %v2060
      %v2117 = vunpack.c.l.b16 %v2061
      %v2118 = vpack.c.b16 %v2115, %v2114
      %v2119 = vpack.c.b16 %v2117, %v2116
      %v2123 = vsel %vm1384, %v2094, 0
      %v2126 = vsel %vm1384, %v2095, 0
      %v2129 = vsel %vm1384, %v2096, 0
      %v2132 = vsel %vm1384, %v2097, 0
      %v2135 = vsel %vm1384, %v2098, 0
      %v2138 = vsel %vm1384, %v2099, 0
      %v2141 = vsel %vm1384, %v2100, 0
      %v2144 = vsel %vm1384, %v2101, 0
      %v2147 = vsel %vm1384, %v2102, 0
      %v2150 = vsel %vm1384, %v2103, 0
      %v2153 = vsel %vm1384, %v2104, 0
      %v2156 = vsel %vm1384, %v2105, 0
      %v2159 = vsel %vm1384, %v2106, 0
      %v2162 = vsel %vm1384, %v2107, 0
      %v2165 = vsel %vm1384, %v2108, 0
      %v2168 = vsel %vm1384, %v2109, 0
      %2170 = vmatprep.subr.bf16.mxu0 0
      %2171 = vmatpush1.bf16.msra.mxu0 %v2118
      %2172 = vmatprep.subr.bf16.mxu0 0
      %2173 = vmatpush1.bf16.msra.mxu0 %v2119
      %2174 = vmatprep.subr.bf16.mxu0 0
      %2175 = vmatpush1.bf16.msra.mxu0 0
      %2176 = vmatprep.subr.bf16.mxu0 0
      %2177 = vmatpush1.bf16.msra.mxu0 0
      %2178 = vmatprep.subr.bf16.mxu0 0
      %2179 = vmatpush1.bf16.msra.mxu0 0
      %2180 = vmatprep.subr.bf16.mxu0 0
      %2181 = vmatpush1.bf16.msra.mxu0 0
      %2182 = vmatprep.subr.bf16.mxu0 0
      %2183 = vmatpush1.bf16.msra.mxu0 0
      %2184 = vmatprep.subr.bf16.mxu0 0
      %2185 = vmatpush1.bf16.msra.mxu0 0
      %2186 = vmatprep.subr.bf16.mxu0 0
      %2187 = vmatpush1.bf16.msra.mxu0 0
      %2188 = vmatprep.subr.bf16.mxu0 0
      %2189 = vmatpush1.bf16.msra.mxu0 0
      %2190 = vmatprep.subr.bf16.mxu0 0
      %2191 = vmatpush1.bf16.msra.mxu0 0
      %2192 = vmatprep.subr.bf16.mxu0 0
      %2193 = vmatpush1.bf16.msra.mxu0 0
      %2194 = vmatprep.subr.bf16.mxu0 0
      %2195 = vmatpush1.bf16.msra.mxu0 0
      %2196 = vmatprep.subr.bf16.mxu0 0
      %2197 = vmatpush1.bf16.msra.mxu0 0
      %2198 = vmatprep.subr.bf16.mxu0 0
      %2199 = vmatpush1.bf16.msra.mxu0 0
      %2200 = vmatprep.subr.bf16.mxu0 0
      %2201 = vmatpush1.bf16.msra.mxu0 0
      %2202 = vmatprep.mubr.bf16.mxu0 0
      %2203 = vmatmul.mubr.bf16.gmra.mrb[0].mxu0 %v2123
      %v2204 = vpop.f32.mrb[0].mxu0
      %v2205 = vadd.f32 0.0, %v2204
      %v2206 = vpop.f32.mrb[0].mxu0
      %v2207 = vpop.f32.mrb[0].mxu0
      %v2208 = vadd.f32 0.0, %v2207
      %v2209 = vpop.f32.mrb[0].mxu0
      %2210 = vmatprep.mubr.bf16.mxu0 0
      %2211 = vmatmul.mubr.bf16.gmra.mrb[0].mxu0 %v2126
      %v2212 = vpop.f32.mrb[0].mxu0
      %v2213 = vadd.f32 0.0, %v2212
      %v2214 = vpop.f32.mrb[0].mxu0
      %v2215 = vpop.f32.mrb[0].mxu0
      %v2216 = vadd.f32 0.0, %v2215
      %v2217 = vpop.f32.mrb[0].mxu0
      %2218 = vmatprep.mubr.bf16.mxu0 0
      %2219 = vmatmul.mubr.bf16.gmra.mrb[0].mxu0 %v2129
      %v2220 = vpop.f32.mrb[0].mxu0
      %v2221 = vadd.f32 0.0, %v2220
      %v2222 = vpop.f32.mrb[0].mxu0
      %v2223 = vpop.f32.mrb[0].mxu0
      %v2224 = vadd.f32 0.0, %v2223
      %v2225 = vpop.f32.mrb[0].mxu0
      %2226 = vmatprep.mubr.bf16.mxu0 0
      %2227 = vmatmul.mubr.bf16.gmra.mrb[0].mxu0 %v2132
      %v2228 = vpop.f32.mrb[0].mxu0
      %v2229 = vadd.f32 0.0, %v2228
      %v2230 = vpop.f32.mrb[0].mxu0
      %v2231 = vpop.f32.mrb[0].mxu0
      %v2232 = vadd.f32 0.0, %v2231
      %v2233 = vpop.f32.mrb[0].mxu0
      %2234 = vmatprep.mubr.bf16.mxu0 0
      %2235 = vmatmul.mubr.bf16.gmra.mrb[0].mxu0 %v2135
      %v2236 = vpop.f32.mrb[0].mxu0
      %v2237 = vadd.f32 0.0, %v2236
      %v2238 = vpop.f32.mrb[0].mxu0
      %v2239 = vpop.f32.mrb[0].mxu0
      %v2240 = vadd.f32 0.0, %v2239
      %v2241 = vpop.f32.mrb[0].mxu0
      %2242 = vmatprep.mubr.bf16.mxu0 0
      %2243 = vmatmul.mubr.bf16.gmra.mrb[0].mxu0 %v2138
      %v2244 = vpop.f32.mrb[0].mxu0
      %v2245 = vadd.f32 0.0, %v2244
      %v2246 = vpop.f32.mrb[0].mxu0
      %v2247 = vpop.f32.mrb[0].mxu0
      %v2248 = vadd.f32 0.0, %v2247
      %v2249 = vpop.f32.mrb[0].mxu0
      %2250 = vmatprep.mubr.bf16.mxu0 0
      %2251 = vmatmul.mubr.bf16.gmra.mrb[0].mxu0 %v2141
      %v2252 = vpop.f32.mrb[0].mxu0
      %v2253 = vadd.f32 0.0, %v2252
      %v2254 = vpop.f32.mrb[0].mxu0
      %v2255 = vpop.f32.mrb[0].mxu0
      %v2256 = vadd.f32 0.0, %v2255
      %v2257 = vpop.f32.mrb[0].mxu0
      %2258 = vmatprep.mubr.bf16.mxu0 0
      %2259 = vmatmul.mubr.bf16.gmra.mrb[0].mxu0 %v2144
      %v2260 = vpop.f32.mrb[0].mxu0
      %v2261 = vadd.f32 0.0, %v2260
      %v2262 = vpop.f32.mrb[0].mxu0
      %v2263 = vpop.f32.mrb[0].mxu0
      %v2264 = vadd.f32 0.0, %v2263
      %v2265 = vpop.f32.mrb[0].mxu0
      %2266 = vmatprep.mubr.bf16.mxu0 0
      %2267 = vmatmul.mubr.bf16.gmra.mrb[0].mxu0 %v2147
      %v2268 = vpop.f32.mrb[0].mxu0
      %v2269 = vadd.f32 0.0, %v2268
      %v2270 = vpop.f32.mrb[0].mxu0
      %v2271 = vpop.f32.mrb[0].mxu0
      %v2272 = vadd.f32 0.0, %v2271
      %v2273 = vpop.f32.mrb[0].mxu0
      %2274 = vmatprep.mubr.bf16.mxu0 0
      %2275 = vmatmul.mubr.bf16.gmra.mrb[0].mxu0 %v2150
      %v2276 = vpop.f32.mrb[0].mxu0
      %v2277 = vadd.f32 0.0, %v2276
      %v2278 = vpop.f32.mrb[0].mxu0
      %v2279 = vpop.f32.mrb[0].mxu0
      %v2280 = vadd.f32 0.0, %v2279
      %v2281 = vpop.f32.mrb[0].mxu0
      %2282 = vmatprep.mubr.bf16.mxu0 0
      %2283 = vmatmul.mubr.bf16.gmra.mrb[0].mxu0 %v2153
      %v2284 = vpop.f32.mrb[0].mxu0
      %v2285 = vadd.f32 0.0, %v2284
      %v2286 = vpop.f32.mrb[0].mxu0
      %v2287 = vpop.f32.mrb[0].mxu0
      %v2288 = vadd.f32 0.0, %v2287
      %v2289 = vpop.f32.mrb[0].mxu0
      %2290 = vmatprep.mubr.bf16.mxu0 0
      %2291 = vmatmul.mubr.bf16.gmra.mrb[0].mxu0 %v2156
      %v2292 = vpop.f32.mrb[0].mxu0
      %v2293 = vadd.f32 0.0, %v2292
      %v2294 = vpop.f32.mrb[0].mxu0
      %v2295 = vpop.f32.mrb[0].mxu0
      %v2296 = vadd.f32 0.0, %v2295
      %v2297 = vpop.f32.mrb[0].mxu0
      %2298 = vmatprep.mubr.bf16.mxu0 0
      %2299 = vmatmul.mubr.bf16.gmra.mrb[0].mxu0 %v2159
      %v2300 = vpop.f32.mrb[0].mxu0
      %v2301 = vadd.f32 0.0, %v2300
      %v2302 = vpop.f32.mrb[0].mxu0
      %v2303 = vpop.f32.mrb[0].mxu0
      %v2304 = vadd.f32 0.0, %v2303
      %v2305 = vpop.f32.mrb[0].mxu0
      %2306 = vmatprep.mubr.bf16.mxu0 0
      %2307 = vmatmul.mubr.bf16.gmra.mrb[0].mxu0 %v2162
      %v2308 = vpop.f32.mrb[0].mxu0
      %v2309 = vadd.f32 0.0, %v2308
      %v2310 = vpop.f32.mrb[0].mxu0
      %v2311 = vpop.f32.mrb[0].mxu0
      %v2312 = vadd.f32 0.0, %v2311
      %v2313 = vpop.f32.mrb[0].mxu0
      %2314 = vmatprep.mubr.bf16.mxu0 0
      %2315 = vmatmul.mubr.bf16.gmra.mrb[0].mxu0 %v2165
      %v2316 = vpop.f32.mrb[0].mxu0
      %v2317 = vadd.f32 0.0, %v2316
      %v2318 = vpop.f32.mrb[0].mxu0
      %v2319 = vpop.f32.mrb[0].mxu0
      %v2320 = vadd.f32 0.0, %v2319
      %v2321 = vpop.f32.mrb[0].mxu0
      %2322 = vmatprep.mubr.bf16.mxu0 0
      %2323 = vmatmul.mubr.bf16.gmra.mrb[0].mxu0 %v2168
      %v2324 = vpop.f32.mrb[0].mxu0
      %v2325 = vadd.f32 0.0, %v2324
      %v2326 = vpop.f32.mrb[0].mxu0
      %v2327 = vpop.f32.mrb[0].mxu0
      %v2328 = vadd.f32 0.0, %v2327
      %v2329 = vpop.f32.mrb[0].mxu0
      %2330 = vdwg.mxu0
      %v2331 = vadd.f32 %v1769, %v2205
      %v2332 = vadd.f32 %v1772, %v2208
      %v2333 = vadd.f32 %v1777, %v2213
      %v2334 = vadd.f32 %v1780, %v2216
      %v2335 = vadd.f32 %v1785, %v2221
      %v2336 = vadd.f32 %v1788, %v2224
      %v2337 = vadd.f32 %v1793, %v2229
      %v2338 = vadd.f32 %v1796, %v2232
      %v2339 = vadd.f32 %v1801, %v2237
      %v2340 = vadd.f32 %v1804, %v2240
      %v2341 = vadd.f32 %v1809, %v2245
      %v2342 = vadd.f32 %v1812, %v2248
      %v2343 = vadd.f32 %v1817, %v2253
      %v2344 = vadd.f32 %v1820, %v2256
      %v2345 = vadd.f32 %v1825, %v2261
      %v2346 = vadd.f32 %v1828, %v2264
      %v2347 = vadd.f32 %v1833, %v2269
      %v2348 = vadd.f32 %v1836, %v2272
      %v2349 = vadd.f32 %v1841, %v2277
      %v2350 = vadd.f32 %v1844, %v2280
      %v2351 = vadd.f32 %v1849, %v2285
      %v2352 = vadd.f32 %v1852, %v2288
      %v2353 = vadd.f32 %v1857, %v2293
      %v2354 = vadd.f32 %v1860, %v2296
      %v2355 = vadd.f32 %v1865, %v2301
      %v2356 = vadd.f32 %v1868, %v2304
      %v2357 = vadd.f32 %v1873, %v2309
      %v2358 = vadd.f32 %v1876, %v2312
      %v2359 = vadd.f32 %v1881, %v2317
      %v2360 = vadd.f32 %v1884, %v2320
      %v2361 = vadd.f32 %v1889, %v2325
      %v2362 = vadd.f32 %v1892, %v2328
      %s2363 = scalar_lea.vmem [#allocation2], 12
      %v2364 = vld [vmem:[%s2363] sm:$0xf]
      %v2365 = vld [vmem:[%s2363 + $0x4] sm:$0xf]
      %v2366 = vld [vmem:[%s2363 + $0xc] sm:$0xf]
      %v2367 = vld [vmem:[%s2363 + $0x10] sm:$0xf]
      %v2368 = vld [vmem:[%s2363 + $0x18] sm:$0xf]
      %v2369 = vld [vmem:[%s2363 + $0x1c] sm:$0xf]
      %v2370 = vld [vmem:[%s2363 + $0x24] sm:$0xf]
      %v2371 = vld [vmem:[%s2363 + $0x28] sm:$0xf]
      %v2372 = vld [vmem:[%s2363 + $0x30] sm:$0xf]
      %v2373 = vld [vmem:[%s2363 + $0x34] sm:$0xf]
      %v2374 = vld [vmem:[%s2363 + $0x3c] sm:$0xf]
      %v2375 = vld [vmem:[%s2363 + $0x40] sm:$0xf]
      %v2376 = vld [vmem:[%s2363 + $0x48] sm:$0xf]
      %v2377 = vld [vmem:[%s2363 + $0x4c] sm:$0xf]
      %v2378 = vld [vmem:[%s2363 + $0x54] sm:$0xf]
      %v2379 = vld [vmem:[%s2363 + $0x58] sm:$0xf]
      %v2380 = vld [vmem:[%s2363 + $0x60] sm:$0xf]
      %v2381 = vld [vmem:[%s2363 + $0x64] sm:$0xf]
      %v2382 = vld [vmem:[%s2363 + $0x6c] sm:$0xf]
      %v2383 = vld [vmem:[%s2363 + $0x70] sm:$0xf]
      %v2384 = vld [vmem:[%s2363 + $0x78] sm:$0xf]
      %v2385 = vld [vmem:[%s2363 + $0x7c] sm:$0xf]
      %v2386 = vld [vmem:[%s2363 + $0x84] sm:$0xf]
      %v2387 = vld [vmem:[%s2363 + $0x88] sm:$0xf]
      %v2388 = vld [vmem:[%s2363 + $0x90] sm:$0xf]
      %v2389 = vld [vmem:[%s2363 + $0x94] sm:$0xf]
      %v2390 = vld [vmem:[%s2363 + $0x9c] sm:$0xf]
      %v2391 = vld [vmem:[%s2363 + $0xa0] sm:$0xf]
      %v2392 = vld [vmem:[%s2363 + $0xa8] sm:$0xf]
      %v2393 = vld [vmem:[%s2363 + $0xac] sm:$0xf]
      %v2394 = vld [vmem:[%s2363 + $0xb4] sm:$0xf]
      %v2395 = vld [vmem:[%s2363 + $0xb8] sm:$0xf]
      %v2396 = vld [vmem:[%s1 + $0x30] sm:$0xf]
      %v2397 = vld [vmem:[%s1 + $0x34] sm:$0xf]
      %v2398 = vld [vmem:[%s1 + $0x38] sm:$0xf]
      %v2399 = vld [vmem:[%s1 + $0x3c] sm:$0xf]
      %v2432 = vunpack.c.l.b16 %v2364
      %v2433 = vunpack.c.l.b16 %v2365
      %v2434 = vunpack.c.l.b16 %v2366
      %v2435 = vunpack.c.l.b16 %v2367
      %v2436 = vunpack.c.l.b16 %v2368
      %v2437 = vunpack.c.l.b16 %v2369
      %v2438 = vunpack.c.l.b16 %v2370
      %v2439 = vunpack.c.l.b16 %v2371
      %v2440 = vunpack.c.l.b16 %v2372
      %v2441 = vunpack.c.l.b16 %v2373
      %v2442 = vunpack.c.l.b16 %v2374
      %v2443 = vunpack.c.l.b16 %v2375
      %v2444 = vunpack.c.l.b16 %v2376
      %v2445 = vunpack.c.l.b16 %v2377
      %v2446 = vunpack.c.l.b16 %v2378
      %v2447 = vunpack.c.l.b16 %v2379
      %v2448 = vunpack.c.l.b16 %v2380
      %v2449 = vunpack.c.l.b16 %v2381
      %v2450 = vunpack.c.l.b16 %v2382
      %v2451 = vunpack.c.l.b16 %v2383
      %v2452 = vunpack.c.l.b16 %v2384
      %v2453 = vunpack.c.l.b16 %v2385
      %v2454 = vunpack.c.l.b16 %v2386
      %v2455 = vunpack.c.l.b16 %v2387
      %v2456 = vunpack.c.l.b16 %v2388
      %v2457 = vunpack.c.l.b16 %v2389
      %v2458 = vunpack.c.l.b16 %v2390
      %v2459 = vunpack.c.l.b16 %v2391
      %v2460 = vunpack.c.l.b16 %v2392
      %v2461 = vunpack.c.l.b16 %v2393
      %v2462 = vunpack.c.l.b16 %v2394
      %v2463 = vunpack.c.l.b16 %v2395
      %v2464 = vpack.c.b16 %v2433, %v2432
      %v2465 = vpack.c.b16 %v2435, %v2434
      %v2466 = vpack.c.b16 %v2437, %v2436
      %v2467 = vpack.c.b16 %v2439, %v2438
      %v2468 = vpack.c.b16 %v2441, %v2440
      %v2469 = vpack.c.b16 %v2443, %v2442
      %v2470 = vpack.c.b16 %v2445, %v2444
      %v2471 = vpack.c.b16 %v2447, %v2446
      %v2472 = vpack.c.b16 %v2449, %v2448
      %v2473 = vpack.c.b16 %v2451, %v2450
      %v2474 = vpack.c.b16 %v2453, %v2452
      %v2475 = vpack.c.b16 %v2455, %v2454
      %v2476 = vpack.c.b16 %v2457, %v2456
      %v2477 = vpack.c.b16 %v2459, %v2458
      %v2478 = vpack.c.b16 %v2461, %v2460
      %v2479 = vpack.c.b16 %v2463, %v2462
      %v2484 = vunpack.c.l.b16 %v2396
      %v2485 = vunpack.c.l.b16 %v2397
      %v2486 = vunpack.c.l.b16 %v2398
      %v2487 = vunpack.c.l.b16 %v2399
      %v2488 = vpack.c.b16 %v2485, %v2484
      %v2489 = vpack.c.b16 %v2487, %v2486
      %v2493 = vsel %vm1384, %v2464, 0
      %v2496 = vsel %vm1384, %v2465, 0
      %v2499 = vsel %vm1384, %v2466, 0
      %v2502 = vsel %vm1384, %v2467, 0
      %v2505 = vsel %vm1384, %v2468, 0
      %v2508 = vsel %vm1384, %v2469, 0
      %v2511 = vsel %vm1384, %v2470, 0
      %v2514 = vsel %vm1384, %v2471, 0
      %v2517 = vsel %vm1384, %v2472, 0
      %v2520 = vsel %vm1384, %v2473, 0
      %v2523 = vsel %vm1384, %v2474, 0
      %v2526 = vsel %vm1384, %v2475, 0
      %v2529 = vsel %vm1384, %v2476, 0
      %v2532 = vsel %vm1384, %v2477, 0
      %v2535 = vsel %vm1384, %v2478, 0
      %v2538 = vsel %vm1384, %v2479, 0
      %2540 = vmatprep.subr.bf16.mxu0 0
      %2541 = vmatpush1.bf16.msra.mxu0 %v2488
      %2542 = vmatprep.subr.bf16.mxu0 0
      %2543 = vmatpush1.bf16.msra.mxu0 %v2489
      %2544 = vmatprep.subr.bf16.mxu0 0
      %2545 = vmatpush1.bf16.msra.mxu0 0
      %2546 = vmatprep.subr.bf16.mxu0 0
      %2547 = vmatpush1.bf16.msra.mxu0 0
      %2548 = vmatprep.subr.bf16.mxu0 0
      %2549 = vmatpush1.bf16.msra.mxu0 0
      %2550 = vmatprep.subr.bf16.mxu0 0
      %2551 = vmatpush1.bf16.msra.mxu0 0
      %2552 = vmatprep.subr.bf16.mxu0 0
      %2553 = vmatpush1.bf16.msra.mxu0 0
      %2554 = vmatprep.subr.bf16.mxu0 0
      %2555 = vmatpush1.bf16.msra.mxu0 0
      %2556 = vmatprep.subr.bf16.mxu0 0
      %2557 = vmatpush1.bf16.msra.mxu0 0
      %2558 = vmatprep.subr.bf16.mxu0 0
      %2559 = vmatpush1.bf16.msra.mxu0 0
      %2560 = vmatprep.subr.bf16.mxu0 0
      %2561 = vmatpush1.bf16.msra.mxu0 0
      %2562 = vmatprep.subr.bf16.mxu0 0
      %2563 = vmatpush1.bf16.msra.mxu0 0
      %2564 = vmatprep.subr.bf16.mxu0 0
      %2565 = vmatpush1.bf16.msra.mxu0 0
      %2566 = vmatprep.subr.bf16.mxu0 0
      %2567 = vmatpush1.bf16.msra.mxu0 0
      %2568 = vmatprep.subr.bf16.mxu0 0
      %2569 = vmatpush1.bf16.msra.mxu0 0
      %2570 = vmatprep.subr.bf16.mxu0 0
      %2571 = vmatpush1.bf16.msra.mxu0 0
      %2572 = vmatprep.mubr.bf16.mxu0 0
      %2573 = vmatmul.mubr.bf16.gmra.mrb[0].mxu0 %v2493
      %v2574 = vpop.f32.mrb[0].mxu0
      %v2575 = vadd.f32 0.0, %v2574
      %v2576 = vpop.f32.mrb[0].mxu0
      %v2577 = vpop.f32.mrb[0].mxu0
      %v2578 = vadd.f32 0.0, %v2577
      %v2579 = vpop.f32.mrb[0].mxu0
      %2580 = vmatprep.mubr.bf16.mxu0 0
      %2581 = vmatmul.mubr.bf16.gmra.mrb[0].mxu0 %v2496
      %v2582 = vpop.f32.mrb[0].mxu0
      %v2583 = vadd.f32 0.0, %v2582
      %v2584 = vpop.f32.mrb[0].mxu0
      %v2585 = vpop.f32.mrb[0].mxu0
      %v2586 = vadd.f32 0.0, %v2585
      %v2587 = vpop.f32.mrb[0].mxu0
      %2588 = vmatprep.mubr.bf16.mxu0 0
      %2589 = vmatmul.mubr.bf16.gmra.mrb[0].mxu0 %v2499
      %v2590 = vpop.f32.mrb[0].mxu0
      %v2591 = vadd.f32 0.0, %v2590
      %v2592 = vpop.f32.mrb[0].mxu0
      %v2593 = vpop.f32.mrb[0].mxu0
      %v2594 = vadd.f32 0.0, %v2593
      %v2595 = vpop.f32.mrb[0].mxu0
      %2596 = vmatprep.mubr.bf16.mxu0 0
      %2597 = vmatmul.mubr.bf16.gmra.mrb[0].mxu0 %v2502
      %v2598 = vpop.f32.mrb[0].mxu0
      %v2599 = vadd.f32 0.0, %v2598
      %v2600 = vpop.f32.mrb[0].mxu0
      %v2601 = vpop.f32.mrb[0].mxu0
      %v2602 = vadd.f32 0.0, %v2601
      %v2603 = vpop.f32.mrb[0].mxu0
      %2604 = vmatprep.mubr.bf16.mxu0 0
      %2605 = vmatmul.mubr.bf16.gmra.mrb[0].mxu0 %v2505
      %v2606 = vpop.f32.mrb[0].mxu0
      %v2607 = vadd.f32 0.0, %v2606
      %v2608 = vpop.f32.mrb[0].mxu0
      %v2609 = vpop.f32.mrb[0].mxu0
      %v2610 = vadd.f32 0.0, %v2609
      %v2611 = vpop.f32.mrb[0].mxu0
      %2612 = vmatprep.mubr.bf16.mxu0 0
      %2613 = vmatmul.mubr.bf16.gmra.mrb[0].mxu0 %v2508
      %v2614 = vpop.f32.mrb[0].mxu0
      %v2615 = vadd.f32 0.0, %v2614
      %v2616 = vpop.f32.mrb[0].mxu0
      %v2617 = vpop.f32.mrb[0].mxu0
      %v2618 = vadd.f32 0.0, %v2617
      %v2619 = vpop.f32.mrb[0].mxu0
      %2620 = vmatprep.mubr.bf16.mxu0 0
      %2621 = vmatmul.mubr.bf16.gmra.mrb[0].mxu0 %v2511
      %v2622 = vpop.f32.mrb[0].mxu0
      %v2623 = vadd.f32 0.0, %v2622
      %v2624 = vpop.f32.mrb[0].mxu0
      %v2625 = vpop.f32.mrb[0].mxu0
      %v2626 = vadd.f32 0.0, %v2625
      %v2627 = vpop.f32.mrb[0].mxu0
      %2628 = vmatprep.mubr.bf16.mxu0 0
      %2629 = vmatmul.mubr.bf16.gmra.mrb[0].mxu0 %v2514
      %v2630 = vpop.f32.mrb[0].mxu0
      %v2631 = vadd.f32 0.0, %v2630
      %v2632 = vpop.f32.mrb[0].mxu0
      %v2633 = vpop.f32.mrb[0].mxu0
      %v2634 = vadd.f32 0.0, %v2633
      %v2635 = vpop.f32.mrb[0].mxu0
      %2636 = vmatprep.mubr.bf16.mxu0 0
      %2637 = vmatmul.mubr.bf16.gmra.mrb[0].mxu0 %v2517
      %v2638 = vpop.f32.mrb[0].mxu0
      %v2639 = vadd.f32 0.0, %v2638
      %v2640 = vpop.f32.mrb[0].mxu0
      %v2641 = vpop.f32.mrb[0].mxu0
      %v2642 = vadd.f32 0.0, %v2641
      %v2643 = vpop.f32.mrb[0].mxu0
      %2644 = vmatprep.mubr.bf16.mxu0 0
      %2645 = vmatmul.mubr.bf16.gmra.mrb[0].mxu0 %v2520
      %v2646 = vpop.f32.mrb[0].mxu0
      %v2647 = vadd.f32 0.0, %v2646
      %v2648 = vpop.f32.mrb[0].mxu0
      %v2649 = vpop.f32.mrb[0].mxu0
      %v2650 = vadd.f32 0.0, %v2649
      %v2651 = vpop.f32.mrb[0].mxu0
      %2652 = vmatprep.mubr.bf16.mxu0 0
      %2653 = vmatmul.mubr.bf16.gmra.mrb[0].mxu0 %v2523
      %v2654 = vpop.f32.mrb[0].mxu0
      %v2655 = vadd.f32 0.0, %v2654
      %v2656 = vpop.f32.mrb[0].mxu0
      %v2657 = vpop.f32.mrb[0].mxu0
      %v2658 = vadd.f32 0.0, %v2657
      %v2659 = vpop.f32.mrb[0].mxu0
      %2660 = vmatprep.mubr.bf16.mxu0 0
      %2661 = vmatmul.mubr.bf16.gmra.mrb[0].mxu0 %v2526
      %v2662 = vpop.f32.mrb[0].mxu0
      %v2663 = vadd.f32 0.0, %v2662
      %v2664 = vpop.f32.mrb[0].mxu0
      %v2665 = vpop.f32.mrb[0].mxu0
      %v2666 = vadd.f32 0.0, %v2665
      %v2667 = vpop.f32.mrb[0].mxu0
      %2668 = vmatprep.mubr.bf16.mxu0 0
      %2669 = vmatmul.mubr.bf16.gmra.mrb[0].mxu0 %v2529
      %v2670 = vpop.f32.mrb[0].mxu0
      %v2671 = vadd.f32 0.0, %v2670
      %v2672 = vpop.f32.mrb[0].mxu0
      %v2673 = vpop.f32.mrb[0].mxu0
      %v2674 = vadd.f32 0.0, %v2673
      %v2675 = vpop.f32.mrb[0].mxu0
      %2676 = vmatprep.mubr.bf16.mxu0 0
      %2677 = vmatmul.mubr.bf16.gmra.mrb[0].mxu0 %v2532
      %v2678 = vpop.f32.mrb[0].mxu0
      %v2679 = vadd.f32 0.0, %v2678
      %v2680 = vpop.f32.mrb[0].mxu0
      %v2681 = vpop.f32.mrb[0].mxu0
      %v2682 = vadd.f32 0.0, %v2681
      %v2683 = vpop.f32.mrb[0].mxu0
      %2684 = vmatprep.mubr.bf16.mxu0 0
      %2685 = vmatmul.mubr.bf16.gmra.mrb[0].mxu0 %v2535
      %v2686 = vpop.f32.mrb[0].mxu0
      %v2687 = vadd.f32 0.0, %v2686
      %v2688 = vpop.f32.mrb[0].mxu0
      %v2689 = vpop.f32.mrb[0].mxu0
      %v2690 = vadd.f32 0.0, %v2689
      %v2691 = vpop.f32.mrb[0].mxu0
      %2692 = vmatprep.mubr.bf16.mxu0 0
      %2693 = vmatmul.mubr.bf16.gmra.mrb[0].mxu0 %v2538
      %v2694 = vpop.f32.mrb[0].mxu0
      %v2695 = vadd.f32 0.0, %v2694
      %v2696 = vpop.f32.mrb[0].mxu0
      %v2697 = vpop.f32.mrb[0].mxu0
      %v2698 = vadd.f32 0.0, %v2697
      %v2699 = vpop.f32.mrb[0].mxu0
      %2700 = vdwg.mxu0
      %v2701 = vadd.f32 %v2331, %v2575
      %v2702 = vadd.f32 %v2332, %v2578
      %v2703 = vadd.f32 %v2333, %v2583
      %v2704 = vadd.f32 %v2334, %v2586
      %v2705 = vadd.f32 %v2335, %v2591
      %v2706 = vadd.f32 %v2336, %v2594
      %v2707 = vadd.f32 %v2337, %v2599
      %v2708 = vadd.f32 %v2338, %v2602
      %v2709 = vadd.f32 %v2339, %v2607
      %v2710 = vadd.f32 %v2340, %v2610
      %v2711 = vadd.f32 %v2341, %v2615
      %v2712 = vadd.f32 %v2342, %v2618
      %v2713 = vadd.f32 %v2343, %v2623
      %v2714 = vadd.f32 %v2344, %v2626
      %v2715 = vadd.f32 %v2345, %v2631
      %v2716 = vadd.f32 %v2346, %v2634
      %v2717 = vadd.f32 %v2347, %v2639
      %v2718 = vadd.f32 %v2348, %v2642
      %v2719 = vadd.f32 %v2349, %v2647
      %v2720 = vadd.f32 %v2350, %v2650
      %v2721 = vadd.f32 %v2351, %v2655
      %v2722 = vadd.f32 %v2352, %v2658
      %v2723 = vadd.f32 %v2353, %v2663
      %v2724 = vadd.f32 %v2354, %v2666
      %v2725 = vadd.f32 %v2355, %v2671
      %v2726 = vadd.f32 %v2356, %v2674
      %v2727 = vadd.f32 %v2357, %v2679
      %v2728 = vadd.f32 %v2358, %v2682
      %v2729 = vadd.f32 %v2359, %v2687
      %v2730 = vadd.f32 %v2360, %v2690
      %v2731 = vadd.f32 %v2361, %v2695
      %v2732 = vadd.f32 %v2362, %v2698
      %v2733 = vld [vmem:[%s2363] sm:$0xf]
      %v2734 = vld [vmem:[%s2363 + $0x4] sm:$0xf]
      %v2735 = vld [vmem:[%s2363 + $0x8] sm:$0x1]
      %v2736 = vld [vmem:[%s2363 + $0xc] sm:$0xf]
      %v2737 = vld [vmem:[%s2363 + $0x10] sm:$0xf]
      %v2738 = vld [vmem:[%s2363 + $0x14] sm:$0x1]
      %v2739 = vld [vmem:[%s2363 + $0x18] sm:$0xf]
      %v2740 = vld [vmem:[%s2363 + $0x1c] sm:$0xf]
      %v2741 = vld [vmem:[%s2363 + $0x20] sm:$0x1]
      %v2742 = vld [vmem:[%s2363 + $0x24] sm:$0xf]
      %v2743 = vld [vmem:[%s2363 + $0x28] sm:$0xf]
      %v2744 = vld [vmem:[%s2363 + $0x2c] sm:$0x1]
      %v2745 = vld [vmem:[%s2363 + $0x30] sm:$0xf]
      %v2746 = vld [vmem:[%s2363 + $0x34] sm:$0xf]
      %v2747 = vld [vmem:[%s2363 + $0x38] sm:$0x1]
      %v2748 = vld [vmem:[%s2363 + $0x3c] sm:$0xf]
      %v2749 = vld [vmem:[%s2363 + $0x40] sm:$0xf]
      %v2750 = vld [vmem:[%s2363 + $0x44] sm:$0x1]
      %v2751 = vld [vmem:[%s2363 + $0x48] sm:$0xf]
      %v2752 = vld [vmem:[%s2363 + $0x4c] sm:$0xf]
      %v2753 = vld [vmem:[%s2363 + $0x50] sm:$0x1]
      %v2754 = vld [vmem:[%s2363 + $0x54] sm:$0xf]
      %v2755 = vld [vmem:[%s2363 + $0x58] sm:$0xf]
      %v2756 = vld [vmem:[%s2363 + $0x5c] sm:$0x1]
      %v2757 = vld [vmem:[%s2363 + $0x60] sm:$0xf]
      %v2758 = vld [vmem:[%s2363 + $0x64] sm:$0xf]
      %v2759 = vld [vmem:[%s2363 + $0x68] sm:$0x1]
      %v2760 = vld [vmem:[%s2363 + $0x6c] sm:$0xf]
      %v2761 = vld [vmem:[%s2363 + $0x70] sm:$0xf]
      %v2762 = vld [vmem:[%s2363 + $0x74] sm:$0x1]
      %v2763 = vld [vmem:[%s2363 + $0x78] sm:$0xf]
      %v2764 = vld [vmem:[%s2363 + $0x7c] sm:$0xf]
      %v2765 = vld [vmem:[%s2363 + $0x80] sm:$0x1]
      %v2766 = vld [vmem:[%s2363 + $0x84] sm:$0xf]
      %v2767 = vld [vmem:[%s2363 + $0x88] sm:$0xf]
      %v2768 = vld [vmem:[%s2363 + $0x8c] sm:$0x1]
      %v2769 = vld [vmem:[%s2363 + $0x90] sm:$0xf]
      %v2770 = vld [vmem:[%s2363 + $0x94] sm:$0xf]
      %v2771 = vld [vmem:[%s2363 + $0x98] sm:$0x1]
      %v2772 = vld [vmem:[%s2363 + $0x9c] sm:$0xf]
      %v2773 = vld [vmem:[%s2363 + $0xa0] sm:$0xf]
      %v2774 = vld [vmem:[%s2363 + $0xa4] sm:$0x1]
      %v2775 = vld [vmem:[%s2363 + $0xa8] sm:$0xf]
      %v2776 = vld [vmem:[%s2363 + $0xac] sm:$0xf]
      %v2777 = vld [vmem:[%s2363 + $0xb0] sm:$0x1]
      %v2778 = vld [vmem:[%s2363 + $0xb4] sm:$0xf]
      %v2779 = vld [vmem:[%s2363 + $0xb8] sm:$0xf]
      %v2780 = vld [vmem:[%s2363 + $0xbc] sm:$0x1]
      %v2782 = vshrl.u32 %v2733, 16
      %v2784 = vrot.slane %v2782, 4
      %v2785 = vshll.u32 %v2733, 16
      %v2787 = vrot.slane %v2785, 5
      %v2788 = vor.u32 %v2784, %v2787
      %v2789 = vrot.slane %v2788, 4
      %v2791 = vshll.u32 %v2734, 16
      %v2793 = vrot.slane %v2791, 5
      %v2794 = vsel %vm935, %v2789, %v2793
      %v2795 = vshrl.u32 %v2734, 16
      %v2797 = vrot.slane %v2795, 4
      %v2798 = vor.u32 %v2797, %v2793
      %v2799 = vrot.slane %v2798, 4
      %v2801 = vshll.u32 %v2735, 16
      %v2803 = vrot.slane %v2801, 5
      %v2804 = vsel %vm935, %v2799, %v2803
      %v2806 = vshrl.u32 %v2736, 16
      %v2808 = vrot.slane %v2806, 4
      %v2809 = vshll.u32 %v2736, 16
      %v2811 = vrot.slane %v2809, 5
      %v2812 = vor.u32 %v2808, %v2811
      %v2813 = vrot.slane %v2812, 4
      %v2815 = vshll.u32 %v2737, 16
      %v2817 = vrot.slane %v2815, 5
      %v2818 = vsel %vm935, %v2813, %v2817
      %v2819 = vshrl.u32 %v2737, 16
      %v2821 = vrot.slane %v2819, 4
      %v2822 = vor.u32 %v2821, %v2817
      %v2823 = vrot.slane %v2822, 4
      %v2825 = vshll.u32 %v2738, 16
      %v2827 = vrot.slane %v2825, 5
      %v2828 = vsel %vm935, %v2823, %v2827
      %v2830 = vshrl.u32 %v2739, 16
      %v2832 = vrot.slane %v2830, 4
      %v2833 = vshll.u32 %v2739, 16
      %v2835 = vrot.slane %v2833, 5
      %v2836 = vor.u32 %v2832, %v2835
      %v2837 = vrot.slane %v2836, 4
      %v2839 = vshll.u32 %v2740, 16
      %v2841 = vrot.slane %v2839, 5
      %v2842 = vsel %vm935, %v2837, %v2841
      %v2843 = vshrl.u32 %v2740, 16
      %v2845 = vrot.slane %v2843, 4
      %v2846 = vor.u32 %v2845, %v2841
      %v2847 = vrot.slane %v2846, 4
      %v2849 = vshll.u32 %v2741, 16
      %v2851 = vrot.slane %v2849, 5
      %v2852 = vsel %vm935, %v2847, %v2851
      %v2854 = vshrl.u32 %v2742, 16
      %v2856 = vrot.slane %v2854, 4
      %v2857 = vshll.u32 %v2742, 16
      %v2859 = vrot.slane %v2857, 5
      %v2860 = vor.u32 %v2856, %v2859
      %v2861 = vrot.slane %v2860, 4
      %v2863 = vshll.u32 %v2743, 16
      %v2865 = vrot.slane %v2863, 5
      %v2866 = vsel %vm935, %v2861, %v2865
      %v2867 = vshrl.u32 %v2743, 16
      %v2869 = vrot.slane %v2867, 4
      %v2870 = vor.u32 %v2869, %v2865
      %v2871 = vrot.slane %v2870, 4
      %v2873 = vshll.u32 %v2744, 16
      %v2875 = vrot.slane %v2873, 5
      %v2876 = vsel %vm935, %v2871, %v2875
      %v2878 = vshrl.u32 %v2745, 16
      %v2880 = vrot.slane %v2878, 4
      %v2881 = vshll.u32 %v2745, 16
      %v2883 = vrot.slane %v2881, 5
      %v2884 = vor.u32 %v2880, %v2883
      %v2885 = vrot.slane %v2884, 4
      %v2887 = vshll.u32 %v2746, 16
      %v2889 = vrot.slane %v2887, 5
      %v2890 = vsel %vm935, %v2885, %v2889
      %v2891 = vshrl.u32 %v2746, 16
      %v2893 = vrot.slane %v2891, 4
      %v2894 = vor.u32 %v2893, %v2889
      %v2895 = vrot.slane %v2894, 4
      %v2897 = vshll.u32 %v2747, 16
      %v2899 = vrot.slane %v2897, 5
      %v2900 = vsel %vm935, %v2895, %v2899
      %v2902 = vshrl.u32 %v2748, 16
      %v2904 = vrot.slane %v2902, 4
      %v2905 = vshll.u32 %v2748, 16
      %v2907 = vrot.slane %v2905, 5
      %v2908 = vor.u32 %v2904, %v2907
      %v2909 = vrot.slane %v2908, 4
      %v2911 = vshll.u32 %v2749, 16
      %v2913 = vrot.slane %v2911, 5
      %v2914 = vsel %vm935, %v2909, %v2913
      %v2915 = vshrl.u32 %v2749, 16
      %v2917 = vrot.slane %v2915, 4
      %v2918 = vor.u32 %v2917, %v2913
      %v2919 = vrot.slane %v2918, 4
      %v2921 = vshll.u32 %v2750, 16
      %v2923 = vrot.slane %v2921, 5
      %v2924 = vsel %vm935, %v2919, %v2923
      %v2926 = vshrl.u32 %v2751, 16
      %v2928 = vrot.slane %v2926, 4
      %v2929 = vshll.u32 %v2751, 16
      %v2931 = vrot.slane %v2929, 5
      %v2932 = vor.u32 %v2928, %v2931
      %v2933 = vrot.slane %v2932, 4
      %v2935 = vshll.u32 %v2752, 16
      %v2937 = vrot.slane %v2935, 5
      %v2938 = vsel %vm935, %v2933, %v2937
      %v2939 = vshrl.u32 %v2752, 16
      %v2941 = vrot.slane %v2939, 4
      %v2942 = vor.u32 %v2941, %v2937
      %v2943 = vrot.slane %v2942, 4
      %v2945 = vshll.u32 %v2753, 16
      %v2947 = vrot.slane %v2945, 5
      %v2948 = vsel %vm935, %v2943, %v2947
      %v2950 = vshrl.u32 %v2754, 16
      %v2952 = vrot.slane %v2950, 4
      %v2953 = vshll.u32 %v2754, 16
      %v2955 = vrot.slane %v2953, 5
      %v2956 = vor.u32 %v2952, %v2955
      %v2957 = vrot.slane %v2956, 4
      %v2959 = vshll.u32 %v2755, 16
      %v2961 = vrot.slane %v2959, 5
      %v2962 = vsel %vm935, %v2957, %v2961
      %v2963 = vshrl.u32 %v2755, 16
      %v2965 = vrot.slane %v2963, 4
      %v2966 = vor.u32 %v2965, %v2961
      %v2967 = vrot.slane %v2966, 4
      %v2969 = vshll.u32 %v2756, 16
      %v2971 = vrot.slane %v2969, 5
      %v2972 = vsel %vm935, %v2967, %v2971
      %v2974 = vshrl.u32 %v2757, 16
      %v2976 = vrot.slane %v2974, 4
      %v2977 = vshll.u32 %v2757, 16
      %v2979 = vrot.slane %v2977, 5
      %v2980 = vor.u32 %v2976, %v2979
      %v2981 = vrot.slane %v2980, 4
      %v2983 = vshll.u32 %v2758, 16
      %v2985 = vrot.slane %v2983, 5
      %v2986 = vsel %vm935, %v2981, %v2985
      %v2987 = vshrl.u32 %v2758, 16
      %v2989 = vrot.slane %v2987, 4
      %v2990 = vor.u32 %v2989, %v2985
      %v2991 = vrot.slane %v2990, 4
      %v2993 = vshll.u32 %v2759, 16
      %v2995 = vrot.slane %v2993, 5
      %v2996 = vsel %vm935, %v2991, %v2995
      %v2998 = vshrl.u32 %v2760, 16
      %v3000 = vrot.slane %v2998, 4
      %v3001 = vshll.u32 %v2760, 16
      %v3003 = vrot.slane %v3001, 5
      %v3004 = vor.u32 %v3000, %v3003
      %v3005 = vrot.slane %v3004, 4
      %v3007 = vshll.u32 %v2761, 16
      %v3009 = vrot.slane %v3007, 5
      %v3010 = vsel %vm935, %v3005, %v3009
      %v3011 = vshrl.u32 %v2761, 16
      %v3013 = vrot.slane %v3011, 4
      %v3014 = vor.u32 %v3013, %v3009
      %v3015 = vrot.slane %v3014, 4
      %v3017 = vshll.u32 %v2762, 16
      %v3019 = vrot.slane %v3017, 5
      %v3020 = vsel %vm935, %v3015, %v3019
      %v3022 = vshrl.u32 %v2763, 16
      %v3024 = vrot.slane %v3022, 4
      %v3025 = vshll.u32 %v2763, 16
      %v3027 = vrot.slane %v3025, 5
      %v3028 = vor.u32 %v3024, %v3027
      %v3029 = vrot.slane %v3028, 4
      %v3031 = vshll.u32 %v2764, 16
      %v3033 = vrot.slane %v3031, 5
      %v3034 = vsel %vm935, %v3029, %v3033
      %v3035 = vshrl.u32 %v2764, 16
      %v3037 = vrot.slane %v3035, 4
      %v3038 = vor.u32 %v3037, %v3033
      %v3039 = vrot.slane %v3038, 4
      %v3041 = vshll.u32 %v2765, 16
      %v3043 = vrot.slane %v3041, 5
      %v3044 = vsel %vm935, %v3039, %v3043
      %v3046 = vshrl.u32 %v2766, 16
      %v3048 = vrot.slane %v3046, 4
      %v3049 = vshll.u32 %v2766, 16
      %v3051 = vrot.slane %v3049, 5
      %v3052 = vor.u32 %v3048, %v3051
      %v3053 = vrot.slane %v3052, 4
      %v3055 = vshll.u32 %v2767, 16
      %v3057 = vrot.slane %v3055, 5
      %v3058 = vsel %vm935, %v3053, %v3057
      %v3059 = vshrl.u32 %v2767, 16
      %v3061 = vrot.slane %v3059, 4
      %v3062 = vor.u32 %v3061, %v3057
      %v3063 = vrot.slane %v3062, 4
      %v3065 = vshll.u32 %v2768, 16
      %v3067 = vrot.slane %v3065, 5
      %v3068 = vsel %vm935, %v3063, %v3067
      %v3070 = vshrl.u32 %v2769, 16
      %v3072 = vrot.slane %v3070, 4
      %v3073 = vshll.u32 %v2769, 16
      %v3075 = vrot.slane %v3073, 5
      %v3076 = vor.u32 %v3072, %v3075
      %v3077 = vrot.slane %v3076, 4
      %v3079 = vshll.u32 %v2770, 16
      %v3081 = vrot.slane %v3079, 5
      %v3082 = vsel %vm935, %v3077, %v3081
      %v3083 = vshrl.u32 %v2770, 16
      %v3085 = vrot.slane %v3083, 4
      %v3086 = vor.u32 %v3085, %v3081
      %v3087 = vrot.slane %v3086, 4
      %v3089 = vshll.u32 %v2771, 16
      %v3091 = vrot.slane %v3089, 5
      %v3092 = vsel %vm935, %v3087, %v3091
      %v3094 = vshrl.u32 %v2772, 16
      %v3096 = vrot.slane %v3094, 4
      %v3097 = vshll.u32 %v2772, 16
      %v3099 = vrot.slane %v3097, 5
      %v3100 = vor.u32 %v3096, %v3099
      %v3101 = vrot.slane %v3100, 4
      %v3103 = vshll.u32 %v2773, 16
      %v3105 = vrot.slane %v3103, 5
      %v3106 = vsel %vm935, %v3101, %v3105
      %v3107 = vshrl.u32 %v2773, 16
      %v3109 = vrot.slane %v3107, 4
      %v3110 = vor.u32 %v3109, %v3105
      %v3111 = vrot.slane %v3110, 4
      %v3113 = vshll.u32 %v2774, 16
      %v3115 = vrot.slane %v3113, 5
      %v3116 = vsel %vm935, %v3111, %v3115
      %v3118 = vshrl.u32 %v2775, 16
      %v3120 = vrot.slane %v3118, 4
      %v3121 = vshll.u32 %v2775, 16
      %v3123 = vrot.slane %v3121, 5
      %v3124 = vor.u32 %v3120, %v3123
      %v3125 = vrot.slane %v3124, 4
      %v3127 = vshll.u32 %v2776, 16
      %v3129 = vrot.slane %v3127, 5
      %v3130 = vsel %vm935, %v3125, %v3129
      %v3131 = vshrl.u32 %v2776, 16
      %v3133 = vrot.slane %v3131, 4
      %v3134 = vor.u32 %v3133, %v3129
      %v3135 = vrot.slane %v3134, 4
      %v3137 = vshll.u32 %v2777, 16
      %v3139 = vrot.slane %v3137, 5
      %v3140 = vsel %vm935, %v3135, %v3139
      %v3142 = vshrl.u32 %v2778, 16
      %v3144 = vrot.slane %v3142, 4
      %v3145 = vshll.u32 %v2778, 16
      %v3147 = vrot.slane %v3145, 5
      %v3148 = vor.u32 %v3144, %v3147
      %v3149 = vrot.slane %v3148, 4
      %v3151 = vshll.u32 %v2779, 16
      %v3153 = vrot.slane %v3151, 5
      %v3154 = vsel %vm935, %v3149, %v3153
      %v3155 = vshrl.u32 %v2779, 16
      %v3157 = vrot.slane %v3155, 4
      %v3158 = vor.u32 %v3157, %v3153
      %v3159 = vrot.slane %v3158, 4
      %v3161 = vshll.u32 %v2780, 16
      %v3163 = vrot.slane %v3161, 5
      %v3164 = vsel %vm935, %v3159, %v3163
      %v3165 = vld [vmem:[%s1 + $0x40] sm:$0xf]
      %v3166 = vld [vmem:[%s1 + $0x44] sm:$0xf]
      %v3167 = vld [vmem:[%s1 + $0x48] sm:$0xf]
      %v3168 = vld [vmem:[%s1 + $0x4c] sm:$0xf]
      %v3169 = vunpack.c.l.b16 %v2794
      %v3170 = vunpack.c.l.b16 %v2804
      %v3171 = vunpack.c.l.b16 %v2818
      %v3172 = vunpack.c.l.b16 %v2828
      %v3173 = vunpack.c.l.b16 %v2842
      %v3174 = vunpack.c.l.b16 %v2852
      %v3175 = vunpack.c.l.b16 %v2866
      %v3176 = vunpack.c.l.b16 %v2876
      %v3177 = vunpack.c.l.b16 %v2890
      %v3178 = vunpack.c.l.b16 %v2900
      %v3179 = vunpack.c.l.b16 %v2914
      %v3180 = vunpack.c.l.b16 %v2924
      %v3181 = vunpack.c.l.b16 %v2938
      %v3182 = vunpack.c.l.b16 %v2948
      %v3183 = vunpack.c.l.b16 %v2962
      %v3184 = vunpack.c.l.b16 %v2972
      %v3185 = vunpack.c.l.b16 %v2986
      %v3186 = vunpack.c.l.b16 %v2996
      %v3187 = vunpack.c.l.b16 %v3010
      %v3188 = vunpack.c.l.b16 %v3020
      %v3189 = vunpack.c.l.b16 %v3034
      %v3190 = vunpack.c.l.b16 %v3044
      %v3191 = vunpack.c.l.b16 %v3058
      %v3192 = vunpack.c.l.b16 %v3068
      %v3193 = vunpack.c.l.b16 %v3082
      %v3194 = vunpack.c.l.b16 %v3092
      %v3195 = vunpack.c.l.b16 %v3106
      %v3196 = vunpack.c.l.b16 %v3116
      %v3197 = vunpack.c.l.b16 %v3130
      %v3198 = vunpack.c.l.b16 %v3140
      %v3199 = vunpack.c.l.b16 %v3154
      %v3200 = vunpack.c.l.b16 %v3164
      %v3201 = vpack.c.b16 %v3170, %v3169
      %v3202 = vpack.c.b16 %v3172, %v3171
      %v3203 = vpack.c.b16 %v3174, %v3173
      %v3204 = vpack.c.b16 %v3176, %v3175
      %v3205 = vpack.c.b16 %v3178, %v3177
      %v3206 = vpack.c.b16 %v3180, %v3179
      %v3207 = vpack.c.b16 %v3182, %v3181
      %v3208 = vpack.c.b16 %v3184, %v3183
      %v3209 = vpack.c.b16 %v3186, %v3185
      %v3210 = vpack.c.b16 %v3188, %v3187
      %v3211 = vpack.c.b16 %v3190, %v3189
      %v3212 = vpack.c.b16 %v3192, %v3191
      %v3213 = vpack.c.b16 %v3194, %v3193
      %v3214 = vpack.c.b16 %v3196, %v3195
      %v3215 = vpack.c.b16 %v3198, %v3197
      %v3216 = vpack.c.b16 %v3200, %v3199
      %v3221 = vunpack.c.l.b16 %v3165
      %v3222 = vunpack.c.l.b16 %v3166
      %v3223 = vunpack.c.l.b16 %v3167
      %v3224 = vunpack.c.l.b16 %v3168
      %v3225 = vpack.c.b16 %v3222, %v3221
      %v3226 = vpack.c.b16 %v3224, %v3223
      %v3230 = vsel %vm1384, %v3201, 0
      %v3233 = vsel %vm1384, %v3202, 0
      %v3236 = vsel %vm1384, %v3203, 0
      %v3239 = vsel %vm1384, %v3204, 0
      %v3242 = vsel %vm1384, %v3205, 0
      %v3245 = vsel %vm1384, %v3206, 0
      %v3248 = vsel %vm1384, %v3207, 0
      %v3251 = vsel %vm1384, %v3208, 0
      %v3254 = vsel %vm1384, %v3209, 0
      %v3257 = vsel %vm1384, %v3210, 0
      %v3260 = vsel %vm1384, %v3211, 0
      %v3263 = vsel %vm1384, %v3212, 0
      %v3266 = vsel %vm1384, %v3213, 0
      %v3269 = vsel %vm1384, %v3214, 0
      %v3272 = vsel %vm1384, %v3215, 0
      %v3275 = vsel %vm1384, %v3216, 0
      %3277 = vmatprep.subr.bf16.mxu0 0
      %3278 = vmatpush1.bf16.msra.mxu0 %v3225
      %3279 = vmatprep.subr.bf16.mxu0 0
      %3280 = vmatpush1.bf16.msra.mxu0 %v3226
      %3281 = vmatprep.subr.bf16.mxu0 0
      %3282 = vmatpush1.bf16.msra.mxu0 0
      %3283 = vmatprep.subr.bf16.mxu0 0
      %3284 = vmatpush1.bf16.msra.mxu0 0
      %3285 = vmatprep.subr.bf16.mxu0 0
      %3286 = vmatpush1.bf16.msra.mxu0 0
      %3287 = vmatprep.subr.bf16.mxu0 0
      %3288 = vmatpush1.bf16.msra.mxu0 0
      %3289 = vmatprep.subr.bf16.mxu0 0
      %3290 = vmatpush1.bf16.msra.mxu0 0
      %3291 = vmatprep.subr.bf16.mxu0 0
      %3292 = vmatpush1.bf16.msra.mxu0 0
      %3293 = vmatprep.subr.bf16.mxu0 0
      %3294 = vmatpush1.bf16.msra.mxu0 0
      %3295 = vmatprep.subr.bf16.mxu0 0
      %3296 = vmatpush1.bf16.msra.mxu0 0
      %3297 = vmatprep.subr.bf16.mxu0 0
      %3298 = vmatpush1.bf16.msra.mxu0 0
      %3299 = vmatprep.subr.bf16.mxu0 0
      %3300 = vmatpush1.bf16.msra.mxu0 0
      %3301 = vmatprep.subr.bf16.mxu0 0
      %3302 = vmatpush1.bf16.msra.mxu0 0
      %3303 = vmatprep.subr.bf16.mxu0 0
      %3304 = vmatpush1.bf16.msra.mxu0 0
      %3305 = vmatprep.subr.bf16.mxu0 0
      %3306 = vmatpush1.bf16.msra.mxu0 0
      %3307 = vmatprep.subr.bf16.mxu0 0
      %3308 = vmatpush1.bf16.msra.mxu0 0
      %3309 = vmatprep.mubr.bf16.mxu0 0
      %3310 = vmatmul.mubr.bf16.gmra.mrb[0].mxu0 %v3230
      %v3311 = vpop.f32.mrb[0].mxu0
      %v3312 = vadd.f32 0.0, %v3311
      %v3313 = vpop.f32.mrb[0].mxu0
      %v3314 = vpop.f32.mrb[0].mxu0
      %v3315 = vadd.f32 0.0, %v3314
      %v3316 = vpop.f32.mrb[0].mxu0
      %3317 = vmatprep.mubr.bf16.mxu0 0
      %3318 = vmatmul.mubr.bf16.gmra.mrb[0].mxu0 %v3233
      %v3319 = vpop.f32.mrb[0].mxu0
      %v3320 = vadd.f32 0.0, %v3319
      %v3321 = vpop.f32.mrb[0].mxu0
      %v3322 = vpop.f32.mrb[0].mxu0
      %v3323 = vadd.f32 0.0, %v3322
      %v3324 = vpop.f32.mrb[0].mxu0
      %3325 = vmatprep.mubr.bf16.mxu0 0
      %3326 = vmatmul.mubr.bf16.gmra.mrb[0].mxu0 %v3236
      %v3327 = vpop.f32.mrb[0].mxu0
      %v3328 = vadd.f32 0.0, %v3327
      %v3329 = vpop.f32.mrb[0].mxu0
      %v3330 = vpop.f32.mrb[0].mxu0
      %v3331 = vadd.f32 0.0, %v3330
      %v3332 = vpop.f32.mrb[0].mxu0
      %3333 = vmatprep.mubr.bf16.mxu0 0
      %3334 = vmatmul.mubr.bf16.gmra.mrb[0].mxu0 %v3239
      %v3335 = vpop.f32.mrb[0].mxu0
      %v3336 = vadd.f32 0.0, %v3335
      %v3337 = vpop.f32.mrb[0].mxu0
      %v3338 = vpop.f32.mrb[0].mxu0
      %v3339 = vadd.f32 0.0, %v3338
      %v3340 = vpop.f32.mrb[0].mxu0
      %3341 = vmatprep.mubr.bf16.mxu0 0
      %3342 = vmatmul.mubr.bf16.gmra.mrb[0].mxu0 %v3242
      %v3343 = vpop.f32.mrb[0].mxu0
      %v3344 = vadd.f32 0.0, %v3343
      %v3345 = vpop.f32.mrb[0].mxu0
      %v3346 = vpop.f32.mrb[0].mxu0
      %v3347 = vadd.f32 0.0, %v3346
      %v3348 = vpop.f32.mrb[0].mxu0
      %3349 = vmatprep.mubr.bf16.mxu0 0
      %3350 = vmatmul.mubr.bf16.gmra.mrb[0].mxu0 %v3245
      %v3351 = vpop.f32.mrb[0].mxu0
      %v3352 = vadd.f32 0.0, %v3351
      %v3353 = vpop.f32.mrb[0].mxu0
      %v3354 = vpop.f32.mrb[0].mxu0
      %v3355 = vadd.f32 0.0, %v3354
      %v3356 = vpop.f32.mrb[0].mxu0
      %3357 = vmatprep.mubr.bf16.mxu0 0
      %3358 = vmatmul.mubr.bf16.gmra.mrb[0].mxu0 %v3248
      %v3359 = vpop.f32.mrb[0].mxu0
      %v3360 = vadd.f32 0.0, %v3359
      %v3361 = vpop.f32.mrb[0].mxu0
      %v3362 = vpop.f32.mrb[0].mxu0
      %v3363 = vadd.f32 0.0, %v3362
      %v3364 = vpop.f32.mrb[0].mxu0
      %3365 = vmatprep.mubr.bf16.mxu0 0
      %3366 = vmatmul.mubr.bf16.gmra.mrb[0].mxu0 %v3251
      %v3367 = vpop.f32.mrb[0].mxu0
      %v3368 = vadd.f32 0.0, %v3367
      %v3369 = vpop.f32.mrb[0].mxu0
      %v3370 = vpop.f32.mrb[0].mxu0
      %v3371 = vadd.f32 0.0, %v3370
      %v3372 = vpop.f32.mrb[0].mxu0
      %3373 = vmatprep.mubr.bf16.mxu0 0
      %3374 = vmatmul.mubr.bf16.gmra.mrb[0].mxu0 %v3254
      %v3375 = vpop.f32.mrb[0].mxu0
      %v3376 = vadd.f32 0.0, %v3375
      %v3377 = vpop.f32.mrb[0].mxu0
      %v3378 = vpop.f32.mrb[0].mxu0
      %v3379 = vadd.f32 0.0, %v3378
      %v3380 = vpop.f32.mrb[0].mxu0
      %3381 = vmatprep.mubr.bf16.mxu0 0
      %3382 = vmatmul.mubr.bf16.gmra.mrb[0].mxu0 %v3257
      %v3383 = vpop.f32.mrb[0].mxu0
      %v3384 = vadd.f32 0.0, %v3383
      %v3385 = vpop.f32.mrb[0].mxu0
      %v3386 = vpop.f32.mrb[0].mxu0
      %v3387 = vadd.f32 0.0, %v3386
      %v3388 = vpop.f32.mrb[0].mxu0
      %3389 = vmatprep.mubr.bf16.mxu0 0
      %3390 = vmatmul.mubr.bf16.gmra.mrb[0].mxu0 %v3260
      %v3391 = vpop.f32.mrb[0].mxu0
      %v3392 = vadd.f32 0.0, %v3391
      %v3393 = vpop.f32.mrb[0].mxu0
      %v3394 = vpop.f32.mrb[0].mxu0
      %v3395 = vadd.f32 0.0, %v3394
      %v3396 = vpop.f32.mrb[0].mxu0
      %3397 = vmatprep.mubr.bf16.mxu0 0
      %3398 = vmatmul.mubr.bf16.gmra.mrb[0].mxu0 %v3263
      %v3399 = vpop.f32.mrb[0].mxu0
      %v3400 = vadd.f32 0.0, %v3399
      %v3401 = vpop.f32.mrb[0].mxu0
      %v3402 = vpop.f32.mrb[0].mxu0
      %v3403 = vadd.f32 0.0, %v3402
      %v3404 = vpop.f32.mrb[0].mxu0
      %3405 = vmatprep.mubr.bf16.mxu0 0
      %3406 = vmatmul.mubr.bf16.gmra.mrb[0].mxu0 %v3266
      %v3407 = vpop.f32.mrb[0].mxu0
      %v3408 = vadd.f32 0.0, %v3407
      %v3409 = vpop.f32.mrb[0].mxu0
      %v3410 = vpop.f32.mrb[0].mxu0
      %v3411 = vadd.f32 0.0, %v3410
      %v3412 = vpop.f32.mrb[0].mxu0
      %3413 = vmatprep.mubr.bf16.mxu0 0
      %3414 = vmatmul.mubr.bf16.gmra.mrb[0].mxu0 %v3269
      %v3415 = vpop.f32.mrb[0].mxu0
      %v3416 = vadd.f32 0.0, %v3415
      %v3417 = vpop.f32.mrb[0].mxu0
      %v3418 = vpop.f32.mrb[0].mxu0
      %v3419 = vadd.f32 0.0, %v3418
      %v3420 = vpop.f32.mrb[0].mxu0
      %3421 = vmatprep.mubr.bf16.mxu0 0
      %3422 = vmatmul.mubr.bf16.gmra.mrb[0].mxu0 %v3272
      %v3423 = vpop.f32.mrb[0].mxu0
      %v3424 = vadd.f32 0.0, %v3423
      %v3425 = vpop.f32.mrb[0].mxu0
      %v3426 = vpop.f32.mrb[0].mxu0
      %v3427 = vadd.f32 0.0, %v3426
      %v3428 = vpop.f32.mrb[0].mxu0
      %3429 = vmatprep.mubr.bf16.mxu0 0
      %3430 = vmatmul.mubr.bf16.gmra.mrb[0].mxu0 %v3275
      %v3431 = vpop.f32.mrb[0].mxu0
      %v3432 = vadd.f32 0.0, %v3431
      %v3433 = vpop.f32.mrb[0].mxu0
      %v3434 = vpop.f32.mrb[0].mxu0
      %v3435 = vadd.f32 0.0, %v3434
      %v3436 = vpop.f32.mrb[0].mxu0
      %3437 = vdwg.mxu0
      %v3438 = vadd.f32 %v2701, %v3312
      %v3439 = vadd.f32 %v2702, %v3315
      %v3440 = vadd.f32 %v2703, %v3320
      %v3441 = vadd.f32 %v2704, %v3323
      %v3442 = vadd.f32 %v2705, %v3328
      %v3443 = vadd.f32 %v2706, %v3331
      %v3444 = vadd.f32 %v2707, %v3336
      %v3445 = vadd.f32 %v2708, %v3339
      %v3446 = vadd.f32 %v2709, %v3344
      %v3447 = vadd.f32 %v2710, %v3347
      %v3448 = vadd.f32 %v2711, %v3352
      %v3449 = vadd.f32 %v2712, %v3355
      %v3450 = vadd.f32 %v2713, %v3360
      %v3451 = vadd.f32 %v2714, %v3363
      %v3452 = vadd.f32 %v2715, %v3368
      %v3453 = vadd.f32 %v2716, %v3371
      %v3454 = vadd.f32 %v2717, %v3376
      %v3455 = vadd.f32 %v2718, %v3379
      %v3456 = vadd.f32 %v2719, %v3384
      %v3457 = vadd.f32 %v2720, %v3387
      %v3458 = vadd.f32 %v2721, %v3392
      %v3459 = vadd.f32 %v2722, %v3395
      %v3460 = vadd.f32 %v2723, %v3400
      %v3461 = vadd.f32 %v2724, %v3403
      %v3462 = vadd.f32 %v2725, %v3408
      %v3463 = vadd.f32 %v2726, %v3411
      %v3464 = vadd.f32 %v2727, %v3416
      %v3465 = vadd.f32 %v2728, %v3419
      %v3466 = vadd.f32 %v2729, %v3424
      %v3467 = vadd.f32 %v2730, %v3427
      %v3468 = vadd.f32 %v2731, %v3432
      %v3469 = vadd.f32 %v2732, %v3435
      %v3470 = vld [vmem:[%s2363] sm:$0xe]
      %v3471 = vld [vmem:[%s2363 + $0xc] sm:$0xe]
      %v3472 = vld [vmem:[%s2363 + $0x18] sm:$0xe]
      %v3473 = vld [vmem:[%s2363 + $0x24] sm:$0xe]
      %v3474 = vld [vmem:[%s2363 + $0x30] sm:$0xe]
      %v3475 = vld [vmem:[%s2363 + $0x3c] sm:$0xe]
      %v3476 = vld [vmem:[%s2363 + $0x48] sm:$0xe]
      %v3477 = vld [vmem:[%s2363 + $0x54] sm:$0xe]
      %v3478 = vld [vmem:[%s2363 + $0x60] sm:$0xe]
      %v3479 = vld [vmem:[%s2363 + $0x6c] sm:$0xe]
      %v3480 = vld [vmem:[%s2363 + $0x78] sm:$0xe]
      %v3481 = vld [vmem:[%s2363 + $0x84] sm:$0xe]
      %v3482 = vld [vmem:[%s2363 + $0x90] sm:$0xe]
      %v3483 = vld [vmem:[%s2363 + $0x9c] sm:$0xe]
      %v3484 = vld [vmem:[%s2363 + $0xa8] sm:$0xe]
      %v3485 = vld [vmem:[%s2363 + $0xb4] sm:$0xe]
      %v3534 = vrot.slane %v3470, 5
      %v3535 = vrot.slane %v3534, 4
      %v3536 = vrot.slane %v2734, 5
      %v3537 = vsel %vm1945, %v3535, %v3536
      %v3538 = vrot.slane %v3536, 4
      %v3539 = vrot.slane %v2735, 5
      %v3540 = vsel %vm1945, %v3538, %v3539
      %v3541 = vrot.slane %v3471, 5
      %v3542 = vrot.slane %v3541, 4
      %v3543 = vrot.slane %v2737, 5
      %v3544 = vsel %vm1945, %v3542, %v3543
      %v3545 = vrot.slane %v3543, 4
      %v3546 = vrot.slane %v2738, 5
      %v3547 = vsel %vm1945, %v3545, %v3546
      %v3548 = vrot.slane %v3472, 5
      %v3549 = vrot.slane %v3548, 4
      %v3550 = vrot.slane %v2740, 5
      %v3551 = vsel %vm1945, %v3549, %v3550
      %v3552 = vrot.slane %v3550, 4
      %v3553 = vrot.slane %v2741, 5
      %v3554 = vsel %vm1945, %v3552, %v3553
      %v3555 = vrot.slane %v3473, 5
      %v3556 = vrot.slane %v3555, 4
      %v3557 = vrot.slane %v2743, 5
      %v3558 = vsel %vm1945, %v3556, %v3557
      %v3559 = vrot.slane %v3557, 4
      %v3560 = vrot.slane %v2744, 5
      %v3561 = vsel %vm1945, %v3559, %v3560
      %v3562 = vrot.slane %v3474, 5
      %v3563 = vrot.slane %v3562, 4
      %v3564 = vrot.slane %v2746, 5
      %v3565 = vsel %vm1945, %v3563, %v3564
      %v3566 = vrot.slane %v3564, 4
      %v3567 = vrot.slane %v2747, 5
      %v3568 = vsel %vm1945, %v3566, %v3567
      %v3569 = vrot.slane %v3475, 5
      %v3570 = vrot.slane %v3569, 4
      %v3571 = vrot.slane %v2749, 5
      %v3572 = vsel %vm1945, %v3570, %v3571
      %v3573 = vrot.slane %v3571, 4
      %v3574 = vrot.slane %v2750, 5
      %v3575 = vsel %vm1945, %v3573, %v3574
      %v3576 = vrot.slane %v3476, 5
      %v3577 = vrot.slane %v3576, 4
      %v3578 = vrot.slane %v2752, 5
      %v3579 = vsel %vm1945, %v3577, %v3578
      %v3580 = vrot.slane %v3578, 4
      %v3581 = vrot.slane %v2753, 5
      %v3582 = vsel %vm1945, %v3580, %v3581
      %v3583 = vrot.slane %v3477, 5
      %v3584 = vrot.slane %v3583, 4
      %v3585 = vrot.slane %v2755, 5
      %v3586 = vsel %vm1945, %v3584, %v3585
      %v3587 = vrot.slane %v3585, 4
      %v3588 = vrot.slane %v2756, 5
      %v3589 = vsel %vm1945, %v3587, %v3588
      %v3590 = vrot.slane %v3478, 5
      %v3591 = vrot.slane %v3590, 4
      %v3592 = vrot.slane %v2758, 5
      %v3593 = vsel %vm1945, %v3591, %v3592
      %v3594 = vrot.slane %v3592, 4
      %v3595 = vrot.slane %v2759, 5
      %v3596 = vsel %vm1945, %v3594, %v3595
      %v3597 = vrot.slane %v3479, 5
      %v3598 = vrot.slane %v3597, 4
      %v3599 = vrot.slane %v2761, 5
      %v3600 = vsel %vm1945, %v3598, %v3599
      %v3601 = vrot.slane %v3599, 4
      %v3602 = vrot.slane %v2762, 5
      %v3603 = vsel %vm1945, %v3601, %v3602
      %v3604 = vrot.slane %v3480, 5
      %v3605 = vrot.slane %v3604, 4
      %v3606 = vrot.slane %v2764, 5
      %v3607 = vsel %vm1945, %v3605, %v3606
      %v3608 = vrot.slane %v3606, 4
      %v3609 = vrot.slane %v2765, 5
      %v3610 = vsel %vm1945, %v3608, %v3609
      %v3611 = vrot.slane %v3481, 5
      %v3612 = vrot.slane %v3611, 4
      %v3613 = vrot.slane %v2767, 5
      %v3614 = vsel %vm1945, %v3612, %v3613
      %v3615 = vrot.slane %v3613, 4
      %v3616 = vrot.slane %v2768, 5
      %v3617 = vsel %vm1945, %v3615, %v3616
      %v3618 = vrot.slane %v3482, 5
      %v3619 = vrot.slane %v3618, 4
      %v3620 = vrot.slane %v2770, 5
      %v3621 = vsel %vm1945, %v3619, %v3620
      %v3622 = vrot.slane %v3620, 4
      %v3623 = vrot.slane %v2771, 5
      %v3624 = vsel %vm1945, %v3622, %v3623
      %v3625 = vrot.slane %v3483, 5
      %v3626 = vrot.slane %v3625, 4
      %v3627 = vrot.slane %v2773, 5
      %v3628 = vsel %vm1945, %v3626, %v3627
      %v3629 = vrot.slane %v3627, 4
      %v3630 = vrot.slane %v2774, 5
      %v3631 = vsel %vm1945, %v3629, %v3630
      %v3632 = vrot.slane %v3484, 5
      %v3633 = vrot.slane %v3632, 4
      %v3634 = vrot.slane %v2776, 5
      %v3635 = vsel %vm1945, %v3633, %v3634
      %v3636 = vrot.slane %v3634, 4
      %v3637 = vrot.slane %v2777, 5
      %v3638 = vsel %vm1945, %v3636, %v3637
      %v3639 = vrot.slane %v3485, 5
      %v3640 = vrot.slane %v3639, 4
      %v3641 = vrot.slane %v2779, 5
      %v3642 = vsel %vm1945, %v3640, %v3641
      %v3643 = vrot.slane %v3641, 4
      %v3644 = vrot.slane %v2780, 5
      %v3645 = vsel %vm1945, %v3643, %v3644
      %v3646 = vld [vmem:[%s1 + $0x50] sm:$0xf]
      %v3647 = vld [vmem:[%s1 + $0x54] sm:$0xf]
      %v3648 = vld [vmem:[%s1 + $0x58] sm:$0xf]
      %v3649 = vld [vmem:[%s1 + $0x5c] sm:$0xf]
      %v3650 = vunpack.c.l.b16 %v3537
      %v3651 = vunpack.c.l.b16 %v3540
      %v3652 = vunpack.c.l.b16 %v3544
      %v3653 = vunpack.c.l.b16 %v3547
      %v3654 = vunpack.c.l.b16 %v3551
      %v3655 = vunpack.c.l.b16 %v3554
      %v3656 = vunpack.c.l.b16 %v3558
      %v3657 = vunpack.c.l.b16 %v3561
      %v3658 = vunpack.c.l.b16 %v3565
      %v3659 = vunpack.c.l.b16 %v3568
      %v3660 = vunpack.c.l.b16 %v3572
      %v3661 = vunpack.c.l.b16 %v3575
      %v3662 = vunpack.c.l.b16 %v3579
      %v3663 = vunpack.c.l.b16 %v3582
      %v3664 = vunpack.c.l.b16 %v3586
      %v3665 = vunpack.c.l.b16 %v3589
      %v3666 = vunpack.c.l.b16 %v3593
      %v3667 = vunpack.c.l.b16 %v3596
      %v3668 = vunpack.c.l.b16 %v3600
      %v3669 = vunpack.c.l.b16 %v3603
      %v3670 = vunpack.c.l.b16 %v3607
      %v3671 = vunpack.c.l.b16 %v3610
      %v3672 = vunpack.c.l.b16 %v3614
      %v3673 = vunpack.c.l.b16 %v3617
      %v3674 = vunpack.c.l.b16 %v3621
      %v3675 = vunpack.c.l.b16 %v3624
      %v3676 = vunpack.c.l.b16 %v3628
      %v3677 = vunpack.c.l.b16 %v3631
      %v3678 = vunpack.c.l.b16 %v3635
      %v3679 = vunpack.c.l.b16 %v3638
      %v3680 = vunpack.c.l.b16 %v3642
      %v3681 = vunpack.c.l.b16 %v3645
      %v3682 = vpack.c.b16 %v3651, %v3650
      %v3683 = vpack.c.b16 %v3653, %v3652
      %v3684 = vpack.c.b16 %v3655, %v3654
      %v3685 = vpack.c.b16 %v3657, %v3656
      %v3686 = vpack.c.b16 %v3659, %v3658
      %v3687 = vpack.c.b16 %v3661, %v3660
      %v3688 = vpack.c.b16 %v3663, %v3662
      %v3689 = vpack.c.b16 %v3665, %v3664
      %v3690 = vpack.c.b16 %v3667, %v3666
      %v3691 = vpack.c.b16 %v3669, %v3668
      %v3692 = vpack.c.b16 %v3671, %v3670
      %v3693 = vpack.c.b16 %v3673, %v3672
      %v3694 = vpack.c.b16 %v3675, %v3674
      %v3695 = vpack.c.b16 %v3677, %v3676
      %v3696 = vpack.c.b16 %v3679, %v3678
      %v3697 = vpack.c.b16 %v3681, %v3680
      %v3702 = vunpack.c.l.b16 %v3646
      %v3703 = vunpack.c.l.b16 %v3647
      %v3704 = vunpack.c.l.b16 %v3648
      %v3705 = vunpack.c.l.b16 %v3649
      %v3706 = vpack.c.b16 %v3703, %v3702
      %v3707 = vpack.c.b16 %v3705, %v3704
      %v3711 = vsel %vm1384, %v3682, 0
      %v3714 = vsel %vm1384, %v3683, 0
      %v3717 = vsel %vm1384, %v3684, 0
      %v3720 = vsel %vm1384, %v3685, 0
      %v3723 = vsel %vm1384, %v3686, 0
      %v3726 = vsel %vm1384, %v3687, 0
      %v3729 = vsel %vm1384, %v3688, 0
      %v3732 = vsel %vm1384, %v3689, 0
      %v3735 = vsel %vm1384, %v3690, 0
      %v3738 = vsel %vm1384, %v3691, 0
      %v3741 = vsel %vm1384, %v3692, 0
      %v3744 = vsel %vm1384, %v3693, 0
      %v3747 = vsel %vm1384, %v3694, 0
      %v3750 = vsel %vm1384, %v3695, 0
      %v3753 = vsel %vm1384, %v3696, 0
      %v3756 = vsel %vm1384, %v3697, 0
      %3758 = vmatprep.subr.bf16.mxu0 0
      %3759 = vmatpush1.bf16.msra.mxu0 %v3706
      %3760 = vmatprep.subr.bf16.mxu0 0
      %3761 = vmatpush1.bf16.msra.mxu0 %v3707
      %3762 = vmatprep.subr.bf16.mxu0 0
      %3763 = vmatpush1.bf16.msra.mxu0 0
      %3764 = vmatprep.subr.bf16.mxu0 0
      %3765 = vmatpush1.bf16.msra.mxu0 0
      %3766 = vmatprep.subr.bf16.mxu0 0
      %3767 = vmatpush1.bf16.msra.mxu0 0
      %3768 = vmatprep.subr.bf16.mxu0 0
      %3769 = vmatpush1.bf16.msra.mxu0 0
      %3770 = vmatprep.subr.bf16.mxu0 0
      %3771 = vmatpush1.bf16.msra.mxu0 0
      %3772 = vmatprep.subr.bf16.mxu0 0
      %3773 = vmatpush1.bf16.msra.mxu0 0
      %3774 = vmatprep.subr.bf16.mxu0 0
      %3775 = vmatpush1.bf16.msra.mxu0 0
      %3776 = vmatprep.subr.bf16.mxu0 0
      %3777 = vmatpush1.bf16.msra.mxu0 0
      %3778 = vmatprep.subr.bf16.mxu0 0
      %3779 = vmatpush1.bf16.msra.mxu0 0
      %3780 = vmatprep.subr.bf16.mxu0 0
      %3781 = vmatpush1.bf16.msra.mxu0 0
      %3782 = vmatprep.subr.bf16.mxu0 0
      %3783 = vmatpush1.bf16.msra.mxu0 0
      %3784 = vmatprep.subr.bf16.mxu0 0
      %3785 = vmatpush1.bf16.msra.mxu0 0
      %3786 = vmatprep.subr.bf16.mxu0 0
      %3787 = vmatpush1.bf16.msra.mxu0 0
      %3788 = vmatprep.subr.bf16.mxu0 0
      %3789 = vmatpush1.bf16.msra.mxu0 0
      %3790 = vmatprep.mubr.bf16.mxu0 0
      %3791 = vmatmul.mubr.bf16.gmra.mrb[0].mxu0 %v3711
      %v3792 = vpop.f32.mrb[0].mxu0
      %v3793 = vadd.f32 0.0, %v3792
      %v3794 = vpop.f32.mrb[0].mxu0
      %v3795 = vpop.f32.mrb[0].mxu0
      %v3796 = vadd.f32 0.0, %v3795
      %v3797 = vpop.f32.mrb[0].mxu0
      %3798 = vmatprep.mubr.bf16.mxu0 0
      %3799 = vmatmul.mubr.bf16.gmra.mrb[0].mxu0 %v3714
      %v3800 = vpop.f32.mrb[0].mxu0
      %v3801 = vadd.f32 0.0, %v3800
      %v3802 = vpop.f32.mrb[0].mxu0
      %v3803 = vpop.f32.mrb[0].mxu0
      %v3804 = vadd.f32 0.0, %v3803
      %v3805 = vpop.f32.mrb[0].mxu0
      %3806 = vmatprep.mubr.bf16.mxu0 0
      %3807 = vmatmul.mubr.bf16.gmra.mrb[0].mxu0 %v3717
      %v3808 = vpop.f32.mrb[0].mxu0
      %v3809 = vadd.f32 0.0, %v3808
      %v3810 = vpop.f32.mrb[0].mxu0
      %v3811 = vpop.f32.mrb[0].mxu0
      %v3812 = vadd.f32 0.0, %v3811
      %v3813 = vpop.f32.mrb[0].mxu0
      %3814 = vmatprep.mubr.bf16.mxu0 0
      %3815 = vmatmul.mubr.bf16.gmra.mrb[0].mxu0 %v3720
      %v3816 = vpop.f32.mrb[0].mxu0
      %v3817 = vadd.f32 0.0, %v3816
      %v3818 = vpop.f32.mrb[0].mxu0
      %v3819 = vpop.f32.mrb[0].mxu0
      %v3820 = vadd.f32 0.0, %v3819
      %v3821 = vpop.f32.mrb[0].mxu0
      %3822 = vmatprep.mubr.bf16.mxu0 0
      %3823 = vmatmul.mubr.bf16.gmra.mrb[0].mxu0 %v3723
      %v3824 = vpop.f32.mrb[0].mxu0
      %v3825 = vadd.f32 0.0, %v3824
      %v3826 = vpop.f32.mrb[0].mxu0
      %v3827 = vpop.f32.mrb[0].mxu0
      %v3828 = vadd.f32 0.0, %v3827
      %v3829 = vpop.f32.mrb[0].mxu0
      %3830 = vmatprep.mubr.bf16.mxu0 0
      %3831 = vmatmul.mubr.bf16.gmra.mrb[0].mxu0 %v3726
      %v3832 = vpop.f32.mrb[0].mxu0
      %v3833 = vadd.f32 0.0, %v3832
      %v3834 = vpop.f32.mrb[0].mxu0
      %v3835 = vpop.f32.mrb[0].mxu0
      %v3836 = vadd.f32 0.0, %v3835
      %v3837 = vpop.f32.mrb[0].mxu0
      %3838 = vmatprep.mubr.bf16.mxu0 0
      %3839 = vmatmul.mubr.bf16.gmra.mrb[0].mxu0 %v3729
      %v3840 = vpop.f32.mrb[0].mxu0
      %v3841 = vadd.f32 0.0, %v3840
      %v3842 = vpop.f32.mrb[0].mxu0
      %v3843 = vpop.f32.mrb[0].mxu0
      %v3844 = vadd.f32 0.0, %v3843
      %v3845 = vpop.f32.mrb[0].mxu0
      %3846 = vmatprep.mubr.bf16.mxu0 0
      %3847 = vmatmul.mubr.bf16.gmra.mrb[0].mxu0 %v3732
      %v3848 = vpop.f32.mrb[0].mxu0
      %v3849 = vadd.f32 0.0, %v3848
      %v3850 = vpop.f32.mrb[0].mxu0
      %v3851 = vpop.f32.mrb[0].mxu0
      %v3852 = vadd.f32 0.0, %v3851
      %v3853 = vpop.f32.mrb[0].mxu0
      %3854 = vmatprep.mubr.bf16.mxu0 0
      %3855 = vmatmul.mubr.bf16.gmra.mrb[0].mxu0 %v3735
      %v3856 = vpop.f32.mrb[0].mxu0
      %v3857 = vadd.f32 0.0, %v3856
      %v3858 = vpop.f32.mrb[0].mxu0
      %v3859 = vpop.f32.mrb[0].mxu0
      %v3860 = vadd.f32 0.0, %v3859
      %v3861 = vpop.f32.mrb[0].mxu0
      %3862 = vmatprep.mubr.bf16.mxu0 0
      %3863 = vmatmul.mubr.bf16.gmra.mrb[0].mxu0 %v3738
      %v3864 = vpop.f32.mrb[0].mxu0
      %v3865 = vadd.f32 0.0, %v3864
      %v3866 = vpop.f32.mrb[0].mxu0
      %v3867 = vpop.f32.mrb[0].mxu0
      %v3868 = vadd.f32 0.0, %v3867
      %v3869 = vpop.f32.mrb[0].mxu0
      %3870 = vmatprep.mubr.bf16.mxu0 0
      %3871 = vmatmul.mubr.bf16.gmra.mrb[0].mxu0 %v3741
      %v3872 = vpop.f32.mrb[0].mxu0
      %v3873 = vadd.f32 0.0, %v3872
      %v3874 = vpop.f32.mrb[0].mxu0
      %v3875 = vpop.f32.mrb[0].mxu0
      %v3876 = vadd.f32 0.0, %v3875
      %v3877 = vpop.f32.mrb[0].mxu0
      %3878 = vmatprep.mubr.bf16.mxu0 0
      %3879 = vmatmul.mubr.bf16.gmra.mrb[0].mxu0 %v3744
      %v3880 = vpop.f32.mrb[0].mxu0
      %v3881 = vadd.f32 0.0, %v3880
      %v3882 = vpop.f32.mrb[0].mxu0
      %v3883 = vpop.f32.mrb[0].mxu0
      %v3884 = vadd.f32 0.0, %v3883
      %v3885 = vpop.f32.mrb[0].mxu0
      %3886 = vmatprep.mubr.bf16.mxu0 0
      %3887 = vmatmul.mubr.bf16.gmra.mrb[0].mxu0 %v3747
      %v3888 = vpop.f32.mrb[0].mxu0
      %v3889 = vadd.f32 0.0, %v3888
      %v3890 = vpop.f32.mrb[0].mxu0
      %v3891 = vpop.f32.mrb[0].mxu0
      %v3892 = vadd.f32 0.0, %v3891
      %v3893 = vpop.f32.mrb[0].mxu0
      %3894 = vmatprep.mubr.bf16.mxu0 0
      %3895 = vmatmul.mubr.bf16.gmra.mrb[0].mxu0 %v3750
      %v3896 = vpop.f32.mrb[0].mxu0
      %v3897 = vadd.f32 0.0, %v3896
      %v3898 = vpop.f32.mrb[0].mxu0
      %v3899 = vpop.f32.mrb[0].mxu0
      %v3900 = vadd.f32 0.0, %v3899
      %v3901 = vpop.f32.mrb[0].mxu0
      %3902 = vmatprep.mubr.bf16.mxu0 0
      %3903 = vmatmul.mubr.bf16.gmra.mrb[0].mxu0 %v3753
      %v3904 = vpop.f32.mrb[0].mxu0
      %v3905 = vadd.f32 0.0, %v3904
      %v3906 = vpop.f32.mrb[0].mxu0
      %v3907 = vpop.f32.mrb[0].mxu0
      %v3908 = vadd.f32 0.0, %v3907
      %v3909 = vpop.f32.mrb[0].mxu0
      %3910 = vmatprep.mubr.bf16.mxu0 0
      %3911 = vmatmul.mubr.bf16.gmra.mrb[0].mxu0 %v3756
      %v3912 = vpop.f32.mrb[0].mxu0
      %v3913 = vadd.f32 0.0, %v3912
      %v3914 = vpop.f32.mrb[0].mxu0
      %v3915 = vpop.f32.mrb[0].mxu0
      %v3916 = vadd.f32 0.0, %v3915
      %v3917 = vpop.f32.mrb[0].mxu0
      %3918 = vdwg.mxu0
      %v3919 = vadd.f32 %v3438, %v3793
      %v3920 = vadd.f32 %v3439, %v3796
      %v3921 = vadd.f32 %v3440, %v3801
      %v3922 = vadd.f32 %v3441, %v3804
      %v3923 = vadd.f32 %v3442, %v3809
      %v3924 = vadd.f32 %v3443, %v3812
      %v3925 = vadd.f32 %v3444, %v3817
      %v3926 = vadd.f32 %v3445, %v3820
      %v3927 = vadd.f32 %v3446, %v3825
      %v3928 = vadd.f32 %v3447, %v3828
      %v3929 = vadd.f32 %v3448, %v3833
      %v3930 = vadd.f32 %v3449, %v3836
      %v3931 = vadd.f32 %v3450, %v3841
      %v3932 = vadd.f32 %v3451, %v3844
      %v3933 = vadd.f32 %v3452, %v3849
      %v3934 = vadd.f32 %v3453, %v3852
      %v3935 = vadd.f32 %v3454, %v3857
      %v3936 = vadd.f32 %v3455, %v3860
      %v3937 = vadd.f32 %v3456, %v3865
      %v3938 = vadd.f32 %v3457, %v3868
      %v3939 = vadd.f32 %v3458, %v3873
      %v3940 = vadd.f32 %v3459, %v3876
      %v3941 = vadd.f32 %v3460, %v3881
      %v3942 = vadd.f32 %v3461, %v3884
      %v3943 = vadd.f32 %v3462, %v3889
      %v3944 = vadd.f32 %v3463, %v3892
      %v3945 = vadd.f32 %v3464, %v3897
      %v3946 = vadd.f32 %v3465, %v3900
      %v3947 = vadd.f32 %v3466, %v3905
      %v3948 = vadd.f32 %v3467, %v3908
      %v3949 = vadd.f32 %v3468, %v3913
      %v3950 = vadd.f32 %v3469, %v3916
      %s3951 = scalar_lea.vmem [#allocation2], 24
      %v3952 = vld [vmem:[%s3951] sm:$0xf]
      %v3953 = vld [vmem:[%s3951 + $0x4] sm:$0xf]
      %v3954 = vld [vmem:[%s3951 + $0xc] sm:$0xf]
      %v3955 = vld [vmem:[%s3951 + $0x10] sm:$0xf]
      %v3956 = vld [vmem:[%s3951 + $0x18] sm:$0xf]
      %v3957 = vld [vmem:[%s3951 + $0x1c] sm:$0xf]
      %v3958 = vld [vmem:[%s3951 + $0x24] sm:$0xf]
      %v3959 = vld [vmem:[%s3951 + $0x28] sm:$0xf]
      %v3960 = vld [vmem:[%s3951 + $0x30] sm:$0xf]
      %v3961 = vld [vmem:[%s3951 + $0x34] sm:$0xf]
      %v3962 = vld [vmem:[%s3951 + $0x3c] sm:$0xf]
      %v3963 = vld [vmem:[%s3951 + $0x40] sm:$0xf]
      %v3964 = vld [vmem:[%s3951 + $0x48] sm:$0xf]
      %v3965 = vld [vmem:[%s3951 + $0x4c] sm:$0xf]
      %v3966 = vld [vmem:[%s3951 + $0x54] sm:$0xf]
      %v3967 = vld [vmem:[%s3951 + $0x58] sm:$0xf]
      %v3968 = vld [vmem:[%s3951 + $0x60] sm:$0xf]
      %v3969 = vld [vmem:[%s3951 + $0x64] sm:$0xf]
      %v3970 = vld [vmem:[%s3951 + $0x6c] sm:$0xf]
      %v3971 = vld [vmem:[%s3951 + $0x70] sm:$0xf]
      %v3972 = vld [vmem:[%s3951 + $0x78] sm:$0xf]
      %v3973 = vld [vmem:[%s3951 + $0x7c] sm:$0xf]
      %v3974 = vld [vmem:[%s3951 + $0x84] sm:$0xf]
      %v3975 = vld [vmem:[%s3951 + $0x88] sm:$0xf]
      %v3976 = vld [vmem:[%s3951 + $0x90] sm:$0xf]
      %v3977 = vld [vmem:[%s3951 + $0x94] sm:$0xf]
      %v3978 = vld [vmem:[%s3951 + $0x9c] sm:$0xf]
      %v3979 = vld [vmem:[%s3951 + $0xa0] sm:$0xf]
      %v3980 = vld [vmem:[%s3951 + $0xa8] sm:$0xf]
      %v3981 = vld [vmem:[%s3951 + $0xac] sm:$0xf]
      %v3982 = vld [vmem:[%s3951 + $0xb4] sm:$0xf]
      %v3983 = vld [vmem:[%s3951 + $0xb8] sm:$0xf]
      %v3984 = vld [vmem:[%s1 + $0x60] sm:$0xf]
      %v3985 = vld [vmem:[%s1 + $0x64] sm:$0xf]
      %v3986 = vld [vmem:[%s1 + $0x68] sm:$0xf]
      %v3987 = vld [vmem:[%s1 + $0x6c] sm:$0xf]
      %v4020 = vunpack.c.l.b16 %v3952
      %v4021 = vunpack.c.l.b16 %v3953
      %v4022 = vunpack.c.l.b16 %v3954
      %v4023 = vunpack.c.l.b16 %v3955
      %v4024 = vunpack.c.l.b16 %v3956
      %v4025 = vunpack.c.l.b16 %v3957
      %v4026 = vunpack.c.l.b16 %v3958
      %v4027 = vunpack.c.l.b16 %v3959
      %v4028 = vunpack.c.l.b16 %v3960
      %v4029 = vunpack.c.l.b16 %v3961
      %v4030 = vunpack.c.l.b16 %v3962
      %v4031 = vunpack.c.l.b16 %v3963
      %v4032 = vunpack.c.l.b16 %v3964
      %v4033 = vunpack.c.l.b16 %v3965
      %v4034 = vunpack.c.l.b16 %v3966
      %v4035 = vunpack.c.l.b16 %v3967
      %v4036 = vunpack.c.l.b16 %v3968
      %v4037 = vunpack.c.l.b16 %v3969
      %v4038 = vunpack.c.l.b16 %v3970
      %v4039 = vunpack.c.l.b16 %v3971
      %v4040 = vunpack.c.l.b16 %v3972
      %v4041 = vunpack.c.l.b16 %v3973
      %v4042 = vunpack.c.l.b16 %v3974
      %v4043 = vunpack.c.l.b16 %v3975
      %v4044 = vunpack.c.l.b16 %v3976
      %v4045 = vunpack.c.l.b16 %v3977
      %v4046 = vunpack.c.l.b16 %v3978
      %v4047 = vunpack.c.l.b16 %v3979
      %v4048 = vunpack.c.l.b16 %v3980
      %v4049 = vunpack.c.l.b16 %v3981
      %v4050 = vunpack.c.l.b16 %v3982
      %v4051 = vunpack.c.l.b16 %v3983
      %v4052 = vpack.c.b16 %v4021, %v4020
      %v4053 = vpack.c.b16 %v4023, %v4022
      %v4054 = vpack.c.b16 %v4025, %v4024
      %v4055 = vpack.c.b16 %v4027, %v4026
      %v4056 = vpack.c.b16 %v4029, %v4028
      %v4057 = vpack.c.b16 %v4031, %v4030
      %v4058 = vpack.c.b16 %v4033, %v4032
      %v4059 = vpack.c.b16 %v4035, %v4034
      %v4060 = vpack.c.b16 %v4037, %v4036
      %v4061 = vpack.c.b16 %v4039, %v4038
      %v4062 = vpack.c.b16 %v4041, %v4040
      %v4063 = vpack.c.b16 %v4043, %v4042
      %v4064 = vpack.c.b16 %v4045, %v4044
      %v4065 = vpack.c.b16 %v4047, %v4046
      %v4066 = vpack.c.b16 %v4049, %v4048
      %v4067 = vpack.c.b16 %v4051, %v4050
      %v4072 = vunpack.c.l.b16 %v3984
      %v4073 = vunpack.c.l.b16 %v3985
      %v4074 = vunpack.c.l.b16 %v3986
      %v4075 = vunpack.c.l.b16 %v3987
      %v4076 = vpack.c.b16 %v4073, %v4072
      %v4077 = vpack.c.b16 %v4075, %v4074
      %v4081 = vsel %vm1384, %v4052, 0
      %v4084 = vsel %vm1384, %v4053, 0
      %v4087 = vsel %vm1384, %v4054, 0
      %v4090 = vsel %vm1384, %v4055, 0
      %v4093 = vsel %vm1384, %v4056, 0
      %v4096 = vsel %vm1384, %v4057, 0
      %v4099 = vsel %vm1384, %v4058, 0
      %v4102 = vsel %vm1384, %v4059, 0
      %v4105 = vsel %vm1384, %v4060, 0
      %v4108 = vsel %vm1384, %v4061, 0
      %v4111 = vsel %vm1384, %v4062, 0
      %v4114 = vsel %vm1384, %v4063, 0
      %v4117 = vsel %vm1384, %v4064, 0
      %v4120 = vsel %vm1384, %v4065, 0
      %v4123 = vsel %vm1384, %v4066, 0
      %v4126 = vsel %vm1384, %v4067, 0
      %4128 = vmatprep.subr.bf16.mxu0 0
      %4129 = vmatpush1.bf16.msra.mxu0 %v4076
      %4130 = vmatprep.subr.bf16.mxu0 0
      %4131 = vmatpush1.bf16.msra.mxu0 %v4077
      %4132 = vmatprep.subr.bf16.mxu0 0
      %4133 = vmatpush1.bf16.msra.mxu0 0
      %4134 = vmatprep.subr.bf16.mxu0 0
      %4135 = vmatpush1.bf16.msra.mxu0 0
      %4136 = vmatprep.subr.bf16.mxu0 0
      %4137 = vmatpush1.bf16.msra.mxu0 0
      %4138 = vmatprep.subr.bf16.mxu0 0
      %4139 = vmatpush1.bf16.msra.mxu0 0
      %4140 = vmatprep.subr.bf16.mxu0 0
      %4141 = vmatpush1.bf16.msra.mxu0 0
      %4142 = vmatprep.subr.bf16.mxu0 0
      %4143 = vmatpush1.bf16.msra.mxu0 0
      %4144 = vmatprep.subr.bf16.mxu0 0
      %4145 = vmatpush1.bf16.msra.mxu0 0
      %4146 = vmatprep.subr.bf16.mxu0 0
      %4147 = vmatpush1.bf16.msra.mxu0 0
      %4148 = vmatprep.subr.bf16.mxu0 0
      %4149 = vmatpush1.bf16.msra.mxu0 0
      %4150 = vmatprep.subr.bf16.mxu0 0
      %4151 = vmatpush1.bf16.msra.mxu0 0
      %4152 = vmatprep.subr.bf16.mxu0 0
      %4153 = vmatpush1.bf16.msra.mxu0 0
      %4154 = vmatprep.subr.bf16.mxu0 0
      %4155 = vmatpush1.bf16.msra.mxu0 0
      %4156 = vmatprep.subr.bf16.mxu0 0
      %4157 = vmatpush1.bf16.msra.mxu0 0
      %4158 = vmatprep.subr.bf16.mxu0 0
      %4159 = vmatpush1.bf16.msra.mxu0 0
      %4160 = vmatprep.mubr.bf16.mxu0 0
      %4161 = vmatmul.mubr.bf16.gmra.mrb[0].mxu0 %v4081
      %v4162 = vpop.f32.mrb[0].mxu0
      %v4163 = vadd.f32 0.0, %v4162
      %v4164 = vpop.f32.mrb[0].mxu0
      %v4165 = vpop.f32.mrb[0].mxu0
      %v4166 = vadd.f32 0.0, %v4165
      %v4167 = vpop.f32.mrb[0].mxu0
      %4168 = vmatprep.mubr.bf16.mxu0 0
      %4169 = vmatmul.mubr.bf16.gmra.mrb[0].mxu0 %v4084
      %v4170 = vpop.f32.mrb[0].mxu0
      %v4171 = vadd.f32 0.0, %v4170
      %v4172 = vpop.f32.mrb[0].mxu0
      %v4173 = vpop.f32.mrb[0].mxu0
      %v4174 = vadd.f32 0.0, %v4173
      %v4175 = vpop.f32.mrb[0].mxu0
      %4176 = vmatprep.mubr.bf16.mxu0 0
      %4177 = vmatmul.mubr.bf16.gmra.mrb[0].mxu0 %v4087
      %v4178 = vpop.f32.mrb[0].mxu0
      %v4179 = vadd.f32 0.0, %v4178
      %v4180 = vpop.f32.mrb[0].mxu0
      %v4181 = vpop.f32.mrb[0].mxu0
      %v4182 = vadd.f32 0.0, %v4181
      %v4183 = vpop.f32.mrb[0].mxu0
      %4184 = vmatprep.mubr.bf16.mxu0 0
      %4185 = vmatmul.mubr.bf16.gmra.mrb[0].mxu0 %v4090
      %v4186 = vpop.f32.mrb[0].mxu0
      %v4187 = vadd.f32 0.0, %v4186
      %v4188 = vpop.f32.mrb[0].mxu0
      %v4189 = vpop.f32.mrb[0].mxu0
      %v4190 = vadd.f32 0.0, %v4189
      %v4191 = vpop.f32.mrb[0].mxu0
      %4192 = vmatprep.mubr.bf16.mxu0 0
      %4193 = vmatmul.mubr.bf16.gmra.mrb[0].mxu0 %v4093
      %v4194 = vpop.f32.mrb[0].mxu0
      %v4195 = vadd.f32 0.0, %v4194
      %v4196 = vpop.f32.mrb[0].mxu0
      %v4197 = vpop.f32.mrb[0].mxu0
      %v4198 = vadd.f32 0.0, %v4197
      %v4199 = vpop.f32.mrb[0].mxu0
      %4200 = vmatprep.mubr.bf16.mxu0 0
      %4201 = vmatmul.mubr.bf16.gmra.mrb[0].mxu0 %v4096
      %v4202 = vpop.f32.mrb[0].mxu0
      %v4203 = vadd.f32 0.0, %v4202
      %v4204 = vpop.f32.mrb[0].mxu0
      %v4205 = vpop.f32.mrb[0].mxu0
      %v4206 = vadd.f32 0.0, %v4205
      %v4207 = vpop.f32.mrb[0].mxu0
      %4208 = vmatprep.mubr.bf16.mxu0 0
      %4209 = vmatmul.mubr.bf16.gmra.mrb[0].mxu0 %v4099
      %v4210 = vpop.f32.mrb[0].mxu0
      %v4211 = vadd.f32 0.0, %v4210
      %v4212 = vpop.f32.mrb[0].mxu0
      %v4213 = vpop.f32.mrb[0].mxu0
      %v4214 = vadd.f32 0.0, %v4213
      %v4215 = vpop.f32.mrb[0].mxu0
      %4216 = vmatprep.mubr.bf16.mxu0 0
      %4217 = vmatmul.mubr.bf16.gmra.mrb[0].mxu0 %v4102
      %v4218 = vpop.f32.mrb[0].mxu0
      %v4219 = vadd.f32 0.0, %v4218
      %v4220 = vpop.f32.mrb[0].mxu0
      %v4221 = vpop.f32.mrb[0].mxu0
      %v4222 = vadd.f32 0.0, %v4221
      %v4223 = vpop.f32.mrb[0].mxu0
      %4224 = vmatprep.mubr.bf16.mxu0 0
      %4225 = vmatmul.mubr.bf16.gmra.mrb[0].mxu0 %v4105
      %v4226 = vpop.f32.mrb[0].mxu0
      %v4227 = vadd.f32 0.0, %v4226
      %v4228 = vpop.f32.mrb[0].mxu0
      %v4229 = vpop.f32.mrb[0].mxu0
      %v4230 = vadd.f32 0.0, %v4229
      %v4231 = vpop.f32.mrb[0].mxu0
      %4232 = vmatprep.mubr.bf16.mxu0 0
      %4233 = vmatmul.mubr.bf16.gmra.mrb[0].mxu0 %v4108
      %v4234 = vpop.f32.mrb[0].mxu0
      %v4235 = vadd.f32 0.0, %v4234
      %v4236 = vpop.f32.mrb[0].mxu0
      %v4237 = vpop.f32.mrb[0].mxu0
      %v4238 = vadd.f32 0.0, %v4237
      %v4239 = vpop.f32.mrb[0].mxu0
      %4240 = vmatprep.mubr.bf16.mxu0 0
      %4241 = vmatmul.mubr.bf16.gmra.mrb[0].mxu0 %v4111
      %v4242 = vpop.f32.mrb[0].mxu0
      %v4243 = vadd.f32 0.0, %v4242
      %v4244 = vpop.f32.mrb[0].mxu0
      %v4245 = vpop.f32.mrb[0].mxu0
      %v4246 = vadd.f32 0.0, %v4245
      %v4247 = vpop.f32.mrb[0].mxu0
      %4248 = vmatprep.mubr.bf16.mxu0 0
      %4249 = vmatmul.mubr.bf16.gmra.mrb[0].mxu0 %v4114
      %v4250 = vpop.f32.mrb[0].mxu0
      %v4251 = vadd.f32 0.0, %v4250
      %v4252 = vpop.f32.mrb[0].mxu0
      %v4253 = vpop.f32.mrb[0].mxu0
      %v4254 = vadd.f32 0.0, %v4253
      %v4255 = vpop.f32.mrb[0].mxu0
      %4256 = vmatprep.mubr.bf16.mxu0 0
      %4257 = vmatmul.mubr.bf16.gmra.mrb[0].mxu0 %v4117
      %v4258 = vpop.f32.mrb[0].mxu0
      %v4259 = vadd.f32 0.0, %v4258
      %v4260 = vpop.f32.mrb[0].mxu0
      %v4261 = vpop.f32.mrb[0].mxu0
      %v4262 = vadd.f32 0.0, %v4261
      %v4263 = vpop.f32.mrb[0].mxu0
      %4264 = vmatprep.mubr.bf16.mxu0 0
      %4265 = vmatmul.mubr.bf16.gmra.mrb[0].mxu0 %v4120
      %v4266 = vpop.f32.mrb[0].mxu0
      %v4267 = vadd.f32 0.0, %v4266
      %v4268 = vpop.f32.mrb[0].mxu0
      %v4269 = vpop.f32.mrb[0].mxu0
      %v4270 = vadd.f32 0.0, %v4269
      %v4271 = vpop.f32.mrb[0].mxu0
      %4272 = vmatprep.mubr.bf16.mxu0 0
      %4273 = vmatmul.mubr.bf16.gmra.mrb[0].mxu0 %v4123
      %v4274 = vpop.f32.mrb[0].mxu0
      %v4275 = vadd.f32 0.0, %v4274
      %v4276 = vpop.f32.mrb[0].mxu0
      %v4277 = vpop.f32.mrb[0].mxu0
      %v4278 = vadd.f32 0.0, %v4277
      %v4279 = vpop.f32.mrb[0].mxu0
      %4280 = vmatprep.mubr.bf16.mxu0 0
      %4281 = vmatmul.mubr.bf16.gmra.mrb[0].mxu0 %v4126
      %v4282 = vpop.f32.mrb[0].mxu0
      %v4283 = vadd.f32 0.0, %v4282
      %v4284 = vpop.f32.mrb[0].mxu0
      %v4285 = vpop.f32.mrb[0].mxu0
      %v4286 = vadd.f32 0.0, %v4285
      %v4287 = vpop.f32.mrb[0].mxu0
      %4288 = vdwg.mxu0
      %v4289 = vadd.f32 %v3919, %v4163
      %v4290 = vadd.f32 %v3920, %v4166
      %v4291 = vadd.f32 %v3921, %v4171
      %v4292 = vadd.f32 %v3922, %v4174
      %v4293 = vadd.f32 %v3923, %v4179
      %v4294 = vadd.f32 %v3924, %v4182
      %v4295 = vadd.f32 %v3925, %v4187
      %v4296 = vadd.f32 %v3926, %v4190
      %v4297 = vadd.f32 %v3927, %v4195
      %v4298 = vadd.f32 %v3928, %v4198
      %v4299 = vadd.f32 %v3929, %v4203
      %v4300 = vadd.f32 %v3930, %v4206
      %v4301 = vadd.f32 %v3931, %v4211
      %v4302 = vadd.f32 %v3932, %v4214
      %v4303 = vadd.f32 %v3933, %v4219
      %v4304 = vadd.f32 %v3934, %v4222
      %v4305 = vadd.f32 %v3935, %v4227
      %v4306 = vadd.f32 %v3936, %v4230
      %v4307 = vadd.f32 %v3937, %v4235
      %v4308 = vadd.f32 %v3938, %v4238
      %v4309 = vadd.f32 %v3939, %v4243
      %v4310 = vadd.f32 %v3940, %v4246
      %v4311 = vadd.f32 %v3941, %v4251
      %v4312 = vadd.f32 %v3942, %v4254
      %v4313 = vadd.f32 %v3943, %v4259
      %v4314 = vadd.f32 %v3944, %v4262
      %v4315 = vadd.f32 %v3945, %v4267
      %v4316 = vadd.f32 %v3946, %v4270
      %v4317 = vadd.f32 %v3947, %v4275
      %v4318 = vadd.f32 %v3948, %v4278
      %v4319 = vadd.f32 %v3949, %v4283
      %v4320 = vadd.f32 %v3950, %v4286
      %v4321 = vld [vmem:[%s3951] sm:$0xf]
      %v4322 = vld [vmem:[%s3951 + $0x4] sm:$0xf]
      %v4323 = vld [vmem:[%s3951 + $0x8] sm:$0x1]
      %v4324 = vld [vmem:[%s3951 + $0xc] sm:$0xf]
      %v4325 = vld [vmem:[%s3951 + $0x10] sm:$0xf]
      %v4326 = vld [vmem:[%s3951 + $0x14] sm:$0x1]
      %v4327 = vld [vmem:[%s3951 + $0x18] sm:$0xf]
      %v4328 = vld [vmem:[%s3951 + $0x1c] sm:$0xf]
      %v4329 = vld [vmem:[%s3951 + $0x20] sm:$0x1]
      %v4330 = vld [vmem:[%s3951 + $0x24] sm:$0xf]
      %v4331 = vld [vmem:[%s3951 + $0x28] sm:$0xf]
      %v4332 = vld [vmem:[%s3951 + $0x2c] sm:$0x1]
      %v4333 = vld [vmem:[%s3951 + $0x30] sm:$0xf]
      %v4334 = vld [vmem:[%s3951 + $0x34] sm:$0xf]
      %v4335 = vld [vmem:[%s3951 + $0x38] sm:$0x1]
      %v4336 = vld [vmem:[%s3951 + $0x3c] sm:$0xf]
      %v4337 = vld [vmem:[%s3951 + $0x40] sm:$0xf]
      %v4338 = vld [vmem:[%s3951 + $0x44] sm:$0x1]
      %v4339 = vld [vmem:[%s3951 + $0x48] sm:$0xf]
      %v4340 = vld [vmem:[%s3951 + $0x4c] sm:$0xf]
      %v4341 = vld [vmem:[%s3951 + $0x50] sm:$0x1]
      %v4342 = vld [vmem:[%s3951 + $0x54] sm:$0xf]
      %v4343 = vld [vmem:[%s3951 + $0x58] sm:$0xf]
      %v4344 = vld [vmem:[%s3951 + $0x5c] sm:$0x1]
      %v4345 = vld [vmem:[%s3951 + $0x60] sm:$0xf]
      %v4346 = vld [vmem:[%s3951 + $0x64] sm:$0xf]
      %v4347 = vld [vmem:[%s3951 + $0x68] sm:$0x1]
      %v4348 = vld [vmem:[%s3951 + $0x6c] sm:$0xf]
      %v4349 = vld [vmem:[%s3951 + $0x70] sm:$0xf]
      %v4350 = vld [vmem:[%s3951 + $0x74] sm:$0x1]
      %v4351 = vld [vmem:[%s3951 + $0x78] sm:$0xf]
      %v4352 = vld [vmem:[%s3951 + $0x7c] sm:$0xf]
      %v4353 = vld [vmem:[%s3951 + $0x80] sm:$0x1]
      %v4354 = vld [vmem:[%s3951 + $0x84] sm:$0xf]
      %v4355 = vld [vmem:[%s3951 + $0x88] sm:$0xf]
      %v4356 = vld [vmem:[%s3951 + $0x8c] sm:$0x1]
      %v4357 = vld [vmem:[%s3951 + $0x90] sm:$0xf]
      %v4358 = vld [vmem:[%s3951 + $0x94] sm:$0xf]
      %v4359 = vld [vmem:[%s3951 + $0x98] sm:$0x1]
      %v4360 = vld [vmem:[%s3951 + $0x9c] sm:$0xf]
      %v4361 = vld [vmem:[%s3951 + $0xa0] sm:$0xf]
      %v4362 = vld [vmem:[%s3951 + $0xa4] sm:$0x1]
      %v4363 = vld [vmem:[%s3951 + $0xa8] sm:$0xf]
      %v4364 = vld [vmem:[%s3951 + $0xac] sm:$0xf]
      %v4365 = vld [vmem:[%s3951 + $0xb0] sm:$0x1]
      %v4366 = vld [vmem:[%s3951 + $0xb4] sm:$0xf]
      %v4367 = vld [vmem:[%s3951 + $0xb8] sm:$0xf]
      %v4368 = vld [vmem:[%s3951 + $0xbc] sm:$0x1]
      %v4370 = vshrl.u32 %v4321, 16
      %v4372 = vrot.slane %v4370, 4
      %v4373 = vshll.u32 %v4321, 16
      %v4375 = vrot.slane %v4373, 5
      %v4376 = vor.u32 %v4372, %v4375
      %v4377 = vrot.slane %v4376, 4
      %v4379 = vshll.u32 %v4322, 16
      %v4381 = vrot.slane %v4379, 5
      %v4382 = vsel %vm935, %v4377, %v4381
      %v4383 = vshrl.u32 %v4322, 16
      %v4385 = vrot.slane %v4383, 4
      %v4386 = vor.u32 %v4385, %v4381
      %v4387 = vrot.slane %v4386, 4
      %v4389 = vshll.u32 %v4323, 16
      %v4391 = vrot.slane %v4389, 5
      %v4392 = vsel %vm935, %v4387, %v4391
      %v4394 = vshrl.u32 %v4324, 16
      %v4396 = vrot.slane %v4394, 4
      %v4397 = vshll.u32 %v4324, 16
      %v4399 = vrot.slane %v4397, 5
      %v4400 = vor.u32 %v4396, %v4399
      %v4401 = vrot.slane %v4400, 4
      %v4403 = vshll.u32 %v4325, 16
      %v4405 = vrot.slane %v4403, 5
      %v4406 = vsel %vm935, %v4401, %v4405
      %v4407 = vshrl.u32 %v4325, 16
      %v4409 = vrot.slane %v4407, 4
      %v4410 = vor.u32 %v4409, %v4405
      %v4411 = vrot.slane %v4410, 4
      %v4413 = vshll.u32 %v4326, 16
      %v4415 = vrot.slane %v4413, 5
      %v4416 = vsel %vm935, %v4411, %v4415
      %v4418 = vshrl.u32 %v4327, 16
      %v4420 = vrot.slane %v4418, 4
      %v4421 = vshll.u32 %v4327, 16
      %v4423 = vrot.slane %v4421, 5
      %v4424 = vor.u32 %v4420, %v4423
      %v4425 = vrot.slane %v4424, 4
      %v4427 = vshll.u32 %v4328, 16
      %v4429 = vrot.slane %v4427, 5
      %v4430 = vsel %vm935, %v4425, %v4429
      %v4431 = vshrl.u32 %v4328, 16
      %v4433 = vrot.slane %v4431, 4
      %v4434 = vor.u32 %v4433, %v4429
      %v4435 = vrot.slane %v4434, 4
      %v4437 = vshll.u32 %v4329, 16
      %v4439 = vrot.slane %v4437, 5
      %v4440 = vsel %vm935, %v4435, %v4439
      %v4442 = vshrl.u32 %v4330, 16
      %v4444 = vrot.slane %v4442, 4
      %v4445 = vshll.u32 %v4330, 16
      %v4447 = vrot.slane %v4445, 5
      %v4448 = vor.u32 %v4444, %v4447
      %v4449 = vrot.slane %v4448, 4
      %v4451 = vshll.u32 %v4331, 16
      %v4453 = vrot.slane %v4451, 5
      %v4454 = vsel %vm935, %v4449, %v4453
      %v4455 = vshrl.u32 %v4331, 16
      %v4457 = vrot.slane %v4455, 4
      %v4458 = vor.u32 %v4457, %v4453
      %v4459 = vrot.slane %v4458, 4
      %v4461 = vshll.u32 %v4332, 16
      %v4463 = vrot.slane %v4461, 5
      %v4464 = vsel %vm935, %v4459, %v4463
      %v4466 = vshrl.u32 %v4333, 16
      %v4468 = vrot.slane %v4466, 4
      %v4469 = vshll.u32 %v4333, 16
      %v4471 = vrot.slane %v4469, 5
      %v4472 = vor.u32 %v4468, %v4471
      %v4473 = vrot.slane %v4472, 4
      %v4475 = vshll.u32 %v4334, 16
      %v4477 = vrot.slane %v4475, 5
      %v4478 = vsel %vm935, %v4473, %v4477
      %v4479 = vshrl.u32 %v4334, 16
      %v4481 = vrot.slane %v4479, 4
      %v4482 = vor.u32 %v4481, %v4477
      %v4483 = vrot.slane %v4482, 4
      %v4485 = vshll.u32 %v4335, 16
      %v4487 = vrot.slane %v4485, 5
      %v4488 = vsel %vm935, %v4483, %v4487
      %v4490 = vshrl.u32 %v4336, 16
      %v4492 = vrot.slane %v4490, 4
      %v4493 = vshll.u32 %v4336, 16
      %v4495 = vrot.slane %v4493, 5
      %v4496 = vor.u32 %v4492, %v4495
      %v4497 = vrot.slane %v4496, 4
      %v4499 = vshll.u32 %v4337, 16
      %v4501 = vrot.slane %v4499, 5
      %v4502 = vsel %vm935, %v4497, %v4501
      %v4503 = vshrl.u32 %v4337, 16
      %v4505 = vrot.slane %v4503, 4
      %v4506 = vor.u32 %v4505, %v4501
      %v4507 = vrot.slane %v4506, 4
      %v4509 = vshll.u32 %v4338, 16
      %v4511 = vrot.slane %v4509, 5
      %v4512 = vsel %vm935, %v4507, %v4511
      %v4514 = vshrl.u32 %v4339, 16
      %v4516 = vrot.slane %v4514, 4
      %v4517 = vshll.u32 %v4339, 16
      %v4519 = vrot.slane %v4517, 5
      %v4520 = vor.u32 %v4516, %v4519
      %v4521 = vrot.slane %v4520, 4
      %v4523 = vshll.u32 %v4340, 16
      %v4525 = vrot.slane %v4523, 5
      %v4526 = vsel %vm935, %v4521, %v4525
      %v4527 = vshrl.u32 %v4340, 16
      %v4529 = vrot.slane %v4527, 4
      %v4530 = vor.u32 %v4529, %v4525
      %v4531 = vrot.slane %v4530, 4
      %v4533 = vshll.u32 %v4341, 16
      %v4535 = vrot.slane %v4533, 5
      %v4536 = vsel %vm935, %v4531, %v4535
      %v4538 = vshrl.u32 %v4342, 16
      %v4540 = vrot.slane %v4538, 4
      %v4541 = vshll.u32 %v4342, 16
      %v4543 = vrot.slane %v4541, 5
      %v4544 = vor.u32 %v4540, %v4543
      %v4545 = vrot.slane %v4544, 4
      %v4547 = vshll.u32 %v4343, 16
      %v4549 = vrot.slane %v4547, 5
      %v4550 = vsel %vm935, %v4545, %v4549
      %v4551 = vshrl.u32 %v4343, 16
      %v4553 = vrot.slane %v4551, 4
      %v4554 = vor.u32 %v4553, %v4549
      %v4555 = vrot.slane %v4554, 4
      %v4557 = vshll.u32 %v4344, 16
      %v4559 = vrot.slane %v4557, 5
      %v4560 = vsel %vm935, %v4555, %v4559
      %v4562 = vshrl.u32 %v4345, 16
      %v4564 = vrot.slane %v4562, 4
      %v4565 = vshll.u32 %v4345, 16
      %v4567 = vrot.slane %v4565, 5
      %v4568 = vor.u32 %v4564, %v4567
      %v4569 = vrot.slane %v4568, 4
      %v4571 = vshll.u32 %v4346, 16
      %v4573 = vrot.slane %v4571, 5
      %v4574 = vsel %vm935, %v4569, %v4573
      %v4575 = vshrl.u32 %v4346, 16
      %v4577 = vrot.slane %v4575, 4
      %v4578 = vor.u32 %v4577, %v4573
      %v4579 = vrot.slane %v4578, 4
      %v4581 = vshll.u32 %v4347, 16
      %v4583 = vrot.slane %v4581, 5
      %v4584 = vsel %vm935, %v4579, %v4583
      %v4586 = vshrl.u32 %v4348, 16
      %v4588 = vrot.slane %v4586, 4
      %v4589 = vshll.u32 %v4348, 16
      %v4591 = vrot.slane %v4589, 5
      %v4592 = vor.u32 %v4588, %v4591
      %v4593 = vrot.slane %v4592, 4
      %v4595 = vshll.u32 %v4349, 16
      %v4597 = vrot.slane %v4595, 5
      %v4598 = vsel %vm935, %v4593, %v4597
      %v4599 = vshrl.u32 %v4349, 16
      %v4601 = vrot.slane %v4599, 4
      %v4602 = vor.u32 %v4601, %v4597
      %v4603 = vrot.slane %v4602, 4
      %v4605 = vshll.u32 %v4350, 16
      %v4607 = vrot.slane %v4605, 5
      %v4608 = vsel %vm935, %v4603, %v4607
      %v4610 = vshrl.u32 %v4351, 16
      %v4612 = vrot.slane %v4610, 4
      %v4613 = vshll.u32 %v4351, 16
      %v4615 = vrot.slane %v4613, 5
      %v4616 = vor.u32 %v4612, %v4615
      %v4617 = vrot.slane %v4616, 4
      %v4619 = vshll.u32 %v4352, 16
      %v4621 = vrot.slane %v4619, 5
      %v4622 = vsel %vm935, %v4617, %v4621
      %v4623 = vshrl.u32 %v4352, 16
      %v4625 = vrot.slane %v4623, 4
      %v4626 = vor.u32 %v4625, %v4621
      %v4627 = vrot.slane %v4626, 4
      %v4629 = vshll.u32 %v4353, 16
      %v4631 = vrot.slane %v4629, 5
      %v4632 = vsel %vm935, %v4627, %v4631
      %v4634 = vshrl.u32 %v4354, 16
      %v4636 = vrot.slane %v4634, 4
      %v4637 = vshll.u32 %v4354, 16
      %v4639 = vrot.slane %v4637, 5
      %v4640 = vor.u32 %v4636, %v4639
      %v4641 = vrot.slane %v4640, 4
      %v4643 = vshll.u32 %v4355, 16
      %v4645 = vrot.slane %v4643, 5
      %v4646 = vsel %vm935, %v4641, %v4645
      %v4647 = vshrl.u32 %v4355, 16
      %v4649 = vrot.slane %v4647, 4
      %v4650 = vor.u32 %v4649, %v4645
      %v4651 = vrot.slane %v4650, 4
      %v4653 = vshll.u32 %v4356, 16
      %v4655 = vrot.slane %v4653, 5
      %v4656 = vsel %vm935, %v4651, %v4655
      %v4658 = vshrl.u32 %v4357, 16
      %v4660 = vrot.slane %v4658, 4
      %v4661 = vshll.u32 %v4357, 16
      %v4663 = vrot.slane %v4661, 5
      %v4664 = vor.u32 %v4660, %v4663
      %v4665 = vrot.slane %v4664, 4
      %v4667 = vshll.u32 %v4358, 16
      %v4669 = vrot.slane %v4667, 5
      %v4670 = vsel %vm935, %v4665, %v4669
      %v4671 = vshrl.u32 %v4358, 16
      %v4673 = vrot.slane %v4671, 4
      %v4674 = vor.u32 %v4673, %v4669
      %v4675 = vrot.slane %v4674, 4
      %v4677 = vshll.u32 %v4359, 16
      %v4679 = vrot.slane %v4677, 5
      %v4680 = vsel %vm935, %v4675, %v4679
      %v4682 = vshrl.u32 %v4360, 16
      %v4684 = vrot.slane %v4682, 4
      %v4685 = vshll.u32 %v4360, 16
      %v4687 = vrot.slane %v4685, 5
      %v4688 = vor.u32 %v4684, %v4687
      %v4689 = vrot.slane %v4688, 4
      %v4691 = vshll.u32 %v4361, 16
      %v4693 = vrot.slane %v4691, 5
      %v4694 = vsel %vm935, %v4689, %v4693
      %v4695 = vshrl.u32 %v4361, 16
      %v4697 = vrot.slane %v4695, 4
      %v4698 = vor.u32 %v4697, %v4693
      %v4699 = vrot.slane %v4698, 4
      %v4701 = vshll.u32 %v4362, 16
      %v4703 = vrot.slane %v4701, 5
      %v4704 = vsel %vm935, %v4699, %v4703
      %v4706 = vshrl.u32 %v4363, 16
      %v4708 = vrot.slane %v4706, 4
      %v4709 = vshll.u32 %v4363, 16
      %v4711 = vrot.slane %v4709, 5
      %v4712 = vor.u32 %v4708, %v4711
      %v4713 = vrot.slane %v4712, 4
      %v4715 = vshll.u32 %v4364, 16
      %v4717 = vrot.slane %v4715, 5
      %v4718 = vsel %vm935, %v4713, %v4717
      %v4719 = vshrl.u32 %v4364, 16
      %v4721 = vrot.slane %v4719, 4
      %v4722 = vor.u32 %v4721, %v4717
      %v4723 = vrot.slane %v4722, 4
      %v4725 = vshll.u32 %v4365, 16
      %v4727 = vrot.slane %v4725, 5
      %v4728 = vsel %vm935, %v4723, %v4727
      %v4730 = vshrl.u32 %v4366, 16
      %v4732 = vrot.slane %v4730, 4
      %v4733 = vshll.u32 %v4366, 16
      %v4735 = vrot.slane %v4733, 5
      %v4736 = vor.u32 %v4732, %v4735
      %v4737 = vrot.slane %v4736, 4
      %v4739 = vshll.u32 %v4367, 16
      %v4741 = vrot.slane %v4739, 5
      %v4742 = vsel %vm935, %v4737, %v4741
      %v4743 = vshrl.u32 %v4367, 16
      %v4745 = vrot.slane %v4743, 4
      %v4746 = vor.u32 %v4745, %v4741
      %v4747 = vrot.slane %v4746, 4
      %v4749 = vshll.u32 %v4368, 16
      %v4751 = vrot.slane %v4749, 5
      %v4752 = vsel %vm935, %v4747, %v4751
      %v4753 = vld [vmem:[%s1 + $0x70] sm:$0xf]
      %v4754 = vld [vmem:[%s1 + $0x74] sm:$0xf]
      %v4755 = vld [vmem:[%s1 + $0x78] sm:$0xf]
      %v4756 = vld [vmem:[%s1 + $0x7c] sm:$0xf]
      %v4757 = vunpack.c.l.b16 %v4382
      %v4758 = vunpack.c.l.b16 %v4392
      %v4759 = vunpack.c.l.b16 %v4406
      %v4760 = vunpack.c.l.b16 %v4416
      %v4761 = vunpack.c.l.b16 %v4430
      %v4762 = vunpack.c.l.b16 %v4440
      %v4763 = vunpack.c.l.b16 %v4454
      %v4764 = vunpack.c.l.b16 %v4464
      %v4765 = vunpack.c.l.b16 %v4478
      %v4766 = vunpack.c.l.b16 %v4488
      %v4767 = vunpack.c.l.b16 %v4502
      %v4768 = vunpack.c.l.b16 %v4512
      %v4769 = vunpack.c.l.b16 %v4526
      %v4770 = vunpack.c.l.b16 %v4536
      %v4771 = vunpack.c.l.b16 %v4550
      %v4772 = vunpack.c.l.b16 %v4560
      %v4773 = vunpack.c.l.b16 %v4574
      %v4774 = vunpack.c.l.b16 %v4584
      %v4775 = vunpack.c.l.b16 %v4598
      %v4776 = vunpack.c.l.b16 %v4608
      %v4777 = vunpack.c.l.b16 %v4622
      %v4778 = vunpack.c.l.b16 %v4632
      %v4779 = vunpack.c.l.b16 %v4646
      %v4780 = vunpack.c.l.b16 %v4656
      %v4781 = vunpack.c.l.b16 %v4670
      %v4782 = vunpack.c.l.b16 %v4680
      %v4783 = vunpack.c.l.b16 %v4694
      %v4784 = vunpack.c.l.b16 %v4704
      %v4785 = vunpack.c.l.b16 %v4718
      %v4786 = vunpack.c.l.b16 %v4728
      %v4787 = vunpack.c.l.b16 %v4742
      %v4788 = vunpack.c.l.b16 %v4752
      %v4789 = vpack.c.b16 %v4758, %v4757
      %v4790 = vpack.c.b16 %v4760, %v4759
      %v4791 = vpack.c.b16 %v4762, %v4761
      %v4792 = vpack.c.b16 %v4764, %v4763
      %v4793 = vpack.c.b16 %v4766, %v4765
      %v4794 = vpack.c.b16 %v4768, %v4767
      %v4795 = vpack.c.b16 %v4770, %v4769
      %v4796 = vpack.c.b16 %v4772, %v4771
      %v4797 = vpack.c.b16 %v4774, %v4773
      %v4798 = vpack.c.b16 %v4776, %v4775
      %v4799 = vpack.c.b16 %v4778, %v4777
      %v4800 = vpack.c.b16 %v4780, %v4779
      %v4801 = vpack.c.b16 %v4782, %v4781
      %v4802 = vpack.c.b16 %v4784, %v4783
      %v4803 = vpack.c.b16 %v4786, %v4785
      %v4804 = vpack.c.b16 %v4788, %v4787
      %v4809 = vunpack.c.l.b16 %v4753
      %v4810 = vunpack.c.l.b16 %v4754
      %v4811 = vunpack.c.l.b16 %v4755
      %v4812 = vunpack.c.l.b16 %v4756
      %v4813 = vpack.c.b16 %v4810, %v4809
      %v4814 = vpack.c.b16 %v4812, %v4811
      %v4818 = vsel %vm1384, %v4789, 0
      %v4821 = vsel %vm1384, %v4790, 0
      %v4824 = vsel %vm1384, %v4791, 0
      %v4827 = vsel %vm1384, %v4792, 0
      %v4830 = vsel %vm1384, %v4793, 0
      %v4833 = vsel %vm1384, %v4794, 0
      %v4836 = vsel %vm1384, %v4795, 0
      %v4839 = vsel %vm1384, %v4796, 0
      %v4842 = vsel %vm1384, %v4797, 0
      %v4845 = vsel %vm1384, %v4798, 0
      %v4848 = vsel %vm1384, %v4799, 0
      %v4851 = vsel %vm1384, %v4800, 0
      %v4854 = vsel %vm1384, %v4801, 0
      %v4857 = vsel %vm1384, %v4802, 0
      %v4860 = vsel %vm1384, %v4803, 0
      %v4863 = vsel %vm1384, %v4804, 0
      %4865 = vmatprep.subr.bf16.mxu0 0
      %4866 = vmatpush1.bf16.msra.mxu0 %v4813
      %4867 = vmatprep.subr.bf16.mxu0 0
      %4868 = vmatpush1.bf16.msra.mxu0 %v4814
      %4869 = vmatprep.subr.bf16.mxu0 0
      %4870 = vmatpush1.bf16.msra.mxu0 0
      %4871 = vmatprep.subr.bf16.mxu0 0
      %4872 = vmatpush1.bf16.msra.mxu0 0
      %4873 = vmatprep.subr.bf16.mxu0 0
      %4874 = vmatpush1.bf16.msra.mxu0 0
      %4875 = vmatprep.subr.bf16.mxu0 0
      %4876 = vmatpush1.bf16.msra.mxu0 0
      %4877 = vmatprep.subr.bf16.mxu0 0
      %4878 = vmatpush1.bf16.msra.mxu0 0
      %4879 = vmatprep.subr.bf16.mxu0 0
      %4880 = vmatpush1.bf16.msra.mxu0 0
      %4881 = vmatprep.subr.bf16.mxu0 0
      %4882 = vmatpush1.bf16.msra.mxu0 0
      %4883 = vmatprep.subr.bf16.mxu0 0
      %4884 = vmatpush1.bf16.msra.mxu0 0
      %4885 = vmatprep.subr.bf16.mxu0 0
      %4886 = vmatpush1.bf16.msra.mxu0 0
      %4887 = vmatprep.subr.bf16.mxu0 0
      %4888 = vmatpush1.bf16.msra.mxu0 0
      %4889 = vmatprep.subr.bf16.mxu0 0
      %4890 = vmatpush1.bf16.msra.mxu0 0
      %4891 = vmatprep.subr.bf16.mxu0 0
      %4892 = vmatpush1.bf16.msra.mxu0 0
      %4893 = vmatprep.subr.bf16.mxu0 0
      %4894 = vmatpush1.bf16.msra.mxu0 0
      %4895 = vmatprep.subr.bf16.mxu0 0
      %4896 = vmatpush1.bf16.msra.mxu0 0
      %4897 = vmatprep.mubr.bf16.mxu0 0
      %4898 = vmatmul.mubr.bf16.gmra.mrb[0].mxu0 %v4818
      %v4899 = vpop.f32.mrb[0].mxu0
      %v4900 = vadd.f32 0.0, %v4899
      %v4901 = vpop.f32.mrb[0].mxu0
      %v4902 = vpop.f32.mrb[0].mxu0
      %v4903 = vadd.f32 0.0, %v4902
      %v4904 = vpop.f32.mrb[0].mxu0
      %4905 = vmatprep.mubr.bf16.mxu0 0
      %4906 = vmatmul.mubr.bf16.gmra.mrb[0].mxu0 %v4821
      %v4907 = vpop.f32.mrb[0].mxu0
      %v4908 = vadd.f32 0.0, %v4907
      %v4909 = vpop.f32.mrb[0].mxu0
      %v4910 = vpop.f32.mrb[0].mxu0
      %v4911 = vadd.f32 0.0, %v4910
      %v4912 = vpop.f32.mrb[0].mxu0
      %4913 = vmatprep.mubr.bf16.mxu0 0
      %4914 = vmatmul.mubr.bf16.gmra.mrb[0].mxu0 %v4824
      %v4915 = vpop.f32.mrb[0].mxu0
      %v4916 = vadd.f32 0.0, %v4915
      %v4917 = vpop.f32.mrb[0].mxu0
      %v4918 = vpop.f32.mrb[0].mxu0
      %v4919 = vadd.f32 0.0, %v4918
      %v4920 = vpop.f32.mrb[0].mxu0
      %4921 = vmatprep.mubr.bf16.mxu0 0
      %4922 = vmatmul.mubr.bf16.gmra.mrb[0].mxu0 %v4827
      %v4923 = vpop.f32.mrb[0].mxu0
      %v4924 = vadd.f32 0.0, %v4923
      %v4925 = vpop.f32.mrb[0].mxu0
      %v4926 = vpop.f32.mrb[0].mxu0
      %v4927 = vadd.f32 0.0, %v4926
      %v4928 = vpop.f32.mrb[0].mxu0
      %4929 = vmatprep.mubr.bf16.mxu0 0
      %4930 = vmatmul.mubr.bf16.gmra.mrb[0].mxu0 %v4830
      %v4931 = vpop.f32.mrb[0].mxu0
      %v4932 = vadd.f32 0.0, %v4931
      %v4933 = vpop.f32.mrb[0].mxu0
      %v4934 = vpop.f32.mrb[0].mxu0
      %v4935 = vadd.f32 0.0, %v4934
      %v4936 = vpop.f32.mrb[0].mxu0
      %4937 = vmatprep.mubr.bf16.mxu0 0
      %4938 = vmatmul.mubr.bf16.gmra.mrb[0].mxu0 %v4833
      %v4939 = vpop.f32.mrb[0].mxu0
      %v4940 = vadd.f32 0.0, %v4939
      %v4941 = vpop.f32.mrb[0].mxu0
      %v4942 = vpop.f32.mrb[0].mxu0
      %v4943 = vadd.f32 0.0, %v4942
      %v4944 = vpop.f32.mrb[0].mxu0
      %4945 = vmatprep.mubr.bf16.mxu0 0
      %4946 = vmatmul.mubr.bf16.gmra.mrb[0].mxu0 %v4836
      %v4947 = vpop.f32.mrb[0].mxu0
      %v4948 = vadd.f32 0.0, %v4947
      %v4949 = vpop.f32.mrb[0].mxu0
      %v4950 = vpop.f32.mrb[0].mxu0
      %v4951 = vadd.f32 0.0, %v4950
      %v4952 = vpop.f32.mrb[0].mxu0
      %4953 = vmatprep.mubr.bf16.mxu0 0
      %4954 = vmatmul.mubr.bf16.gmra.mrb[0].mxu0 %v4839
      %v4955 = vpop.f32.mrb[0].mxu0
      %v4956 = vadd.f32 0.0, %v4955
      %v4957 = vpop.f32.mrb[0].mxu0
      %v4958 = vpop.f32.mrb[0].mxu0
      %v4959 = vadd.f32 0.0, %v4958
      %v4960 = vpop.f32.mrb[0].mxu0
      %4961 = vmatprep.mubr.bf16.mxu0 0
      %4962 = vmatmul.mubr.bf16.gmra.mrb[0].mxu0 %v4842
      %v4963 = vpop.f32.mrb[0].mxu0
      %v4964 = vadd.f32 0.0, %v4963
      %v4965 = vpop.f32.mrb[0].mxu0
      %v4966 = vpop.f32.mrb[0].mxu0
      %v4967 = vadd.f32 0.0, %v4966
      %v4968 = vpop.f32.mrb[0].mxu0
      %4969 = vmatprep.mubr.bf16.mxu0 0
      %4970 = vmatmul.mubr.bf16.gmra.mrb[0].mxu0 %v4845
      %v4971 = vpop.f32.mrb[0].mxu0
      %v4972 = vadd.f32 0.0, %v4971
      %v4973 = vpop.f32.mrb[0].mxu0
      %v4974 = vpop.f32.mrb[0].mxu0
      %v4975 = vadd.f32 0.0, %v4974
      %v4976 = vpop.f32.mrb[0].mxu0
      %4977 = vmatprep.mubr.bf16.mxu0 0
      %4978 = vmatmul.mubr.bf16.gmra.mrb[0].mxu0 %v4848
      %v4979 = vpop.f32.mrb[0].mxu0
      %v4980 = vadd.f32 0.0, %v4979
      %v4981 = vpop.f32.mrb[0].mxu0
      %v4982 = vpop.f32.mrb[0].mxu0
      %v4983 = vadd.f32 0.0, %v4982
      %v4984 = vpop.f32.mrb[0].mxu0
      %4985 = vmatprep.mubr.bf16.mxu0 0
      %4986 = vmatmul.mubr.bf16.gmra.mrb[0].mxu0 %v4851
      %v4987 = vpop.f32.mrb[0].mxu0
      %v4988 = vadd.f32 0.0, %v4987
      %v4989 = vpop.f32.mrb[0].mxu0
      %v4990 = vpop.f32.mrb[0].mxu0
      %v4991 = vadd.f32 0.0, %v4990
      %v4992 = vpop.f32.mrb[0].mxu0
      %4993 = vmatprep.mubr.bf16.mxu0 0
      %4994 = vmatmul.mubr.bf16.gmra.mrb[0].mxu0 %v4854
      %v4995 = vpop.f32.mrb[0].mxu0
      %v4996 = vadd.f32 0.0, %v4995
      %v4997 = vpop.f32.mrb[0].mxu0
      %v4998 = vpop.f32.mrb[0].mxu0
      %v4999 = vadd.f32 0.0, %v4998
      %v5000 = vpop.f32.mrb[0].mxu0
      %5001 = vmatprep.mubr.bf16.mxu0 0
      %5002 = vmatmul.mubr.bf16.gmra.mrb[0].mxu0 %v4857
      %v5003 = vpop.f32.mrb[0].mxu0
      %v5004 = vadd.f32 0.0, %v5003
      %v5005 = vpop.f32.mrb[0].mxu0
      %v5006 = vpop.f32.mrb[0].mxu0
      %v5007 = vadd.f32 0.0, %v5006
      %v5008 = vpop.f32.mrb[0].mxu0
      %5009 = vmatprep.mubr.bf16.mxu0 0
      %5010 = vmatmul.mubr.bf16.gmra.mrb[0].mxu0 %v4860
      %v5011 = vpop.f32.mrb[0].mxu0
      %v5012 = vadd.f32 0.0, %v5011
      %v5013 = vpop.f32.mrb[0].mxu0
      %v5014 = vpop.f32.mrb[0].mxu0
      %v5015 = vadd.f32 0.0, %v5014
      %v5016 = vpop.f32.mrb[0].mxu0
      %5017 = vmatprep.mubr.bf16.mxu0 0
      %5018 = vmatmul.mubr.bf16.gmra.mrb[0].mxu0 %v4863
      %v5019 = vpop.f32.mrb[0].mxu0
      %v5020 = vadd.f32 0.0, %v5019
      %v5021 = vpop.f32.mrb[0].mxu0
      %v5022 = vpop.f32.mrb[0].mxu0
      %v5023 = vadd.f32 0.0, %v5022
      %v5024 = vpop.f32.mrb[0].mxu0
      %5025 = vdwg.mxu0
      %v5026 = vadd.f32 %v4289, %v4900
      %v5027 = vadd.f32 %v4290, %v4903
      %v5028 = vadd.f32 %v4291, %v4908
      %v5029 = vadd.f32 %v4292, %v4911
      %v5030 = vadd.f32 %v4293, %v4916
      %v5031 = vadd.f32 %v4294, %v4919
      %v5032 = vadd.f32 %v4295, %v4924
      %v5033 = vadd.f32 %v4296, %v4927
      %v5034 = vadd.f32 %v4297, %v4932
      %v5035 = vadd.f32 %v4298, %v4935
      %v5036 = vadd.f32 %v4299, %v4940
      %v5037 = vadd.f32 %v4300, %v4943
      %v5038 = vadd.f32 %v4301, %v4948
      %v5039 = vadd.f32 %v4302, %v4951
      %v5040 = vadd.f32 %v4303, %v4956
      %v5041 = vadd.f32 %v4304, %v4959
      %v5042 = vadd.f32 %v4305, %v4964
      %v5043 = vadd.f32 %v4306, %v4967
      %v5044 = vadd.f32 %v4307, %v4972
      %v5045 = vadd.f32 %v4308, %v4975
      %v5046 = vadd.f32 %v4309, %v4980
      %v5047 = vadd.f32 %v4310, %v4983
      %v5048 = vadd.f32 %v4311, %v4988
      %v5049 = vadd.f32 %v4312, %v4991
      %v5050 = vadd.f32 %v4313, %v4996
      %v5051 = vadd.f32 %v4314, %v4999
      %v5052 = vadd.f32 %v4315, %v5004
      %v5053 = vadd.f32 %v4316, %v5007
      %v5054 = vadd.f32 %v4317, %v5012
      %v5055 = vadd.f32 %v4318, %v5015
      %v5056 = vadd.f32 %v4319, %v5020
      %v5057 = vadd.f32 %v4320, %v5023
      %v5058 = vld [vmem:[%s3951] sm:$0xe]
      %v5059 = vld [vmem:[%s3951 + $0xc] sm:$0xe]
      %v5060 = vld [vmem:[%s3951 + $0x18] sm:$0xe]
      %v5061 = vld [vmem:[%s3951 + $0x24] sm:$0xe]
      %v5062 = vld [vmem:[%s3951 + $0x30] sm:$0xe]
      %v5063 = vld [vmem:[%s3951 + $0x3c] sm:$0xe]
      %v5064 = vld [vmem:[%s3951 + $0x48] sm:$0xe]
      %v5065 = vld [vmem:[%s3951 + $0x54] sm:$0xe]
      %v5066 = vld [vmem:[%s3951 + $0x60] sm:$0xe]
      %v5067 = vld [vmem:[%s3951 + $0x6c] sm:$0xe]
      %v5068 = vld [vmem:[%s3951 + $0x78] sm:$0xe]
      %v5069 = vld [vmem:[%s3951 + $0x84] sm:$0xe]
      %v5070 = vld [vmem:[%s3951 + $0x90] sm:$0xe]
      %v5071 = vld [vmem:[%s3951 + $0x9c] sm:$0xe]
      %v5072 = vld [vmem:[%s3951 + $0xa8] sm:$0xe]
      %v5073 = vld [vmem:[%s3951 + $0xb4] sm:$0xe]
      %v5122 = vrot.slane %v5058, 5
      %v5123 = vrot.slane %v5122, 4
      %v5124 = vrot.slane %v4322, 5
      %v5125 = vsel %vm1945, %v5123, %v5124
      %v5126 = vrot.slane %v5124, 4
      %v5127 = vrot.slane %v4323, 5
      %v5128 = vsel %vm1945, %v5126, %v5127
      %v5129 = vrot.slane %v5059, 5
      %v5130 = vrot.slane %v5129, 4
      %v5131 = vrot.slane %v4325, 5
      %v5132 = vsel %vm1945, %v5130, %v5131
      %v5133 = vrot.slane %v5131, 4
      %v5134 = vrot.slane %v4326, 5
      %v5135 = vsel %vm1945, %v5133, %v5134
      %v5136 = vrot.slane %v5060, 5
      %v5137 = vrot.slane %v5136, 4
      %v5138 = vrot.slane %v4328, 5
      %v5139 = vsel %vm1945, %v5137, %v5138
      %v5140 = vrot.slane %v5138, 4
      %v5141 = vrot.slane %v4329, 5
      %v5142 = vsel %vm1945, %v5140, %v5141
      %v5143 = vrot.slane %v5061, 5
      %v5144 = vrot.slane %v5143, 4
      %v5145 = vrot.slane %v4331, 5
      %v5146 = vsel %vm1945, %v5144, %v5145
      %v5147 = vrot.slane %v5145, 4
      %v5148 = vrot.slane %v4332, 5
      %v5149 = vsel %vm1945, %v5147, %v5148
      %v5150 = vrot.slane %v5062, 5
      %v5151 = vrot.slane %v5150, 4
      %v5152 = vrot.slane %v4334, 5
      %v5153 = vsel %vm1945, %v5151, %v5152
      %v5154 = vrot.slane %v5152, 4
      %v5155 = vrot.slane %v4335, 5
      %v5156 = vsel %vm1945, %v5154, %v5155
      %v5157 = vrot.slane %v5063, 5
      %v5158 = vrot.slane %v5157, 4
      %v5159 = vrot.slane %v4337, 5
      %v5160 = vsel %vm1945, %v5158, %v5159
      %v5161 = vrot.slane %v5159, 4
      %v5162 = vrot.slane %v4338, 5
      %v5163 = vsel %vm1945, %v5161, %v5162
      %v5164 = vrot.slane %v5064, 5
      %v5165 = vrot.slane %v5164, 4
      %v5166 = vrot.slane %v4340, 5
      %v5167 = vsel %vm1945, %v5165, %v5166
      %v5168 = vrot.slane %v5166, 4
      %v5169 = vrot.slane %v4341, 5
      %v5170 = vsel %vm1945, %v5168, %v5169
      %v5171 = vrot.slane %v5065, 5
      %v5172 = vrot.slane %v5171, 4
      %v5173 = vrot.slane %v4343, 5
      %v5174 = vsel %vm1945, %v5172, %v5173
      %v5175 = vrot.slane %v5173, 4
      %v5176 = vrot.slane %v4344, 5
      %v5177 = vsel %vm1945, %v5175, %v5176
      %v5178 = vrot.slane %v5066, 5
      %v5179 = vrot.slane %v5178, 4
      %v5180 = vrot.slane %v4346, 5
      %v5181 = vsel %vm1945, %v5179, %v5180
      %v5182 = vrot.slane %v5180, 4
      %v5183 = vrot.slane %v4347, 5
      %v5184 = vsel %vm1945, %v5182, %v5183
      %v5185 = vrot.slane %v5067, 5
      %v5186 = vrot.slane %v5185, 4
      %v5187 = vrot.slane %v4349, 5
      %v5188 = vsel %vm1945, %v5186, %v5187
      %v5189 = vrot.slane %v5187, 4
      %v5190 = vrot.slane %v4350, 5
      %v5191 = vsel %vm1945, %v5189, %v5190
      %v5192 = vrot.slane %v5068, 5
      %v5193 = vrot.slane %v5192, 4
      %v5194 = vrot.slane %v4352, 5
      %v5195 = vsel %vm1945, %v5193, %v5194
      %v5196 = vrot.slane %v5194, 4
      %v5197 = vrot.slane %v4353, 5
      %v5198 = vsel %vm1945, %v5196, %v5197
      %v5199 = vrot.slane %v5069, 5
      %v5200 = vrot.slane %v5199, 4
      %v5201 = vrot.slane %v4355, 5
      %v5202 = vsel %vm1945, %v5200, %v5201
      %v5203 = vrot.slane %v5201, 4
      %v5204 = vrot.slane %v4356, 5
      %v5205 = vsel %vm1945, %v5203, %v5204
      %v5206 = vrot.slane %v5070, 5
      %v5207 = vrot.slane %v5206, 4
      %v5208 = vrot.slane %v4358, 5
      %v5209 = vsel %vm1945, %v5207, %v5208
      %v5210 = vrot.slane %v5208, 4
      %v5211 = vrot.slane %v4359, 5
      %v5212 = vsel %vm1945, %v5210, %v5211
      %v5213 = vrot.slane %v5071, 5
      %v5214 = vrot.slane %v5213, 4
      %v5215 = vrot.slane %v4361, 5
      %v5216 = vsel %vm1945, %v5214, %v5215
      %v5217 = vrot.slane %v5215, 4
      %v5218 = vrot.slane %v4362, 5
      %v5219 = vsel %vm1945, %v5217, %v5218
      %v5220 = vrot.slane %v5072, 5
      %v5221 = vrot.slane %v5220, 4
      %v5222 = vrot.slane %v4364, 5
      %v5223 = vsel %vm1945, %v5221, %v5222
      %v5224 = vrot.slane %v5222, 4
      %v5225 = vrot.slane %v4365, 5
      %v5226 = vsel %vm1945, %v5224, %v5225
      %v5227 = vrot.slane %v5073, 5
      %v5228 = vrot.slane %v5227, 4
      %v5229 = vrot.slane %v4367, 5
      %v5230 = vsel %vm1945, %v5228, %v5229
      %v5231 = vrot.slane %v5229, 4
      %v5232 = vrot.slane %v4368, 5
      %v5233 = vsel %vm1945, %v5231, %v5232
      %v5234 = vld [vmem:[%s1 + $0x80] sm:$0xf]
      %v5235 = vld [vmem:[%s1 + $0x84] sm:$0xf]
      %v5236 = vld [vmem:[%s1 + $0x88] sm:$0xf]
      %v5237 = vld [vmem:[%s1 + $0x8c] sm:$0xf]
      %v5238 = vunpack.c.l.b16 %v5125
      %v5239 = vunpack.c.l.b16 %v5128
      %v5240 = vunpack.c.l.b16 %v5132
      %v5241 = vunpack.c.l.b16 %v5135
      %v5242 = vunpack.c.l.b16 %v5139
      %v5243 = vunpack.c.l.b16 %v5142
      %v5244 = vunpack.c.l.b16 %v5146
      %v5245 = vunpack.c.l.b16 %v5149
      %v5246 = vunpack.c.l.b16 %v5153
      %v5247 = vunpack.c.l.b16 %v5156
      %v5248 = vunpack.c.l.b16 %v5160
      %v5249 = vunpack.c.l.b16 %v5163
      %v5250 = vunpack.c.l.b16 %v5167
      %v5251 = vunpack.c.l.b16 %v5170
      %v5252 = vunpack.c.l.b16 %v5174
      %v5253 = vunpack.c.l.b16 %v5177
      %v5254 = vunpack.c.l.b16 %v5181
      %v5255 = vunpack.c.l.b16 %v5184
      %v5256 = vunpack.c.l.b16 %v5188
      %v5257 = vunpack.c.l.b16 %v5191
      %v5258 = vunpack.c.l.b16 %v5195
      %v5259 = vunpack.c.l.b16 %v5198
      %v5260 = vunpack.c.l.b16 %v5202
      %v5261 = vunpack.c.l.b16 %v5205
      %v5262 = vunpack.c.l.b16 %v5209
      %v5263 = vunpack.c.l.b16 %v5212
      %v5264 = vunpack.c.l.b16 %v5216
      %v5265 = vunpack.c.l.b16 %v5219
      %v5266 = vunpack.c.l.b16 %v5223
      %v5267 = vunpack.c.l.b16 %v5226
      %v5268 = vunpack.c.l.b16 %v5230
      %v5269 = vunpack.c.l.b16 %v5233
      %v5270 = vpack.c.b16 %v5239, %v5238
      %v5271 = vpack.c.b16 %v5241, %v5240
      %v5272 = vpack.c.b16 %v5243, %v5242
      %v5273 = vpack.c.b16 %v5245, %v5244
      %v5274 = vpack.c.b16 %v5247, %v5246
      %v5275 = vpack.c.b16 %v5249, %v5248
      %v5276 = vpack.c.b16 %v5251, %v5250
      %v5277 = vpack.c.b16 %v5253, %v5252
      %v5278 = vpack.c.b16 %v5255, %v5254
      %v5279 = vpack.c.b16 %v5257, %v5256
      %v5280 = vpack.c.b16 %v5259, %v5258
      %v5281 = vpack.c.b16 %v5261, %v5260
      %v5282 = vpack.c.b16 %v5263, %v5262
      %v5283 = vpack.c.b16 %v5265, %v5264
      %v5284 = vpack.c.b16 %v5267, %v5266
      %v5285 = vpack.c.b16 %v5269, %v5268
      %v5290 = vunpack.c.l.b16 %v5234
      %v5291 = vunpack.c.l.b16 %v5235
      %v5292 = vunpack.c.l.b16 %v5236
      %v5293 = vunpack.c.l.b16 %v5237
      %v5294 = vpack.c.b16 %v5291, %v5290
      %v5295 = vpack.c.b16 %v5293, %v5292
      %v5299 = vsel %vm1384, %v5270, 0
      %v5302 = vsel %vm1384, %v5271, 0
      %v5305 = vsel %vm1384, %v5272, 0
      %v5308 = vsel %vm1384, %v5273, 0
      %v5311 = vsel %vm1384, %v5274, 0
      %v5314 = vsel %vm1384, %v5275, 0
      %v5317 = vsel %vm1384, %v5276, 0
      %v5320 = vsel %vm1384, %v5277, 0
      %v5323 = vsel %vm1384, %v5278, 0
      %v5326 = vsel %vm1384, %v5279, 0
      %v5329 = vsel %vm1384, %v5280, 0
      %v5332 = vsel %vm1384, %v5281, 0
      %v5335 = vsel %vm1384, %v5282, 0
      %v5338 = vsel %vm1384, %v5283, 0
      %v5341 = vsel %vm1384, %v5284, 0
      %v5344 = vsel %vm1384, %v5285, 0
      %5346 = vmatprep.subr.bf16.mxu0 0
      %5347 = vmatpush1.bf16.msra.mxu0 %v5294
      %5348 = vmatprep.subr.bf16.mxu0 0
      %5349 = vmatpush1.bf16.msra.mxu0 %v5295
      %5350 = vmatprep.subr.bf16.mxu0 0
      %5351 = vmatpush1.bf16.msra.mxu0 0
      %5352 = vmatprep.subr.bf16.mxu0 0
      %5353 = vmatpush1.bf16.msra.mxu0 0
      %5354 = vmatprep.subr.bf16.mxu0 0
      %5355 = vmatpush1.bf16.msra.mxu0 0
      %5356 = vmatprep.subr.bf16.mxu0 0
      %5357 = vmatpush1.bf16.msra.mxu0 0
      %5358 = vmatprep.subr.bf16.mxu0 0
      %5359 = vmatpush1.bf16.msra.mxu0 0
      %5360 = vmatprep.subr.bf16.mxu0 0
      %5361 = vmatpush1.bf16.msra.mxu0 0
      %5362 = vmatprep.subr.bf16.mxu0 0
      %5363 = vmatpush1.bf16.msra.mxu0 0
      %5364 = vmatprep.subr.bf16.mxu0 0
      %5365 = vmatpush1.bf16.msra.mxu0 0
      %5366 = vmatprep.subr.bf16.mxu0 0
      %5367 = vmatpush1.bf16.msra.mxu0 0
      %5368 = vmatprep.subr.bf16.mxu0 0
      %5369 = vmatpush1.bf16.msra.mxu0 0
      %5370 = vmatprep.subr.bf16.mxu0 0
      %5371 = vmatpush1.bf16.msra.mxu0 0
      %5372 = vmatprep.subr.bf16.mxu0 0
      %5373 = vmatpush1.bf16.msra.mxu0 0
      %5374 = vmatprep.subr.bf16.mxu0 0
      %5375 = vmatpush1.bf16.msra.mxu0 0
      %5376 = vmatprep.subr.bf16.mxu0 0
      %5377 = vmatpush1.bf16.msra.mxu0 0
      %5378 = vmatprep.mubr.bf16.mxu0 0
      %5379 = vmatmul.mubr.bf16.gmra.mrb[0].mxu0 %v5299
      %v5380 = vpop.f32.mrb[0].mxu0
      %v5381 = vadd.f32 0.0, %v5380
      %v5382 = vpop.f32.mrb[0].mxu0
      %v5383 = vpop.f32.mrb[0].mxu0
      %v5384 = vadd.f32 0.0, %v5383
      %v5385 = vpop.f32.mrb[0].mxu0
      %5386 = vmatprep.mubr.bf16.mxu0 0
      %5387 = vmatmul.mubr.bf16.gmra.mrb[0].mxu0 %v5302
      %v5388 = vpop.f32.mrb[0].mxu0
      %v5389 = vadd.f32 0.0, %v5388
      %v5390 = vpop.f32.mrb[0].mxu0
      %v5391 = vpop.f32.mrb[0].mxu0
      %v5392 = vadd.f32 0.0, %v5391
      %v5393 = vpop.f32.mrb[0].mxu0
      %5394 = vmatprep.mubr.bf16.mxu0 0
      %5395 = vmatmul.mubr.bf16.gmra.mrb[0].mxu0 %v5305
      %v5396 = vpop.f32.mrb[0].mxu0
      %v5397 = vadd.f32 0.0, %v5396
      %v5398 = vpop.f32.mrb[0].mxu0
      %v5399 = vpop.f32.mrb[0].mxu0
      %v5400 = vadd.f32 0.0, %v5399
      %v5401 = vpop.f32.mrb[0].mxu0
      %5402 = vmatprep.mubr.bf16.mxu0 0
      %5403 = vmatmul.mubr.bf16.gmra.mrb[0].mxu0 %v5308
      %v5404 = vpop.f32.mrb[0].mxu0
      %v5405 = vadd.f32 0.0, %v5404
      %v5406 = vpop.f32.mrb[0].mxu0
      %v5407 = vpop.f32.mrb[0].mxu0
      %v5408 = vadd.f32 0.0, %v5407
      %v5409 = vpop.f32.mrb[0].mxu0
      %5410 = vmatprep.mubr.bf16.mxu0 0
      %5411 = vmatmul.mubr.bf16.gmra.mrb[0].mxu0 %v5311
      %v5412 = vpop.f32.mrb[0].mxu0
      %v5413 = vadd.f32 0.0, %v5412
      %v5414 = vpop.f32.mrb[0].mxu0
      %v5415 = vpop.f32.mrb[0].mxu0
      %v5416 = vadd.f32 0.0, %v5415
      %v5417 = vpop.f32.mrb[0].mxu0
      %5418 = vmatprep.mubr.bf16.mxu0 0
      %5419 = vmatmul.mubr.bf16.gmra.mrb[0].mxu0 %v5314
      %v5420 = vpop.f32.mrb[0].mxu0
      %v5421 = vadd.f32 0.0, %v5420
      %v5422 = vpop.f32.mrb[0].mxu0
      %v5423 = vpop.f32.mrb[0].mxu0
      %v5424 = vadd.f32 0.0, %v5423
      %v5425 = vpop.f32.mrb[0].mxu0
      %5426 = vmatprep.mubr.bf16.mxu0 0
      %5427 = vmatmul.mubr.bf16.gmra.mrb[0].mxu0 %v5317
      %v5428 = vpop.f32.mrb[0].mxu0
      %v5429 = vadd.f32 0.0, %v5428
      %v5430 = vpop.f32.mrb[0].mxu0
      %v5431 = vpop.f32.mrb[0].mxu0
      %v5432 = vadd.f32 0.0, %v5431
      %v5433 = vpop.f32.mrb[0].mxu0
      %5434 = vmatprep.mubr.bf16.mxu0 0
      %5435 = vmatmul.mubr.bf16.gmra.mrb[0].mxu0 %v5320
      %v5436 = vpop.f32.mrb[0].mxu0
      %v5437 = vadd.f32 0.0, %v5436
      %v5438 = vpop.f32.mrb[0].mxu0
      %v5439 = vpop.f32.mrb[0].mxu0
      %v5440 = vadd.f32 0.0, %v5439
      %v5441 = vpop.f32.mrb[0].mxu0
      %5442 = vmatprep.mubr.bf16.mxu0 0
      %5443 = vmatmul.mubr.bf16.gmra.mrb[0].mxu0 %v5323
      %v5444 = vpop.f32.mrb[0].mxu0
      %v5445 = vadd.f32 0.0, %v5444
      %v5446 = vpop.f32.mrb[0].mxu0
      %v5447 = vpop.f32.mrb[0].mxu0
      %v5448 = vadd.f32 0.0, %v5447
      %v5449 = vpop.f32.mrb[0].mxu0
      %5450 = vmatprep.mubr.bf16.mxu0 0
      %5451 = vmatmul.mubr.bf16.gmra.mrb[0].mxu0 %v5326
      %v5452 = vpop.f32.mrb[0].mxu0
      %v5453 = vadd.f32 0.0, %v5452
      %v5454 = vpop.f32.mrb[0].mxu0
      %v5455 = vpop.f32.mrb[0].mxu0
      %v5456 = vadd.f32 0.0, %v5455
      %v5457 = vpop.f32.mrb[0].mxu0
      %5458 = vmatprep.mubr.bf16.mxu0 0
      %5459 = vmatmul.mubr.bf16.gmra.mrb[0].mxu0 %v5329
      %v5460 = vpop.f32.mrb[0].mxu0
      %v5461 = vadd.f32 0.0, %v5460
      %v5462 = vpop.f32.mrb[0].mxu0
      %v5463 = vpop.f32.mrb[0].mxu0
      %v5464 = vadd.f32 0.0, %v5463
      %v5465 = vpop.f32.mrb[0].mxu0
      %5466 = vmatprep.mubr.bf16.mxu0 0
      %5467 = vmatmul.mubr.bf16.gmra.mrb[0].mxu0 %v5332
      %v5468 = vpop.f32.mrb[0].mxu0
      %v5469 = vadd.f32 0.0, %v5468
      %v5470 = vpop.f32.mrb[0].mxu0
      %v5471 = vpop.f32.mrb[0].mxu0
      %v5472 = vadd.f32 0.0, %v5471
      %v5473 = vpop.f32.mrb[0].mxu0
      %5474 = vmatprep.mubr.bf16.mxu0 0
      %5475 = vmatmul.mubr.bf16.gmra.mrb[0].mxu0 %v5335
      %v5476 = vpop.f32.mrb[0].mxu0
      %v5477 = vadd.f32 0.0, %v5476
      %v5478 = vpop.f32.mrb[0].mxu0
      %v5479 = vpop.f32.mrb[0].mxu0
      %v5480 = vadd.f32 0.0, %v5479
      %v5481 = vpop.f32.mrb[0].mxu0
      %5482 = vmatprep.mubr.bf16.mxu0 0
      %5483 = vmatmul.mubr.bf16.gmra.mrb[0].mxu0 %v5338
      %v5484 = vpop.f32.mrb[0].mxu0
      %v5485 = vadd.f32 0.0, %v5484
      %v5486 = vpop.f32.mrb[0].mxu0
      %v5487 = vpop.f32.mrb[0].mxu0
      %v5488 = vadd.f32 0.0, %v5487
      %v5489 = vpop.f32.mrb[0].mxu0
      %5490 = vmatprep.mubr.bf16.mxu0 0
      %5491 = vmatmul.mubr.bf16.gmra.mrb[0].mxu0 %v5341
      %v5492 = vpop.f32.mrb[0].mxu0
      %v5493 = vadd.f32 0.0, %v5492
      %v5494 = vpop.f32.mrb[0].mxu0
      %v5495 = vpop.f32.mrb[0].mxu0
      %v5496 = vadd.f32 0.0, %v5495
      %v5497 = vpop.f32.mrb[0].mxu0
      %5498 = vmatprep.mubr.bf16.mxu0 0
      %5499 = vmatmul.mubr.bf16.gmra.mrb[0].mxu0 %v5344
      %v5500 = vpop.f32.mrb[0].mxu0
      %v5501 = vadd.f32 0.0, %v5500
      %v5502 = vpop.f32.mrb[0].mxu0
      %v5503 = vpop.f32.mrb[0].mxu0
      %v5504 = vadd.f32 0.0, %v5503
      %v5505 = vpop.f32.mrb[0].mxu0
      %5506 = vdwg.mxu0
      %v5507 = vadd.f32 %v5026, %v5381
      %v5508 = vadd.f32 %v5027, %v5384
      %v5509 = vadd.f32 %v5028, %v5389
      %v5510 = vadd.f32 %v5029, %v5392
      %v5511 = vadd.f32 %v5030, %v5397
      %v5512 = vadd.f32 %v5031, %v5400
      %v5513 = vadd.f32 %v5032, %v5405
      %v5514 = vadd.f32 %v5033, %v5408
      %v5515 = vadd.f32 %v5034, %v5413
      %v5516 = vadd.f32 %v5035, %v5416
      %v5517 = vadd.f32 %v5036, %v5421
      %v5518 = vadd.f32 %v5037, %v5424
      %v5519 = vadd.f32 %v5038, %v5429
      %v5520 = vadd.f32 %v5039, %v5432
      %v5521 = vadd.f32 %v5040, %v5437
      %v5522 = vadd.f32 %v5041, %v5440
      %v5523 = vadd.f32 %v5042, %v5445
      %v5524 = vadd.f32 %v5043, %v5448
      %v5525 = vadd.f32 %v5044, %v5453
      %v5526 = vadd.f32 %v5045, %v5456
      %v5527 = vadd.f32 %v5046, %v5461
      %v5528 = vadd.f32 %v5047, %v5464
      %v5529 = vadd.f32 %v5048, %v5469
      %v5530 = vadd.f32 %v5049, %v5472
      %v5531 = vadd.f32 %v5050, %v5477
      %v5532 = vadd.f32 %v5051, %v5480
      %v5533 = vadd.f32 %v5052, %v5485
      %v5534 = vadd.f32 %v5053, %v5488
      %v5535 = vadd.f32 %v5054, %v5493
      %v5536 = vadd.f32 %v5055, %v5496
      %v5537 = vadd.f32 %v5056, %v5501
      %v5538 = vadd.f32 %v5057, %v5504
      %v5539 = vld [vmem:[%s2] sm:$0x1]
      %v5541 = vlaneseq
      %v5542 = vshrl.u32 %v5541, 7
      %v5543 = vsub.s32 0, %v5542
      %v5544 = vrot.slane %v5539, %v5543
      %v5546 = vadd.f32 %v5507, %v5544
      %v5547 = vadd.f32 %v5508, %v5544
      %v5548 = vadd.f32 %v5509, %v5544
      %v5549 = vadd.f32 %v5510, %v5544
      %v5550 = vadd.f32 %v5511, %v5544
      %v5551 = vadd.f32 %v5512, %v5544
      %v5552 = vadd.f32 %v5513, %v5544
      %v5553 = vadd.f32 %v5514, %v5544
      %v5554 = vadd.f32 %v5515, %v5544
      %v5555 = vadd.f32 %v5516, %v5544
      %v5556 = vadd.f32 %v5517, %v5544
      %v5557 = vadd.f32 %v5518, %v5544
      %v5558 = vadd.f32 %v5519, %v5544
      %v5559 = vadd.f32 %v5520, %v5544
      %v5560 = vadd.f32 %v5521, %v5544
      %v5561 = vadd.f32 %v5522, %v5544
      %v5562 = vadd.f32 %v5523, %v5544
      %v5563 = vadd.f32 %v5524, %v5544
      %v5564 = vadd.f32 %v5525, %v5544
      %v5565 = vadd.f32 %v5526, %v5544
      %v5566 = vadd.f32 %v5527, %v5544
      %v5567 = vadd.f32 %v5528, %v5544
      %v5568 = vadd.f32 %v5529, %v5544
      %v5569 = vadd.f32 %v5530, %v5544
      %v5570 = vadd.f32 %v5531, %v5544
      %v5571 = vadd.f32 %v5532, %v5544
      %v5572 = vadd.f32 %v5533, %v5544
      %v5573 = vadd.f32 %v5534, %v5544
      %v5574 = vadd.f32 %v5535, %v5544
      %v5575 = vadd.f32 %v5536, %v5544
      %v5576 = vadd.f32 %v5537, %v5544
      %v5577 = vadd.f32 %v5538, %v5544
      %v5578 = vld [vmem:[%s3] sm:$0x1]
      %v5579 = vld [vmem:[%s4] sm:$0x1]
      %v5580 = vsel %vm1384, %v5546, 0.0
      %v5581 = vsel %vm1384, %v5547, 0.0
      %v5582 = vadd.f32 %v5580, %v5581
      %v5583 = vsel %vm1384, %v5548, 0.0
      %v5584 = vadd.f32 %v5582, %v5583
      %v5585 = vsel %vm1384, %v5549, 0.0
      %v5586 = vadd.f32 %v5584, %v5585
      %v5587 = vsel %vm1384, %v5550, 0.0
      %v5588 = vadd.f32 %v5586, %v5587
      %v5589 = vsel %vm1384, %v5551, 0.0
      %v5590 = vadd.f32 %v5588, %v5589
      %v5591 = vsel %vm1384, %v5552, 0.0
      %v5592 = vadd.f32 %v5590, %v5591
      %v5593 = vsel %vm1384, %v5553, 0.0
      %v5594 = vadd.f32 %v5592, %v5593
      %v5595 = vsel %vm1384, %v5554, 0.0
      %v5596 = vadd.f32 %v5594, %v5595
      %v5597 = vsel %vm1384, %v5555, 0.0
      %v5598 = vadd.f32 %v5596, %v5597
      %v5599 = vsel %vm1384, %v5556, 0.0
      %v5600 = vadd.f32 %v5598, %v5599
      %v5601 = vsel %vm1384, %v5557, 0.0
      %v5602 = vadd.f32 %v5600, %v5601
      %v5603 = vsel %vm1384, %v5558, 0.0
      %v5604 = vadd.f32 %v5602, %v5603
      %v5605 = vsel %vm1384, %v5559, 0.0
      %v5606 = vadd.f32 %v5604, %v5605
      %v5607 = vsel %vm1384, %v5560, 0.0
      %v5608 = vadd.f32 %v5606, %v5607
      %v5609 = vsel %vm1384, %v5561, 0.0
      %v5610 = vadd.f32 %v5608, %v5609
      %v5611 = vsel %vm1384, %v5562, 0.0
      %v5612 = vadd.f32 %v5610, %v5611
      %v5613 = vsel %vm1384, %v5563, 0.0
      %v5614 = vadd.f32 %v5612, %v5613
      %v5615 = vsel %vm1384, %v5564, 0.0
      %v5616 = vadd.f32 %v5614, %v5615
      %v5617 = vsel %vm1384, %v5565, 0.0
      %v5618 = vadd.f32 %v5616, %v5617
      %v5619 = vsel %vm1384, %v5566, 0.0
      %v5620 = vadd.f32 %v5618, %v5619
      %v5621 = vsel %vm1384, %v5567, 0.0
      %v5622 = vadd.f32 %v5620, %v5621
      %v5623 = vsel %vm1384, %v5568, 0.0
      %v5624 = vadd.f32 %v5622, %v5623
      %v5625 = vsel %vm1384, %v5569, 0.0
      %v5626 = vadd.f32 %v5624, %v5625
      %v5627 = vsel %vm1384, %v5570, 0.0
      %v5628 = vadd.f32 %v5626, %v5627
      %v5629 = vsel %vm1384, %v5571, 0.0
      %v5630 = vadd.f32 %v5628, %v5629
      %v5631 = vsel %vm1384, %v5572, 0.0
      %v5632 = vadd.f32 %v5630, %v5631
      %v5633 = vsel %vm1384, %v5573, 0.0
      %v5634 = vadd.f32 %v5632, %v5633
      %v5635 = vsel %vm1384, %v5574, 0.0
      %v5636 = vadd.f32 %v5634, %v5635
      %v5637 = vsel %vm1384, %v5575, 0.0
      %v5638 = vadd.f32 %v5636, %v5637
      %v5639 = vsel %vm1384, %v5576, 0.0
      %v5640 = vadd.f32 %v5638, %v5639
      %v5641 = vsel %vm1384, %v5577, 0.0
      %v5642 = vadd.f32 %v5640, %v5641
      %v5643 = vrot.slane %v5642, 4
      %v5644 = vadd.f32 %v5642, %v5643
      %v5645 = vrot.slane %v5644, 2
      %v5646 = vadd.f32 %v5644, %v5645
      %v5647 = vrot.slane %v5646, 1
      %v5648 = vadd.f32 %v5646, %v5647
      %v5649 = vrcp.pop 256.0
      %v5650 = vmul.f32 %v5648, %v5649
      %v5651 = vsub.f32 %v5546, %v5650
      %v5652 = vsub.f32 %v5547, %v5650
      %v5653 = vsub.f32 %v5548, %v5650
      %v5654 = vsub.f32 %v5549, %v5650
      %v5655 = vsub.f32 %v5550, %v5650
      %v5656 = vsub.f32 %v5551, %v5650
      %v5657 = vsub.f32 %v5552, %v5650
      %v5658 = vsub.f32 %v5553, %v5650
      %v5659 = vsub.f32 %v5554, %v5650
      %v5660 = vsub.f32 %v5555, %v5650
      %v5661 = vsub.f32 %v5556, %v5650
      %v5662 = vsub.f32 %v5557, %v5650
      %v5663 = vsub.f32 %v5558, %v5650
      %v5664 = vsub.f32 %v5559, %v5650
      %v5665 = vsub.f32 %v5560, %v5650
      %v5666 = vsub.f32 %v5561, %v5650
      %v5667 = vsub.f32 %v5562, %v5650
      %v5668 = vsub.f32 %v5563, %v5650
      %v5669 = vsub.f32 %v5564, %v5650
      %v5670 = vsub.f32 %v5565, %v5650
      %v5671 = vsub.f32 %v5566, %v5650
      %v5672 = vsub.f32 %v5567, %v5650
      %v5673 = vsub.f32 %v5568, %v5650
      %v5674 = vsub.f32 %v5569, %v5650
      %v5675 = vsub.f32 %v5570, %v5650
      %v5676 = vsub.f32 %v5571, %v5650
      %v5677 = vsub.f32 %v5572, %v5650
      %v5678 = vsub.f32 %v5573, %v5650
      %v5679 = vsub.f32 %v5574, %v5650
      %v5680 = vsub.f32 %v5575, %v5650
      %v5681 = vsub.f32 %v5576, %v5650
      %v5682 = vsub.f32 %v5577, %v5650
      %v5683 = vmul.f32 %v5651, %v5651
      %v5684 = vmul.f32 %v5652, %v5652
      %v5685 = vmul.f32 %v5653, %v5653
      %v5686 = vmul.f32 %v5654, %v5654
      %v5687 = vmul.f32 %v5655, %v5655
      %v5688 = vmul.f32 %v5656, %v5656
      %v5689 = vmul.f32 %v5657, %v5657
      %v5690 = vmul.f32 %v5658, %v5658
      %v5691 = vmul.f32 %v5659, %v5659
      %v5692 = vmul.f32 %v5660, %v5660
      %v5693 = vmul.f32 %v5661, %v5661
      %v5694 = vmul.f32 %v5662, %v5662
      %v5695 = vmul.f32 %v5663, %v5663
      %v5696 = vmul.f32 %v5664, %v5664
      %v5697 = vmul.f32 %v5665, %v5665
      %v5698 = vmul.f32 %v5666, %v5666
      %v5699 = vmul.f32 %v5667, %v5667
      %v5700 = vmul.f32 %v5668, %v5668
      %v5701 = vmul.f32 %v5669, %v5669
      %v5702 = vmul.f32 %v5670, %v5670
      %v5703 = vmul.f32 %v5671, %v5671
      %v5704 = vmul.f32 %v5672, %v5672
      %v5705 = vmul.f32 %v5673, %v5673
      %v5706 = vmul.f32 %v5674, %v5674
      %v5707 = vmul.f32 %v5675, %v5675
      %v5708 = vmul.f32 %v5676, %v5676
      %v5709 = vmul.f32 %v5677, %v5677
      %v5710 = vmul.f32 %v5678, %v5678
      %v5711 = vmul.f32 %v5679, %v5679
      %v5712 = vmul.f32 %v5680, %v5680
      %v5713 = vmul.f32 %v5681, %v5681
      %v5714 = vmul.f32 %v5682, %v5682
      %v5715 = vsel %vm1384, %v5683, 0.0
      %v5716 = vsel %vm1384, %v5684, 0.0
      %v5717 = vadd.f32 %v5715, %v5716
      %v5718 = vsel %vm1384, %v5685, 0.0
      %v5719 = vadd.f32 %v5717, %v5718
      %v5720 = vsel %vm1384, %v5686, 0.0
      %v5721 = vadd.f32 %v5719, %v5720
      %v5722 = vsel %vm1384, %v5687, 0.0
      %v5723 = vadd.f32 %v5721, %v5722
      %v5724 = vsel %vm1384, %v5688, 0.0
      %v5725 = vadd.f32 %v5723, %v5724
      %v5726 = vsel %vm1384, %v5689, 0.0
      %v5727 = vadd.f32 %v5725, %v5726
      %v5728 = vsel %vm1384, %v5690, 0.0
      %v5729 = vadd.f32 %v5727, %v5728
      %v5730 = vsel %vm1384, %v5691, 0.0
      %v5731 = vadd.f32 %v5729, %v5730
      %v5732 = vsel %vm1384, %v5692, 0.0
      %v5733 = vadd.f32 %v5731, %v5732
      %v5734 = vsel %vm1384, %v5693, 0.0
      %v5735 = vadd.f32 %v5733, %v5734
      %v5736 = vsel %vm1384, %v5694, 0.0
      %v5737 = vadd.f32 %v5735, %v5736
      %v5738 = vsel %vm1384, %v5695, 0.0
      %v5739 = vadd.f32 %v5737, %v5738
      %v5740 = vsel %vm1384, %v5696, 0.0
      %v5741 = vadd.f32 %v5739, %v5740
      %v5742 = vsel %vm1384, %v5697, 0.0
      %v5743 = vadd.f32 %v5741, %v5742
      %v5744 = vsel %vm1384, %v5698, 0.0
      %v5745 = vadd.f32 %v5743, %v5744
      %v5746 = vsel %vm1384, %v5699, 0.0
      %v5747 = vadd.f32 %v5745, %v5746
      %v5748 = vsel %vm1384, %v5700, 0.0
      %v5749 = vadd.f32 %v5747, %v5748
      %v5750 = vsel %vm1384, %v5701, 0.0
      %v5751 = vadd.f32 %v5749, %v5750
      %v5752 = vsel %vm1384, %v5702, 0.0
      %v5753 = vadd.f32 %v5751, %v5752
      %v5754 = vsel %vm1384, %v5703, 0.0
      %v5755 = vadd.f32 %v5753, %v5754
      %v5756 = vsel %vm1384, %v5704, 0.0
      %v5757 = vadd.f32 %v5755, %v5756
      %v5758 = vsel %vm1384, %v5705, 0.0
      %v5759 = vadd.f32 %v5757, %v5758
      %v5760 = vsel %vm1384, %v5706, 0.0
      %v5761 = vadd.f32 %v5759, %v5760
      %v5762 = vsel %vm1384, %v5707, 0.0
      %v5763 = vadd.f32 %v5761, %v5762
      %v5764 = vsel %vm1384, %v5708, 0.0
      %v5765 = vadd.f32 %v5763, %v5764
      %v5766 = vsel %vm1384, %v5709, 0.0
      %v5767 = vadd.f32 %v5765, %v5766
      %v5768 = vsel %vm1384, %v5710, 0.0
      %v5769 = vadd.f32 %v5767, %v5768
      %v5770 = vsel %vm1384, %v5711, 0.0
      %v5771 = vadd.f32 %v5769, %v5770
      %v5772 = vsel %vm1384, %v5712, 0.0
      %v5773 = vadd.f32 %v5771, %v5772
      %v5774 = vsel %vm1384, %v5713, 0.0
      %v5775 = vadd.f32 %v5773, %v5774
      %v5776 = vsel %vm1384, %v5714, 0.0
      %v5777 = vadd.f32 %v5775, %v5776
      %v5778 = vrot.slane %v5777, 4
      %v5779 = vadd.f32 %v5777, %v5778
      %v5780 = vrot.slane %v5779, 2
      %v5781 = vadd.f32 %v5779, %v5780
      %v5782 = vrot.slane %v5781, 1
      %v5783 = vadd.f32 %v5781, %v5782
      %v5784 = vmul.f32 %v5783, %v5649
      %v5785 = vadd.f32 %v5784, 1e-05
      %v5786 = vrsqrt.pop %v5785
      %v5787 = vmul.f32 %v5651, %v5786
      %v5788 = vmul.f32 %v5652, %v5786
      %v5789 = vmul.f32 %v5653, %v5786
      %v5790 = vmul.f32 %v5654, %v5786
      %v5791 = vmul.f32 %v5655, %v5786
      %v5792 = vmul.f32 %v5656, %v5786
      %v5793 = vmul.f32 %v5657, %v5786
      %v5794 = vmul.f32 %v5658, %v5786
      %v5795 = vmul.f32 %v5659, %v5786
      %v5796 = vmul.f32 %v5660, %v5786
      %v5797 = vmul.f32 %v5661, %v5786
      %v5798 = vmul.f32 %v5662, %v5786
      %v5799 = vmul.f32 %v5663, %v5786
      %v5800 = vmul.f32 %v5664, %v5786
      %v5801 = vmul.f32 %v5665, %v5786
      %v5802 = vmul.f32 %v5666, %v5786
      %v5803 = vmul.f32 %v5667, %v5786
      %v5804 = vmul.f32 %v5668, %v5786
      %v5805 = vmul.f32 %v5669, %v5786
      %v5806 = vmul.f32 %v5670, %v5786
      %v5807 = vmul.f32 %v5671, %v5786
      %v5808 = vmul.f32 %v5672, %v5786
      %v5809 = vmul.f32 %v5673, %v5786
      %v5810 = vmul.f32 %v5674, %v5786
      %v5811 = vmul.f32 %v5675, %v5786
      %v5812 = vmul.f32 %v5676, %v5786
      %v5813 = vmul.f32 %v5677, %v5786
      %v5814 = vmul.f32 %v5678, %v5786
      %v5815 = vmul.f32 %v5679, %v5786
      %v5816 = vmul.f32 %v5680, %v5786
      %v5817 = vmul.f32 %v5681, %v5786
      %v5818 = vmul.f32 %v5682, %v5786
      %v5820 = vlaneseq
      %v5821 = vshrl.u32 %v5820, 7
      %v5822 = vsub.s32 0, %v5821
      %v5823 = vrot.slane %v5578, %v5822
      %v5825 = vmul.f32 %v5787, %v5823
      %v5826 = vmul.f32 %v5788, %v5823
      %v5827 = vmul.f32 %v5789, %v5823
      %v5828 = vmul.f32 %v5790, %v5823
      %v5829 = vmul.f32 %v5791, %v5823
      %v5830 = vmul.f32 %v5792, %v5823
      %v5831 = vmul.f32 %v5793, %v5823
      %v5832 = vmul.f32 %v5794, %v5823
      %v5833 = vmul.f32 %v5795, %v5823
      %v5834 = vmul.f32 %v5796, %v5823
      %v5835 = vmul.f32 %v5797, %v5823
      %v5836 = vmul.f32 %v5798, %v5823
      %v5837 = vmul.f32 %v5799, %v5823
      %v5838 = vmul.f32 %v5800, %v5823
      %v5839 = vmul.f32 %v5801, %v5823
      %v5840 = vmul.f32 %v5802, %v5823
      %v5841 = vmul.f32 %v5803, %v5823
      %v5842 = vmul.f32 %v5804, %v5823
      %v5843 = vmul.f32 %v5805, %v5823
      %v5844 = vmul.f32 %v5806, %v5823
      %v5845 = vmul.f32 %v5807, %v5823
      %v5846 = vmul.f32 %v5808, %v5823
      %v5847 = vmul.f32 %v5809, %v5823
      %v5848 = vmul.f32 %v5810, %v5823
      %v5849 = vmul.f32 %v5811, %v5823
      %v5850 = vmul.f32 %v5812, %v5823
      %v5851 = vmul.f32 %v5813, %v5823
      %v5852 = vmul.f32 %v5814, %v5823
      %v5853 = vmul.f32 %v5815, %v5823
      %v5854 = vmul.f32 %v5816, %v5823
      %v5855 = vmul.f32 %v5817, %v5823
      %v5856 = vmul.f32 %v5818, %v5823
      %v5858 = vlaneseq
      %v5859 = vshrl.u32 %v5858, 7
      %v5860 = vsub.s32 0, %v5859
      %v5861 = vrot.slane %v5579, %v5860
      %v5863 = vadd.f32 %v5825, %v5861
      %v5864 = vadd.f32 %v5826, %v5861
      %v5865 = vadd.f32 %v5827, %v5861
      %v5866 = vadd.f32 %v5828, %v5861
      %v5867 = vadd.f32 %v5829, %v5861
      %v5868 = vadd.f32 %v5830, %v5861
      %v5869 = vadd.f32 %v5831, %v5861
      %v5870 = vadd.f32 %v5832, %v5861
      %v5871 = vadd.f32 %v5833, %v5861
      %v5872 = vadd.f32 %v5834, %v5861
      %v5873 = vadd.f32 %v5835, %v5861
      %v5874 = vadd.f32 %v5836, %v5861
      %v5875 = vadd.f32 %v5837, %v5861
      %v5876 = vadd.f32 %v5838, %v5861
      %v5877 = vadd.f32 %v5839, %v5861
      %v5878 = vadd.f32 %v5840, %v5861
      %v5879 = vadd.f32 %v5841, %v5861
      %v5880 = vadd.f32 %v5842, %v5861
      %v5881 = vadd.f32 %v5843, %v5861
      %v5882 = vadd.f32 %v5844, %v5861
      %v5883 = vadd.f32 %v5845, %v5861
      %v5884 = vadd.f32 %v5846, %v5861
      %v5885 = vadd.f32 %v5847, %v5861
      %v5886 = vadd.f32 %v5848, %v5861
      %v5887 = vadd.f32 %v5849, %v5861
      %v5888 = vadd.f32 %v5850, %v5861
      %v5889 = vadd.f32 %v5851, %v5861
      %v5890 = vadd.f32 %v5852, %v5861
      %v5891 = vadd.f32 %v5853, %v5861
      %v5892 = vadd.f32 %v5854, %v5861
      %v5893 = vadd.f32 %v5855, %v5861
      %v5894 = vadd.f32 %v5856, %v5861
      %v5895 = vmul.f32 %v5863, 0.5
      %v5896 = vmul.f32 %v5864, 0.5
      %v5897 = vmul.f32 %v5865, 0.5
      %v5898 = vmul.f32 %v5866, 0.5
      %v5899 = vmul.f32 %v5867, 0.5
      %v5900 = vmul.f32 %v5868, 0.5
      %v5901 = vmul.f32 %v5869, 0.5
      %v5902 = vmul.f32 %v5870, 0.5
      %v5903 = vmul.f32 %v5871, 0.5
      %v5904 = vmul.f32 %v5872, 0.5
      %v5905 = vmul.f32 %v5873, 0.5
      %v5906 = vmul.f32 %v5874, 0.5
      %v5907 = vmul.f32 %v5875, 0.5
      %v5908 = vmul.f32 %v5876, 0.5
      %v5909 = vmul.f32 %v5877, 0.5
      %v5910 = vmul.f32 %v5878, 0.5
      %v5911 = vmul.f32 %v5879, 0.5
      %v5912 = vmul.f32 %v5880, 0.5
      %v5913 = vmul.f32 %v5881, 0.5
      %v5914 = vmul.f32 %v5882, 0.5
      %v5915 = vmul.f32 %v5883, 0.5
      %v5916 = vmul.f32 %v5884, 0.5
      %v5917 = vmul.f32 %v5885, 0.5
      %v5918 = vmul.f32 %v5886, 0.5
      %v5919 = vmul.f32 %v5887, 0.5
      %v5920 = vmul.f32 %v5888, 0.5
      %v5921 = vmul.f32 %v5889, 0.5
      %v5922 = vmul.f32 %v5890, 0.5
      %v5923 = vmul.f32 %v5891, 0.5
      %v5924 = vmul.f32 %v5892, 0.5
      %v5925 = vmul.f32 %v5893, 0.5
      %v5926 = vmul.f32 %v5894, 0.5
      %v5927 = vmul.f32 %v5863, 0.70710677
      %v5928 = vmul.f32 %v5864, 0.70710677
      %v5929 = vmul.f32 %v5865, 0.70710677
      %v5930 = vmul.f32 %v5866, 0.70710677
      %v5931 = vmul.f32 %v5867, 0.70710677
      %v5932 = vmul.f32 %v5868, 0.70710677
      %v5933 = vmul.f32 %v5869, 0.70710677
      %v5934 = vmul.f32 %v5870, 0.70710677
      %v5935 = vmul.f32 %v5871, 0.70710677
      %v5936 = vmul.f32 %v5872, 0.70710677
      %v5937 = vmul.f32 %v5873, 0.70710677
      %v5938 = vmul.f32 %v5874, 0.70710677
      %v5939 = vmul.f32 %v5875, 0.70710677
      %v5940 = vmul.f32 %v5876, 0.70710677
      %v5941 = vmul.f32 %v5877, 0.70710677
      %v5942 = vmul.f32 %v5878, 0.70710677
      %v5943 = vmul.f32 %v5879, 0.70710677
      %v5944 = vmul.f32 %v5880, 0.70710677
      %v5945 = vmul.f32 %v5881, 0.70710677
      %v5946 = vmul.f32 %v5882, 0.70710677
      %v5947 = vmul.f32 %v5883, 0.70710677
      %v5948 = vmul.f32 %v5884, 0.70710677
      %v5949 = vmul.f32 %v5885, 0.70710677
      %v5950 = vmul.f32 %v5886, 0.70710677
      %v5951 = vmul.f32 %v5887, 0.70710677
      %v5952 = vmul.f32 %v5888, 0.70710677
      %v5953 = vmul.f32 %v5889, 0.70710677
      %v5954 = vmul.f32 %v5890, 0.70710677
      %v5955 = vmul.f32 %v5891, 0.70710677
      %v5956 = vmul.f32 %v5892, 0.70710677
      %v5957 = vmul.f32 %v5893, 0.70710677
      %v5958 = vmul.f32 %v5894, 0.70710677
      %v5959 = verf.f32.pop %v5927
      %v5960 = verf.f32.pop %v5928
      %v5961 = verf.f32.pop %v5929
      %v5962 = verf.f32.pop %v5930
      %v5963 = verf.f32.pop %v5931
      %v5964 = verf.f32.pop %v5932
      %v5965 = verf.f32.pop %v5933
      %v5966 = verf.f32.pop %v5934
      %v5967 = verf.f32.pop %v5935
      %v5968 = verf.f32.pop %v5936
      %v5969 = verf.f32.pop %v5937
      %v5970 = verf.f32.pop %v5938
      %v5971 = verf.f32.pop %v5939
      %v5972 = verf.f32.pop %v5940
      %v5973 = verf.f32.pop %v5941
      %v5974 = verf.f32.pop %v5942
      %v5975 = verf.f32.pop %v5943
      %v5976 = verf.f32.pop %v5944
      %v5977 = verf.f32.pop %v5945
      %v5978 = verf.f32.pop %v5946
      %v5979 = verf.f32.pop %v5947
      %v5980 = verf.f32.pop %v5948
      %v5981 = verf.f32.pop %v5949
      %v5982 = verf.f32.pop %v5950
      %v5983 = verf.f32.pop %v5951
      %v5984 = verf.f32.pop %v5952
      %v5985 = verf.f32.pop %v5953
      %v5986 = verf.f32.pop %v5954
      %v5987 = verf.f32.pop %v5955
      %v5988 = verf.f32.pop %v5956
      %v5989 = verf.f32.pop %v5957
      %v5990 = verf.f32.pop %v5958
      %v5991 = vadd.f32 %v5959, 1.0
      %v5992 = vadd.f32 %v5960, 1.0
      %v5993 = vadd.f32 %v5961, 1.0
      %v5994 = vadd.f32 %v5962, 1.0
      %v5995 = vadd.f32 %v5963, 1.0
      %v5996 = vadd.f32 %v5964, 1.0
      %v5997 = vadd.f32 %v5965, 1.0
      %v5998 = vadd.f32 %v5966, 1.0
      %v5999 = vadd.f32 %v5967, 1.0
      %v6000 = vadd.f32 %v5968, 1.0
      %v6001 = vadd.f32 %v5969, 1.0
      %v6002 = vadd.f32 %v5970, 1.0
      %v6003 = vadd.f32 %v5971, 1.0
      %v6004 = vadd.f32 %v5972, 1.0
      %v6005 = vadd.f32 %v5973, 1.0
      %v6006 = vadd.f32 %v5974, 1.0
      %v6007 = vadd.f32 %v5975, 1.0
      %v6008 = vadd.f32 %v5976, 1.0
      %v6009 = vadd.f32 %v5977, 1.0
      %v6010 = vadd.f32 %v5978, 1.0
      %v6011 = vadd.f32 %v5979, 1.0
      %v6012 = vadd.f32 %v5980, 1.0
      %v6013 = vadd.f32 %v5981, 1.0
      %v6014 = vadd.f32 %v5982, 1.0
      %v6015 = vadd.f32 %v5983, 1.0
      %v6016 = vadd.f32 %v5984, 1.0
      %v6017 = vadd.f32 %v5985, 1.0
      %v6018 = vadd.f32 %v5986, 1.0
      %v6019 = vadd.f32 %v5987, 1.0
      %v6020 = vadd.f32 %v5988, 1.0
      %v6021 = vadd.f32 %v5989, 1.0
      %v6022 = vadd.f32 %v5990, 1.0
      %v6023 = vmul.f32 %v5895, %v5991
      %v6024 = vmul.f32 %v5896, %v5992
      %v6025 = vmul.f32 %v5897, %v5993
      %v6026 = vmul.f32 %v5898, %v5994
      %v6027 = vmul.f32 %v5899, %v5995
      %v6028 = vmul.f32 %v5900, %v5996
      %v6029 = vmul.f32 %v5901, %v5997
      %v6030 = vmul.f32 %v5902, %v5998
      %v6031 = vmul.f32 %v5903, %v5999
      %v6032 = vmul.f32 %v5904, %v6000
      %v6033 = vmul.f32 %v5905, %v6001
      %v6034 = vmul.f32 %v5906, %v6002
      %v6035 = vmul.f32 %v5907, %v6003
      %v6036 = vmul.f32 %v5908, %v6004
      %v6037 = vmul.f32 %v5909, %v6005
      %v6038 = vmul.f32 %v5910, %v6006
      %v6039 = vmul.f32 %v5911, %v6007
      %v6040 = vmul.f32 %v5912, %v6008
      %v6041 = vmul.f32 %v5913, %v6009
      %v6042 = vmul.f32 %v5914, %v6010
      %v6043 = vmul.f32 %v5915, %v6011
      %v6044 = vmul.f32 %v5916, %v6012
      %v6045 = vmul.f32 %v5917, %v6013
      %v6046 = vmul.f32 %v5918, %v6014
      %v6047 = vmul.f32 %v5919, %v6015
      %v6048 = vmul.f32 %v5920, %v6016
      %v6049 = vmul.f32 %v5921, %v6017
      %v6050 = vmul.f32 %v5922, %v6018
      %v6051 = vmul.f32 %v5923, %v6019
      %v6052 = vmul.f32 %v5924, %v6020
      %v6053 = vmul.f32 %v5925, %v6021
      %v6054 = vmul.f32 %v5926, %v6022
      %v6055 = vpack.c.bf16 %v6024, %v6023
      %v6056 = vpack.c.bf16 %v6026, %v6025
      %v6057 = vpack.c.bf16 %v6028, %v6027
      %v6058 = vpack.c.bf16 %v6030, %v6029
      %v6059 = vpack.c.bf16 %v6032, %v6031
      %v6060 = vpack.c.bf16 %v6034, %v6033
      %v6061 = vpack.c.bf16 %v6036, %v6035
      %v6062 = vpack.c.bf16 %v6038, %v6037
      %v6063 = vpack.c.bf16 %v6040, %v6039
      %v6064 = vpack.c.bf16 %v6042, %v6041
      %v6065 = vpack.c.bf16 %v6044, %v6043
      %v6066 = vpack.c.bf16 %v6046, %v6045
      %v6067 = vpack.c.bf16 %v6048, %v6047
      %v6068 = vpack.c.bf16 %v6050, %v6049
      %v6069 = vpack.c.bf16 %v6052, %v6051
      %v6070 = vpack.c.bf16 %v6054, %v6053
      %v6072 = vshrl.u32 %v6056, 16
      %v6075 = vshrl.u32 %v6055, 16
      %v6078 = vshrl.u32 %v6057, 16
      %v6081 = vshrl.u32 %v6058, 16
      %v6084 = vshrl.u32 %v6059, 16
      %v6087 = vshrl.u32 %v6060, 16
      %v6090 = vshrl.u32 %v6061, 16
      %v6093 = vshrl.u32 %v6062, 16
      %v6096 = vshrl.u32 %v6063, 16
      %v6099 = vshrl.u32 %v6064, 16
      %v6102 = vshrl.u32 %v6065, 16
      %v6105 = vshrl.u32 %v6066, 16
      %v6108 = vshrl.u32 %v6067, 16
      %v6111 = vshrl.u32 %v6068, 16
      %v6114 = vshrl.u32 %v6069, 16
      %v6117 = vshrl.u32 %v6070, 16
      %v6135 = vrot.slane %v6072, 7
      %v6136 = vshll.u32 %v6056, 16
      %v6138 = vor.u32 %v6135, %v6136
      %v6139 = vrot.slane %v6075, 7
      %v6140 = vshll.u32 %v6055, 16
      %v6142 = vor.u32 %v6139, %v6140
      %v6143 = vrot.slane %v6078, 7
      %v6144 = vshll.u32 %v6057, 16
      %v6146 = vor.u32 %v6143, %v6144
      %v6147 = vrot.slane %v6081, 7
      %v6148 = vshll.u32 %v6058, 16
      %v6150 = vor.u32 %v6147, %v6148
      %v6151 = vrot.slane %v6084, 7
      %v6152 = vshll.u32 %v6059, 16
      %v6154 = vor.u32 %v6151, %v6152
      %v6155 = vrot.slane %v6087, 7
      %v6156 = vshll.u32 %v6060, 16
      %v6158 = vor.u32 %v6155, %v6156
      %v6159 = vrot.slane %v6090, 7
      %v6160 = vshll.u32 %v6061, 16
      %v6162 = vor.u32 %v6159, %v6160
      %v6163 = vrot.slane %v6093, 7
      %v6164 = vshll.u32 %v6062, 16
      %v6166 = vor.u32 %v6163, %v6164
      %v6167 = vrot.slane %v6096, 7
      %v6168 = vshll.u32 %v6063, 16
      %v6170 = vor.u32 %v6167, %v6168
      %v6171 = vrot.slane %v6099, 7
      %v6172 = vshll.u32 %v6064, 16
      %v6174 = vor.u32 %v6171, %v6172
      %v6175 = vrot.slane %v6102, 7
      %v6176 = vshll.u32 %v6065, 16
      %v6178 = vor.u32 %v6175, %v6176
      %v6179 = vrot.slane %v6105, 7
      %v6180 = vshll.u32 %v6066, 16
      %v6182 = vor.u32 %v6179, %v6180
      %v6183 = vrot.slane %v6108, 7
      %v6184 = vshll.u32 %v6067, 16
      %v6186 = vor.u32 %v6183, %v6184
      %v6187 = vrot.slane %v6111, 7
      %v6188 = vshll.u32 %v6068, 16
      %v6190 = vor.u32 %v6187, %v6188
      %v6191 = vrot.slane %v6114, 7
      %v6192 = vshll.u32 %v6069, 16
      %v6194 = vor.u32 %v6191, %v6192
      %v6195 = vrot.slane %v6117, 7
      %v6196 = vshll.u32 %v6070, 16
      %v6198 = vor.u32 %v6195, %v6196
      %v6231 = vrot.slane %v6136, 7
      %v6232 = vrot.slane %v6140, 7
      %v6233 = vrot.slane %v6144, 7
      %v6234 = vrot.slane %v6148, 7
      %v6235 = vrot.slane %v6152, 7
      %v6236 = vrot.slane %v6156, 7
      %v6237 = vrot.slane %v6160, 7
      %v6238 = vrot.slane %v6164, 7
      %v6239 = vrot.slane %v6168, 7
      %v6240 = vrot.slane %v6172, 7
      %v6241 = vrot.slane %v6176, 7
      %v6242 = vrot.slane %v6180, 7
      %v6243 = vrot.slane %v6184, 7
      %v6244 = vrot.slane %v6188, 7
      %v6245 = vrot.slane %v6192, 7
      %v6246 = vrot.slane %v6196, 7
      %v6263 = vsel %vm616, %v6072, %v6138
      %v6264 = vsel %vm616, %v6075, %v6142
      %v6265 = vsel %vm616, %v6078, %v6146
      %v6266 = vsel %vm616, %v6081, %v6150
      %v6267 = vsel %vm616, %v6084, %v6154
      %v6268 = vsel %vm616, %v6087, %v6158
      %v6269 = vsel %vm616, %v6090, %v6162
      %v6270 = vsel %vm616, %v6093, %v6166
      %v6271 = vsel %vm616, %v6096, %v6170
      %v6272 = vsel %vm616, %v6099, %v6174
      %v6273 = vsel %vm616, %v6102, %v6178
      %v6274 = vsel %vm616, %v6105, %v6182
      %v6275 = vsel %vm616, %v6108, %v6186
      %v6276 = vsel %vm616, %v6111, %v6190
      %v6277 = vsel %vm616, %v6114, %v6194
      %v6278 = vsel %vm616, %v6117, %v6198
      %v6279 = vsel %vm616, %v6135, %v6231
      %v6280 = vsel %vm616, %v6139, %v6232
      %v6281 = vsel %vm616, %v6143, %v6233
      %v6282 = vsel %vm616, %v6147, %v6234
      %v6283 = vsel %vm616, %v6151, %v6235
      %v6284 = vsel %vm616, %v6155, %v6236
      %v6285 = vsel %vm616, %v6159, %v6237
      %v6286 = vsel %vm616, %v6163, %v6238
      %v6287 = vsel %vm616, %v6167, %v6239
      %v6288 = vsel %vm616, %v6171, %v6240
      %v6289 = vsel %vm616, %v6175, %v6241
      %v6290 = vsel %vm616, %v6179, %v6242
      %v6291 = vsel %vm616, %v6183, %v6243
      %v6292 = vsel %vm616, %v6187, %v6244
      %v6293 = vsel %vm616, %v6191, %v6245
      %v6294 = vsel %vm616, %v6195, %v6246
      %v6327 = vunpack.c.l.b16 %v6263
      %v6328 = vunpack.c.h.b16 %v6263
      %v6329 = vunpack.c.l.b16 %v6279
      %v6330 = vunpack.c.l.b16 %v6264
      %v6331 = vunpack.c.h.b16 %v6264
      %v6332 = vunpack.c.l.b16 %v6280
      %v6333 = vunpack.c.l.b16 %v6265
      %v6334 = vunpack.c.h.b16 %v6265
      %v6335 = vunpack.c.l.b16 %v6281
      %v6336 = vunpack.c.l.b16 %v6266
      %v6337 = vunpack.c.h.b16 %v6266
      %v6338 = vunpack.c.l.b16 %v6282
      %v6339 = vunpack.c.l.b16 %v6267
      %v6340 = vunpack.c.h.b16 %v6267
      %v6341 = vunpack.c.l.b16 %v6283
      %v6342 = vunpack.c.l.b16 %v6268
      %v6343 = vunpack.c.h.b16 %v6268
      %v6344 = vunpack.c.l.b16 %v6284
      %v6345 = vunpack.c.l.b16 %v6269
      %v6346 = vunpack.c.h.b16 %v6269
      %v6347 = vunpack.c.l.b16 %v6285
      %v6348 = vunpack.c.l.b16 %v6270
      %v6349 = vunpack.c.h.b16 %v6270
      %v6350 = vunpack.c.l.b16 %v6286
      %v6351 = vunpack.c.l.b16 %v6271
      %v6352 = vunpack.c.h.b16 %v6271
      %v6353 = vunpack.c.l.b16 %v6287
      %v6354 = vunpack.c.l.b16 %v6272
      %v6355 = vunpack.c.h.b16 %v6272
      %v6356 = vunpack.c.l.b16 %v6288
      %v6357 = vunpack.c.l.b16 %v6273
      %v6358 = vunpack.c.h.b16 %v6273
      %v6359 = vunpack.c.l.b16 %v6289
      %v6360 = vunpack.c.l.b16 %v6274
      %v6361 = vunpack.c.h.b16 %v6274
      %v6362 = vunpack.c.l.b16 %v6290
      %v6363 = vunpack.c.l.b16 %v6275
      %v6364 = vunpack.c.h.b16 %v6275
      %v6365 = vunpack.c.l.b16 %v6291
      %v6366 = vunpack.c.l.b16 %v6276
      %v6367 = vunpack.c.h.b16 %v6276
      %v6368 = vunpack.c.l.b16 %v6292
      %v6369 = vunpack.c.l.b16 %v6277
      %v6370 = vunpack.c.h.b16 %v6277
      %v6371 = vunpack.c.l.b16 %v6293
      %v6372 = vunpack.c.l.b16 %v6278
      %v6373 = vunpack.c.h.b16 %v6278
      %v6374 = vunpack.c.l.b16 %v6294
      %v6375 = vpack.c.b16 %v6327, %v6327
      %v6376 = vpack.c.b16 %v6328, %v6328
      %v6377 = vpack.c.b16 %v6329, %v6329
      %v6378 = vpack.c.b16 %v6330, %v6330
      %v6379 = vpack.c.b16 %v6331, %v6331
      %v6380 = vpack.c.b16 %v6332, %v6332
      %v6381 = vpack.c.b16 %v6333, %v6333
      %v6382 = vpack.c.b16 %v6334, %v6334
      %v6383 = vpack.c.b16 %v6335, %v6335
      %v6384 = vpack.c.b16 %v6336, %v6336
      %v6385 = vpack.c.b16 %v6337, %v6337
      %v6386 = vpack.c.b16 %v6338, %v6338
      %v6387 = vpack.c.b16 %v6339, %v6339
      %v6388 = vpack.c.b16 %v6340, %v6340
      %v6389 = vpack.c.b16 %v6341, %v6341
      %v6390 = vpack.c.b16 %v6342, %v6342
      %v6391 = vpack.c.b16 %v6343, %v6343
      %v6392 = vpack.c.b16 %v6344, %v6344
      %v6393 = vpack.c.b16 %v6345, %v6345
      %v6394 = vpack.c.b16 %v6346, %v6346
      %v6395 = vpack.c.b16 %v6347, %v6347
      %v6396 = vpack.c.b16 %v6348, %v6348
      %v6397 = vpack.c.b16 %v6349, %v6349
      %v6398 = vpack.c.b16 %v6350, %v6350
      %v6399 = vpack.c.b16 %v6351, %v6351
      %v6400 = vpack.c.b16 %v6352, %v6352
      %v6401 = vpack.c.b16 %v6353, %v6353
      %v6402 = vpack.c.b16 %v6354, %v6354
      %v6403 = vpack.c.b16 %v6355, %v6355
      %v6404 = vpack.c.b16 %v6356, %v6356
      %v6405 = vpack.c.b16 %v6357, %v6357
      %v6406 = vpack.c.b16 %v6358, %v6358
      %v6407 = vpack.c.b16 %v6359, %v6359
      %v6408 = vpack.c.b16 %v6360, %v6360
      %v6409 = vpack.c.b16 %v6361, %v6361
      %v6410 = vpack.c.b16 %v6362, %v6362
      %v6411 = vpack.c.b16 %v6363, %v6363
      %v6412 = vpack.c.b16 %v6364, %v6364
      %v6413 = vpack.c.b16 %v6365, %v6365
      %v6414 = vpack.c.b16 %v6366, %v6366
      %v6415 = vpack.c.b16 %v6367, %v6367
      %v6416 = vpack.c.b16 %v6368, %v6368
      %v6417 = vpack.c.b16 %v6369, %v6369
      %v6418 = vpack.c.b16 %v6370, %v6370
      %v6419 = vpack.c.b16 %v6371, %v6371
      %v6420 = vpack.c.b16 %v6372, %v6372
      %v6421 = vpack.c.b16 %v6373, %v6373
      %v6422 = vpack.c.b16 %v6374, %v6374
      %6471 = vst.msk [vmem:[#allocation3] sm:$0xf] %vm825, %v6375
      %6472 = vst.msk [vmem:[#allocation3 + $0x4] sm:$0xf] %vm825, %v6376
      %6473 = vst.msk [vmem:[#allocation3 + $0x8] sm:$0x1] %vm828, %v6377
      %6474 = vst.msk [vmem:[#allocation3 + $0xc] sm:$0xf] %vm825, %v6378
      %6475 = vst.msk [vmem:[#allocation3 + $0x10] sm:$0xf] %vm825, %v6379
      %6476 = vst.msk [vmem:[#allocation3 + $0x14] sm:$0x1] %vm828, %v6380
      %6477 = vst.msk [vmem:[#allocation3 + $0x18] sm:$0xf] %vm825, %v6375
      %6478 = vst.msk [vmem:[#allocation3 + $0x1c] sm:$0xf] %vm825, %v6376
      %6479 = vst.msk [vmem:[#allocation3 + $0x20] sm:$0x1] %vm828, %v6377
      %6480 = vst.msk [vmem:[#allocation3 + $0x24] sm:$0xf] %vm825, %v6381
      %6481 = vst.msk [vmem:[#allocation3 + $0x28] sm:$0xf] %vm825, %v6382
      %6482 = vst.msk [vmem:[#allocation3 + $0x2c] sm:$0x1] %vm828, %v6383
      %6483 = vst.msk [vmem:[#allocation3 + $0x30] sm:$0xf] %vm825, %v6384
      %6484 = vst.msk [vmem:[#allocation3 + $0x34] sm:$0xf] %vm825, %v6385
      %6485 = vst.msk [vmem:[#allocation3 + $0x38] sm:$0x1] %vm828, %v6386
      %6486 = vst.msk [vmem:[#allocation3 + $0x3c] sm:$0xf] %vm825, %v6387
      %6487 = vst.msk [vmem:[#allocation3 + $0x40] sm:$0xf] %vm825, %v6388
      %6488 = vst.msk [vmem:[#allocation3 + $0x44] sm:$0x1] %vm828, %v6389
      %6489 = vst.msk [vmem:[#allocation3 + $0x48] sm:$0xf] %vm825, %v6390
      %6490 = vst.msk [vmem:[#allocation3 + $0x4c] sm:$0xf] %vm825, %v6391
      %6491 = vst.msk [vmem:[#allocation3 + $0x50] sm:$0x1] %vm828, %v6392
      %6492 = vst.msk [vmem:[#allocation3 + $0x54] sm:$0xf] %vm825, %v6393
      %6493 = vst.msk [vmem:[#allocation3 + $0x58] sm:$0xf] %vm825, %v6394
      %6494 = vst.msk [vmem:[#allocation3 + $0x5c] sm:$0x1] %vm828, %v6395
      %6495 = vst.msk [vmem:[#allocation3 + $0x60] sm:$0xf] %vm825, %v6396
      %6496 = vst.msk [vmem:[#allocation3 + $0x64] sm:$0xf] %vm825, %v6397
      %6497 = vst.msk [vmem:[#allocation3 + $0x68] sm:$0x1] %vm828, %v6398
      %6498 = vst.msk [vmem:[#allocation3 + $0x6c] sm:$0xf] %vm825, %v6399
      %6499 = vst.msk [vmem:[#allocation3 + $0x70] sm:$0xf] %vm825, %v6400
      %6500 = vst.msk [vmem:[#allocation3 + $0x74] sm:$0x1] %vm828, %v6401
      %6501 = vst.msk [vmem:[#allocation3 + $0x78] sm:$0xf] %vm825, %v6402
      %6502 = vst.msk [vmem:[#allocation3 + $0x7c] sm:$0xf] %vm825, %v6403
      %6503 = vst.msk [vmem:[#allocation3 + $0x80] sm:$0x1] %vm828, %v6404
      %6504 = vst.msk [vmem:[#allocation3 + $0x84] sm:$0xf] %vm825, %v6405
      %6505 = vst.msk [vmem:[#allocation3 + $0x88] sm:$0xf] %vm825, %v6406
      %6506 = vst.msk [vmem:[#allocation3 + $0x8c] sm:$0x1] %vm828, %v6407
      %6507 = vst.msk [vmem:[#allocation3 + $0x90] sm:$0xf] %vm825, %v6408
      %6508 = vst.msk [vmem:[#allocation3 + $0x94] sm:$0xf] %vm825, %v6409
      %6509 = vst.msk [vmem:[#allocation3 + $0x98] sm:$0x1] %vm828, %v6410
      %6510 = vst.msk [vmem:[#allocation3 + $0x9c] sm:$0xf] %vm825, %v6411
      %6511 = vst.msk [vmem:[#allocation3 + $0xa0] sm:$0xf] %vm825, %v6412
      %6512 = vst.msk [vmem:[#allocation3 + $0xa4] sm:$0x1] %vm828, %v6413
      %6513 = vst.msk [vmem:[#allocation3 + $0xa8] sm:$0xf] %vm825, %v6414
      %6514 = vst.msk [vmem:[#allocation3 + $0xac] sm:$0xf] %vm825, %v6415
      %6515 = vst.msk [vmem:[#allocation3 + $0xb0] sm:$0x1] %vm828, %v6416
      %6516 = vst.msk [vmem:[#allocation3 + $0xb4] sm:$0xf] %vm825, %v6417
      %6517 = vst.msk [vmem:[#allocation3 + $0xb8] sm:$0xf] %vm825, %v6418
      %6518 = vst.msk [vmem:[#allocation3 + $0xbc] sm:$0x1] %vm828, %v6419
      %6519 = vst.msk [vmem:[#allocation3 + $0xc0] sm:$0xf] %vm825, %v6420
      %6520 = vst.msk [vmem:[#allocation3 + $0xc4] sm:$0xf] %vm825, %v6421
      %6521 = vst.msk [vmem:[#allocation3 + $0xc8] sm:$0x1] %vm828, %v6422
      %6522 = vst.msk [vmem:[#allocation3 + $0xcc] sm:$0xf] %vm825, %v6417
      %6523 = vst.msk [vmem:[#allocation3 + $0xd0] sm:$0xf] %vm825, %v6418
      %6524 = vst.msk [vmem:[#allocation3 + $0xd4] sm:$0x1] %vm828, %v6419
      %v6525 = vld [vmem:[#allocation3] sm:$0xf]
      %v6526 = vld [vmem:[#allocation3 + $0x4] sm:$0xf]
      %v6527 = vld [vmem:[#allocation3 + $0xc] sm:$0xf]
      %v6528 = vld [vmem:[#allocation3 + $0x10] sm:$0xf]
      %v6529 = vld [vmem:[#allocation3 + $0x18] sm:$0xf]
      %v6530 = vld [vmem:[#allocation3 + $0x1c] sm:$0xf]
      %v6531 = vld [vmem:[#allocation3 + $0x24] sm:$0xf]
      %v6532 = vld [vmem:[#allocation3 + $0x28] sm:$0xf]
      %v6533 = vld [vmem:[#allocation3 + $0x30] sm:$0xf]
      %v6534 = vld [vmem:[#allocation3 + $0x34] sm:$0xf]
      %v6535 = vld [vmem:[#allocation3 + $0x3c] sm:$0xf]
      %v6536 = vld [vmem:[#allocation3 + $0x40] sm:$0xf]
      %v6537 = vld [vmem:[#allocation3 + $0x48] sm:$0xf]
      %v6538 = vld [vmem:[#allocation3 + $0x4c] sm:$0xf]
      %v6539 = vld [vmem:[#allocation3 + $0x54] sm:$0xf]
      %v6540 = vld [vmem:[#allocation3 + $0x58] sm:$0xf]
      %v6541 = vld [vmem:[#allocation3 + $0x60] sm:$0xf]
      %v6542 = vld [vmem:[#allocation3 + $0x64] sm:$0xf]
      %v6543 = vld [vmem:[#allocation3 + $0x6c] sm:$0xf]
      %v6544 = vld [vmem:[#allocation3 + $0x70] sm:$0xf]
      %v6545 = vld [vmem:[#allocation3 + $0x78] sm:$0xf]
      %v6546 = vld [vmem:[#allocation3 + $0x7c] sm:$0xf]
      %v6547 = vld [vmem:[#allocation3 + $0x84] sm:$0xf]
      %v6548 = vld [vmem:[#allocation3 + $0x88] sm:$0xf]
      %v6549 = vld [vmem:[#allocation3 + $0x90] sm:$0xf]
      %v6550 = vld [vmem:[#allocation3 + $0x94] sm:$0xf]
      %v6551 = vld [vmem:[#allocation3 + $0x9c] sm:$0xf]
      %v6552 = vld [vmem:[#allocation3 + $0xa0] sm:$0xf]
      %v6553 = vld [vmem:[#allocation3 + $0xa8] sm:$0xf]
      %v6554 = vld [vmem:[#allocation3 + $0xac] sm:$0xf]
      %v6555 = vld [vmem:[#allocation3 + $0xb4] sm:$0xf]
      %v6556 = vld [vmem:[#allocation3 + $0xb8] sm:$0xf]
      %v6557 = vld [vmem:[%s5] sm:$0xf]
      %v6558 = vld [vmem:[%s5 + $0x4] sm:$0xf]
      %v6559 = vld [vmem:[%s5 + $0x8] sm:$0xf]
      %v6560 = vld [vmem:[%s5 + $0xc] sm:$0xf]
      %v6561 = vld [vmem:[#allocation3 + $0x8] sm:$0x1]
      %v6562 = vld [vmem:[#allocation3 + $0x14] sm:$0x1]
      %v6563 = vld [vmem:[#allocation3 + $0x20] sm:$0x1]
      %v6564 = vld [vmem:[#allocation3 + $0x2c] sm:$0x1]
      %v6565 = vld [vmem:[#allocation3 + $0x38] sm:$0x1]
      %v6566 = vld [vmem:[#allocation3 + $0x44] sm:$0x1]
      %v6567 = vld [vmem:[#allocation3 + $0x50] sm:$0x1]
      %v6568 = vld [vmem:[#allocation3 + $0x5c] sm:$0x1]
      %v6569 = vld [vmem:[#allocation3 + $0x68] sm:$0x1]
      %v6570 = vld [vmem:[#allocation3 + $0x74] sm:$0x1]
      %v6571 = vld [vmem:[#allocation3 + $0x80] sm:$0x1]
      %v6572 = vld [vmem:[#allocation3 + $0x8c] sm:$0x1]
      %v6573 = vld [vmem:[#allocation3 + $0x98] sm:$0x1]
      %v6574 = vld [vmem:[#allocation3 + $0xa4] sm:$0x1]
      %v6575 = vld [vmem:[#allocation3 + $0xb0] sm:$0x1]
      %v6576 = vld [vmem:[#allocation3 + $0xbc] sm:$0x1]
      %v6578 = vshrl.u32 %v6525, 16
      %v6580 = vrot.slane %v6578, 4
      %v6581 = vshll.u32 %v6525, 16
      %v6583 = vrot.slane %v6581, 5
      %v6584 = vor.u32 %v6580, %v6583
      %v6585 = vrot.slane %v6584, 4
      %v6587 = vshll.u32 %v6526, 16
      %v6589 = vrot.slane %v6587, 5
      %v6590 = vsel %vm935, %v6585, %v6589
      %v6591 = vshrl.u32 %v6526, 16
      %v6593 = vrot.slane %v6591, 4
      %v6594 = vor.u32 %v6593, %v6589
      %v6595 = vrot.slane %v6594, 4
      %v6597 = vshll.u32 %v6561, 16
      %v6599 = vrot.slane %v6597, 5
      %v6600 = vsel %vm935, %v6595, %v6599
      %v6602 = vshrl.u32 %v6527, 16
      %v6604 = vrot.slane %v6602, 4
      %v6605 = vshll.u32 %v6527, 16
      %v6607 = vrot.slane %v6605, 5
      %v6608 = vor.u32 %v6604, %v6607
      %v6609 = vrot.slane %v6608, 4
      %v6611 = vshll.u32 %v6528, 16
      %v6613 = vrot.slane %v6611, 5
      %v6614 = vsel %vm935, %v6609, %v6613
      %v6615 = vshrl.u32 %v6528, 16
      %v6617 = vrot.slane %v6615, 4
      %v6618 = vor.u32 %v6617, %v6613
      %v6619 = vrot.slane %v6618, 4
      %v6621 = vshll.u32 %v6562, 16
      %v6623 = vrot.slane %v6621, 5
      %v6624 = vsel %vm935, %v6619, %v6623
      %v6626 = vshrl.u32 %v6529, 16
      %v6628 = vrot.slane %v6626, 4
      %v6629 = vshll.u32 %v6529, 16
      %v6631 = vrot.slane %v6629, 5
      %v6632 = vor.u32 %v6628, %v6631
      %v6633 = vrot.slane %v6632, 4
      %v6635 = vshll.u32 %v6530, 16
      %v6637 = vrot.slane %v6635, 5
      %v6638 = vsel %vm935, %v6633, %v6637
      %v6639 = vshrl.u32 %v6530, 16
      %v6641 = vrot.slane %v6639, 4
      %v6642 = vor.u32 %v6641, %v6637
      %v6643 = vrot.slane %v6642, 4
      %v6645 = vshll.u32 %v6563, 16
      %v6647 = vrot.slane %v6645, 5
      %v6648 = vsel %vm935, %v6643, %v6647
      %v6650 = vshrl.u32 %v6531, 16
      %v6652 = vrot.slane %v6650, 4
      %v6653 = vshll.u32 %v6531, 16
      %v6655 = vrot.slane %v6653, 5
      %v6656 = vor.u32 %v6652, %v6655
      %v6657 = vrot.slane %v6656, 4
      %v6659 = vshll.u32 %v6532, 16
      %v6661 = vrot.slane %v6659, 5
      %v6662 = vsel %vm935, %v6657, %v6661
      %v6663 = vshrl.u32 %v6532, 16
      %v6665 = vrot.slane %v6663, 4
      %v6666 = vor.u32 %v6665, %v6661
      %v6667 = vrot.slane %v6666, 4
      %v6669 = vshll.u32 %v6564, 16
      %v6671 = vrot.slane %v6669, 5
      %v6672 = vsel %vm935, %v6667, %v6671
      %v6674 = vshrl.u32 %v6533, 16
      %v6676 = vrot.slane %v6674, 4
      %v6677 = vshll.u32 %v6533, 16
      %v6679 = vrot.slane %v6677, 5
      %v6680 = vor.u32 %v6676, %v6679
      %v6681 = vrot.slane %v6680, 4
      %v6683 = vshll.u32 %v6534, 16
      %v6685 = vrot.slane %v6683, 5
      %v6686 = vsel %vm935, %v6681, %v6685
      %v6687 = vshrl.u32 %v6534, 16
      %v6689 = vrot.slane %v6687, 4
      %v6690 = vor.u32 %v6689, %v6685
      %v6691 = vrot.slane %v6690, 4
      %v6693 = vshll.u32 %v6565, 16
      %v6695 = vrot.slane %v6693, 5
      %v6696 = vsel %vm935, %v6691, %v6695
      %v6698 = vshrl.u32 %v6535, 16
      %v6700 = vrot.slane %v6698, 4
      %v6701 = vshll.u32 %v6535, 16
      %v6703 = vrot.slane %v6701, 5
      %v6704 = vor.u32 %v6700, %v6703
      %v6705 = vrot.slane %v6704, 4
      %v6707 = vshll.u32 %v6536, 16
      %v6709 = vrot.slane %v6707, 5
      %v6710 = vsel %vm935, %v6705, %v6709
      %v6711 = vshrl.u32 %v6536, 16
      %v6713 = vrot.slane %v6711, 4
      %v6714 = vor.u32 %v6713, %v6709
      %v6715 = vrot.slane %v6714, 4
      %v6717 = vshll.u32 %v6566, 16
      %v6719 = vrot.slane %v6717, 5
      %v6720 = vsel %vm935, %v6715, %v6719
      %v6722 = vshrl.u32 %v6537, 16
      %v6724 = vrot.slane %v6722, 4
      %v6725 = vshll.u32 %v6537, 16
      %v6727 = vrot.slane %v6725, 5
      %v6728 = vor.u32 %v6724, %v6727
      %v6729 = vrot.slane %v6728, 4
      %v6731 = vshll.u32 %v6538, 16
      %v6733 = vrot.slane %v6731, 5
      %v6734 = vsel %vm935, %v6729, %v6733
      %v6735 = vshrl.u32 %v6538, 16
      %v6737 = vrot.slane %v6735, 4
      %v6738 = vor.u32 %v6737, %v6733
      %v6739 = vrot.slane %v6738, 4
      %v6741 = vshll.u32 %v6567, 16
      %v6743 = vrot.slane %v6741, 5
      %v6744 = vsel %vm935, %v6739, %v6743
      %v6746 = vshrl.u32 %v6539, 16
      %v6748 = vrot.slane %v6746, 4
      %v6749 = vshll.u32 %v6539, 16
      %v6751 = vrot.slane %v6749, 5
      %v6752 = vor.u32 %v6748, %v6751
      %v6753 = vrot.slane %v6752, 4
      %v6755 = vshll.u32 %v6540, 16
      %v6757 = vrot.slane %v6755, 5
      %v6758 = vsel %vm935, %v6753, %v6757
      %v6759 = vshrl.u32 %v6540, 16
      %v6761 = vrot.slane %v6759, 4
      %v6762 = vor.u32 %v6761, %v6757
      %v6763 = vrot.slane %v6762, 4
      %v6765 = vshll.u32 %v6568, 16
      %v6767 = vrot.slane %v6765, 5
      %v6768 = vsel %vm935, %v6763, %v6767
      %v6770 = vshrl.u32 %v6541, 16
      %v6772 = vrot.slane %v6770, 4
      %v6773 = vshll.u32 %v6541, 16
      %v6775 = vrot.slane %v6773, 5
      %v6776 = vor.u32 %v6772, %v6775
      %v6777 = vrot.slane %v6776, 4
      %v6779 = vshll.u32 %v6542, 16
      %v6781 = vrot.slane %v6779, 5
      %v6782 = vsel %vm935, %v6777, %v6781
      %v6783 = vshrl.u32 %v6542, 16
      %v6785 = vrot.slane %v6783, 4
      %v6786 = vor.u32 %v6785, %v6781
      %v6787 = vrot.slane %v6786, 4
      %v6789 = vshll.u32 %v6569, 16
      %v6791 = vrot.slane %v6789, 5
      %v6792 = vsel %vm935, %v6787, %v6791
      %v6794 = vshrl.u32 %v6543, 16
      %v6796 = vrot.slane %v6794, 4
      %v6797 = vshll.u32 %v6543, 16
      %v6799 = vrot.slane %v6797, 5
      %v6800 = vor.u32 %v6796, %v6799
      %v6801 = vrot.slane %v6800, 4
      %v6803 = vshll.u32 %v6544, 16
      %v6805 = vrot.slane %v6803, 5
      %v6806 = vsel %vm935, %v6801, %v6805
      %v6807 = vshrl.u32 %v6544, 16
      %v6809 = vrot.slane %v6807, 4
      %v6810 = vor.u32 %v6809, %v6805
      %v6811 = vrot.slane %v6810, 4
      %v6813 = vshll.u32 %v6570, 16
      %v6815 = vrot.slane %v6813, 5
      %v6816 = vsel %vm935, %v6811, %v6815
      %v6818 = vshrl.u32 %v6545, 16
      %v6820 = vrot.slane %v6818, 4
      %v6821 = vshll.u32 %v6545, 16
      %v6823 = vrot.slane %v6821, 5
      %v6824 = vor.u32 %v6820, %v6823
      %v6825 = vrot.slane %v6824, 4
      %v6827 = vshll.u32 %v6546, 16
      %v6829 = vrot.slane %v6827, 5
      %v6830 = vsel %vm935, %v6825, %v6829
      %v6831 = vshrl.u32 %v6546, 16
      %v6833 = vrot.slane %v6831, 4
      %v6834 = vor.u32 %v6833, %v6829
      %v6835 = vrot.slane %v6834, 4
      %v6837 = vshll.u32 %v6571, 16
      %v6839 = vrot.slane %v6837, 5
      %v6840 = vsel %vm935, %v6835, %v6839
      %v6842 = vshrl.u32 %v6547, 16
      %v6844 = vrot.slane %v6842, 4
      %v6845 = vshll.u32 %v6547, 16
      %v6847 = vrot.slane %v6845, 5
      %v6848 = vor.u32 %v6844, %v6847
      %v6849 = vrot.slane %v6848, 4
      %v6851 = vshll.u32 %v6548, 16
      %v6853 = vrot.slane %v6851, 5
      %v6854 = vsel %vm935, %v6849, %v6853
      %v6855 = vshrl.u32 %v6548, 16
      %v6857 = vrot.slane %v6855, 4
      %v6858 = vor.u32 %v6857, %v6853
      %v6859 = vrot.slane %v6858, 4
      %v6861 = vshll.u32 %v6572, 16
      %v6863 = vrot.slane %v6861, 5
      %v6864 = vsel %vm935, %v6859, %v6863
      %v6866 = vshrl.u32 %v6549, 16
      %v6868 = vrot.slane %v6866, 4
      %v6869 = vshll.u32 %v6549, 16
      %v6871 = vrot.slane %v6869, 5
      %v6872 = vor.u32 %v6868, %v6871
      %v6873 = vrot.slane %v6872, 4
      %v6875 = vshll.u32 %v6550, 16
      %v6877 = vrot.slane %v6875, 5
      %v6878 = vsel %vm935, %v6873, %v6877
      %v6879 = vshrl.u32 %v6550, 16
      %v6881 = vrot.slane %v6879, 4
      %v6882 = vor.u32 %v6881, %v6877
      %v6883 = vrot.slane %v6882, 4
      %v6885 = vshll.u32 %v6573, 16
      %v6887 = vrot.slane %v6885, 5
      %v6888 = vsel %vm935, %v6883, %v6887
      %v6890 = vshrl.u32 %v6551, 16
      %v6892 = vrot.slane %v6890, 4
      %v6893 = vshll.u32 %v6551, 16
      %v6895 = vrot.slane %v6893, 5
      %v6896 = vor.u32 %v6892, %v6895
      %v6897 = vrot.slane %v6896, 4
      %v6899 = vshll.u32 %v6552, 16
      %v6901 = vrot.slane %v6899, 5
      %v6902 = vsel %vm935, %v6897, %v6901
      %v6903 = vshrl.u32 %v6552, 16
      %v6905 = vrot.slane %v6903, 4
      %v6906 = vor.u32 %v6905, %v6901
      %v6907 = vrot.slane %v6906, 4
      %v6909 = vshll.u32 %v6574, 16
      %v6911 = vrot.slane %v6909, 5
      %v6912 = vsel %vm935, %v6907, %v6911
      %v6914 = vshrl.u32 %v6553, 16
      %v6916 = vrot.slane %v6914, 4
      %v6917 = vshll.u32 %v6553, 16
      %v6919 = vrot.slane %v6917, 5
      %v6920 = vor.u32 %v6916, %v6919
      %v6921 = vrot.slane %v6920, 4
      %v6923 = vshll.u32 %v6554, 16
      %v6925 = vrot.slane %v6923, 5
      %v6926 = vsel %vm935, %v6921, %v6925
      %v6927 = vshrl.u32 %v6554, 16
      %v6929 = vrot.slane %v6927, 4
      %v6930 = vor.u32 %v6929, %v6925
      %v6931 = vrot.slane %v6930, 4
      %v6933 = vshll.u32 %v6575, 16
      %v6935 = vrot.slane %v6933, 5
      %v6936 = vsel %vm935, %v6931, %v6935
      %v6938 = vshrl.u32 %v6555, 16
      %v6940 = vrot.slane %v6938, 4
      %v6941 = vshll.u32 %v6555, 16
      %v6943 = vrot.slane %v6941, 5
      %v6944 = vor.u32 %v6940, %v6943
      %v6945 = vrot.slane %v6944, 4
      %v6947 = vshll.u32 %v6556, 16
      %v6949 = vrot.slane %v6947, 5
      %v6950 = vsel %vm935, %v6945, %v6949
      %v6951 = vshrl.u32 %v6556, 16
      %v6953 = vrot.slane %v6951, 4
      %v6954 = vor.u32 %v6953, %v6949
      %v6955 = vrot.slane %v6954, 4
      %v6957 = vshll.u32 %v6576, 16
      %v6959 = vrot.slane %v6957, 5
      %v6960 = vsel %vm935, %v6955, %v6959
      %v6961 = vld [vmem:[%s5 + $0x10] sm:$0xf]
      %v6962 = vld [vmem:[%s5 + $0x14] sm:$0xf]
      %v6963 = vld [vmem:[%s5 + $0x18] sm:$0xf]
      %v6964 = vld [vmem:[%s5 + $0x1c] sm:$0xf]
      %v6965 = vunpack.c.l.b16 %v6590
      %v6966 = vunpack.c.l.b16 %v6600
      %v6967 = vunpack.c.l.b16 %v6614
      %v6968 = vunpack.c.l.b16 %v6624
      %v6969 = vunpack.c.l.b16 %v6638
      %v6970 = vunpack.c.l.b16 %v6648
      %v6971 = vunpack.c.l.b16 %v6662
      %v6972 = vunpack.c.l.b16 %v6672
      %v6973 = vunpack.c.l.b16 %v6686
      %v6974 = vunpack.c.l.b16 %v6696
      %v6975 = vunpack.c.l.b16 %v6710
      %v6976 = vunpack.c.l.b16 %v6720
      %v6977 = vunpack.c.l.b16 %v6734
      %v6978 = vunpack.c.l.b16 %v6744
      %v6979 = vunpack.c.l.b16 %v6758
      %v6980 = vunpack.c.l.b16 %v6768
      %v6981 = vunpack.c.l.b16 %v6782
      %v6982 = vunpack.c.l.b16 %v6792
      %v6983 = vunpack.c.l.b16 %v6806
      %v6984 = vunpack.c.l.b16 %v6816
      %v6985 = vunpack.c.l.b16 %v6830
      %v6986 = vunpack.c.l.b16 %v6840
      %v6987 = vunpack.c.l.b16 %v6854
      %v6988 = vunpack.c.l.b16 %v6864
      %v6989 = vunpack.c.l.b16 %v6878
      %v6990 = vunpack.c.l.b16 %v6888
      %v6991 = vunpack.c.l.b16 %v6902
      %v6992 = vunpack.c.l.b16 %v6912
      %v6993 = vunpack.c.l.b16 %v6926
      %v6994 = vunpack.c.l.b16 %v6936
      %v6995 = vunpack.c.l.b16 %v6950
      %v6996 = vunpack.c.l.b16 %v6960
      %v6997 = vpack.c.b16 %v6966, %v6965
      %v6998 = vpack.c.b16 %v6968, %v6967
      %v6999 = vpack.c.b16 %v6970, %v6969
      %v7000 = vpack.c.b16 %v6972, %v6971
      %v7001 = vpack.c.b16 %v6974, %v6973
      %v7002 = vpack.c.b16 %v6976, %v6975
      %v7003 = vpack.c.b16 %v6978, %v6977
      %v7004 = vpack.c.b16 %v6980, %v6979
      %v7005 = vpack.c.b16 %v6982, %v6981
      %v7006 = vpack.c.b16 %v6984, %v6983
      %v7007 = vpack.c.b16 %v6986, %v6985
      %v7008 = vpack.c.b16 %v6988, %v6987
      %v7009 = vpack.c.b16 %v6990, %v6989
      %v7010 = vpack.c.b16 %v6992, %v6991
      %v7011 = vpack.c.b16 %v6994, %v6993
      %v7012 = vpack.c.b16 %v6996, %v6995
      %v7017 = vunpack.c.l.b16 %v6961
      %v7018 = vunpack.c.l.b16 %v6962
      %v7019 = vunpack.c.l.b16 %v6963
      %v7020 = vunpack.c.l.b16 %v6964
      %v7021 = vpack.c.b16 %v7018, %v7017
      %v7022 = vpack.c.b16 %v7020, %v7019
      %v7026 = vsel %vm1384, %v6997, 0
      %v7029 = vsel %vm1384, %v6998, 0
      %v7032 = vsel %vm1384, %v6999, 0
      %v7035 = vsel %vm1384, %v7000, 0
      %v7038 = vsel %vm1384, %v7001, 0
      %v7041 = vsel %vm1384, %v7002, 0
      %v7044 = vsel %vm1384, %v7003, 0
      %v7047 = vsel %vm1384, %v7004, 0
      %v7050 = vsel %vm1384, %v7005, 0
      %v7053 = vsel %vm1384, %v7006, 0
      %v7056 = vsel %vm1384, %v7007, 0
      %v7059 = vsel %vm1384, %v7008, 0
      %v7062 = vsel %vm1384, %v7009, 0
      %v7065 = vsel %vm1384, %v7010, 0
      %v7068 = vsel %vm1384, %v7011, 0
      %v7071 = vsel %vm1384, %v7012, 0
      %7073 = vmatprep.subr.bf16.mxu0 0
      %7074 = vmatpush1.bf16.msra.mxu0 %v7021
      %7075 = vmatprep.subr.bf16.mxu0 0
      %7076 = vmatpush1.bf16.msra.mxu0 %v7022
      %7077 = vmatprep.subr.bf16.mxu0 0
      %7078 = vmatpush1.bf16.msra.mxu0 0
      %7079 = vmatprep.subr.bf16.mxu0 0
      %7080 = vmatpush1.bf16.msra.mxu0 0
      %7081 = vmatprep.subr.bf16.mxu0 0
      %7082 = vmatpush1.bf16.msra.mxu0 0
      %7083 = vmatprep.subr.bf16.mxu0 0
      %7084 = vmatpush1.bf16.msra.mxu0 0
      %7085 = vmatprep.subr.bf16.mxu0 0
      %7086 = vmatpush1.bf16.msra.mxu0 0
      %7087 = vmatprep.subr.bf16.mxu0 0
      %7088 = vmatpush1.bf16.msra.mxu0 0
      %7089 = vmatprep.subr.bf16.mxu0 0
      %7090 = vmatpush1.bf16.msra.mxu0 0
      %7091 = vmatprep.subr.bf16.mxu0 0
      %7092 = vmatpush1.bf16.msra.mxu0 0
      %7093 = vmatprep.subr.bf16.mxu0 0
      %7094 = vmatpush1.bf16.msra.mxu0 0
      %7095 = vmatprep.subr.bf16.mxu0 0
      %7096 = vmatpush1.bf16.msra.mxu0 0
      %7097 = vmatprep.subr.bf16.mxu0 0
      %7098 = vmatpush1.bf16.msra.mxu0 0
      %7099 = vmatprep.subr.bf16.mxu0 0
      %7100 = vmatpush1.bf16.msra.mxu0 0
      %7101 = vmatprep.subr.bf16.mxu0 0
      %7102 = vmatpush1.bf16.msra.mxu0 0
      %7103 = vmatprep.subr.bf16.mxu0 0
      %7104 = vmatpush1.bf16.msra.mxu0 0
      %7105 = vmatprep.mubr.bf16.mxu0 0
      %7106 = vmatmul.mubr.bf16.gmra.mrb[0].mxu0 %v7026
      %v7107 = vpop.f32.mrb[0].mxu0
      %v7108 = vadd.f32 0.0, %v7107
      %v7109 = vpop.f32.mrb[0].mxu0
      %v7110 = vpop.f32.mrb[0].mxu0
      %v7111 = vadd.f32 0.0, %v7110
      %v7112 = vpop.f32.mrb[0].mxu0
      %7113 = vmatprep.mubr.bf16.mxu0 0
      %7114 = vmatmul.mubr.bf16.gmra.mrb[0].mxu0 %v7029
      %v7115 = vpop.f32.mrb[0].mxu0
      %v7116 = vadd.f32 0.0, %v7115
      %v7117 = vpop.f32.mrb[0].mxu0
      %v7118 = vpop.f32.mrb[0].mxu0
      %v7119 = vadd.f32 0.0, %v7118
      %v7120 = vpop.f32.mrb[0].mxu0
      %7121 = vmatprep.mubr.bf16.mxu0 0
      %7122 = vmatmul.mubr.bf16.gmra.mrb[0].mxu0 %v7032
      %v7123 = vpop.f32.mrb[0].mxu0
      %v7124 = vadd.f32 0.0, %v7123
      %v7125 = vpop.f32.mrb[0].mxu0
      %v7126 = vpop.f32.mrb[0].mxu0
      %v7127 = vadd.f32 0.0, %v7126
      %v7128 = vpop.f32.mrb[0].mxu0
      %7129 = vmatprep.mubr.bf16.mxu0 0
      %7130 = vmatmul.mubr.bf16.gmra.mrb[0].mxu0 %v7035
      %v7131 = vpop.f32.mrb[0].mxu0
      %v7132 = vadd.f32 0.0, %v7131
      %v7133 = vpop.f32.mrb[0].mxu0
      %v7134 = vpop.f32.mrb[0].mxu0
      %v7135 = vadd.f32 0.0, %v7134
      %v7136 = vpop.f32.mrb[0].mxu0
      %7137 = vmatprep.mubr.bf16.mxu0 0
      %7138 = vmatmul.mubr.bf16.gmra.mrb[0].mxu0 %v7038
      %v7139 = vpop.f32.mrb[0].mxu0
      %v7140 = vadd.f32 0.0, %v7139
      %v7141 = vpop.f32.mrb[0].mxu0
      %v7142 = vpop.f32.mrb[0].mxu0
      %v7143 = vadd.f32 0.0, %v7142
      %v7144 = vpop.f32.mrb[0].mxu0
      %7145 = vmatprep.mubr.bf16.mxu0 0
      %7146 = vmatmul.mubr.bf16.gmra.mrb[0].mxu0 %v7041
      %v7147 = vpop.f32.mrb[0].mxu0
      %v7148 = vadd.f32 0.0, %v7147
      %v7149 = vpop.f32.mrb[0].mxu0
      %v7150 = vpop.f32.mrb[0].mxu0
      %v7151 = vadd.f32 0.0, %v7150
      %v7152 = vpop.f32.mrb[0].mxu0
      %7153 = vmatprep.mubr.bf16.mxu0 0
      %7154 = vmatmul.mubr.bf16.gmra.mrb[0].mxu0 %v7044
      %v7155 = vpop.f32.mrb[0].mxu0
      %v7156 = vadd.f32 0.0, %v7155
      %v7157 = vpop.f32.mrb[0].mxu0
      %v7158 = vpop.f32.mrb[0].mxu0
      %v7159 = vadd.f32 0.0, %v7158
      %v7160 = vpop.f32.mrb[0].mxu0
      %7161 = vmatprep.mubr.bf16.mxu0 0
      %7162 = vmatmul.mubr.bf16.gmra.mrb[0].mxu0 %v7047
      %v7163 = vpop.f32.mrb[0].mxu0
      %v7164 = vadd.f32 0.0, %v7163
      %v7165 = vpop.f32.mrb[0].mxu0
      %v7166 = vpop.f32.mrb[0].mxu0
      %v7167 = vadd.f32 0.0, %v7166
      %v7168 = vpop.f32.mrb[0].mxu0
      %7169 = vmatprep.mubr.bf16.mxu0 0
      %7170 = vmatmul.mubr.bf16.gmra.mrb[0].mxu0 %v7050
      %v7171 = vpop.f32.mrb[0].mxu0
      %v7172 = vadd.f32 0.0, %v7171
      %v7173 = vpop.f32.mrb[0].mxu0
      %v7174 = vpop.f32.mrb[0].mxu0
      %v7175 = vadd.f32 0.0, %v7174
      %v7176 = vpop.f32.mrb[0].mxu0
      %7177 = vmatprep.mubr.bf16.mxu0 0
      %7178 = vmatmul.mubr.bf16.gmra.mrb[0].mxu0 %v7053
      %v7179 = vpop.f32.mrb[0].mxu0
      %v7180 = vadd.f32 0.0, %v7179
      %v7181 = vpop.f32.mrb[0].mxu0
      %v7182 = vpop.f32.mrb[0].mxu0
      %v7183 = vadd.f32 0.0, %v7182
      %v7184 = vpop.f32.mrb[0].mxu0
      %7185 = vmatprep.mubr.bf16.mxu0 0
      %7186 = vmatmul.mubr.bf16.gmra.mrb[0].mxu0 %v7056
      %v7187 = vpop.f32.mrb[0].mxu0
      %v7188 = vadd.f32 0.0, %v7187
      %v7189 = vpop.f32.mrb[0].mxu0
      %v7190 = vpop.f32.mrb[0].mxu0
      %v7191 = vadd.f32 0.0, %v7190
      %v7192 = vpop.f32.mrb[0].mxu0
      %7193 = vmatprep.mubr.bf16.mxu0 0
      %7194 = vmatmul.mubr.bf16.gmra.mrb[0].mxu0 %v7059
      %v7195 = vpop.f32.mrb[0].mxu0
      %v7196 = vadd.f32 0.0, %v7195
      %v7197 = vpop.f32.mrb[0].mxu0
      %v7198 = vpop.f32.mrb[0].mxu0
      %v7199 = vadd.f32 0.0, %v7198
      %v7200 = vpop.f32.mrb[0].mxu0
      %7201 = vmatprep.mubr.bf16.mxu0 0
      %7202 = vmatmul.mubr.bf16.gmra.mrb[0].mxu0 %v7062
      %v7203 = vpop.f32.mrb[0].mxu0
      %v7204 = vadd.f32 0.0, %v7203
      %v7205 = vpop.f32.mrb[0].mxu0
      %v7206 = vpop.f32.mrb[0].mxu0
      %v7207 = vadd.f32 0.0, %v7206
      %v7208 = vpop.f32.mrb[0].mxu0
      %7209 = vmatprep.mubr.bf16.mxu0 0
      %7210 = vmatmul.mubr.bf16.gmra.mrb[0].mxu0 %v7065
      %v7211 = vpop.f32.mrb[0].mxu0
      %v7212 = vadd.f32 0.0, %v7211
      %v7213 = vpop.f32.mrb[0].mxu0
      %v7214 = vpop.f32.mrb[0].mxu0
      %v7215 = vadd.f32 0.0, %v7214
      %v7216 = vpop.f32.mrb[0].mxu0
      %7217 = vmatprep.mubr.bf16.mxu0 0
      %7218 = vmatmul.mubr.bf16.gmra.mrb[0].mxu0 %v7068
      %v7219 = vpop.f32.mrb[0].mxu0
      %v7220 = vadd.f32 0.0, %v7219
      %v7221 = vpop.f32.mrb[0].mxu0
      %v7222 = vpop.f32.mrb[0].mxu0
      %v7223 = vadd.f32 0.0, %v7222
      %v7224 = vpop.f32.mrb[0].mxu0
      %7225 = vmatprep.mubr.bf16.mxu0 0
      %7226 = vmatmul.mubr.bf16.gmra.mrb[0].mxu0 %v7071
      %v7227 = vpop.f32.mrb[0].mxu0
      %v7228 = vadd.f32 0.0, %v7227
      %v7229 = vpop.f32.mrb[0].mxu0
      %v7230 = vpop.f32.mrb[0].mxu0
      %v7231 = vadd.f32 0.0, %v7230
      %v7232 = vpop.f32.mrb[0].mxu0
      %7233 = vdwg.mxu0
      %v7266 = vunpack.c.l.b16 %v6525
      %v7267 = vunpack.c.l.b16 %v6526
      %v7268 = vunpack.c.l.b16 %v6527
      %v7269 = vunpack.c.l.b16 %v6528
      %v7270 = vunpack.c.l.b16 %v6529
      %v7271 = vunpack.c.l.b16 %v6530
      %v7272 = vunpack.c.l.b16 %v6531
      %v7273 = vunpack.c.l.b16 %v6532
      %v7274 = vunpack.c.l.b16 %v6533
      %v7275 = vunpack.c.l.b16 %v6534
      %v7276 = vunpack.c.l.b16 %v6535
      %v7277 = vunpack.c.l.b16 %v6536
      %v7278 = vunpack.c.l.b16 %v6537
      %v7279 = vunpack.c.l.b16 %v6538
      %v7280 = vunpack.c.l.b16 %v6539
      %v7281 = vunpack.c.l.b16 %v6540
      %v7282 = vunpack.c.l.b16 %v6541
      %v7283 = vunpack.c.l.b16 %v6542
      %v7284 = vunpack.c.l.b16 %v6543
      %v7285 = vunpack.c.l.b16 %v6544
      %v7286 = vunpack.c.l.b16 %v6545
      %v7287 = vunpack.c.l.b16 %v6546
      %v7288 = vunpack.c.l.b16 %v6547
      %v7289 = vunpack.c.l.b16 %v6548
      %v7290 = vunpack.c.l.b16 %v6549
      %v7291 = vunpack.c.l.b16 %v6550
      %v7292 = vunpack.c.l.b16 %v6551
      %v7293 = vunpack.c.l.b16 %v6552
      %v7294 = vunpack.c.l.b16 %v6553
      %v7295 = vunpack.c.l.b16 %v6554
      %v7296 = vunpack.c.l.b16 %v6555
      %v7297 = vunpack.c.l.b16 %v6556
      %v7298 = vpack.c.b16 %v7267, %v7266
      %v7299 = vpack.c.b16 %v7269, %v7268
      %v7300 = vpack.c.b16 %v7271, %v7270
      %v7301 = vpack.c.b16 %v7273, %v7272
      %v7302 = vpack.c.b16 %v7275, %v7274
      %v7303 = vpack.c.b16 %v7277, %v7276
      %v7304 = vpack.c.b16 %v7279, %v7278
      %v7305 = vpack.c.b16 %v7281, %v7280
      %v7306 = vpack.c.b16 %v7283, %v7282
      %v7307 = vpack.c.b16 %v7285, %v7284
      %v7308 = vpack.c.b16 %v7287, %v7286
      %v7309 = vpack.c.b16 %v7289, %v7288
      %v7310 = vpack.c.b16 %v7291, %v7290
      %v7311 = vpack.c.b16 %v7293, %v7292
      %v7312 = vpack.c.b16 %v7295, %v7294
      %v7313 = vpack.c.b16 %v7297, %v7296
      %v7318 = vunpack.c.l.b16 %v6557
      %v7319 = vunpack.c.l.b16 %v6558
      %v7320 = vunpack.c.l.b16 %v6559
      %v7321 = vunpack.c.l.b16 %v6560
      %v7322 = vpack.c.b16 %v7319, %v7318
      %v7323 = vpack.c.b16 %v7321, %v7320
      %v7327 = vsel %vm1384, %v7298, 0
      %v7330 = vsel %vm1384, %v7299, 0
      %v7333 = vsel %vm1384, %v7300, 0
      %v7336 = vsel %vm1384, %v7301, 0
      %v7339 = vsel %vm1384, %v7302, 0
      %v7342 = vsel %vm1384, %v7303, 0
      %v7345 = vsel %vm1384, %v7304, 0
      %v7348 = vsel %vm1384, %v7305, 0
      %v7351 = vsel %vm1384, %v7306, 0
      %v7354 = vsel %vm1384, %v7307, 0
      %v7357 = vsel %vm1384, %v7308, 0
      %v7360 = vsel %vm1384, %v7309, 0
      %v7363 = vsel %vm1384, %v7310, 0
      %v7366 = vsel %vm1384, %v7311, 0
      %v7369 = vsel %vm1384, %v7312, 0
      %v7372 = vsel %vm1384, %v7313, 0
      %7374 = vmatprep.subr.bf16.mxu0 0
      %7375 = vmatpush1.bf16.msra.mxu0 %v7322
      %7376 = vmatprep.subr.bf16.mxu0 0
      %7377 = vmatpush1.bf16.msra.mxu0 %v7323
      %7378 = vmatprep.subr.bf16.mxu0 0
      %7379 = vmatpush1.bf16.msra.mxu0 0
      %7380 = vmatprep.subr.bf16.mxu0 0
      %7381 = vmatpush1.bf16.msra.mxu0 0
      %7382 = vmatprep.subr.bf16.mxu0 0
      %7383 = vmatpush1.bf16.msra.mxu0 0
      %7384 = vmatprep.subr.bf16.mxu0 0
      %7385 = vmatpush1.bf16.msra.mxu0 0
      %7386 = vmatprep.subr.bf16.mxu0 0
      %7387 = vmatpush1.bf16.msra.mxu0 0
      %7388 = vmatprep.subr.bf16.mxu0 0
      %7389 = vmatpush1.bf16.msra.mxu0 0
      %7390 = vmatprep.subr.bf16.mxu0 0
      %7391 = vmatpush1.bf16.msra.mxu0 0
      %7392 = vmatprep.subr.bf16.mxu0 0
      %7393 = vmatpush1.bf16.msra.mxu0 0
      %7394 = vmatprep.subr.bf16.mxu0 0
      %7395 = vmatpush1.bf16.msra.mxu0 0
      %7396 = vmatprep.subr.bf16.mxu0 0
      %7397 = vmatpush1.bf16.msra.mxu0 0
      %7398 = vmatprep.subr.bf16.mxu0 0
      %7399 = vmatpush1.bf16.msra.mxu0 0
      %7400 = vmatprep.subr.bf16.mxu0 0
      %7401 = vmatpush1.bf16.msra.mxu0 0
      %7402 = vmatprep.subr.bf16.mxu0 0
      %7403 = vmatpush1.bf16.msra.mxu0 0
      %7404 = vmatprep.subr.bf16.mxu0 0
      %7405 = vmatpush1.bf16.msra.mxu0 0
      %7406 = vmatprep.mubr.bf16.mxu0 0
      %7407 = vmatmul.mubr.bf16.gmra.mrb[0].mxu0 %v7327
      %v7408 = vpop.f32.mrb[0].mxu0
      %v7409 = vadd.f32 %v7108, %v7408
      %v7410 = vpop.f32.mrb[0].mxu0
      %v7411 = vpop.f32.mrb[0].mxu0
      %v7412 = vadd.f32 %v7111, %v7411
      %v7413 = vpop.f32.mrb[0].mxu0
      %7414 = vmatprep.mubr.bf16.mxu0 0
      %7415 = vmatmul.mubr.bf16.gmra.mrb[0].mxu0 %v7330
      %v7416 = vpop.f32.mrb[0].mxu0
      %v7417 = vadd.f32 %v7116, %v7416
      %v7418 = vpop.f32.mrb[0].mxu0
      %v7419 = vpop.f32.mrb[0].mxu0
      %v7420 = vadd.f32 %v7119, %v7419
      %v7421 = vpop.f32.mrb[0].mxu0
      %7422 = vmatprep.mubr.bf16.mxu0 0
      %7423 = vmatmul.mubr.bf16.gmra.mrb[0].mxu0 %v7333
      %v7424 = vpop.f32.mrb[0].mxu0
      %v7425 = vadd.f32 %v7124, %v7424
      %v7426 = vpop.f32.mrb[0].mxu0
      %v7427 = vpop.f32.mrb[0].mxu0
      %v7428 = vadd.f32 %v7127, %v7427
      %v7429 = vpop.f32.mrb[0].mxu0
      %7430 = vmatprep.mubr.bf16.mxu0 0
      %7431 = vmatmul.mubr.bf16.gmra.mrb[0].mxu0 %v7336
      %v7432 = vpop.f32.mrb[0].mxu0
      %v7433 = vadd.f32 %v7132, %v7432
      %v7434 = vpop.f32.mrb[0].mxu0
      %v7435 = vpop.f32.mrb[0].mxu0
      %v7436 = vadd.f32 %v7135, %v7435
      %v7437 = vpop.f32.mrb[0].mxu0
      %7438 = vmatprep.mubr.bf16.mxu0 0
      %7439 = vmatmul.mubr.bf16.gmra.mrb[0].mxu0 %v7339
      %v7440 = vpop.f32.mrb[0].mxu0
      %v7441 = vadd.f32 %v7140, %v7440
      %v7442 = vpop.f32.mrb[0].mxu0
      %v7443 = vpop.f32.mrb[0].mxu0
      %v7444 = vadd.f32 %v7143, %v7443
      %v7445 = vpop.f32.mrb[0].mxu0
      %7446 = vmatprep.mubr.bf16.mxu0 0
      %7447 = vmatmul.mubr.bf16.gmra.mrb[0].mxu0 %v7342
      %v7448 = vpop.f32.mrb[0].mxu0
      %v7449 = vadd.f32 %v7148, %v7448
      %v7450 = vpop.f32.mrb[0].mxu0
      %v7451 = vpop.f32.mrb[0].mxu0
      %v7452 = vadd.f32 %v7151, %v7451
      %v7453 = vpop.f32.mrb[0].mxu0
      %7454 = vmatprep.mubr.bf16.mxu0 0
      %7455 = vmatmul.mubr.bf16.gmra.mrb[0].mxu0 %v7345
      %v7456 = vpop.f32.mrb[0].mxu0
      %v7457 = vadd.f32 %v7156, %v7456
      %v7458 = vpop.f32.mrb[0].mxu0
      %v7459 = vpop.f32.mrb[0].mxu0
      %v7460 = vadd.f32 %v7159, %v7459
      %v7461 = vpop.f32.mrb[0].mxu0
      %7462 = vmatprep.mubr.bf16.mxu0 0
      %7463 = vmatmul.mubr.bf16.gmra.mrb[0].mxu0 %v7348
      %v7464 = vpop.f32.mrb[0].mxu0
      %v7465 = vadd.f32 %v7164, %v7464
      %v7466 = vpop.f32.mrb[0].mxu0
      %v7467 = vpop.f32.mrb[0].mxu0
      %v7468 = vadd.f32 %v7167, %v7467
      %v7469 = vpop.f32.mrb[0].mxu0
      %7470 = vmatprep.mubr.bf16.mxu0 0
      %7471 = vmatmul.mubr.bf16.gmra.mrb[0].mxu0 %v7351
      %v7472 = vpop.f32.mrb[0].mxu0
      %v7473 = vadd.f32 %v7172, %v7472
      %v7474 = vpop.f32.mrb[0].mxu0
      %v7475 = vpop.f32.mrb[0].mxu0
      %v7476 = vadd.f32 %v7175, %v7475
      %v7477 = vpop.f32.mrb[0].mxu0
      %7478 = vmatprep.mubr.bf16.mxu0 0
      %7479 = vmatmul.mubr.bf16.gmra.mrb[0].mxu0 %v7354
      %v7480 = vpop.f32.mrb[0].mxu0
      %v7481 = vadd.f32 %v7180, %v7480
      %v7482 = vpop.f32.mrb[0].mxu0
      %v7483 = vpop.f32.mrb[0].mxu0
      %v7484 = vadd.f32 %v7183, %v7483
      %v7485 = vpop.f32.mrb[0].mxu0
      %7486 = vmatprep.mubr.bf16.mxu0 0
      %7487 = vmatmul.mubr.bf16.gmra.mrb[0].mxu0 %v7357
      %v7488 = vpop.f32.mrb[0].mxu0
      %v7489 = vadd.f32 %v7188, %v7488
      %v7490 = vpop.f32.mrb[0].mxu0
      %v7491 = vpop.f32.mrb[0].mxu0
      %v7492 = vadd.f32 %v7191, %v7491
      %v7493 = vpop.f32.mrb[0].mxu0
      %7494 = vmatprep.mubr.bf16.mxu0 0
      %7495 = vmatmul.mubr.bf16.gmra.mrb[0].mxu0 %v7360
      %v7496 = vpop.f32.mrb[0].mxu0
      %v7497 = vadd.f32 %v7196, %v7496
      %v7498 = vpop.f32.mrb[0].mxu0
      %v7499 = vpop.f32.mrb[0].mxu0
      %v7500 = vadd.f32 %v7199, %v7499
      %v7501 = vpop.f32.mrb[0].mxu0
      %7502 = vmatprep.mubr.bf16.mxu0 0
      %7503 = vmatmul.mubr.bf16.gmra.mrb[0].mxu0 %v7363
      %v7504 = vpop.f32.mrb[0].mxu0
      %v7505 = vadd.f32 %v7204, %v7504
      %v7506 = vpop.f32.mrb[0].mxu0
      %v7507 = vpop.f32.mrb[0].mxu0
      %v7508 = vadd.f32 %v7207, %v7507
      %v7509 = vpop.f32.mrb[0].mxu0
      %7510 = vmatprep.mubr.bf16.mxu0 0
      %7511 = vmatmul.mubr.bf16.gmra.mrb[0].mxu0 %v7366
      %v7512 = vpop.f32.mrb[0].mxu0
      %v7513 = vadd.f32 %v7212, %v7512
      %v7514 = vpop.f32.mrb[0].mxu0
      %v7515 = vpop.f32.mrb[0].mxu0
      %v7516 = vadd.f32 %v7215, %v7515
      %v7517 = vpop.f32.mrb[0].mxu0
      %7518 = vmatprep.mubr.bf16.mxu0 0
      %7519 = vmatmul.mubr.bf16.gmra.mrb[0].mxu0 %v7369
      %v7520 = vpop.f32.mrb[0].mxu0
      %v7521 = vadd.f32 %v7220, %v7520
      %v7522 = vpop.f32.mrb[0].mxu0
      %v7523 = vpop.f32.mrb[0].mxu0
      %v7524 = vadd.f32 %v7223, %v7523
      %v7525 = vpop.f32.mrb[0].mxu0
      %7526 = vmatprep.mubr.bf16.mxu0 0
      %7527 = vmatmul.mubr.bf16.gmra.mrb[0].mxu0 %v7372
      %v7528 = vpop.f32.mrb[0].mxu0
      %v7529 = vadd.f32 %v7228, %v7528
      %v7530 = vpop.f32.mrb[0].mxu0
      %v7531 = vpop.f32.mrb[0].mxu0
      %v7532 = vadd.f32 %v7231, %v7531
      %v7533 = vpop.f32.mrb[0].mxu0
      %7534 = vdwg.mxu0
      %v7535 = vld [vmem:[#allocation3] sm:$0xe]
      %v7536 = vld [vmem:[#allocation3 + $0xc] sm:$0xe]
      %v7537 = vld [vmem:[#allocation3 + $0x18] sm:$0xe]
      %v7538 = vld [vmem:[#allocation3 + $0x24] sm:$0xe]
      %v7539 = vld [vmem:[#allocation3 + $0x30] sm:$0xe]
      %v7540 = vld [vmem:[#allocation3 + $0x3c] sm:$0xe]
      %v7541 = vld [vmem:[#allocation3 + $0x48] sm:$0xe]
      %v7542 = vld [vmem:[#allocation3 + $0x54] sm:$0xe]
      %v7543 = vld [vmem:[#allocation3 + $0x60] sm:$0xe]
      %v7544 = vld [vmem:[#allocation3 + $0x6c] sm:$0xe]
      %v7545 = vld [vmem:[#allocation3 + $0x78] sm:$0xe]
      %v7546 = vld [vmem:[#allocation3 + $0x84] sm:$0xe]
      %v7547 = vld [vmem:[#allocation3 + $0x90] sm:$0xe]
      %v7548 = vld [vmem:[#allocation3 + $0x9c] sm:$0xe]
      %v7549 = vld [vmem:[#allocation3 + $0xa8] sm:$0xe]
      %v7550 = vld [vmem:[#allocation3 + $0xb4] sm:$0xe]
      %v7583 = vrot.slane %v7535, 5
      %v7584 = vrot.slane %v7583, 4
      %v7585 = vrot.slane %v6526, 5
      %v7586 = vsel %vm1945, %v7584, %v7585
      %v7587 = vrot.slane %v7585, 4
      %v7588 = vrot.slane %v6561, 5
      %v7589 = vsel %vm1945, %v7587, %v7588
      %v7590 = vrot.slane %v7536, 5
      %v7591 = vrot.slane %v7590, 4
      %v7592 = vrot.slane %v6528, 5
      %v7593 = vsel %vm1945, %v7591, %v7592
      %v7594 = vrot.slane %v7592, 4
      %v7595 = vrot.slane %v6562, 5
      %v7596 = vsel %vm1945, %v7594, %v7595
      %v7597 = vrot.slane %v7537, 5
      %v7598 = vrot.slane %v7597, 4
      %v7599 = vrot.slane %v6530, 5
      %v7600 = vsel %vm1945, %v7598, %v7599
      %v7601 = vrot.slane %v7599, 4
      %v7602 = vrot.slane %v6563, 5
      %v7603 = vsel %vm1945, %v7601, %v7602
      %v7604 = vrot.slane %v7538, 5
      %v7605 = vrot.slane %v7604, 4
      %v7606 = vrot.slane %v6532, 5
      %v7607 = vsel %vm1945, %v7605, %v7606
      %v7608 = vrot.slane %v7606, 4
      %v7609 = vrot.slane %v6564, 5
      %v7610 = vsel %vm1945, %v7608, %v7609
      %v7611 = vrot.slane %v7539, 5
      %v7612 = vrot.slane %v7611, 4
      %v7613 = vrot.slane %v6534, 5
      %v7614 = vsel %vm1945, %v7612, %v7613
      %v7615 = vrot.slane %v7613, 4
      %v7616 = vrot.slane %v6565, 5
      %v7617 = vsel %vm1945, %v7615, %v7616
      %v7618 = vrot.slane %v7540, 5
      %v7619 = vrot.slane %v7618, 4
      %v7620 = vrot.slane %v6536, 5
      %v7621 = vsel %vm1945, %v7619, %v7620
      %v7622 = vrot.slane %v7620, 4
      %v7623 = vrot.slane %v6566, 5
      %v7624 = vsel %vm1945, %v7622, %v7623
      %v7625 = vrot.slane %v7541, 5
      %v7626 = vrot.slane %v7625, 4
      %v7627 = vrot.slane %v6538, 5
      %v7628 = vsel %vm1945, %v7626, %v7627
      %v7629 = vrot.slane %v7627, 4
      %v7630 = vrot.slane %v6567, 5
      %v7631 = vsel %vm1945, %v7629, %v7630
      %v7632 = vrot.slane %v7542, 5
      %v7633 = vrot.slane %v7632, 4
      %v7634 = vrot.slane %v6540, 5
      %v7635 = vsel %vm1945, %v7633, %v7634
      %v7636 = vrot.slane %v7634, 4
      %v7637 = vrot.slane %v6568, 5
      %v7638 = vsel %vm1945, %v7636, %v7637
      %v7639 = vrot.slane %v7543, 5
      %v7640 = vrot.slane %v7639, 4
      %v7641 = vrot.slane %v6542, 5
      %v7642 = vsel %vm1945, %v7640, %v7641
      %v7643 = vrot.slane %v7641, 4
      %v7644 = vrot.slane %v6569, 5
      %v7645 = vsel %vm1945, %v7643, %v7644
      %v7646 = vrot.slane %v7544, 5
      %v7647 = vrot.slane %v7646, 4
      %v7648 = vrot.slane %v6544, 5
      %v7649 = vsel %vm1945, %v7647, %v7648
      %v7650 = vrot.slane %v7648, 4
      %v7651 = vrot.slane %v6570, 5
      %v7652 = vsel %vm1945, %v7650, %v7651
      %v7653 = vrot.slane %v7545, 5
      %v7654 = vrot.slane %v7653, 4
      %v7655 = vrot.slane %v6546, 5
      %v7656 = vsel %vm1945, %v7654, %v7655
      %v7657 = vrot.slane %v7655, 4
      %v7658 = vrot.slane %v6571, 5
      %v7659 = vsel %vm1945, %v7657, %v7658
      %v7660 = vrot.slane %v7546, 5
      %v7661 = vrot.slane %v7660, 4
      %v7662 = vrot.slane %v6548, 5
      %v7663 = vsel %vm1945, %v7661, %v7662
      %v7664 = vrot.slane %v7662, 4
      %v7665 = vrot.slane %v6572, 5
      %v7666 = vsel %vm1945, %v7664, %v7665
      %v7667 = vrot.slane %v7547, 5
      %v7668 = vrot.slane %v7667, 4
      %v7669 = vrot.slane %v6550, 5
      %v7670 = vsel %vm1945, %v7668, %v7669
      %v7671 = vrot.slane %v7669, 4
      %v7672 = vrot.slane %v6573, 5
      %v7673 = vsel %vm1945, %v7671, %v7672
      %v7674 = vrot.slane %v7548, 5
      %v7675 = vrot.slane %v7674, 4
      %v7676 = vrot.slane %v6552, 5
      %v7677 = vsel %vm1945, %v7675, %v7676
      %v7678 = vrot.slane %v7676, 4
      %v7679 = vrot.slane %v6574, 5
      %v7680 = vsel %vm1945, %v7678, %v7679
      %v7681 = vrot.slane %v7549, 5
      %v7682 = vrot.slane %v7681, 4
      %v7683 = vrot.slane %v6554, 5
      %v7684 = vsel %vm1945, %v7682, %v7683
      %v7685 = vrot.slane %v7683, 4
      %v7686 = vrot.slane %v6575, 5
      %v7687 = vsel %vm1945, %v7685, %v7686
      %v7688 = vrot.slane %v7550, 5
      %v7689 = vrot.slane %v7688, 4
      %v7690 = vrot.slane %v6556, 5
      %v7691 = vsel %vm1945, %v7689, %v7690
      %v7692 = vrot.slane %v7690, 4
      %v7693 = vrot.slane %v6576, 5
      %v7694 = vsel %vm1945, %v7692, %v7693
      %v7695 = vld [vmem:[%s5 + $0x20] sm:$0xf]
      %v7696 = vld [vmem:[%s5 + $0x24] sm:$0xf]
      %v7697 = vld [vmem:[%s5 + $0x28] sm:$0xf]
      %v7698 = vld [vmem:[%s5 + $0x2c] sm:$0xf]
      %v7699 = vunpack.c.l.b16 %v7586
      %v7700 = vunpack.c.l.b16 %v7589
      %v7701 = vunpack.c.l.b16 %v7593
      %v7702 = vunpack.c.l.b16 %v7596
      %v7703 = vunpack.c.l.b16 %v7600
      %v7704 = vunpack.c.l.b16 %v7603
      %v7705 = vunpack.c.l.b16 %v7607
      %v7706 = vunpack.c.l.b16 %v7610
      %v7707 = vunpack.c.l.b16 %v7614
      %v7708 = vunpack.c.l.b16 %v7617
      %v7709 = vunpack.c.l.b16 %v7621
      %v7710 = vunpack.c.l.b16 %v7624
      %v7711 = vunpack.c.l.b16 %v7628
      %v7712 = vunpack.c.l.b16 %v7631
      %v7713 = vunpack.c.l.b16 %v7635
      %v7714 = vunpack.c.l.b16 %v7638
      %v7715 = vunpack.c.l.b16 %v7642
      %v7716 = vunpack.c.l.b16 %v7645
      %v7717 = vunpack.c.l.b16 %v7649
      %v7718 = vunpack.c.l.b16 %v7652
      %v7719 = vunpack.c.l.b16 %v7656
      %v7720 = vunpack.c.l.b16 %v7659
      %v7721 = vunpack.c.l.b16 %v7663
      %v7722 = vunpack.c.l.b16 %v7666
      %v7723 = vunpack.c.l.b16 %v7670
      %v7724 = vunpack.c.l.b16 %v7673
      %v7725 = vunpack.c.l.b16 %v7677
      %v7726 = vunpack.c.l.b16 %v7680
      %v7727 = vunpack.c.l.b16 %v7684
      %v7728 = vunpack.c.l.b16 %v7687
      %v7729 = vunpack.c.l.b16 %v7691
      %v7730 = vunpack.c.l.b16 %v7694
      %v7731 = vpack.c.b16 %v7700, %v7699
      %v7732 = vpack.c.b16 %v7702, %v7701
      %v7733 = vpack.c.b16 %v7704, %v7703
      %v7734 = vpack.c.b16 %v7706, %v7705
      %v7735 = vpack.c.b16 %v7708, %v7707
      %v7736 = vpack.c.b16 %v7710, %v7709
      %v7737 = vpack.c.b16 %v7712, %v7711
      %v7738 = vpack.c.b16 %v7714, %v7713
      %v7739 = vpack.c.b16 %v7716, %v7715
      %v7740 = vpack.c.b16 %v7718, %v7717
      %v7741 = vpack.c.b16 %v7720, %v7719
      %v7742 = vpack.c.b16 %v7722, %v7721
      %v7743 = vpack.c.b16 %v7724, %v7723
      %v7744 = vpack.c.b16 %v7726, %v7725
      %v7745 = vpack.c.b16 %v7728, %v7727
      %v7746 = vpack.c.b16 %v7730, %v7729
      %v7751 = vunpack.c.l.b16 %v7695
      %v7752 = vunpack.c.l.b16 %v7696
      %v7753 = vunpack.c.l.b16 %v7697
      %v7754 = vunpack.c.l.b16 %v7698
      %v7755 = vpack.c.b16 %v7752, %v7751
      %v7756 = vpack.c.b16 %v7754, %v7753
      %v7760 = vsel %vm1384, %v7731, 0
      %v7763 = vsel %vm1384, %v7732, 0
      %v7766 = vsel %vm1384, %v7733, 0
      %v7769 = vsel %vm1384, %v7734, 0
      %v7772 = vsel %vm1384, %v7735, 0
      %v7775 = vsel %vm1384, %v7736, 0
      %v7778 = vsel %vm1384, %v7737, 0
      %v7781 = vsel %vm1384, %v7738, 0
      %v7784 = vsel %vm1384, %v7739, 0
      %v7787 = vsel %vm1384, %v7740, 0
      %v7790 = vsel %vm1384, %v7741, 0
      %v7793 = vsel %vm1384, %v7742, 0
      %v7796 = vsel %vm1384, %v7743, 0
      %v7799 = vsel %vm1384, %v7744, 0
      %v7802 = vsel %vm1384, %v7745, 0
      %v7805 = vsel %vm1384, %v7746, 0
      %7807 = vmatprep.subr.bf16.mxu0 0
      %7808 = vmatpush1.bf16.msra.mxu0 %v7755
      %7809 = vmatprep.subr.bf16.mxu0 0
      %7810 = vmatpush1.bf16.msra.mxu0 %v7756
      %7811 = vmatprep.subr.bf16.mxu0 0
      %7812 = vmatpush1.bf16.msra.mxu0 0
      %7813 = vmatprep.subr.bf16.mxu0 0
      %7814 = vmatpush1.bf16.msra.mxu0 0
      %7815 = vmatprep.subr.bf16.mxu0 0
      %7816 = vmatpush1.bf16.msra.mxu0 0
      %7817 = vmatprep.subr.bf16.mxu0 0
      %7818 = vmatpush1.bf16.msra.mxu0 0
      %7819 = vmatprep.subr.bf16.mxu0 0
      %7820 = vmatpush1.bf16.msra.mxu0 0
      %7821 = vmatprep.subr.bf16.mxu0 0
      %7822 = vmatpush1.bf16.msra.mxu0 0
      %7823 = vmatprep.subr.bf16.mxu0 0
      %7824 = vmatpush1.bf16.msra.mxu0 0
      %7825 = vmatprep.subr.bf16.mxu0 0
      %7826 = vmatpush1.bf16.msra.mxu0 0
      %7827 = vmatprep.subr.bf16.mxu0 0
      %7828 = vmatpush1.bf16.msra.mxu0 0
      %7829 = vmatprep.subr.bf16.mxu0 0
      %7830 = vmatpush1.bf16.msra.mxu0 0
      %7831 = vmatprep.subr.bf16.mxu0 0
      %7832 = vmatpush1.bf16.msra.mxu0 0
      %7833 = vmatprep.subr.bf16.mxu0 0
      %7834 = vmatpush1.bf16.msra.mxu0 0
      %7835 = vmatprep.subr.bf16.mxu0 0
      %7836 = vmatpush1.bf16.msra.mxu0 0
      %7837 = vmatprep.subr.bf16.mxu0 0
      %7838 = vmatpush1.bf16.msra.mxu0 0
      %7839 = vmatprep.mubr.bf16.mxu0 0
      %7840 = vmatmul.mubr.bf16.gmra.mrb[0].mxu0 %v7760
      %v7841 = vpop.f32.mrb[0].mxu0
      %v7842 = vadd.f32 0.0, %v7841
      %v7843 = vpop.f32.mrb[0].mxu0
      %v7844 = vpop.f32.mrb[0].mxu0
      %v7845 = vadd.f32 0.0, %v7844
      %v7846 = vpop.f32.mrb[0].mxu0
      %7847 = vmatprep.mubr.bf16.mxu0 0
      %7848 = vmatmul.mubr.bf16.gmra.mrb[0].mxu0 %v7763
      %v7849 = vpop.f32.mrb[0].mxu0
      %v7850 = vadd.f32 0.0, %v7849
      %v7851 = vpop.f32.mrb[0].mxu0
      %v7852 = vpop.f32.mrb[0].mxu0
      %v7853 = vadd.f32 0.0, %v7852
      %v7854 = vpop.f32.mrb[0].mxu0
      %7855 = vmatprep.mubr.bf16.mxu0 0
      %7856 = vmatmul.mubr.bf16.gmra.mrb[0].mxu0 %v7766
      %v7857 = vpop.f32.mrb[0].mxu0
      %v7858 = vadd.f32 0.0, %v7857
      %v7859 = vpop.f32.mrb[0].mxu0
      %v7860 = vpop.f32.mrb[0].mxu0
      %v7861 = vadd.f32 0.0, %v7860
      %v7862 = vpop.f32.mrb[0].mxu0
      %7863 = vmatprep.mubr.bf16.mxu0 0
      %7864 = vmatmul.mubr.bf16.gmra.mrb[0].mxu0 %v7769
      %v7865 = vpop.f32.mrb[0].mxu0
      %v7866 = vadd.f32 0.0, %v7865
      %v7867 = vpop.f32.mrb[0].mxu0
      %v7868 = vpop.f32.mrb[0].mxu0
      %v7869 = vadd.f32 0.0, %v7868
      %v7870 = vpop.f32.mrb[0].mxu0
      %7871 = vmatprep.mubr.bf16.mxu0 0
      %7872 = vmatmul.mubr.bf16.gmra.mrb[0].mxu0 %v7772
      %v7873 = vpop.f32.mrb[0].mxu0
      %v7874 = vadd.f32 0.0, %v7873
      %v7875 = vpop.f32.mrb[0].mxu0
      %v7876 = vpop.f32.mrb[0].mxu0
      %v7877 = vadd.f32 0.0, %v7876
      %v7878 = vpop.f32.mrb[0].mxu0
      %7879 = vmatprep.mubr.bf16.mxu0 0
      %7880 = vmatmul.mubr.bf16.gmra.mrb[0].mxu0 %v7775
      %v7881 = vpop.f32.mrb[0].mxu0
      %v7882 = vadd.f32 0.0, %v7881
      %v7883 = vpop.f32.mrb[0].mxu0
      %v7884 = vpop.f32.mrb[0].mxu0
      %v7885 = vadd.f32 0.0, %v7884
      %v7886 = vpop.f32.mrb[0].mxu0
      %7887 = vmatprep.mubr.bf16.mxu0 0
      %7888 = vmatmul.mubr.bf16.gmra.mrb[0].mxu0 %v7778
      %v7889 = vpop.f32.mrb[0].mxu0
      %v7890 = vadd.f32 0.0, %v7889
      %v7891 = vpop.f32.mrb[0].mxu0
      %v7892 = vpop.f32.mrb[0].mxu0
      %v7893 = vadd.f32 0.0, %v7892
      %v7894 = vpop.f32.mrb[0].mxu0
      %7895 = vmatprep.mubr.bf16.mxu0 0
      %7896 = vmatmul.mubr.bf16.gmra.mrb[0].mxu0 %v7781
      %v7897 = vpop.f32.mrb[0].mxu0
      %v7898 = vadd.f32 0.0, %v7897
      %v7899 = vpop.f32.mrb[0].mxu0
      %v7900 = vpop.f32.mrb[0].mxu0
      %v7901 = vadd.f32 0.0, %v7900
      %v7902 = vpop.f32.mrb[0].mxu0
      %7903 = vmatprep.mubr.bf16.mxu0 0
      %7904 = vmatmul.mubr.bf16.gmra.mrb[0].mxu0 %v7784
      %v7905 = vpop.f32.mrb[0].mxu0
      %v7906 = vadd.f32 0.0, %v7905
      %v7907 = vpop.f32.mrb[0].mxu0
      %v7908 = vpop.f32.mrb[0].mxu0
      %v7909 = vadd.f32 0.0, %v7908
      %v7910 = vpop.f32.mrb[0].mxu0
      %7911 = vmatprep.mubr.bf16.mxu0 0
      %7912 = vmatmul.mubr.bf16.gmra.mrb[0].mxu0 %v7787
      %v7913 = vpop.f32.mrb[0].mxu0
      %v7914 = vadd.f32 0.0, %v7913
      %v7915 = vpop.f32.mrb[0].mxu0
      %v7916 = vpop.f32.mrb[0].mxu0
      %v7917 = vadd.f32 0.0, %v7916
      %v7918 = vpop.f32.mrb[0].mxu0
      %7919 = vmatprep.mubr.bf16.mxu0 0
      %7920 = vmatmul.mubr.bf16.gmra.mrb[0].mxu0 %v7790
      %v7921 = vpop.f32.mrb[0].mxu0
      %v7922 = vadd.f32 0.0, %v7921
      %v7923 = vpop.f32.mrb[0].mxu0
      %v7924 = vpop.f32.mrb[0].mxu0
      %v7925 = vadd.f32 0.0, %v7924
      %v7926 = vpop.f32.mrb[0].mxu0
      %7927 = vmatprep.mubr.bf16.mxu0 0
      %7928 = vmatmul.mubr.bf16.gmra.mrb[0].mxu0 %v7793
      %v7929 = vpop.f32.mrb[0].mxu0
      %v7930 = vadd.f32 0.0, %v7929
      %v7931 = vpop.f32.mrb[0].mxu0
      %v7932 = vpop.f32.mrb[0].mxu0
      %v7933 = vadd.f32 0.0, %v7932
      %v7934 = vpop.f32.mrb[0].mxu0
      %7935 = vmatprep.mubr.bf16.mxu0 0
      %7936 = vmatmul.mubr.bf16.gmra.mrb[0].mxu0 %v7796
      %v7937 = vpop.f32.mrb[0].mxu0
      %v7938 = vadd.f32 0.0, %v7937
      %v7939 = vpop.f32.mrb[0].mxu0
      %v7940 = vpop.f32.mrb[0].mxu0
      %v7941 = vadd.f32 0.0, %v7940
      %v7942 = vpop.f32.mrb[0].mxu0
      %7943 = vmatprep.mubr.bf16.mxu0 0
      %7944 = vmatmul.mubr.bf16.gmra.mrb[0].mxu0 %v7799
      %v7945 = vpop.f32.mrb[0].mxu0
      %v7946 = vadd.f32 0.0, %v7945
      %v7947 = vpop.f32.mrb[0].mxu0
      %v7948 = vpop.f32.mrb[0].mxu0
      %v7949 = vadd.f32 0.0, %v7948
      %v7950 = vpop.f32.mrb[0].mxu0
      %7951 = vmatprep.mubr.bf16.mxu0 0
      %7952 = vmatmul.mubr.bf16.gmra.mrb[0].mxu0 %v7802
      %v7953 = vpop.f32.mrb[0].mxu0
      %v7954 = vadd.f32 0.0, %v7953
      %v7955 = vpop.f32.mrb[0].mxu0
      %v7956 = vpop.f32.mrb[0].mxu0
      %v7957 = vadd.f32 0.0, %v7956
      %v7958 = vpop.f32.mrb[0].mxu0
      %7959 = vmatprep.mubr.bf16.mxu0 0
      %7960 = vmatmul.mubr.bf16.gmra.mrb[0].mxu0 %v7805
      %v7961 = vpop.f32.mrb[0].mxu0
      %v7962 = vadd.f32 0.0, %v7961
      %v7963 = vpop.f32.mrb[0].mxu0
      %v7964 = vpop.f32.mrb[0].mxu0
      %v7965 = vadd.f32 0.0, %v7964
      %v7966 = vpop.f32.mrb[0].mxu0
      %7967 = vdwg.mxu0
      %v7968 = vadd.f32 %v7409, %v7842
      %v7969 = vadd.f32 %v7412, %v7845
      %v7970 = vadd.f32 %v7417, %v7850
      %v7971 = vadd.f32 %v7420, %v7853
      %v7972 = vadd.f32 %v7425, %v7858
      %v7973 = vadd.f32 %v7428, %v7861
      %v7974 = vadd.f32 %v7433, %v7866
      %v7975 = vadd.f32 %v7436, %v7869
      %v7976 = vadd.f32 %v7441, %v7874
      %v7977 = vadd.f32 %v7444, %v7877
      %v7978 = vadd.f32 %v7449, %v7882
      %v7979 = vadd.f32 %v7452, %v7885
      %v7980 = vadd.f32 %v7457, %v7890
      %v7981 = vadd.f32 %v7460, %v7893
      %v7982 = vadd.f32 %v7465, %v7898
      %v7983 = vadd.f32 %v7468, %v7901
      %v7984 = vadd.f32 %v7473, %v7906
      %v7985 = vadd.f32 %v7476, %v7909
      %v7986 = vadd.f32 %v7481, %v7914
      %v7987 = vadd.f32 %v7484, %v7917
      %v7988 = vadd.f32 %v7489, %v7922
      %v7989 = vadd.f32 %v7492, %v7925
      %v7990 = vadd.f32 %v7497, %v7930
      %v7991 = vadd.f32 %v7500, %v7933
      %v7992 = vadd.f32 %v7505, %v7938
      %v7993 = vadd.f32 %v7508, %v7941
      %v7994 = vadd.f32 %v7513, %v7946
      %v7995 = vadd.f32 %v7516, %v7949
      %v7996 = vadd.f32 %v7521, %v7954
      %v7997 = vadd.f32 %v7524, %v7957
      %v7998 = vadd.f32 %v7529, %v7962
      %v7999 = vadd.f32 %v7532, %v7965
      %s8000 = scalar_lea.vmem [#allocation3], 12
      %v8001 = vld [vmem:[%s8000] sm:$0xf]
      %v8002 = vld [vmem:[%s8000 + $0x4] sm:$0xf]
      %v8003 = vld [vmem:[%s8000 + $0xc] sm:$0xf]
      %v8004 = vld [vmem:[%s8000 + $0x10] sm:$0xf]
      %v8005 = vld [vmem:[%s8000 + $0x18] sm:$0xf]
      %v8006 = vld [vmem:[%s8000 + $0x1c] sm:$0xf]
      %v8007 = vld [vmem:[%s8000 + $0x24] sm:$0xf]
      %v8008 = vld [vmem:[%s8000 + $0x28] sm:$0xf]
      %v8009 = vld [vmem:[%s8000 + $0x30] sm:$0xf]
      %v8010 = vld [vmem:[%s8000 + $0x34] sm:$0xf]
      %v8011 = vld [vmem:[%s8000 + $0x3c] sm:$0xf]
      %v8012 = vld [vmem:[%s8000 + $0x40] sm:$0xf]
      %v8013 = vld [vmem:[%s8000 + $0x48] sm:$0xf]
      %v8014 = vld [vmem:[%s8000 + $0x4c] sm:$0xf]
      %v8015 = vld [vmem:[%s8000 + $0x54] sm:$0xf]
      %v8016 = vld [vmem:[%s8000 + $0x58] sm:$0xf]
      %v8017 = vld [vmem:[%s8000 + $0x60] sm:$0xf]
      %v8018 = vld [vmem:[%s8000 + $0x64] sm:$0xf]
      %v8019 = vld [vmem:[%s8000 + $0x6c] sm:$0xf]
      %v8020 = vld [vmem:[%s8000 + $0x70] sm:$0xf]
      %v8021 = vld [vmem:[%s8000 + $0x78] sm:$0xf]
      %v8022 = vld [vmem:[%s8000 + $0x7c] sm:$0xf]
      %v8023 = vld [vmem:[%s8000 + $0x84] sm:$0xf]
      %v8024 = vld [vmem:[%s8000 + $0x88] sm:$0xf]
      %v8025 = vld [vmem:[%s8000 + $0x90] sm:$0xf]
      %v8026 = vld [vmem:[%s8000 + $0x94] sm:$0xf]
      %v8027 = vld [vmem:[%s8000 + $0x9c] sm:$0xf]
      %v8028 = vld [vmem:[%s8000 + $0xa0] sm:$0xf]
      %v8029 = vld [vmem:[%s8000 + $0xa8] sm:$0xf]
      %v8030 = vld [vmem:[%s8000 + $0xac] sm:$0xf]
      %v8031 = vld [vmem:[%s8000 + $0xb4] sm:$0xf]
      %v8032 = vld [vmem:[%s8000 + $0xb8] sm:$0xf]
      %v8033 = vld [vmem:[%s5 + $0x30] sm:$0xf]
      %v8034 = vld [vmem:[%s5 + $0x34] sm:$0xf]
      %v8035 = vld [vmem:[%s5 + $0x38] sm:$0xf]
      %v8036 = vld [vmem:[%s5 + $0x3c] sm:$0xf]
      %v8069 = vunpack.c.l.b16 %v8001
      %v8070 = vunpack.c.l.b16 %v8002
      %v8071 = vunpack.c.l.b16 %v8003
      %v8072 = vunpack.c.l.b16 %v8004
      %v8073 = vunpack.c.l.b16 %v8005
      %v8074 = vunpack.c.l.b16 %v8006
      %v8075 = vunpack.c.l.b16 %v8007
      %v8076 = vunpack.c.l.b16 %v8008
      %v8077 = vunpack.c.l.b16 %v8009
      %v8078 = vunpack.c.l.b16 %v8010
      %v8079 = vunpack.c.l.b16 %v8011
      %v8080 = vunpack.c.l.b16 %v8012
      %v8081 = vunpack.c.l.b16 %v8013
      %v8082 = vunpack.c.l.b16 %v8014
      %v8083 = vunpack.c.l.b16 %v8015
      %v8084 = vunpack.c.l.b16 %v8016
      %v8085 = vunpack.c.l.b16 %v8017
      %v8086 = vunpack.c.l.b16 %v8018
      %v8087 = vunpack.c.l.b16 %v8019
      %v8088 = vunpack.c.l.b16 %v8020
      %v8089 = vunpack.c.l.b16 %v8021
      %v8090 = vunpack.c.l.b16 %v8022
      %v8091 = vunpack.c.l.b16 %v8023
      %v8092 = vunpack.c.l.b16 %v8024
      %v8093 = vunpack.c.l.b16 %v8025
      %v8094 = vunpack.c.l.b16 %v8026
      %v8095 = vunpack.c.l.b16 %v8027
      %v8096 = vunpack.c.l.b16 %v8028
      %v8097 = vunpack.c.l.b16 %v8029
      %v8098 = vunpack.c.l.b16 %v8030
      %v8099 = vunpack.c.l.b16 %v8031
      %v8100 = vunpack.c.l.b16 %v8032
      %v8101 = vpack.c.b16 %v8070, %v8069
      %v8102 = vpack.c.b16 %v8072, %v8071
      %v8103 = vpack.c.b16 %v8074, %v8073
      %v8104 = vpack.c.b16 %v8076, %v8075
      %v8105 = vpack.c.b16 %v8078, %v8077
      %v8106 = vpack.c.b16 %v8080, %v8079
      %v8107 = vpack.c.b16 %v8082, %v8081
      %v8108 = vpack.c.b16 %v8084, %v8083
      %v8109 = vpack.c.b16 %v8086, %v8085
      %v8110 = vpack.c.b16 %v8088, %v8087
      %v8111 = vpack.c.b16 %v8090, %v8089
      %v8112 = vpack.c.b16 %v8092, %v8091
      %v8113 = vpack.c.b16 %v8094, %v8093
      %v8114 = vpack.c.b16 %v8096, %v8095
      %v8115 = vpack.c.b16 %v8098, %v8097
      %v8116 = vpack.c.b16 %v8100, %v8099
      %v8121 = vunpack.c.l.b16 %v8033
      %v8122 = vunpack.c.l.b16 %v8034
      %v8123 = vunpack.c.l.b16 %v8035
      %v8124 = vunpack.c.l.b16 %v8036
      %v8125 = vpack.c.b16 %v8122, %v8121
      %v8126 = vpack.c.b16 %v8124, %v8123
      %v8130 = vsel %vm1384, %v8101, 0
      %v8133 = vsel %vm1384, %v8102, 0
      %v8136 = vsel %vm1384, %v8103, 0
      %v8139 = vsel %vm1384, %v8104, 0
      %v8142 = vsel %vm1384, %v8105, 0
      %v8145 = vsel %vm1384, %v8106, 0
      %v8148 = vsel %vm1384, %v8107, 0
      %v8151 = vsel %vm1384, %v8108, 0
      %v8154 = vsel %vm1384, %v8109, 0
      %v8157 = vsel %vm1384, %v8110, 0
      %v8160 = vsel %vm1384, %v8111, 0
      %v8163 = vsel %vm1384, %v8112, 0
      %v8166 = vsel %vm1384, %v8113, 0
      %v8169 = vsel %vm1384, %v8114, 0
      %v8172 = vsel %vm1384, %v8115, 0
      %v8175 = vsel %vm1384, %v8116, 0
      %8177 = vmatprep.subr.bf16.mxu0 0
      %8178 = vmatpush1.bf16.msra.mxu0 %v8125
      %8179 = vmatprep.subr.bf16.mxu0 0
      %8180 = vmatpush1.bf16.msra.mxu0 %v8126
      %8181 = vmatprep.subr.bf16.mxu0 0
      %8182 = vmatpush1.bf16.msra.mxu0 0
      %8183 = vmatprep.subr.bf16.mxu0 0
      %8184 = vmatpush1.bf16.msra.mxu0 0
      %8185 = vmatprep.subr.bf16.mxu0 0
      %8186 = vmatpush1.bf16.msra.mxu0 0
      %8187 = vmatprep.subr.bf16.mxu0 0
      %8188 = vmatpush1.bf16.msra.mxu0 0
      %8189 = vmatprep.subr.bf16.mxu0 0
      %8190 = vmatpush1.bf16.msra.mxu0 0
      %8191 = vmatprep.subr.bf16.mxu0 0
      %8192 = vmatpush1.bf16.msra.mxu0 0
      %8193 = vmatprep.subr.bf16.mxu0 0
      %8194 = vmatpush1.bf16.msra.mxu0 0
      %8195 = vmatprep.subr.bf16.mxu0 0
      %8196 = vmatpush1.bf16.msra.mxu0 0
      %8197 = vmatprep.subr.bf16.mxu0 0
      %8198 = vmatpush1.bf16.msra.mxu0 0
      %8199 = vmatprep.subr.bf16.mxu0 0
      %8200 = vmatpush1.bf16.msra.mxu0 0
      %8201 = vmatprep.subr.bf16.mxu0 0
      %8202 = vmatpush1.bf16.msra.mxu0 0
      %8203 = vmatprep.subr.bf16.mxu0 0
      %8204 = vmatpush1.bf16.msra.mxu0 0
      %8205 = vmatprep.subr.bf16.mxu0 0
      %8206 = vmatpush1.bf16.msra.mxu0 0
      %8207 = vmatprep.subr.bf16.mxu0 0
      %8208 = vmatpush1.bf16.msra.mxu0 0
      %8209 = vmatprep.mubr.bf16.mxu0 0
      %8210 = vmatmul.mubr.bf16.gmra.mrb[0].mxu0 %v8130
      %v8211 = vpop.f32.mrb[0].mxu0
      %v8212 = vadd.f32 0.0, %v8211
      %v8213 = vpop.f32.mrb[0].mxu0
      %v8214 = vpop.f32.mrb[0].mxu0
      %v8215 = vadd.f32 0.0, %v8214
      %v8216 = vpop.f32.mrb[0].mxu0
      %8217 = vmatprep.mubr.bf16.mxu0 0
      %8218 = vmatmul.mubr.bf16.gmra.mrb[0].mxu0 %v8133
      %v8219 = vpop.f32.mrb[0].mxu0
      %v8220 = vadd.f32 0.0, %v8219
      %v8221 = vpop.f32.mrb[0].mxu0
      %v8222 = vpop.f32.mrb[0].mxu0
      %v8223 = vadd.f32 0.0, %v8222
      %v8224 = vpop.f32.mrb[0].mxu0
      %8225 = vmatprep.mubr.bf16.mxu0 0
      %8226 = vmatmul.mubr.bf16.gmra.mrb[0].mxu0 %v8136
      %v8227 = vpop.f32.mrb[0].mxu0
      %v8228 = vadd.f32 0.0, %v8227
      %v8229 = vpop.f32.mrb[0].mxu0
      %v8230 = vpop.f32.mrb[0].mxu0
      %v8231 = vadd.f32 0.0, %v8230
      %v8232 = vpop.f32.mrb[0].mxu0
      %8233 = vmatprep.mubr.bf16.mxu0 0
      %8234 = vmatmul.mubr.bf16.gmra.mrb[0].mxu0 %v8139
      %v8235 = vpop.f32.mrb[0].mxu0
      %v8236 = vadd.f32 0.0, %v8235
      %v8237 = vpop.f32.mrb[0].mxu0
      %v8238 = vpop.f32.mrb[0].mxu0
      %v8239 = vadd.f32 0.0, %v8238
      %v8240 = vpop.f32.mrb[0].mxu0
      %8241 = vmatprep.mubr.bf16.mxu0 0
      %8242 = vmatmul.mubr.bf16.gmra.mrb[0].mxu0 %v8142
      %v8243 = vpop.f32.mrb[0].mxu0
      %v8244 = vadd.f32 0.0, %v8243
      %v8245 = vpop.f32.mrb[0].mxu0
      %v8246 = vpop.f32.mrb[0].mxu0
      %v8247 = vadd.f32 0.0, %v8246
      %v8248 = vpop.f32.mrb[0].mxu0
      %8249 = vmatprep.mubr.bf16.mxu0 0
      %8250 = vmatmul.mubr.bf16.gmra.mrb[0].mxu0 %v8145
      %v8251 = vpop.f32.mrb[0].mxu0
      %v8252 = vadd.f32 0.0, %v8251
      %v8253 = vpop.f32.mrb[0].mxu0
      %v8254 = vpop.f32.mrb[0].mxu0
      %v8255 = vadd.f32 0.0, %v8254
      %v8256 = vpop.f32.mrb[0].mxu0
      %8257 = vmatprep.mubr.bf16.mxu0 0
      %8258 = vmatmul.mubr.bf16.gmra.mrb[0].mxu0 %v8148
      %v8259 = vpop.f32.mrb[0].mxu0
      %v8260 = vadd.f32 0.0, %v8259
      %v8261 = vpop.f32.mrb[0].mxu0
      %v8262 = vpop.f32.mrb[0].mxu0
      %v8263 = vadd.f32 0.0, %v8262
      %v8264 = vpop.f32.mrb[0].mxu0
      %8265 = vmatprep.mubr.bf16.mxu0 0
      %8266 = vmatmul.mubr.bf16.gmra.mrb[0].mxu0 %v8151
      %v8267 = vpop.f32.mrb[0].mxu0
      %v8268 = vadd.f32 0.0, %v8267
      %v8269 = vpop.f32.mrb[0].mxu0
      %v8270 = vpop.f32.mrb[0].mxu0
      %v8271 = vadd.f32 0.0, %v8270
      %v8272 = vpop.f32.mrb[0].mxu0
      %8273 = vmatprep.mubr.bf16.mxu0 0
      %8274 = vmatmul.mubr.bf16.gmra.mrb[0].mxu0 %v8154
      %v8275 = vpop.f32.mrb[0].mxu0
      %v8276 = vadd.f32 0.0, %v8275
      %v8277 = vpop.f32.mrb[0].mxu0
      %v8278 = vpop.f32.mrb[0].mxu0
      %v8279 = vadd.f32 0.0, %v8278
      %v8280 = vpop.f32.mrb[0].mxu0
      %8281 = vmatprep.mubr.bf16.mxu0 0
      %8282 = vmatmul.mubr.bf16.gmra.mrb[0].mxu0 %v8157
      %v8283 = vpop.f32.mrb[0].mxu0
      %v8284 = vadd.f32 0.0, %v8283
      %v8285 = vpop.f32.mrb[0].mxu0
      %v8286 = vpop.f32.mrb[0].mxu0
      %v8287 = vadd.f32 0.0, %v8286
      %v8288 = vpop.f32.mrb[0].mxu0
      %8289 = vmatprep.mubr.bf16.mxu0 0
      %8290 = vmatmul.mubr.bf16.gmra.mrb[0].mxu0 %v8160
      %v8291 = vpop.f32.mrb[0].mxu0
      %v8292 = vadd.f32 0.0, %v8291
      %v8293 = vpop.f32.mrb[0].mxu0
      %v8294 = vpop.f32.mrb[0].mxu0
      %v8295 = vadd.f32 0.0, %v8294
      %v8296 = vpop.f32.mrb[0].mxu0
      %8297 = vmatprep.mubr.bf16.mxu0 0
      %8298 = vmatmul.mubr.bf16.gmra.mrb[0].mxu0 %v8163
      %v8299 = vpop.f32.mrb[0].mxu0
      %v8300 = vadd.f32 0.0, %v8299
      %v8301 = vpop.f32.mrb[0].mxu0
      %v8302 = vpop.f32.mrb[0].mxu0
      %v8303 = vadd.f32 0.0, %v8302
      %v8304 = vpop.f32.mrb[0].mxu0
      %8305 = vmatprep.mubr.bf16.mxu0 0
      %8306 = vmatmul.mubr.bf16.gmra.mrb[0].mxu0 %v8166
      %v8307 = vpop.f32.mrb[0].mxu0
      %v8308 = vadd.f32 0.0, %v8307
      %v8309 = vpop.f32.mrb[0].mxu0
      %v8310 = vpop.f32.mrb[0].mxu0
      %v8311 = vadd.f32 0.0, %v8310
      %v8312 = vpop.f32.mrb[0].mxu0
      %8313 = vmatprep.mubr.bf16.mxu0 0
      %8314 = vmatmul.mubr.bf16.gmra.mrb[0].mxu0 %v8169
      %v8315 = vpop.f32.mrb[0].mxu0
      %v8316 = vadd.f32 0.0, %v8315
      %v8317 = vpop.f32.mrb[0].mxu0
      %v8318 = vpop.f32.mrb[0].mxu0
      %v8319 = vadd.f32 0.0, %v8318
      %v8320 = vpop.f32.mrb[0].mxu0
      %8321 = vmatprep.mubr.bf16.mxu0 0
      %8322 = vmatmul.mubr.bf16.gmra.mrb[0].mxu0 %v8172
      %v8323 = vpop.f32.mrb[0].mxu0
      %v8324 = vadd.f32 0.0, %v8323
      %v8325 = vpop.f32.mrb[0].mxu0
      %v8326 = vpop.f32.mrb[0].mxu0
      %v8327 = vadd.f32 0.0, %v8326
      %v8328 = vpop.f32.mrb[0].mxu0
      %8329 = vmatprep.mubr.bf16.mxu0 0
      %8330 = vmatmul.mubr.bf16.gmra.mrb[0].mxu0 %v8175
      %v8331 = vpop.f32.mrb[0].mxu0
      %v8332 = vadd.f32 0.0, %v8331
      %v8333 = vpop.f32.mrb[0].mxu0
      %v8334 = vpop.f32.mrb[0].mxu0
      %v8335 = vadd.f32 0.0, %v8334
      %v8336 = vpop.f32.mrb[0].mxu0
      %8337 = vdwg.mxu0
      %v8338 = vadd.f32 %v7968, %v8212
      %v8339 = vadd.f32 %v7969, %v8215
      %v8340 = vadd.f32 %v7970, %v8220
      %v8341 = vadd.f32 %v7971, %v8223
      %v8342 = vadd.f32 %v7972, %v8228
      %v8343 = vadd.f32 %v7973, %v8231
      %v8344 = vadd.f32 %v7974, %v8236
      %v8345 = vadd.f32 %v7975, %v8239
      %v8346 = vadd.f32 %v7976, %v8244
      %v8347 = vadd.f32 %v7977, %v8247
      %v8348 = vadd.f32 %v7978, %v8252
      %v8349 = vadd.f32 %v7979, %v8255
      %v8350 = vadd.f32 %v7980, %v8260
      %v8351 = vadd.f32 %v7981, %v8263
      %v8352 = vadd.f32 %v7982, %v8268
      %v8353 = vadd.f32 %v7983, %v8271
      %v8354 = vadd.f32 %v7984, %v8276
      %v8355 = vadd.f32 %v7985, %v8279
      %v8356 = vadd.f32 %v7986, %v8284
      %v8357 = vadd.f32 %v7987, %v8287
      %v8358 = vadd.f32 %v7988, %v8292
      %v8359 = vadd.f32 %v7989, %v8295
      %v8360 = vadd.f32 %v7990, %v8300
      %v8361 = vadd.f32 %v7991, %v8303
      %v8362 = vadd.f32 %v7992, %v8308
      %v8363 = vadd.f32 %v7993, %v8311
      %v8364 = vadd.f32 %v7994, %v8316
      %v8365 = vadd.f32 %v7995, %v8319
      %v8366 = vadd.f32 %v7996, %v8324
      %v8367 = vadd.f32 %v7997, %v8327
      %v8368 = vadd.f32 %v7998, %v8332
      %v8369 = vadd.f32 %v7999, %v8335
      %v8370 = vld [vmem:[%s8000] sm:$0xf]
      %v8371 = vld [vmem:[%s8000 + $0x4] sm:$0xf]
      %v8372 = vld [vmem:[%s8000 + $0x8] sm:$0x1]
      %v8373 = vld [vmem:[%s8000 + $0xc] sm:$0xf]
      %v8374 = vld [vmem:[%s8000 + $0x10] sm:$0xf]
      %v8375 = vld [vmem:[%s8000 + $0x14] sm:$0x1]
      %v8376 = vld [vmem:[%s8000 + $0x18] sm:$0xf]
      %v8377 = vld [vmem:[%s8000 + $0x1c] sm:$0xf]
      %v8378 = vld [vmem:[%s8000 + $0x20] sm:$0x1]
      %v8379 = vld [vmem:[%s8000 + $0x24] sm:$0xf]
      %v8380 = vld [vmem:[%s8000 + $0x28] sm:$0xf]
      %v8381 = vld [vmem:[%s8000 + $0x2c] sm:$0x1]
      %v8382 = vld [vmem:[%s8000 + $0x30] sm:$0xf]
      %v8383 = vld [vmem:[%s8000 + $0x34] sm:$0xf]
      %v8384 = vld [vmem:[%s8000 + $0x38] sm:$0x1]
      %v8385 = vld [vmem:[%s8000 + $0x3c] sm:$0xf]
      %v8386 = vld [vmem:[%s8000 + $0x40] sm:$0xf]
      %v8387 = vld [vmem:[%s8000 + $0x44] sm:$0x1]
      %v8388 = vld [vmem:[%s8000 + $0x48] sm:$0xf]
      %v8389 = vld [vmem:[%s8000 + $0x4c] sm:$0xf]
      %v8390 = vld [vmem:[%s8000 + $0x50] sm:$0x1]
      %v8391 = vld [vmem:[%s8000 + $0x54] sm:$0xf]
      %v8392 = vld [vmem:[%s8000 + $0x58] sm:$0xf]
      %v8393 = vld [vmem:[%s8000 + $0x5c] sm:$0x1]
      %v8394 = vld [vmem:[%s8000 + $0x60] sm:$0xf]
      %v8395 = vld [vmem:[%s8000 + $0x64] sm:$0xf]
      %v8396 = vld [vmem:[%s8000 + $0x68] sm:$0x1]
      %v8397 = vld [vmem:[%s8000 + $0x6c] sm:$0xf]
      %v8398 = vld [vmem:[%s8000 + $0x70] sm:$0xf]
      %v8399 = vld [vmem:[%s8000 + $0x74] sm:$0x1]
      %v8400 = vld [vmem:[%s8000 + $0x78] sm:$0xf]
      %v8401 = vld [vmem:[%s8000 + $0x7c] sm:$0xf]
      %v8402 = vld [vmem:[%s8000 + $0x80] sm:$0x1]
      %v8403 = vld [vmem:[%s8000 + $0x84] sm:$0xf]
      %v8404 = vld [vmem:[%s8000 + $0x88] sm:$0xf]
      %v8405 = vld [vmem:[%s8000 + $0x8c] sm:$0x1]
      %v8406 = vld [vmem:[%s8000 + $0x90] sm:$0xf]
      %v8407 = vld [vmem:[%s8000 + $0x94] sm:$0xf]
      %v8408 = vld [vmem:[%s8000 + $0x98] sm:$0x1]
      %v8409 = vld [vmem:[%s8000 + $0x9c] sm:$0xf]
      %v8410 = vld [vmem:[%s8000 + $0xa0] sm:$0xf]
      %v8411 = vld [vmem:[%s8000 + $0xa4] sm:$0x1]
      %v8412 = vld [vmem:[%s8000 + $0xa8] sm:$0xf]
      %v8413 = vld [vmem:[%s8000 + $0xac] sm:$0xf]
      %v8414 = vld [vmem:[%s8000 + $0xb0] sm:$0x1]
      %v8415 = vld [vmem:[%s8000 + $0xb4] sm:$0xf]
      %v8416 = vld [vmem:[%s8000 + $0xb8] sm:$0xf]
      %v8417 = vld [vmem:[%s8000 + $0xbc] sm:$0x1]
      %v8419 = vshrl.u32 %v8370, 16
      %v8421 = vrot.slane %v8419, 4
      %v8422 = vshll.u32 %v8370, 16
      %v8424 = vrot.slane %v8422, 5
      %v8425 = vor.u32 %v8421, %v8424
      %v8426 = vrot.slane %v8425, 4
      %v8428 = vshll.u32 %v8371, 16
      %v8430 = vrot.slane %v8428, 5
      %v8431 = vsel %vm935, %v8426, %v8430
      %v8432 = vshrl.u32 %v8371, 16
      %v8434 = vrot.slane %v8432, 4
      %v8435 = vor.u32 %v8434, %v8430
      %v8436 = vrot.slane %v8435, 4
      %v8438 = vshll.u32 %v8372, 16
      %v8440 = vrot.slane %v8438, 5
      %v8441 = vsel %vm935, %v8436, %v8440
      %v8443 = vshrl.u32 %v8373, 16
      %v8445 = vrot.slane %v8443, 4
      %v8446 = vshll.u32 %v8373, 16
      %v8448 = vrot.slane %v8446, 5
      %v8449 = vor.u32 %v8445, %v8448
      %v8450 = vrot.slane %v8449, 4
      %v8452 = vshll.u32 %v8374, 16
      %v8454 = vrot.slane %v8452, 5
      %v8455 = vsel %vm935, %v8450, %v8454
      %v8456 = vshrl.u32 %v8374, 16
      %v8458 = vrot.slane %v8456, 4
      %v8459 = vor.u32 %v8458, %v8454
      %v8460 = vrot.slane %v8459, 4
      %v8462 = vshll.u32 %v8375, 16
      %v8464 = vrot.slane %v8462, 5
      %v8465 = vsel %vm935, %v8460, %v8464
      %v8467 = vshrl.u32 %v8376, 16
      %v8469 = vrot.slane %v8467, 4
      %v8470 = vshll.u32 %v8376, 16
      %v8472 = vrot.slane %v8470, 5
      %v8473 = vor.u32 %v8469, %v8472
      %v8474 = vrot.slane %v8473, 4
      %v8476 = vshll.u32 %v8377, 16
      %v8478 = vrot.slane %v8476, 5
      %v8479 = vsel %vm935, %v8474, %v8478
      %v8480 = vshrl.u32 %v8377, 16
      %v8482 = vrot.slane %v8480, 4
      %v8483 = vor.u32 %v8482, %v8478
      %v8484 = vrot.slane %v8483, 4
      %v8486 = vshll.u32 %v8378, 16
      %v8488 = vrot.slane %v8486, 5
      %v8489 = vsel %vm935, %v8484, %v8488
      %v8491 = vshrl.u32 %v8379, 16
      %v8493 = vrot.slane %v8491, 4
      %v8494 = vshll.u32 %v8379, 16
      %v8496 = vrot.slane %v8494, 5
      %v8497 = vor.u32 %v8493, %v8496
      %v8498 = vrot.slane %v8497, 4
      %v8500 = vshll.u32 %v8380, 16
      %v8502 = vrot.slane %v8500, 5
      %v8503 = vsel %vm935, %v8498, %v8502
      %v8504 = vshrl.u32 %v8380, 16
      %v8506 = vrot.slane %v8504, 4
      %v8507 = vor.u32 %v8506, %v8502
      %v8508 = vrot.slane %v8507, 4
      %v8510 = vshll.u32 %v8381, 16
      %v8512 = vrot.slane %v8510, 5
      %v8513 = vsel %vm935, %v8508, %v8512
      %v8515 = vshrl.u32 %v8382, 16
      %v8517 = vrot.slane %v8515, 4
      %v8518 = vshll.u32 %v8382, 16
      %v8520 = vrot.slane %v8518, 5
      %v8521 = vor.u32 %v8517, %v8520
      %v8522 = vrot.slane %v8521, 4
      %v8524 = vshll.u32 %v8383, 16
      %v8526 = vrot.slane %v8524, 5
      %v8527 = vsel %vm935, %v8522, %v8526
      %v8528 = vshrl.u32 %v8383, 16
      %v8530 = vrot.slane %v8528, 4
      %v8531 = vor.u32 %v8530, %v8526
      %v8532 = vrot.slane %v8531, 4
      %v8534 = vshll.u32 %v8384, 16
      %v8536 = vrot.slane %v8534, 5
      %v8537 = vsel %vm935, %v8532, %v8536
      %v8539 = vshrl.u32 %v8385, 16
      %v8541 = vrot.slane %v8539, 4
      %v8542 = vshll.u32 %v8385, 16
      %v8544 = vrot.slane %v8542, 5
      %v8545 = vor.u32 %v8541, %v8544
      %v8546 = vrot.slane %v8545, 4
      %v8548 = vshll.u32 %v8386, 16
      %v8550 = vrot.slane %v8548, 5
      %v8551 = vsel %vm935, %v8546, %v8550
      %v8552 = vshrl.u32 %v8386, 16
      %v8554 = vrot.slane %v8552, 4
      %v8555 = vor.u32 %v8554, %v8550
      %v8556 = vrot.slane %v8555, 4
      %v8558 = vshll.u32 %v8387, 16
      %v8560 = vrot.slane %v8558, 5
      %v8561 = vsel %vm935, %v8556, %v8560
      %v8563 = vshrl.u32 %v8388, 16
      %v8565 = vrot.slane %v8563, 4
      %v8566 = vshll.u32 %v8388, 16
      %v8568 = vrot.slane %v8566, 5
      %v8569 = vor.u32 %v8565, %v8568
      %v8570 = vrot.slane %v8569, 4
      %v8572 = vshll.u32 %v8389, 16
      %v8574 = vrot.slane %v8572, 5
      %v8575 = vsel %vm935, %v8570, %v8574
      %v8576 = vshrl.u32 %v8389, 16
      %v8578 = vrot.slane %v8576, 4
      %v8579 = vor.u32 %v8578, %v8574
      %v8580 = vrot.slane %v8579, 4
      %v8582 = vshll.u32 %v8390, 16
      %v8584 = vrot.slane %v8582, 5
      %v8585 = vsel %vm935, %v8580, %v8584
      %v8587 = vshrl.u32 %v8391, 16
      %v8589 = vrot.slane %v8587, 4
      %v8590 = vshll.u32 %v8391, 16
      %v8592 = vrot.slane %v8590, 5
      %v8593 = vor.u32 %v8589, %v8592
      %v8594 = vrot.slane %v8593, 4
      %v8596 = vshll.u32 %v8392, 16
      %v8598 = vrot.slane %v8596, 5
      %v8599 = vsel %vm935, %v8594, %v8598
      %v8600 = vshrl.u32 %v8392, 16
      %v8602 = vrot.slane %v8600, 4
      %v8603 = vor.u32 %v8602, %v8598
      %v8604 = vrot.slane %v8603, 4
      %v8606 = vshll.u32 %v8393, 16
      %v8608 = vrot.slane %v8606, 5
      %v8609 = vsel %vm935, %v8604, %v8608
      %v8611 = vshrl.u32 %v8394, 16
      %v8613 = vrot.slane %v8611, 4
      %v8614 = vshll.u32 %v8394, 16
      %v8616 = vrot.slane %v8614, 5
      %v8617 = vor.u32 %v8613, %v8616
      %v8618 = vrot.slane %v8617, 4
      %v8620 = vshll.u32 %v8395, 16
      %v8622 = vrot.slane %v8620, 5
      %v8623 = vsel %vm935, %v8618, %v8622
      %v8624 = vshrl.u32 %v8395, 16
      %v8626 = vrot.slane %v8624, 4
      %v8627 = vor.u32 %v8626, %v8622
      %v8628 = vrot.slane %v8627, 4
      %v8630 = vshll.u32 %v8396, 16
      %v8632 = vrot.slane %v8630, 5
      %v8633 = vsel %vm935, %v8628, %v8632
      %v8635 = vshrl.u32 %v8397, 16
      %v8637 = vrot.slane %v8635, 4
      %v8638 = vshll.u32 %v8397, 16
      %v8640 = vrot.slane %v8638, 5
      %v8641 = vor.u32 %v8637, %v8640
      %v8642 = vrot.slane %v8641, 4
      %v8644 = vshll.u32 %v8398, 16
      %v8646 = vrot.slane %v8644, 5
      %v8647 = vsel %vm935, %v8642, %v8646
      %v8648 = vshrl.u32 %v8398, 16
      %v8650 = vrot.slane %v8648, 4
      %v8651 = vor.u32 %v8650, %v8646
      %v8652 = vrot.slane %v8651, 4
      %v8654 = vshll.u32 %v8399, 16
      %v8656 = vrot.slane %v8654, 5
      %v8657 = vsel %vm935, %v8652, %v8656
      %v8659 = vshrl.u32 %v8400, 16
      %v8661 = vrot.slane %v8659, 4
      %v8662 = vshll.u32 %v8400, 16
      %v8664 = vrot.slane %v8662, 5
      %v8665 = vor.u32 %v8661, %v8664
      %v8666 = vrot.slane %v8665, 4
      %v8668 = vshll.u32 %v8401, 16
      %v8670 = vrot.slane %v8668, 5
      %v8671 = vsel %vm935, %v8666, %v8670
      %v8672 = vshrl.u32 %v8401, 16
      %v8674 = vrot.slane %v8672, 4
      %v8675 = vor.u32 %v8674, %v8670
      %v8676 = vrot.slane %v8675, 4
      %v8678 = vshll.u32 %v8402, 16
      %v8680 = vrot.slane %v8678, 5
      %v8681 = vsel %vm935, %v8676, %v8680
      %v8683 = vshrl.u32 %v8403, 16
      %v8685 = vrot.slane %v8683, 4
      %v8686 = vshll.u32 %v8403, 16
      %v8688 = vrot.slane %v8686, 5
      %v8689 = vor.u32 %v8685, %v8688
      %v8690 = vrot.slane %v8689, 4
      %v8692 = vshll.u32 %v8404, 16
      %v8694 = vrot.slane %v8692, 5
      %v8695 = vsel %vm935, %v8690, %v8694
      %v8696 = vshrl.u32 %v8404, 16
      %v8698 = vrot.slane %v8696, 4
      %v8699 = vor.u32 %v8698, %v8694
      %v8700 = vrot.slane %v8699, 4
      %v8702 = vshll.u32 %v8405, 16
      %v8704 = vrot.slane %v8702, 5
      %v8705 = vsel %vm935, %v8700, %v8704
      %v8707 = vshrl.u32 %v8406, 16
      %v8709 = vrot.slane %v8707, 4
      %v8710 = vshll.u32 %v8406, 16
      %v8712 = vrot.slane %v8710, 5
      %v8713 = vor.u32 %v8709, %v8712
      %v8714 = vrot.slane %v8713, 4
      %v8716 = vshll.u32 %v8407, 16
      %v8718 = vrot.slane %v8716, 5
      %v8719 = vsel %vm935, %v8714, %v8718
      %v8720 = vshrl.u32 %v8407, 16
      %v8722 = vrot.slane %v8720, 4
      %v8723 = vor.u32 %v8722, %v8718
      %v8724 = vrot.slane %v8723, 4
      %v8726 = vshll.u32 %v8408, 16
      %v8728 = vrot.slane %v8726, 5
      %v8729 = vsel %vm935, %v8724, %v8728
      %v8731 = vshrl.u32 %v8409, 16
      %v8733 = vrot.slane %v8731, 4
      %v8734 = vshll.u32 %v8409, 16
      %v8736 = vrot.slane %v8734, 5
      %v8737 = vor.u32 %v8733, %v8736
      %v8738 = vrot.slane %v8737, 4
      %v8740 = vshll.u32 %v8410, 16
      %v8742 = vrot.slane %v8740, 5
      %v8743 = vsel %vm935, %v8738, %v8742
      %v8744 = vshrl.u32 %v8410, 16
      %v8746 = vrot.slane %v8744, 4
      %v8747 = vor.u32 %v8746, %v8742
      %v8748 = vrot.slane %v8747, 4
      %v8750 = vshll.u32 %v8411, 16
      %v8752 = vrot.slane %v8750, 5
      %v8753 = vsel %vm935, %v8748, %v8752
      %v8755 = vshrl.u32 %v8412, 16
      %v8757 = vrot.slane %v8755, 4
      %v8758 = vshll.u32 %v8412, 16
      %v8760 = vrot.slane %v8758, 5
      %v8761 = vor.u32 %v8757, %v8760
      %v8762 = vrot.slane %v8761, 4
      %v8764 = vshll.u32 %v8413, 16
      %v8766 = vrot.slane %v8764, 5
      %v8767 = vsel %vm935, %v8762, %v8766
      %v8768 = vshrl.u32 %v8413, 16
      %v8770 = vrot.slane %v8768, 4
      %v8771 = vor.u32 %v8770, %v8766
      %v8772 = vrot.slane %v8771, 4
      %v8774 = vshll.u32 %v8414, 16
      %v8776 = vrot.slane %v8774, 5
      %v8777 = vsel %vm935, %v8772, %v8776
      %v8779 = vshrl.u32 %v8415, 16
      %v8781 = vrot.slane %v8779, 4
      %v8782 = vshll.u32 %v8415, 16
      %v8784 = vrot.slane %v8782, 5
      %v8785 = vor.u32 %v8781, %v8784
      %v8786 = vrot.slane %v8785, 4
      %v8788 = vshll.u32 %v8416, 16
      %v8790 = vrot.slane %v8788, 5
      %v8791 = vsel %vm935, %v8786, %v8790
      %v8792 = vshrl.u32 %v8416, 16
      %v8794 = vrot.slane %v8792, 4
      %v8795 = vor.u32 %v8794, %v8790
      %v8796 = vrot.slane %v8795, 4
      %v8798 = vshll.u32 %v8417, 16
      %v8800 = vrot.slane %v8798, 5
      %v8801 = vsel %vm935, %v8796, %v8800
      %v8802 = vld [vmem:[%s5 + $0x40] sm:$0xf]
      %v8803 = vld [vmem:[%s5 + $0x44] sm:$0xf]
      %v8804 = vld [vmem:[%s5 + $0x48] sm:$0xf]
      %v8805 = vld [vmem:[%s5 + $0x4c] sm:$0xf]
      %v8806 = vunpack.c.l.b16 %v8431
      %v8807 = vunpack.c.l.b16 %v8441
      %v8808 = vunpack.c.l.b16 %v8455
      %v8809 = vunpack.c.l.b16 %v8465
      %v8810 = vunpack.c.l.b16 %v8479
      %v8811 = vunpack.c.l.b16 %v8489
      %v8812 = vunpack.c.l.b16 %v8503
      %v8813 = vunpack.c.l.b16 %v8513
      %v8814 = vunpack.c.l.b16 %v8527
      %v8815 = vunpack.c.l.b16 %v8537
      %v8816 = vunpack.c.l.b16 %v8551
      %v8817 = vunpack.c.l.b16 %v8561
      %v8818 = vunpack.c.l.b16 %v8575
      %v8819 = vunpack.c.l.b16 %v8585
      %v8820 = vunpack.c.l.b16 %v8599
      %v8821 = vunpack.c.l.b16 %v8609
      %v8822 = vunpack.c.l.b16 %v8623
      %v8823 = vunpack.c.l.b16 %v8633
      %v8824 = vunpack.c.l.b16 %v8647
      %v8825 = vunpack.c.l.b16 %v8657
      %v8826 = vunpack.c.l.b16 %v8671
      %v8827 = vunpack.c.l.b16 %v8681
      %v8828 = vunpack.c.l.b16 %v8695
      %v8829 = vunpack.c.l.b16 %v8705
      %v8830 = vunpack.c.l.b16 %v8719
      %v8831 = vunpack.c.l.b16 %v8729
      %v8832 = vunpack.c.l.b16 %v8743
      %v8833 = vunpack.c.l.b16 %v8753
      %v8834 = vunpack.c.l.b16 %v8767
      %v8835 = vunpack.c.l.b16 %v8777
      %v8836 = vunpack.c.l.b16 %v8791
      %v8837 = vunpack.c.l.b16 %v8801
      %v8838 = vpack.c.b16 %v8807, %v8806
      %v8839 = vpack.c.b16 %v8809, %v8808
      %v8840 = vpack.c.b16 %v8811, %v8810
      %v8841 = vpack.c.b16 %v8813, %v8812
      %v8842 = vpack.c.b16 %v8815, %v8814
      %v8843 = vpack.c.b16 %v8817, %v8816
      %v8844 = vpack.c.b16 %v8819, %v8818
      %v8845 = vpack.c.b16 %v8821, %v8820
      %v8846 = vpack.c.b16 %v8823, %v8822
      %v8847 = vpack.c.b16 %v8825, %v8824
      %v8848 = vpack.c.b16 %v8827, %v8826
      %v8849 = vpack.c.b16 %v8829, %v8828
      %v8850 = vpack.c.b16 %v8831, %v8830
      %v8851 = vpack.c.b16 %v8833, %v8832
      %v8852 = vpack.c.b16 %v8835, %v8834
      %v8853 = vpack.c.b16 %v8837, %v8836
      %v8858 = vunpack.c.l.b16 %v8802
      %v8859 = vunpack.c.l.b16 %v8803
      %v8860 = vunpack.c.l.b16 %v8804
      %v8861 = vunpack.c.l.b16 %v8805
      %v8862 = vpack.c.b16 %v8859, %v8858
      %v8863 = vpack.c.b16 %v8861, %v8860
      %v8867 = vsel %vm1384, %v8838, 0
      %v8870 = vsel %vm1384, %v8839, 0
      %v8873 = vsel %vm1384, %v8840, 0
      %v8876 = vsel %vm1384, %v8841, 0
      %v8879 = vsel %vm1384, %v8842, 0
      %v8882 = vsel %vm1384, %v8843, 0
      %v8885 = vsel %vm1384, %v8844, 0
      %v8888 = vsel %vm1384, %v8845, 0
      %v8891 = vsel %vm1384, %v8846, 0
      %v8894 = vsel %vm1384, %v8847, 0
      %v8897 = vsel %vm1384, %v8848, 0
      %v8900 = vsel %vm1384, %v8849, 0
      %v8903 = vsel %vm1384, %v8850, 0
      %v8906 = vsel %vm1384, %v8851, 0
      %v8909 = vsel %vm1384, %v8852, 0
      %v8912 = vsel %vm1384, %v8853, 0
      %8914 = vmatprep.subr.bf16.mxu0 0
      %8915 = vmatpush1.bf16.msra.mxu0 %v8862
      %8916 = vmatprep.subr.bf16.mxu0 0
      %8917 = vmatpush1.bf16.msra.mxu0 %v8863
      %8918 = vmatprep.subr.bf16.mxu0 0
      %8919 = vmatpush1.bf16.msra.mxu0 0
      %8920 = vmatprep.subr.bf16.mxu0 0
      %8921 = vmatpush1.bf16.msra.mxu0 0
      %8922 = vmatprep.subr.bf16.mxu0 0
      %8923 = vmatpush1.bf16.msra.mxu0 0
      %8924 = vmatprep.subr.bf16.mxu0 0
      %8925 = vmatpush1.bf16.msra.mxu0 0
      %8926 = vmatprep.subr.bf16.mxu0 0
      %8927 = vmatpush1.bf16.msra.mxu0 0
      %8928 = vmatprep.subr.bf16.mxu0 0
      %8929 = vmatpush1.bf16.msra.mxu0 0
      %8930 = vmatprep.subr.bf16.mxu0 0
      %8931 = vmatpush1.bf16.msra.mxu0 0
      %8932 = vmatprep.subr.bf16.mxu0 0
      %8933 = vmatpush1.bf16.msra.mxu0 0
      %8934 = vmatprep.subr.bf16.mxu0 0
      %8935 = vmatpush1.bf16.msra.mxu0 0
      %8936 = vmatprep.subr.bf16.mxu0 0
      %8937 = vmatpush1.bf16.msra.mxu0 0
      %8938 = vmatprep.subr.bf16.mxu0 0
      %8939 = vmatpush1.bf16.msra.mxu0 0
      %8940 = vmatprep.subr.bf16.mxu0 0
      %8941 = vmatpush1.bf16.msra.mxu0 0
      %8942 = vmatprep.subr.bf16.mxu0 0
      %8943 = vmatpush1.bf16.msra.mxu0 0
      %8944 = vmatprep.subr.bf16.mxu0 0
      %8945 = vmatpush1.bf16.msra.mxu0 0
      %8946 = vmatprep.mubr.bf16.mxu0 0
      %8947 = vmatmul.mubr.bf16.gmra.mrb[0].mxu0 %v8867
      %v8948 = vpop.f32.mrb[0].mxu0
      %v8949 = vadd.f32 0.0, %v8948
      %v8950 = vpop.f32.mrb[0].mxu0
      %v8951 = vpop.f32.mrb[0].mxu0
      %v8952 = vadd.f32 0.0, %v8951
      %v8953 = vpop.f32.mrb[0].mxu0
      %8954 = vmatprep.mubr.bf16.mxu0 0
      %8955 = vmatmul.mubr.bf16.gmra.mrb[0].mxu0 %v8870
      %v8956 = vpop.f32.mrb[0].mxu0
      %v8957 = vadd.f32 0.0, %v8956
      %v8958 = vpop.f32.mrb[0].mxu0
      %v8959 = vpop.f32.mrb[0].mxu0
      %v8960 = vadd.f32 0.0, %v8959
      %v8961 = vpop.f32.mrb[0].mxu0
      %8962 = vmatprep.mubr.bf16.mxu0 0
      %8963 = vmatmul.mubr.bf16.gmra.mrb[0].mxu0 %v8873
      %v8964 = vpop.f32.mrb[0].mxu0
      %v8965 = vadd.f32 0.0, %v8964
      %v8966 = vpop.f32.mrb[0].mxu0
      %v8967 = vpop.f32.mrb[0].mxu0
      %v8968 = vadd.f32 0.0, %v8967
      %v8969 = vpop.f32.mrb[0].mxu0
      %8970 = vmatprep.mubr.bf16.mxu0 0
      %8971 = vmatmul.mubr.bf16.gmra.mrb[0].mxu0 %v8876
      %v8972 = vpop.f32.mrb[0].mxu0
      %v8973 = vadd.f32 0.0, %v8972
      %v8974 = vpop.f32.mrb[0].mxu0
      %v8975 = vpop.f32.mrb[0].mxu0
      %v8976 = vadd.f32 0.0, %v8975
      %v8977 = vpop.f32.mrb[0].mxu0
      %8978 = vmatprep.mubr.bf16.mxu0 0
      %8979 = vmatmul.mubr.bf16.gmra.mrb[0].mxu0 %v8879
      %v8980 = vpop.f32.mrb[0].mxu0
      %v8981 = vadd.f32 0.0, %v8980
      %v8982 = vpop.f32.mrb[0].mxu0
      %v8983 = vpop.f32.mrb[0].mxu0
      %v8984 = vadd.f32 0.0, %v8983
      %v8985 = vpop.f32.mrb[0].mxu0
      %8986 = vmatprep.mubr.bf16.mxu0 0
      %8987 = vmatmul.mubr.bf16.gmra.mrb[0].mxu0 %v8882
      %v8988 = vpop.f32.mrb[0].mxu0
      %v8989 = vadd.f32 0.0, %v8988
      %v8990 = vpop.f32.mrb[0].mxu0
      %v8991 = vpop.f32.mrb[0].mxu0
      %v8992 = vadd.f32 0.0, %v8991
      %v8993 = vpop.f32.mrb[0].mxu0
      %8994 = vmatprep.mubr.bf16.mxu0 0
      %8995 = vmatmul.mubr.bf16.gmra.mrb[0].mxu0 %v8885
      %v8996 = vpop.f32.mrb[0].mxu0
      %v8997 = vadd.f32 0.0, %v8996
      %v8998 = vpop.f32.mrb[0].mxu0
      %v8999 = vpop.f32.mrb[0].mxu0
      %v9000 = vadd.f32 0.0, %v8999
      %v9001 = vpop.f32.mrb[0].mxu0
      %9002 = vmatprep.mubr.bf16.mxu0 0
      %9003 = vmatmul.mubr.bf16.gmra.mrb[0].mxu0 %v8888
      %v9004 = vpop.f32.mrb[0].mxu0
      %v9005 = vadd.f32 0.0, %v9004
      %v9006 = vpop.f32.mrb[0].mxu0
      %v9007 = vpop.f32.mrb[0].mxu0
      %v9008 = vadd.f32 0.0, %v9007
      %v9009 = vpop.f32.mrb[0].mxu0
      %9010 = vmatprep.mubr.bf16.mxu0 0
      %9011 = vmatmul.mubr.bf16.gmra.mrb[0].mxu0 %v8891
      %v9012 = vpop.f32.mrb[0].mxu0
      %v9013 = vadd.f32 0.0, %v9012
      %v9014 = vpop.f32.mrb[0].mxu0
      %v9015 = vpop.f32.mrb[0].mxu0
      %v9016 = vadd.f32 0.0, %v9015
      %v9017 = vpop.f32.mrb[0].mxu0
      %9018 = vmatprep.mubr.bf16.mxu0 0
      %9019 = vmatmul.mubr.bf16.gmra.mrb[0].mxu0 %v8894
      %v9020 = vpop.f32.mrb[0].mxu0
      %v9021 = vadd.f32 0.0, %v9020
      %v9022 = vpop.f32.mrb[0].mxu0
      %v9023 = vpop.f32.mrb[0].mxu0
      %v9024 = vadd.f32 0.0, %v9023
      %v9025 = vpop.f32.mrb[0].mxu0
      %9026 = vmatprep.mubr.bf16.mxu0 0
      %9027 = vmatmul.mubr.bf16.gmra.mrb[0].mxu0 %v8897
      %v9028 = vpop.f32.mrb[0].mxu0
      %v9029 = vadd.f32 0.0, %v9028
      %v9030 = vpop.f32.mrb[0].mxu0
      %v9031 = vpop.f32.mrb[0].mxu0
      %v9032 = vadd.f32 0.0, %v9031
      %v9033 = vpop.f32.mrb[0].mxu0
      %9034 = vmatprep.mubr.bf16.mxu0 0
      %9035 = vmatmul.mubr.bf16.gmra.mrb[0].mxu0 %v8900
      %v9036 = vpop.f32.mrb[0].mxu0
      %v9037 = vadd.f32 0.0, %v9036
      %v9038 = vpop.f32.mrb[0].mxu0
      %v9039 = vpop.f32.mrb[0].mxu0
      %v9040 = vadd.f32 0.0, %v9039
      %v9041 = vpop.f32.mrb[0].mxu0
      %9042 = vmatprep.mubr.bf16.mxu0 0
      %9043 = vmatmul.mubr.bf16.gmra.mrb[0].mxu0 %v8903
      %v9044 = vpop.f32.mrb[0].mxu0
      %v9045 = vadd.f32 0.0, %v9044
      %v9046 = vpop.f32.mrb[0].mxu0
      %v9047 = vpop.f32.mrb[0].mxu0
      %v9048 = vadd.f32 0.0, %v9047
      %v9049 = vpop.f32.mrb[0].mxu0
      %9050 = vmatprep.mubr.bf16.mxu0 0
      %9051 = vmatmul.mubr.bf16.gmra.mrb[0].mxu0 %v8906
      %v9052 = vpop.f32.mrb[0].mxu0
      %v9053 = vadd.f32 0.0, %v9052
      %v9054 = vpop.f32.mrb[0].mxu0
      %v9055 = vpop.f32.mrb[0].mxu0
      %v9056 = vadd.f32 0.0, %v9055
      %v9057 = vpop.f32.mrb[0].mxu0
      %9058 = vmatprep.mubr.bf16.mxu0 0
      %9059 = vmatmul.mubr.bf16.gmra.mrb[0].mxu0 %v8909
      %v9060 = vpop.f32.mrb[0].mxu0
      %v9061 = vadd.f32 0.0, %v9060
      %v9062 = vpop.f32.mrb[0].mxu0
      %v9063 = vpop.f32.mrb[0].mxu0
      %v9064 = vadd.f32 0.0, %v9063
      %v9065 = vpop.f32.mrb[0].mxu0
      %9066 = vmatprep.mubr.bf16.mxu0 0
      %9067 = vmatmul.mubr.bf16.gmra.mrb[0].mxu0 %v8912
      %v9068 = vpop.f32.mrb[0].mxu0
      %v9069 = vadd.f32 0.0, %v9068
      %v9070 = vpop.f32.mrb[0].mxu0
      %v9071 = vpop.f32.mrb[0].mxu0
      %v9072 = vadd.f32 0.0, %v9071
      %v9073 = vpop.f32.mrb[0].mxu0
      %9074 = vdwg.mxu0
      %v9075 = vadd.f32 %v8338, %v8949
      %v9076 = vadd.f32 %v8339, %v8952
      %v9077 = vadd.f32 %v8340, %v8957
      %v9078 = vadd.f32 %v8341, %v8960
      %v9079 = vadd.f32 %v8342, %v8965
      %v9080 = vadd.f32 %v8343, %v8968
      %v9081 = vadd.f32 %v8344, %v8973
      %v9082 = vadd.f32 %v8345, %v8976
      %v9083 = vadd.f32 %v8346, %v8981
      %v9084 = vadd.f32 %v8347, %v8984
      %v9085 = vadd.f32 %v8348, %v8989
      %v9086 = vadd.f32 %v8349, %v8992
      %v9087 = vadd.f32 %v8350, %v8997
      %v9088 = vadd.f32 %v8351, %v9000
      %v9089 = vadd.f32 %v8352, %v9005
      %v9090 = vadd.f32 %v8353, %v9008
      %v9091 = vadd.f32 %v8354, %v9013
      %v9092 = vadd.f32 %v8355, %v9016
      %v9093 = vadd.f32 %v8356, %v9021
      %v9094 = vadd.f32 %v8357, %v9024
      %v9095 = vadd.f32 %v8358, %v9029
      %v9096 = vadd.f32 %v8359, %v9032
      %v9097 = vadd.f32 %v8360, %v9037
      %v9098 = vadd.f32 %v8361, %v9040
      %v9099 = vadd.f32 %v8362, %v9045
      %v9100 = vadd.f32 %v8363, %v9048
      %v9101 = vadd.f32 %v8364, %v9053
      %v9102 = vadd.f32 %v8365, %v9056
      %v9103 = vadd.f32 %v8366, %v9061
      %v9104 = vadd.f32 %v8367, %v9064
      %v9105 = vadd.f32 %v8368, %v9069
      %v9106 = vadd.f32 %v8369, %v9072
      %v9107 = vld [vmem:[%s8000] sm:$0xe]
      %v9108 = vld [vmem:[%s8000 + $0xc] sm:$0xe]
      %v9109 = vld [vmem:[%s8000 + $0x18] sm:$0xe]
      %v9110 = vld [vmem:[%s8000 + $0x24] sm:$0xe]
      %v9111 = vld [vmem:[%s8000 + $0x30] sm:$0xe]
      %v9112 = vld [vmem:[%s8000 + $0x3c] sm:$0xe]
      %v9113 = vld [vmem:[%s8000 + $0x48] sm:$0xe]
      %v9114 = vld [vmem:[%s8000 + $0x54] sm:$0xe]
      %v9115 = vld [vmem:[%s8000 + $0x60] sm:$0xe]
      %v9116 = vld [vmem:[%s8000 + $0x6c] sm:$0xe]
      %v9117 = vld [vmem:[%s8000 + $0x78] sm:$0xe]
      %v9118 = vld [vmem:[%s8000 + $0x84] sm:$0xe]
      %v9119 = vld [vmem:[%s8000 + $0x90] sm:$0xe]
      %v9120 = vld [vmem:[%s8000 + $0x9c] sm:$0xe]
      %v9121 = vld [vmem:[%s8000 + $0xa8] sm:$0xe]
      %v9122 = vld [vmem:[%s8000 + $0xb4] sm:$0xe]
      %v9171 = vrot.slane %v9107, 5
      %v9172 = vrot.slane %v9171, 4
      %v9173 = vrot.slane %v8371, 5
      %v9174 = vsel %vm1945, %v9172, %v9173
      %v9175 = vrot.slane %v9173, 4
      %v9176 = vrot.slane %v8372, 5
      %v9177 = vsel %vm1945, %v9175, %v9176
      %v9178 = vrot.slane %v9108, 5
      %v9179 = vrot.slane %v9178, 4
      %v9180 = vrot.slane %v8374, 5
      %v9181 = vsel %vm1945, %v9179, %v9180
      %v9182 = vrot.slane %v9180, 4
      %v9183 = vrot.slane %v8375, 5
      %v9184 = vsel %vm1945, %v9182, %v9183
      %v9185 = vrot.slane %v9109, 5
      %v9186 = vrot.slane %v9185, 4
      %v9187 = vrot.slane %v8377, 5
      %v9188 = vsel %vm1945, %v9186, %v9187
      %v9189 = vrot.slane %v9187, 4
      %v9190 = vrot.slane %v8378, 5
      %v9191 = vsel %vm1945, %v9189, %v9190
      %v9192 = vrot.slane %v9110, 5
      %v9193 = vrot.slane %v9192, 4
      %v9194 = vrot.slane %v8380, 5
      %v9195 = vsel %vm1945, %v9193, %v9194
      %v9196 = vrot.slane %v9194, 4
      %v9197 = vrot.slane %v8381, 5
      %v9198 = vsel %vm1945, %v9196, %v9197
      %v9199 = vrot.slane %v9111, 5
      %v9200 = vrot.slane %v9199, 4
      %v9201 = vrot.slane %v8383, 5
      %v9202 = vsel %vm1945, %v9200, %v9201
      %v9203 = vrot.slane %v9201, 4
      %v9204 = vrot.slane %v8384, 5
      %v9205 = vsel %vm1945, %v9203, %v9204
      %v9206 = vrot.slane %v9112, 5
      %v9207 = vrot.slane %v9206, 4
      %v9208 = vrot.slane %v8386, 5
      %v9209 = vsel %vm1945, %v9207, %v9208
      %v9210 = vrot.slane %v9208, 4
      %v9211 = vrot.slane %v8387, 5
      %v9212 = vsel %vm1945, %v9210, %v9211
      %v9213 = vrot.slane %v9113, 5
      %v9214 = vrot.slane %v9213, 4
      %v9215 = vrot.slane %v8389, 5
      %v9216 = vsel %vm1945, %v9214, %v9215
      %v9217 = vrot.slane %v9215, 4
      %v9218 = vrot.slane %v8390, 5
      %v9219 = vsel %vm1945, %v9217, %v9218
      %v9220 = vrot.slane %v9114, 5
      %v9221 = vrot.slane %v9220, 4
      %v9222 = vrot.slane %v8392, 5
      %v9223 = vsel %vm1945, %v9221, %v9222
      %v9224 = vrot.slane %v9222, 4
      %v9225 = vrot.slane %v8393, 5
      %v9226 = vsel %vm1945, %v9224, %v9225
      %v9227 = vrot.slane %v9115, 5
      %v9228 = vrot.slane %v9227, 4
      %v9229 = vrot.slane %v8395, 5
      %v9230 = vsel %vm1945, %v9228, %v9229
      %v9231 = vrot.slane %v9229, 4
      %v9232 = vrot.slane %v8396, 5
      %v9233 = vsel %vm1945, %v9231, %v9232
      %v9234 = vrot.slane %v9116, 5
      %v9235 = vrot.slane %v9234, 4
      %v9236 = vrot.slane %v8398, 5
      %v9237 = vsel %vm1945, %v9235, %v9236
      %v9238 = vrot.slane %v9236, 4
      %v9239 = vrot.slane %v8399, 5
      %v9240 = vsel %vm1945, %v9238, %v9239
      %v9241 = vrot.slane %v9117, 5
      %v9242 = vrot.slane %v9241, 4
      %v9243 = vrot.slane %v8401, 5
      %v9244 = vsel %vm1945, %v9242, %v9243
      %v9245 = vrot.slane %v9243, 4
      %v9246 = vrot.slane %v8402, 5
      %v9247 = vsel %vm1945, %v9245, %v9246
      %v9248 = vrot.slane %v9118, 5
      %v9249 = vrot.slane %v9248, 4
      %v9250 = vrot.slane %v8404, 5
      %v9251 = vsel %vm1945, %v9249, %v9250
      %v9252 = vrot.slane %v9250, 4
      %v9253 = vrot.slane %v8405, 5
      %v9254 = vsel %vm1945, %v9252, %v9253
      %v9255 = vrot.slane %v9119, 5
      %v9256 = vrot.slane %v9255, 4
      %v9257 = vrot.slane %v8407, 5
      %v9258 = vsel %vm1945, %v9256, %v9257
      %v9259 = vrot.slane %v9257, 4
      %v9260 = vrot.slane %v8408, 5
      %v9261 = vsel %vm1945, %v9259, %v9260
      %v9262 = vrot.slane %v9120, 5
      %v9263 = vrot.slane %v9262, 4
      %v9264 = vrot.slane %v8410, 5
      %v9265 = vsel %vm1945, %v9263, %v9264
      %v9266 = vrot.slane %v9264, 4
      %v9267 = vrot.slane %v8411, 5
      %v9268 = vsel %vm1945, %v9266, %v9267
      %v9269 = vrot.slane %v9121, 5
      %v9270 = vrot.slane %v9269, 4
      %v9271 = vrot.slane %v8413, 5
      %v9272 = vsel %vm1945, %v9270, %v9271
      %v9273 = vrot.slane %v9271, 4
      %v9274 = vrot.slane %v8414, 5
      %v9275 = vsel %vm1945, %v9273, %v9274
      %v9276 = vrot.slane %v9122, 5
      %v9277 = vrot.slane %v9276, 4
      %v9278 = vrot.slane %v8416, 5
      %v9279 = vsel %vm1945, %v9277, %v9278
      %v9280 = vrot.slane %v9278, 4
      %v9281 = vrot.slane %v8417, 5
      %v9282 = vsel %vm1945, %v9280, %v9281
      %v9283 = vld [vmem:[%s5 + $0x50] sm:$0xf]
      %v9284 = vld [vmem:[%s5 + $0x54] sm:$0xf]
      %v9285 = vld [vmem:[%s5 + $0x58] sm:$0xf]
      %v9286 = vld [vmem:[%s5 + $0x5c] sm:$0xf]
      %v9287 = vunpack.c.l.b16 %v9174
      %v9288 = vunpack.c.l.b16 %v9177
      %v9289 = vunpack.c.l.b16 %v9181
      %v9290 = vunpack.c.l.b16 %v9184
      %v9291 = vunpack.c.l.b16 %v9188
      %v9292 = vunpack.c.l.b16 %v9191
      %v9293 = vunpack.c.l.b16 %v9195
      %v9294 = vunpack.c.l.b16 %v9198
      %v9295 = vunpack.c.l.b16 %v9202
      %v9296 = vunpack.c.l.b16 %v9205
      %v9297 = vunpack.c.l.b16 %v9209
      %v9298 = vunpack.c.l.b16 %v9212
      %v9299 = vunpack.c.l.b16 %v9216
      %v9300 = vunpack.c.l.b16 %v9219
      %v9301 = vunpack.c.l.b16 %v9223
      %v9302 = vunpack.c.l.b16 %v9226
      %v9303 = vunpack.c.l.b16 %v9230
      %v9304 = vunpack.c.l.b16 %v9233
      %v9305 = vunpack.c.l.b16 %v9237
      %v9306 = vunpack.c.l.b16 %v9240
      %v9307 = vunpack.c.l.b16 %v9244
      %v9308 = vunpack.c.l.b16 %v9247
      %v9309 = vunpack.c.l.b16 %v9251
      %v9310 = vunpack.c.l.b16 %v9254
      %v9311 = vunpack.c.l.b16 %v9258
      %v9312 = vunpack.c.l.b16 %v9261
      %v9313 = vunpack.c.l.b16 %v9265
      %v9314 = vunpack.c.l.b16 %v9268
      %v9315 = vunpack.c.l.b16 %v9272
      %v9316 = vunpack.c.l.b16 %v9275
      %v9317 = vunpack.c.l.b16 %v9279
      %v9318 = vunpack.c.l.b16 %v9282
      %v9319 = vpack.c.b16 %v9288, %v9287
      %v9320 = vpack.c.b16 %v9290, %v9289
      %v9321 = vpack.c.b16 %v9292, %v9291
      %v9322 = vpack.c.b16 %v9294, %v9293
      %v9323 = vpack.c.b16 %v9296, %v9295
      %v9324 = vpack.c.b16 %v9298, %v9297
      %v9325 = vpack.c.b16 %v9300, %v9299
      %v9326 = vpack.c.b16 %v9302, %v9301
      %v9327 = vpack.c.b16 %v9304, %v9303
      %v9328 = vpack.c.b16 %v9306, %v9305
      %v9329 = vpack.c.b16 %v9308, %v9307
      %v9330 = vpack.c.b16 %v9310, %v9309
      %v9331 = vpack.c.b16 %v9312, %v9311
      %v9332 = vpack.c.b16 %v9314, %v9313
      %v9333 = vpack.c.b16 %v9316, %v9315
      %v9334 = vpack.c.b16 %v9318, %v9317
      %v9339 = vunpack.c.l.b16 %v9283
      %v9340 = vunpack.c.l.b16 %v9284
      %v9341 = vunpack.c.l.b16 %v9285
      %v9342 = vunpack.c.l.b16 %v9286
      %v9343 = vpack.c.b16 %v9340, %v9339
      %v9344 = vpack.c.b16 %v9342, %v9341
      %v9348 = vsel %vm1384, %v9319, 0
      %v9351 = vsel %vm1384, %v9320, 0
      %v9354 = vsel %vm1384, %v9321, 0
      %v9357 = vsel %vm1384, %v9322, 0
      %v9360 = vsel %vm1384, %v9323, 0
      %v9363 = vsel %vm1384, %v9324, 0
      %v9366 = vsel %vm1384, %v9325, 0
      %v9369 = vsel %vm1384, %v9326, 0
      %v9372 = vsel %vm1384, %v9327, 0
      %v9375 = vsel %vm1384, %v9328, 0
      %v9378 = vsel %vm1384, %v9329, 0
      %v9381 = vsel %vm1384, %v9330, 0
      %v9384 = vsel %vm1384, %v9331, 0
      %v9387 = vsel %vm1384, %v9332, 0
      %v9390 = vsel %vm1384, %v9333, 0
      %v9393 = vsel %vm1384, %v9334, 0
      %9395 = vmatprep.subr.bf16.mxu0 0
      %9396 = vmatpush1.bf16.msra.mxu0 %v9343
      %9397 = vmatprep.subr.bf16.mxu0 0
      %9398 = vmatpush1.bf16.msra.mxu0 %v9344
      %9399 = vmatprep.subr.bf16.mxu0 0
      %9400 = vmatpush1.bf16.msra.mxu0 0
      %9401 = vmatprep.subr.bf16.mxu0 0
      %9402 = vmatpush1.bf16.msra.mxu0 0
      %9403 = vmatprep.subr.bf16.mxu0 0
      %9404 = vmatpush1.bf16.msra.mxu0 0
      %9405 = vmatprep.subr.bf16.mxu0 0
      %9406 = vmatpush1.bf16.msra.mxu0 0
      %9407 = vmatprep.subr.bf16.mxu0 0
      %9408 = vmatpush1.bf16.msra.mxu0 0
      %9409 = vmatprep.subr.bf16.mxu0 0
      %9410 = vmatpush1.bf16.msra.mxu0 0
      %9411 = vmatprep.subr.bf16.mxu0 0
      %9412 = vmatpush1.bf16.msra.mxu0 0
      %9413 = vmatprep.subr.bf16.mxu0 0
      %9414 = vmatpush1.bf16.msra.mxu0 0
      %9415 = vmatprep.subr.bf16.mxu0 0
      %9416 = vmatpush1.bf16.msra.mxu0 0
      %9417 = vmatprep.subr.bf16.mxu0 0
      %9418 = vmatpush1.bf16.msra.mxu0 0
      %9419 = vmatprep.subr.bf16.mxu0 0
      %9420 = vmatpush1.bf16.msra.mxu0 0
      %9421 = vmatprep.subr.bf16.mxu0 0
      %9422 = vmatpush1.bf16.msra.mxu0 0
      %9423 = vmatprep.subr.bf16.mxu0 0
      %9424 = vmatpush1.bf16.msra.mxu0 0
      %9425 = vmatprep.subr.bf16.mxu0 0
      %9426 = vmatpush1.bf16.msra.mxu0 0
      %9427 = vmatprep.mubr.bf16.mxu0 0
      %9428 = vmatmul.mubr.bf16.gmra.mrb[0].mxu0 %v9348
      %v9429 = vpop.f32.mrb[0].mxu0
      %v9430 = vadd.f32 0.0, %v9429
      %v9431 = vpop.f32.mrb[0].mxu0
      %v9432 = vpop.f32.mrb[0].mxu0
      %v9433 = vadd.f32 0.0, %v9432
      %v9434 = vpop.f32.mrb[0].mxu0
      %9435 = vmatprep.mubr.bf16.mxu0 0
      %9436 = vmatmul.mubr.bf16.gmra.mrb[0].mxu0 %v9351
      %v9437 = vpop.f32.mrb[0].mxu0
      %v9438 = vadd.f32 0.0, %v9437
      %v9439 = vpop.f32.mrb[0].mxu0
      %v9440 = vpop.f32.mrb[0].mxu0
      %v9441 = vadd.f32 0.0, %v9440
      %v9442 = vpop.f32.mrb[0].mxu0
      %9443 = vmatprep.mubr.bf16.mxu0 0
      %9444 = vmatmul.mubr.bf16.gmra.mrb[0].mxu0 %v9354
      %v9445 = vpop.f32.mrb[0].mxu0
      %v9446 = vadd.f32 0.0, %v9445
      %v9447 = vpop.f32.mrb[0].mxu0
      %v9448 = vpop.f32.mrb[0].mxu0
      %v9449 = vadd.f32 0.0, %v9448
      %v9450 = vpop.f32.mrb[0].mxu0
      %9451 = vmatprep.mubr.bf16.mxu0 0
      %9452 = vmatmul.mubr.bf16.gmra.mrb[0].mxu0 %v9357
      %v9453 = vpop.f32.mrb[0].mxu0
      %v9454 = vadd.f32 0.0, %v9453
      %v9455 = vpop.f32.mrb[0].mxu0
      %v9456 = vpop.f32.mrb[0].mxu0
      %v9457 = vadd.f32 0.0, %v9456
      %v9458 = vpop.f32.mrb[0].mxu0
      %9459 = vmatprep.mubr.bf16.mxu0 0
      %9460 = vmatmul.mubr.bf16.gmra.mrb[0].mxu0 %v9360
      %v9461 = vpop.f32.mrb[0].mxu0
      %v9462 = vadd.f32 0.0, %v9461
      %v9463 = vpop.f32.mrb[0].mxu0
      %v9464 = vpop.f32.mrb[0].mxu0
      %v9465 = vadd.f32 0.0, %v9464
      %v9466 = vpop.f32.mrb[0].mxu0
      %9467 = vmatprep.mubr.bf16.mxu0 0
      %9468 = vmatmul.mubr.bf16.gmra.mrb[0].mxu0 %v9363
      %v9469 = vpop.f32.mrb[0].mxu0
      %v9470 = vadd.f32 0.0, %v9469
      %v9471 = vpop.f32.mrb[0].mxu0
      %v9472 = vpop.f32.mrb[0].mxu0
      %v9473 = vadd.f32 0.0, %v9472
      %v9474 = vpop.f32.mrb[0].mxu0
      %9475 = vmatprep.mubr.bf16.mxu0 0
      %9476 = vmatmul.mubr.bf16.gmra.mrb[0].mxu0 %v9366
      %v9477 = vpop.f32.mrb[0].mxu0
      %v9478 = vadd.f32 0.0, %v9477
      %v9479 = vpop.f32.mrb[0].mxu0
      %v9480 = vpop.f32.mrb[0].mxu0
      %v9481 = vadd.f32 0.0, %v9480
      %v9482 = vpop.f32.mrb[0].mxu0
      %9483 = vmatprep.mubr.bf16.mxu0 0
      %9484 = vmatmul.mubr.bf16.gmra.mrb[0].mxu0 %v9369
      %v9485 = vpop.f32.mrb[0].mxu0
      %v9486 = vadd.f32 0.0, %v9485
      %v9487 = vpop.f32.mrb[0].mxu0
      %v9488 = vpop.f32.mrb[0].mxu0
      %v9489 = vadd.f32 0.0, %v9488
      %v9490 = vpop.f32.mrb[0].mxu0
      %9491 = vmatprep.mubr.bf16.mxu0 0
      %9492 = vmatmul.mubr.bf16.gmra.mrb[0].mxu0 %v9372
      %v9493 = vpop.f32.mrb[0].mxu0
      %v9494 = vadd.f32 0.0, %v9493
      %v9495 = vpop.f32.mrb[0].mxu0
      %v9496 = vpop.f32.mrb[0].mxu0
      %v9497 = vadd.f32 0.0, %v9496
      %v9498 = vpop.f32.mrb[0].mxu0
      %9499 = vmatprep.mubr.bf16.mxu0 0
      %9500 = vmatmul.mubr.bf16.gmra.mrb[0].mxu0 %v9375
      %v9501 = vpop.f32.mrb[0].mxu0
      %v9502 = vadd.f32 0.0, %v9501
      %v9503 = vpop.f32.mrb[0].mxu0
      %v9504 = vpop.f32.mrb[0].mxu0
      %v9505 = vadd.f32 0.0, %v9504
      %v9506 = vpop.f32.mrb[0].mxu0
      %9507 = vmatprep.mubr.bf16.mxu0 0
      %9508 = vmatmul.mubr.bf16.gmra.mrb[0].mxu0 %v9378
      %v9509 = vpop.f32.mrb[0].mxu0
      %v9510 = vadd.f32 0.0, %v9509
      %v9511 = vpop.f32.mrb[0].mxu0
      %v9512 = vpop.f32.mrb[0].mxu0
      %v9513 = vadd.f32 0.0, %v9512
      %v9514 = vpop.f32.mrb[0].mxu0
      %9515 = vmatprep.mubr.bf16.mxu0 0
      %9516 = vmatmul.mubr.bf16.gmra.mrb[0].mxu0 %v9381
      %v9517 = vpop.f32.mrb[0].mxu0
      %v9518 = vadd.f32 0.0, %v9517
      %v9519 = vpop.f32.mrb[0].mxu0
      %v9520 = vpop.f32.mrb[0].mxu0
      %v9521 = vadd.f32 0.0, %v9520
      %v9522 = vpop.f32.mrb[0].mxu0
      %9523 = vmatprep.mubr.bf16.mxu0 0
      %9524 = vmatmul.mubr.bf16.gmra.mrb[0].mxu0 %v9384
      %v9525 = vpop.f32.mrb[0].mxu0
      %v9526 = vadd.f32 0.0, %v9525
      %v9527 = vpop.f32.mrb[0].mxu0
      %v9528 = vpop.f32.mrb[0].mxu0
      %v9529 = vadd.f32 0.0, %v9528
      %v9530 = vpop.f32.mrb[0].mxu0
      %9531 = vmatprep.mubr.bf16.mxu0 0
      %9532 = vmatmul.mubr.bf16.gmra.mrb[0].mxu0 %v9387
      %v9533 = vpop.f32.mrb[0].mxu0
      %v9534 = vadd.f32 0.0, %v9533
      %v9535 = vpop.f32.mrb[0].mxu0
      %v9536 = vpop.f32.mrb[0].mxu0
      %v9537 = vadd.f32 0.0, %v9536
      %v9538 = vpop.f32.mrb[0].mxu0
      %9539 = vmatprep.mubr.bf16.mxu0 0
      %9540 = vmatmul.mubr.bf16.gmra.mrb[0].mxu0 %v9390
      %v9541 = vpop.f32.mrb[0].mxu0
      %v9542 = vadd.f32 0.0, %v9541
      %v9543 = vpop.f32.mrb[0].mxu0
      %v9544 = vpop.f32.mrb[0].mxu0
      %v9545 = vadd.f32 0.0, %v9544
      %v9546 = vpop.f32.mrb[0].mxu0
      %9547 = vmatprep.mubr.bf16.mxu0 0
      %9548 = vmatmul.mubr.bf16.gmra.mrb[0].mxu0 %v9393
      %v9549 = vpop.f32.mrb[0].mxu0
      %v9550 = vadd.f32 0.0, %v9549
      %v9551 = vpop.f32.mrb[0].mxu0
      %v9552 = vpop.f32.mrb[0].mxu0
      %v9553 = vadd.f32 0.0, %v9552
      %v9554 = vpop.f32.mrb[0].mxu0
      %9555 = vdwg.mxu0
      %v9556 = vadd.f32 %v9075, %v9430
      %v9557 = vadd.f32 %v9076, %v9433
      %v9558 = vadd.f32 %v9077, %v9438
      %v9559 = vadd.f32 %v9078, %v9441
      %v9560 = vadd.f32 %v9079, %v9446
      %v9561 = vadd.f32 %v9080, %v9449
      %v9562 = vadd.f32 %v9081, %v9454
      %v9563 = vadd.f32 %v9082, %v9457
      %v9564 = vadd.f32 %v9083, %v9462
      %v9565 = vadd.f32 %v9084, %v9465
      %v9566 = vadd.f32 %v9085, %v9470
      %v9567 = vadd.f32 %v9086, %v9473
      %v9568 = vadd.f32 %v9087, %v9478
      %v9569 = vadd.f32 %v9088, %v9481
      %v9570 = vadd.f32 %v9089, %v9486
      %v9571 = vadd.f32 %v9090, %v9489
      %v9572 = vadd.f32 %v9091, %v9494
      %v9573 = vadd.f32 %v9092, %v9497
      %v9574 = vadd.f32 %v9093, %v9502
      %v9575 = vadd.f32 %v9094, %v9505
      %v9576 = vadd.f32 %v9095, %v9510
      %v9577 = vadd.f32 %v9096, %v9513
      %v9578 = vadd.f32 %v9097, %v9518
      %v9579 = vadd.f32 %v9098, %v9521
      %v9580 = vadd.f32 %v9099, %v9526
      %v9581 = vadd.f32 %v9100, %v9529
      %v9582 = vadd.f32 %v9101, %v9534
      %v9583 = vadd.f32 %v9102, %v9537
      %v9584 = vadd.f32 %v9103, %v9542
      %v9585 = vadd.f32 %v9104, %v9545
      %v9586 = vadd.f32 %v9105, %v9550
      %v9587 = vadd.f32 %v9106, %v9553
      %s9588 = scalar_lea.vmem [#allocation3], 24
      %v9589 = vld [vmem:[%s9588] sm:$0xf]
      %v9590 = vld [vmem:[%s9588 + $0x4] sm:$0xf]
      %v9591 = vld [vmem:[%s9588 + $0xc] sm:$0xf]
      %v9592 = vld [vmem:[%s9588 + $0x10] sm:$0xf]
      %v9593 = vld [vmem:[%s9588 + $0x18] sm:$0xf]
      %v9594 = vld [vmem:[%s9588 + $0x1c] sm:$0xf]
      %v9595 = vld [vmem:[%s9588 + $0x24] sm:$0xf]
      %v9596 = vld [vmem:[%s9588 + $0x28] sm:$0xf]
      %v9597 = vld [vmem:[%s9588 + $0x30] sm:$0xf]
      %v9598 = vld [vmem:[%s9588 + $0x34] sm:$0xf]
      %v9599 = vld [vmem:[%s9588 + $0x3c] sm:$0xf]
      %v9600 = vld [vmem:[%s9588 + $0x40] sm:$0xf]
      %v9601 = vld [vmem:[%s9588 + $0x48] sm:$0xf]
      %v9602 = vld [vmem:[%s9588 + $0x4c] sm:$0xf]
      %v9603 = vld [vmem:[%s9588 + $0x54] sm:$0xf]
      %v9604 = vld [vmem:[%s9588 + $0x58] sm:$0xf]
      %v9605 = vld [vmem:[%s9588 + $0x60] sm:$0xf]
      %v9606 = vld [vmem:[%s9588 + $0x64] sm:$0xf]
      %v9607 = vld [vmem:[%s9588 + $0x6c] sm:$0xf]
      %v9608 = vld [vmem:[%s9588 + $0x70] sm:$0xf]
      %v9609 = vld [vmem:[%s9588 + $0x78] sm:$0xf]
      %v9610 = vld [vmem:[%s9588 + $0x7c] sm:$0xf]
      %v9611 = vld [vmem:[%s9588 + $0x84] sm:$0xf]
      %v9612 = vld [vmem:[%s9588 + $0x88] sm:$0xf]
      %v9613 = vld [vmem:[%s9588 + $0x90] sm:$0xf]
      %v9614 = vld [vmem:[%s9588 + $0x94] sm:$0xf]
      %v9615 = vld [vmem:[%s9588 + $0x9c] sm:$0xf]
      %v9616 = vld [vmem:[%s9588 + $0xa0] sm:$0xf]
      %v9617 = vld [vmem:[%s9588 + $0xa8] sm:$0xf]
      %v9618 = vld [vmem:[%s9588 + $0xac] sm:$0xf]
      %v9619 = vld [vmem:[%s9588 + $0xb4] sm:$0xf]
      %v9620 = vld [vmem:[%s9588 + $0xb8] sm:$0xf]
      %v9621 = vld [vmem:[%s5 + $0x60] sm:$0xf]
      %v9622 = vld [vmem:[%s5 + $0x64] sm:$0xf]
      %v9623 = vld [vmem:[%s5 + $0x68] sm:$0xf]
      %v9624 = vld [vmem:[%s5 + $0x6c] sm:$0xf]
      %v9657 = vunpack.c.l.b16 %v9589
      %v9658 = vunpack.c.l.b16 %v9590
      %v9659 = vunpack.c.l.b16 %v9591
      %v9660 = vunpack.c.l.b16 %v9592
      %v9661 = vunpack.c.l.b16 %v9593
      %v9662 = vunpack.c.l.b16 %v9594
      %v9663 = vunpack.c.l.b16 %v9595
      %v9664 = vunpack.c.l.b16 %v9596
      %v9665 = vunpack.c.l.b16 %v9597
      %v9666 = vunpack.c.l.b16 %v9598
      %v9667 = vunpack.c.l.b16 %v9599
      %v9668 = vunpack.c.l.b16 %v9600
      %v9669 = vunpack.c.l.b16 %v9601
      %v9670 = vunpack.c.l.b16 %v9602
      %v9671 = vunpack.c.l.b16 %v9603
      %v9672 = vunpack.c.l.b16 %v9604
      %v9673 = vunpack.c.l.b16 %v9605
      %v9674 = vunpack.c.l.b16 %v9606
      %v9675 = vunpack.c.l.b16 %v9607
      %v9676 = vunpack.c.l.b16 %v9608
      %v9677 = vunpack.c.l.b16 %v9609
      %v9678 = vunpack.c.l.b16 %v9610
      %v9679 = vunpack.c.l.b16 %v9611
      %v9680 = vunpack.c.l.b16 %v9612
      %v9681 = vunpack.c.l.b16 %v9613
      %v9682 = vunpack.c.l.b16 %v9614
      %v9683 = vunpack.c.l.b16 %v9615
      %v9684 = vunpack.c.l.b16 %v9616
      %v9685 = vunpack.c.l.b16 %v9617
      %v9686 = vunpack.c.l.b16 %v9618
      %v9687 = vunpack.c.l.b16 %v9619
      %v9688 = vunpack.c.l.b16 %v9620
      %v9689 = vpack.c.b16 %v9658, %v9657
      %v9690 = vpack.c.b16 %v9660, %v9659
      %v9691 = vpack.c.b16 %v9662, %v9661
      %v9692 = vpack.c.b16 %v9664, %v9663
      %v9693 = vpack.c.b16 %v9666, %v9665
      %v9694 = vpack.c.b16 %v9668, %v9667
      %v9695 = vpack.c.b16 %v9670, %v9669
      %v9696 = vpack.c.b16 %v9672, %v9671
      %v9697 = vpack.c.b16 %v9674, %v9673
      %v9698 = vpack.c.b16 %v9676, %v9675
      %v9699 = vpack.c.b16 %v9678, %v9677
      %v9700 = vpack.c.b16 %v9680, %v9679
      %v9701 = vpack.c.b16 %v9682, %v9681
      %v9702 = vpack.c.b16 %v9684, %v9683
      %v9703 = vpack.c.b16 %v9686, %v9685
      %v9704 = vpack.c.b16 %v9688, %v9687
      %v9709 = vunpack.c.l.b16 %v9621
      %v9710 = vunpack.c.l.b16 %v9622
      %v9711 = vunpack.c.l.b16 %v9623
      %v9712 = vunpack.c.l.b16 %v9624
      %v9713 = vpack.c.b16 %v9710, %v9709
      %v9714 = vpack.c.b16 %v9712, %v9711
      %v9718 = vsel %vm1384, %v9689, 0
      %v9721 = vsel %vm1384, %v9690, 0
      %v9724 = vsel %vm1384, %v9691, 0
      %v9727 = vsel %vm1384, %v9692, 0
      %v9730 = vsel %vm1384, %v9693, 0
      %v9733 = vsel %vm1384, %v9694, 0
      %v9736 = vsel %vm1384, %v9695, 0
      %v9739 = vsel %vm1384, %v9696, 0
      %v9742 = vsel %vm1384, %v9697, 0
      %v9745 = vsel %vm1384, %v9698, 0
      %v9748 = vsel %vm1384, %v9699, 0
      %v9751 = vsel %vm1384, %v9700, 0
      %v9754 = vsel %vm1384, %v9701, 0
      %v9757 = vsel %vm1384, %v9702, 0
      %v9760 = vsel %vm1384, %v9703, 0
      %v9763 = vsel %vm1384, %v9704, 0
      %9765 = vmatprep.subr.bf16.mxu0 0
      %9766 = vmatpush1.bf16.msra.mxu0 %v9713
      %9767 = vmatprep.subr.bf16.mxu0 0
      %9768 = vmatpush1.bf16.msra.mxu0 %v9714
      %9769 = vmatprep.subr.bf16.mxu0 0
      %9770 = vmatpush1.bf16.msra.mxu0 0
      %9771 = vmatprep.subr.bf16.mxu0 0
      %9772 = vmatpush1.bf16.msra.mxu0 0
      %9773 = vmatprep.subr.bf16.mxu0 0
      %9774 = vmatpush1.bf16.msra.mxu0 0
      %9775 = vmatprep.subr.bf16.mxu0 0
      %9776 = vmatpush1.bf16.msra.mxu0 0
      %9777 = vmatprep.subr.bf16.mxu0 0
      %9778 = vmatpush1.bf16.msra.mxu0 0
      %9779 = vmatprep.subr.bf16.mxu0 0
      %9780 = vmatpush1.bf16.msra.mxu0 0
      %9781 = vmatprep.subr.bf16.mxu0 0
      %9782 = vmatpush1.bf16.msra.mxu0 0
      %9783 = vmatprep.subr.bf16.mxu0 0
      %9784 = vmatpush1.bf16.msra.mxu0 0
      %9785 = vmatprep.subr.bf16.mxu0 0
      %9786 = vmatpush1.bf16.msra.mxu0 0
      %9787 = vmatprep.subr.bf16.mxu0 0
      %9788 = vmatpush1.bf16.msra.mxu0 0
      %9789 = vmatprep.subr.bf16.mxu0 0
      %9790 = vmatpush1.bf16.msra.mxu0 0
      %9791 = vmatprep.subr.bf16.mxu0 0
      %9792 = vmatpush1.bf16.msra.mxu0 0
      %9793 = vmatprep.subr.bf16.mxu0 0
      %9794 = vmatpush1.bf16.msra.mxu0 0
      %9795 = vmatprep.subr.bf16.mxu0 0
      %9796 = vmatpush1.bf16.msra.mxu0 0
      %9797 = vmatprep.mubr.bf16.mxu0 0
      %9798 = vmatmul.mubr.bf16.gmra.mrb[0].mxu0 %v9718
      %v9799 = vpop.f32.mrb[0].mxu0
      %v9800 = vadd.f32 0.0, %v9799
      %v9801 = vpop.f32.mrb[0].mxu0
      %v9802 = vpop.f32.mrb[0].mxu0
      %v9803 = vadd.f32 0.0, %v9802
      %v9804 = vpop.f32.mrb[0].mxu0
      %9805 = vmatprep.mubr.bf16.mxu0 0
      %9806 = vmatmul.mubr.bf16.gmra.mrb[0].mxu0 %v9721
      %v9807 = vpop.f32.mrb[0].mxu0
      %v9808 = vadd.f32 0.0, %v9807
      %v9809 = vpop.f32.mrb[0].mxu0
      %v9810 = vpop.f32.mrb[0].mxu0
      %v9811 = vadd.f32 0.0, %v9810
      %v9812 = vpop.f32.mrb[0].mxu0
      %9813 = vmatprep.mubr.bf16.mxu0 0
      %9814 = vmatmul.mubr.bf16.gmra.mrb[0].mxu0 %v9724
      %v9815 = vpop.f32.mrb[0].mxu0
      %v9816 = vadd.f32 0.0, %v9815
      %v9817 = vpop.f32.mrb[0].mxu0
      %v9818 = vpop.f32.mrb[0].mxu0
      %v9819 = vadd.f32 0.0, %v9818
      %v9820 = vpop.f32.mrb[0].mxu0
      %9821 = vmatprep.mubr.bf16.mxu0 0
      %9822 = vmatmul.mubr.bf16.gmra.mrb[0].mxu0 %v9727
      %v9823 = vpop.f32.mrb[0].mxu0
      %v9824 = vadd.f32 0.0, %v9823
      %v9825 = vpop.f32.mrb[0].mxu0
      %v9826 = vpop.f32.mrb[0].mxu0
      %v9827 = vadd.f32 0.0, %v9826
      %v9828 = vpop.f32.mrb[0].mxu0
      %9829 = vmatprep.mubr.bf16.mxu0 0
      %9830 = vmatmul.mubr.bf16.gmra.mrb[0].mxu0 %v9730
      %v9831 = vpop.f32.mrb[0].mxu0
      %v9832 = vadd.f32 0.0, %v9831
      %v9833 = vpop.f32.mrb[0].mxu0
      %v9834 = vpop.f32.mrb[0].mxu0
      %v9835 = vadd.f32 0.0, %v9834
      %v9836 = vpop.f32.mrb[0].mxu0
      %9837 = vmatprep.mubr.bf16.mxu0 0
      %9838 = vmatmul.mubr.bf16.gmra.mrb[0].mxu0 %v9733
      %v9839 = vpop.f32.mrb[0].mxu0
      %v9840 = vadd.f32 0.0, %v9839
      %v9841 = vpop.f32.mrb[0].mxu0
      %v9842 = vpop.f32.mrb[0].mxu0
      %v9843 = vadd.f32 0.0, %v9842
      %v9844 = vpop.f32.mrb[0].mxu0
      %9845 = vmatprep.mubr.bf16.mxu0 0
      %9846 = vmatmul.mubr.bf16.gmra.mrb[0].mxu0 %v9736
      %v9847 = vpop.f32.mrb[0].mxu0
      %v9848 = vadd.f32 0.0, %v9847
      %v9849 = vpop.f32.mrb[0].mxu0
      %v9850 = vpop.f32.mrb[0].mxu0
      %v9851 = vadd.f32 0.0, %v9850
      %v9852 = vpop.f32.mrb[0].mxu0
      %9853 = vmatprep.mubr.bf16.mxu0 0
      %9854 = vmatmul.mubr.bf16.gmra.mrb[0].mxu0 %v9739
      %v9855 = vpop.f32.mrb[0].mxu0
      %v9856 = vadd.f32 0.0, %v9855
      %v9857 = vpop.f32.mrb[0].mxu0
      %v9858 = vpop.f32.mrb[0].mxu0
      %v9859 = vadd.f32 0.0, %v9858
      %v9860 = vpop.f32.mrb[0].mxu0
      %9861 = vmatprep.mubr.bf16.mxu0 0
      %9862 = vmatmul.mubr.bf16.gmra.mrb[0].mxu0 %v9742
      %v9863 = vpop.f32.mrb[0].mxu0
      %v9864 = vadd.f32 0.0, %v9863
      %v9865 = vpop.f32.mrb[0].mxu0
      %v9866 = vpop.f32.mrb[0].mxu0
      %v9867 = vadd.f32 0.0, %v9866
      %v9868 = vpop.f32.mrb[0].mxu0
      %9869 = vmatprep.mubr.bf16.mxu0 0
      %9870 = vmatmul.mubr.bf16.gmra.mrb[0].mxu0 %v9745
      %v9871 = vpop.f32.mrb[0].mxu0
      %v9872 = vadd.f32 0.0, %v9871
      %v9873 = vpop.f32.mrb[0].mxu0
      %v9874 = vpop.f32.mrb[0].mxu0
      %v9875 = vadd.f32 0.0, %v9874
      %v9876 = vpop.f32.mrb[0].mxu0
      %9877 = vmatprep.mubr.bf16.mxu0 0
      %9878 = vmatmul.mubr.bf16.gmra.mrb[0].mxu0 %v9748
      %v9879 = vpop.f32.mrb[0].mxu0
      %v9880 = vadd.f32 0.0, %v9879
      %v9881 = vpop.f32.mrb[0].mxu0
      %v9882 = vpop.f32.mrb[0].mxu0
      %v9883 = vadd.f32 0.0, %v9882
      %v9884 = vpop.f32.mrb[0].mxu0
      %9885 = vmatprep.mubr.bf16.mxu0 0
      %9886 = vmatmul.mubr.bf16.gmra.mrb[0].mxu0 %v9751
      %v9887 = vpop.f32.mrb[0].mxu0
      %v9888 = vadd.f32 0.0, %v9887
      %v9889 = vpop.f32.mrb[0].mxu0
      %v9890 = vpop.f32.mrb[0].mxu0
      %v9891 = vadd.f32 0.0, %v9890
      %v9892 = vpop.f32.mrb[0].mxu0
      %9893 = vmatprep.mubr.bf16.mxu0 0
      %9894 = vmatmul.mubr.bf16.gmra.mrb[0].mxu0 %v9754
      %v9895 = vpop.f32.mrb[0].mxu0
      %v9896 = vadd.f32 0.0, %v9895
      %v9897 = vpop.f32.mrb[0].mxu0
      %v9898 = vpop.f32.mrb[0].mxu0
      %v9899 = vadd.f32 0.0, %v9898
      %v9900 = vpop.f32.mrb[0].mxu0
      %9901 = vmatprep.mubr.bf16.mxu0 0
      %9902 = vmatmul.mubr.bf16.gmra.mrb[0].mxu0 %v9757
      %v9903 = vpop.f32.mrb[0].mxu0
      %v9904 = vadd.f32 0.0, %v9903
      %v9905 = vpop.f32.mrb[0].mxu0
      %v9906 = vpop.f32.mrb[0].mxu0
      %v9907 = vadd.f32 0.0, %v9906
      %v9908 = vpop.f32.mrb[0].mxu0
      %9909 = vmatprep.mubr.bf16.mxu0 0
      %9910 = vmatmul.mubr.bf16.gmra.mrb[0].mxu0 %v9760
      %v9911 = vpop.f32.mrb[0].mxu0
      %v9912 = vadd.f32 0.0, %v9911
      %v9913 = vpop.f32.mrb[0].mxu0
      %v9914 = vpop.f32.mrb[0].mxu0
      %v9915 = vadd.f32 0.0, %v9914
      %v9916 = vpop.f32.mrb[0].mxu0
      %9917 = vmatprep.mubr.bf16.mxu0 0
      %9918 = vmatmul.mubr.bf16.gmra.mrb[0].mxu0 %v9763
      %v9919 = vpop.f32.mrb[0].mxu0
      %v9920 = vadd.f32 0.0, %v9919
      %v9921 = vpop.f32.mrb[0].mxu0
      %v9922 = vpop.f32.mrb[0].mxu0
      %v9923 = vadd.f32 0.0, %v9922
      %v9924 = vpop.f32.mrb[0].mxu0
      %9925 = vdwg.mxu0
      %v9926 = vadd.f32 %v9556, %v9800
      %v9927 = vadd.f32 %v9557, %v9803
      %v9928 = vadd.f32 %v9558, %v9808
      %v9929 = vadd.f32 %v9559, %v9811
      %v9930 = vadd.f32 %v9560, %v9816
      %v9931 = vadd.f32 %v9561, %v9819
      %v9932 = vadd.f32 %v9562, %v9824
      %v9933 = vadd.f32 %v9563, %v9827
      %v9934 = vadd.f32 %v9564, %v9832
      %v9935 = vadd.f32 %v9565, %v9835
      %v9936 = vadd.f32 %v9566, %v9840
      %v9937 = vadd.f32 %v9567, %v9843
      %v9938 = vadd.f32 %v9568, %v9848
      %v9939 = vadd.f32 %v9569, %v9851
      %v9940 = vadd.f32 %v9570, %v9856
      %v9941 = vadd.f32 %v9571, %v9859
      %v9942 = vadd.f32 %v9572, %v9864
      %v9943 = vadd.f32 %v9573, %v9867
      %v9944 = vadd.f32 %v9574, %v9872
      %v9945 = vadd.f32 %v9575, %v9875
      %v9946 = vadd.f32 %v9576, %v9880
      %v9947 = vadd.f32 %v9577, %v9883
      %v9948 = vadd.f32 %v9578, %v9888
      %v9949 = vadd.f32 %v9579, %v9891
      %v9950 = vadd.f32 %v9580, %v9896
      %v9951 = vadd.f32 %v9581, %v9899
      %v9952 = vadd.f32 %v9582, %v9904
      %v9953 = vadd.f32 %v9583, %v9907
      %v9954 = vadd.f32 %v9584, %v9912
      %v9955 = vadd.f32 %v9585, %v9915
      %v9956 = vadd.f32 %v9586, %v9920
      %v9957 = vadd.f32 %v9587, %v9923
      %v9958 = vld [vmem:[%s9588] sm:$0xf]
      %v9959 = vld [vmem:[%s9588 + $0x4] sm:$0xf]
      %v9960 = vld [vmem:[%s9588 + $0x8] sm:$0x1]
      %v9961 = vld [vmem:[%s9588 + $0xc] sm:$0xf]
      %v9962 = vld [vmem:[%s9588 + $0x10] sm:$0xf]
      %v9963 = vld [vmem:[%s9588 + $0x14] sm:$0x1]
      %v9964 = vld [vmem:[%s9588 + $0x18] sm:$0xf]
      %v9965 = vld [vmem:[%s9588 + $0x1c] sm:$0xf]
      %v9966 = vld [vmem:[%s9588 + $0x20] sm:$0x1]
      %v9967 = vld [vmem:[%s9588 + $0x24] sm:$0xf]
      %v9968 = vld [vmem:[%s9588 + $0x28] sm:$0xf]
      %v9969 = vld [vmem:[%s9588 + $0x2c] sm:$0x1]
      %v9970 = vld [vmem:[%s9588 + $0x30] sm:$0xf]
      %v9971 = vld [vmem:[%s9588 + $0x34] sm:$0xf]
      %v9972 = vld [vmem:[%s9588 + $0x38] sm:$0x1]
      %v9973 = vld [vmem:[%s9588 + $0x3c] sm:$0xf]
      %v9974 = vld [vmem:[%s9588 + $0x40] sm:$0xf]
      %v9975 = vld [vmem:[%s9588 + $0x44] sm:$0x1]
      %v9976 = vld [vmem:[%s9588 + $0x48] sm:$0xf]
      %v9977 = vld [vmem:[%s9588 + $0x4c] sm:$0xf]
      %v9978 = vld [vmem:[%s9588 + $0x50] sm:$0x1]
      %v9979 = vld [vmem:[%s9588 + $0x54] sm:$0xf]
      %v9980 = vld [vmem:[%s9588 + $0x58] sm:$0xf]
      %v9981 = vld [vmem:[%s9588 + $0x5c] sm:$0x1]
      %v9982 = vld [vmem:[%s9588 + $0x60] sm:$0xf]
      %v9983 = vld [vmem:[%s9588 + $0x64] sm:$0xf]
      %v9984 = vld [vmem:[%s9588 + $0x68] sm:$0x1]
      %v9985 = vld [vmem:[%s9588 + $0x6c] sm:$0xf]
      %v9986 = vld [vmem:[%s9588 + $0x70] sm:$0xf]
      %v9987 = vld [vmem:[%s9588 + $0x74] sm:$0x1]
      %v9988 = vld [vmem:[%s9588 + $0x78] sm:$0xf]
      %v9989 = vld [vmem:[%s9588 + $0x7c] sm:$0xf]
      %v9990 = vld [vmem:[%s9588 + $0x80] sm:$0x1]
      %v9991 = vld [vmem:[%s9588 + $0x84] sm:$0xf]
      %v9992 = vld [vmem:[%s9588 + $0x88] sm:$0xf]
      %v9993 = vld [vmem:[%s9588 + $0x8c] sm:$0x1]
      %v9994 = vld [vmem:[%s9588 + $0x90] sm:$0xf]
      %v9995 = vld [vmem:[%s9588 + $0x94] sm:$0xf]
      %v9996 = vld [vmem:[%s9588 + $0x98] sm:$0x1]
      %v9997 = vld [vmem:[%s9588 + $0x9c] sm:$0xf]
      %v9998 = vld [vmem:[%s9588 + $0xa0] sm:$0xf]
      %v9999 = vld [vmem:[%s9588 + $0xa4] sm:$0x1]
      %v10000 = vld [vmem:[%s9588 + $0xa8] sm:$0xf]
      %v10001 = vld [vmem:[%s9588 + $0xac] sm:$0xf]
      %v10002 = vld [vmem:[%s9588 + $0xb0] sm:$0x1]
      %v10003 = vld [vmem:[%s9588 + $0xb4] sm:$0xf]
      %v10004 = vld [vmem:[%s9588 + $0xb8] sm:$0xf]
      %v10005 = vld [vmem:[%s9588 + $0xbc] sm:$0x1]
      %v10007 = vshrl.u32 %v9958, 16
      %v10009 = vrot.slane %v10007, 4
      %v10010 = vshll.u32 %v9958, 16
      %v10012 = vrot.slane %v10010, 5
      %v10013 = vor.u32 %v10009, %v10012
      %v10014 = vrot.slane %v10013, 4
      %v10016 = vshll.u32 %v9959, 16
      %v10018 = vrot.slane %v10016, 5
      %v10019 = vsel %vm935, %v10014, %v10018
      %v10020 = vshrl.u32 %v9959, 16
      %v10022 = vrot.slane %v10020, 4
      %v10023 = vor.u32 %v10022, %v10018
      %v10024 = vrot.slane %v10023, 4
      %v10026 = vshll.u32 %v9960, 16
      %v10028 = vrot.slane %v10026, 5
      %v10029 = vsel %vm935, %v10024, %v10028
      %v10031 = vshrl.u32 %v9961, 16
      %v10033 = vrot.slane %v10031, 4
      %v10034 = vshll.u32 %v9961, 16
      %v10036 = vrot.slane %v10034, 5
      %v10037 = vor.u32 %v10033, %v10036
      %v10038 = vrot.slane %v10037, 4
      %v10040 = vshll.u32 %v9962, 16
      %v10042 = vrot.slane %v10040, 5
      %v10043 = vsel %vm935, %v10038, %v10042
      %v10044 = vshrl.u32 %v9962, 16
      %v10046 = vrot.slane %v10044, 4
      %v10047 = vor.u32 %v10046, %v10042
      %v10048 = vrot.slane %v10047, 4
      %v10050 = vshll.u32 %v9963, 16
      %v10052 = vrot.slane %v10050, 5
      %v10053 = vsel %vm935, %v10048, %v10052
      %v10055 = vshrl.u32 %v9964, 16
      %v10057 = vrot.slane %v10055, 4
      %v10058 = vshll.u32 %v9964, 16
      %v10060 = vrot.slane %v10058, 5
      %v10061 = vor.u32 %v10057, %v10060
      %v10062 = vrot.slane %v10061, 4
      %v10064 = vshll.u32 %v9965, 16
      %v10066 = vrot.slane %v10064, 5
      %v10067 = vsel %vm935, %v10062, %v10066
      %v10068 = vshrl.u32 %v9965, 16
      %v10070 = vrot.slane %v10068, 4
      %v10071 = vor.u32 %v10070, %v10066
      %v10072 = vrot.slane %v10071, 4
      %v10074 = vshll.u32 %v9966, 16
      %v10076 = vrot.slane %v10074, 5
      %v10077 = vsel %vm935, %v10072, %v10076
      %v10079 = vshrl.u32 %v9967, 16
      %v10081 = vrot.slane %v10079, 4
      %v10082 = vshll.u32 %v9967, 16
      %v10084 = vrot.slane %v10082, 5
      %v10085 = vor.u32 %v10081, %v10084
      %v10086 = vrot.slane %v10085, 4
      %v10088 = vshll.u32 %v9968, 16
      %v10090 = vrot.slane %v10088, 5
      %v10091 = vsel %vm935, %v10086, %v10090
      %v10092 = vshrl.u32 %v9968, 16
      %v10094 = vrot.slane %v10092, 4
      %v10095 = vor.u32 %v10094, %v10090
      %v10096 = vrot.slane %v10095, 4
      %v10098 = vshll.u32 %v9969, 16
      %v10100 = vrot.slane %v10098, 5
      %v10101 = vsel %vm935, %v10096, %v10100
      %v10103 = vshrl.u32 %v9970, 16
      %v10105 = vrot.slane %v10103, 4
      %v10106 = vshll.u32 %v9970, 16
      %v10108 = vrot.slane %v10106, 5
      %v10109 = vor.u32 %v10105, %v10108
      %v10110 = vrot.slane %v10109, 4
      %v10112 = vshll.u32 %v9971, 16
      %v10114 = vrot.slane %v10112, 5
      %v10115 = vsel %vm935, %v10110, %v10114
      %v10116 = vshrl.u32 %v9971, 16
      %v10118 = vrot.slane %v10116, 4
      %v10119 = vor.u32 %v10118, %v10114
      %v10120 = vrot.slane %v10119, 4
      %v10122 = vshll.u32 %v9972, 16
      %v10124 = vrot.slane %v10122, 5
      %v10125 = vsel %vm935, %v10120, %v10124
      %v10127 = vshrl.u32 %v9973, 16
      %v10129 = vrot.slane %v10127, 4
      %v10130 = vshll.u32 %v9973, 16
      %v10132 = vrot.slane %v10130, 5
      %v10133 = vor.u32 %v10129, %v10132
      %v10134 = vrot.slane %v10133, 4
      %v10136 = vshll.u32 %v9974, 16
      %v10138 = vrot.slane %v10136, 5
      %v10139 = vsel %vm935, %v10134, %v10138
      %v10140 = vshrl.u32 %v9974, 16
      %v10142 = vrot.slane %v10140, 4
      %v10143 = vor.u32 %v10142, %v10138
      %v10144 = vrot.slane %v10143, 4
      %v10146 = vshll.u32 %v9975, 16
      %v10148 = vrot.slane %v10146, 5
      %v10149 = vsel %vm935, %v10144, %v10148
      %v10151 = vshrl.u32 %v9976, 16
      %v10153 = vrot.slane %v10151, 4
      %v10154 = vshll.u32 %v9976, 16
      %v10156 = vrot.slane %v10154, 5
      %v10157 = vor.u32 %v10153, %v10156
      %v10158 = vrot.slane %v10157, 4
      %v10160 = vshll.u32 %v9977, 16
      %v10162 = vrot.slane %v10160, 5
      %v10163 = vsel %vm935, %v10158, %v10162
      %v10164 = vshrl.u32 %v9977, 16
      %v10166 = vrot.slane %v10164, 4
      %v10167 = vor.u32 %v10166, %v10162
      %v10168 = vrot.slane %v10167, 4
      %v10170 = vshll.u32 %v9978, 16
      %v10172 = vrot.slane %v10170, 5
      %v10173 = vsel %vm935, %v10168, %v10172
      %v10175 = vshrl.u32 %v9979, 16
      %v10177 = vrot.slane %v10175, 4
      %v10178 = vshll.u32 %v9979, 16
      %v10180 = vrot.slane %v10178, 5
      %v10181 = vor.u32 %v10177, %v10180
      %v10182 = vrot.slane %v10181, 4
      %v10184 = vshll.u32 %v9980, 16
      %v10186 = vrot.slane %v10184, 5
      %v10187 = vsel %vm935, %v10182, %v10186
      %v10188 = vshrl.u32 %v9980, 16
      %v10190 = vrot.slane %v10188, 4
      %v10191 = vor.u32 %v10190, %v10186
      %v10192 = vrot.slane %v10191, 4
      %v10194 = vshll.u32 %v9981, 16
      %v10196 = vrot.slane %v10194, 5
      %v10197 = vsel %vm935, %v10192, %v10196
      %v10199 = vshrl.u32 %v9982, 16
      %v10201 = vrot.slane %v10199, 4
      %v10202 = vshll.u32 %v9982, 16
      %v10204 = vrot.slane %v10202, 5
      %v10205 = vor.u32 %v10201, %v10204
      %v10206 = vrot.slane %v10205, 4
      %v10208 = vshll.u32 %v9983, 16
      %v10210 = vrot.slane %v10208, 5
      %v10211 = vsel %vm935, %v10206, %v10210
      %v10212 = vshrl.u32 %v9983, 16
      %v10214 = vrot.slane %v10212, 4
      %v10215 = vor.u32 %v10214, %v10210
      %v10216 = vrot.slane %v10215, 4
      %v10218 = vshll.u32 %v9984, 16
      %v10220 = vrot.slane %v10218, 5
      %v10221 = vsel %vm935, %v10216, %v10220
      %v10223 = vshrl.u32 %v9985, 16
      %v10225 = vrot.slane %v10223, 4
      %v10226 = vshll.u32 %v9985, 16
      %v10228 = vrot.slane %v10226, 5
      %v10229 = vor.u32 %v10225, %v10228
      %v10230 = vrot.slane %v10229, 4
      %v10232 = vshll.u32 %v9986, 16
      %v10234 = vrot.slane %v10232, 5
      %v10235 = vsel %vm935, %v10230, %v10234
      %v10236 = vshrl.u32 %v9986, 16
      %v10238 = vrot.slane %v10236, 4
      %v10239 = vor.u32 %v10238, %v10234
      %v10240 = vrot.slane %v10239, 4
      %v10242 = vshll.u32 %v9987, 16
      %v10244 = vrot.slane %v10242, 5
      %v10245 = vsel %vm935, %v10240, %v10244
      %v10247 = vshrl.u32 %v9988, 16
      %v10249 = vrot.slane %v10247, 4
      %v10250 = vshll.u32 %v9988, 16
      %v10252 = vrot.slane %v10250, 5
      %v10253 = vor.u32 %v10249, %v10252
      %v10254 = vrot.slane %v10253, 4
      %v10256 = vshll.u32 %v9989, 16
      %v10258 = vrot.slane %v10256, 5
      %v10259 = vsel %vm935, %v10254, %v10258
      %v10260 = vshrl.u32 %v9989, 16
      %v10262 = vrot.slane %v10260, 4
      %v10263 = vor.u32 %v10262, %v10258
      %v10264 = vrot.slane %v10263, 4
      %v10266 = vshll.u32 %v9990, 16
      %v10268 = vrot.slane %v10266, 5
      %v10269 = vsel %vm935, %v10264, %v10268
      %v10271 = vshrl.u32 %v9991, 16
      %v10273 = vrot.slane %v10271, 4
      %v10274 = vshll.u32 %v9991, 16
      %v10276 = vrot.slane %v10274, 5
      %v10277 = vor.u32 %v10273, %v10276
      %v10278 = vrot.slane %v10277, 4
      %v10280 = vshll.u32 %v9992, 16
      %v10282 = vrot.slane %v10280, 5
      %v10283 = vsel %vm935, %v10278, %v10282
      %v10284 = vshrl.u32 %v9992, 16
      %v10286 = vrot.slane %v10284, 4
      %v10287 = vor.u32 %v10286, %v10282
      %v10288 = vrot.slane %v10287, 4
      %v10290 = vshll.u32 %v9993, 16
      %v10292 = vrot.slane %v10290, 5
      %v10293 = vsel %vm935, %v10288, %v10292
      %v10295 = vshrl.u32 %v9994, 16
      %v10297 = vrot.slane %v10295, 4
      %v10298 = vshll.u32 %v9994, 16
      %v10300 = vrot.slane %v10298, 5
      %v10301 = vor.u32 %v10297, %v10300
      %v10302 = vrot.slane %v10301, 4
      %v10304 = vshll.u32 %v9995, 16
      %v10306 = vrot.slane %v10304, 5
      %v10307 = vsel %vm935, %v10302, %v10306
      %v10308 = vshrl.u32 %v9995, 16
      %v10310 = vrot.slane %v10308, 4
      %v10311 = vor.u32 %v10310, %v10306
      %v10312 = vrot.slane %v10311, 4
      %v10314 = vshll.u32 %v9996, 16
      %v10316 = vrot.slane %v10314, 5
      %v10317 = vsel %vm935, %v10312, %v10316
      %v10319 = vshrl.u32 %v9997, 16
      %v10321 = vrot.slane %v10319, 4
      %v10322 = vshll.u32 %v9997, 16
      %v10324 = vrot.slane %v10322, 5
      %v10325 = vor.u32 %v10321, %v10324
      %v10326 = vrot.slane %v10325, 4
      %v10328 = vshll.u32 %v9998, 16
      %v10330 = vrot.slane %v10328, 5
      %v10331 = vsel %vm935, %v10326, %v10330
      %v10332 = vshrl.u32 %v9998, 16
      %v10334 = vrot.slane %v10332, 4
      %v10335 = vor.u32 %v10334, %v10330
      %v10336 = vrot.slane %v10335, 4
      %v10338 = vshll.u32 %v9999, 16
      %v10340 = vrot.slane %v10338, 5
      %v10341 = vsel %vm935, %v10336, %v10340
      %v10343 = vshrl.u32 %v10000, 16
      %v10345 = vrot.slane %v10343, 4
      %v10346 = vshll.u32 %v10000, 16
      %v10348 = vrot.slane %v10346, 5
      %v10349 = vor.u32 %v10345, %v10348
      %v10350 = vrot.slane %v10349, 4
      %v10352 = vshll.u32 %v10001, 16
      %v10354 = vrot.slane %v10352, 5
      %v10355 = vsel %vm935, %v10350, %v10354
      %v10356 = vshrl.u32 %v10001, 16
      %v10358 = vrot.slane %v10356, 4
      %v10359 = vor.u32 %v10358, %v10354
      %v10360 = vrot.slane %v10359, 4
      %v10362 = vshll.u32 %v10002, 16
      %v10364 = vrot.slane %v10362, 5
      %v10365 = vsel %vm935, %v10360, %v10364
      %v10367 = vshrl.u32 %v10003, 16
      %v10369 = vrot.slane %v10367, 4
      %v10370 = vshll.u32 %v10003, 16
      %v10372 = vrot.slane %v10370, 5
      %v10373 = vor.u32 %v10369, %v10372
      %v10374 = vrot.slane %v10373, 4
      %v10376 = vshll.u32 %v10004, 16
      %v10378 = vrot.slane %v10376, 5
      %v10379 = vsel %vm935, %v10374, %v10378
      %v10380 = vshrl.u32 %v10004, 16
      %v10382 = vrot.slane %v10380, 4
      %v10383 = vor.u32 %v10382, %v10378
      %v10384 = vrot.slane %v10383, 4
      %v10386 = vshll.u32 %v10005, 16
      %v10388 = vrot.slane %v10386, 5
      %v10389 = vsel %vm935, %v10384, %v10388
      %v10390 = vld [vmem:[%s5 + $0x70] sm:$0xf]
      %v10391 = vld [vmem:[%s5 + $0x74] sm:$0xf]
      %v10392 = vld [vmem:[%s5 + $0x78] sm:$0xf]
      %v10393 = vld [vmem:[%s5 + $0x7c] sm:$0xf]
      %v10394 = vunpack.c.l.b16 %v10019
      %v10395 = vunpack.c.l.b16 %v10029
      %v10396 = vunpack.c.l.b16 %v10043
      %v10397 = vunpack.c.l.b16 %v10053
      %v10398 = vunpack.c.l.b16 %v10067
      %v10399 = vunpack.c.l.b16 %v10077
      %v10400 = vunpack.c.l.b16 %v10091
      %v10401 = vunpack.c.l.b16 %v10101
      %v10402 = vunpack.c.l.b16 %v10115
      %v10403 = vunpack.c.l.b16 %v10125
      %v10404 = vunpack.c.l.b16 %v10139
      %v10405 = vunpack.c.l.b16 %v10149
      %v10406 = vunpack.c.l.b16 %v10163
      %v10407 = vunpack.c.l.b16 %v10173
      %v10408 = vunpack.c.l.b16 %v10187
      %v10409 = vunpack.c.l.b16 %v10197
      %v10410 = vunpack.c.l.b16 %v10211
      %v10411 = vunpack.c.l.b16 %v10221
      %v10412 = vunpack.c.l.b16 %v10235
      %v10413 = vunpack.c.l.b16 %v10245
      %v10414 = vunpack.c.l.b16 %v10259
      %v10415 = vunpack.c.l.b16 %v10269
      %v10416 = vunpack.c.l.b16 %v10283
      %v10417 = vunpack.c.l.b16 %v10293
      %v10418 = vunpack.c.l.b16 %v10307
      %v10419 = vunpack.c.l.b16 %v10317
      %v10420 = vunpack.c.l.b16 %v10331
      %v10421 = vunpack.c.l.b16 %v10341
      %v10422 = vunpack.c.l.b16 %v10355
      %v10423 = vunpack.c.l.b16 %v10365
      %v10424 = vunpack.c.l.b16 %v10379
      %v10425 = vunpack.c.l.b16 %v10389
      %v10426 = vpack.c.b16 %v10395, %v10394
      %v10427 = vpack.c.b16 %v10397, %v10396
      %v10428 = vpack.c.b16 %v10399, %v10398
      %v10429 = vpack.c.b16 %v10401, %v10400
      %v10430 = vpack.c.b16 %v10403, %v10402
      %v10431 = vpack.c.b16 %v10405, %v10404
      %v10432 = vpack.c.b16 %v10407, %v10406
      %v10433 = vpack.c.b16 %v10409, %v10408
      %v10434 = vpack.c.b16 %v10411, %v10410
      %v10435 = vpack.c.b16 %v10413, %v10412
      %v10436 = vpack.c.b16 %v10415, %v10414
      %v10437 = vpack.c.b16 %v10417, %v10416
      %v10438 = vpack.c.b16 %v10419, %v10418
      %v10439 = vpack.c.b16 %v10421, %v10420
      %v10440 = vpack.c.b16 %v10423, %v10422
      %v10441 = vpack.c.b16 %v10425, %v10424
      %v10446 = vunpack.c.l.b16 %v10390
      %v10447 = vunpack.c.l.b16 %v10391
      %v10448 = vunpack.c.l.b16 %v10392
      %v10449 = vunpack.c.l.b16 %v10393
      %v10450 = vpack.c.b16 %v10447, %v10446
      %v10451 = vpack.c.b16 %v10449, %v10448
      %v10455 = vsel %vm1384, %v10426, 0
      %v10458 = vsel %vm1384, %v10427, 0
      %v10461 = vsel %vm1384, %v10428, 0
      %v10464 = vsel %vm1384, %v10429, 0
      %v10467 = vsel %vm1384, %v10430, 0
      %v10470 = vsel %vm1384, %v10431, 0
      %v10473 = vsel %vm1384, %v10432, 0
      %v10476 = vsel %vm1384, %v10433, 0
      %v10479 = vsel %vm1384, %v10434, 0
      %v10482 = vsel %vm1384, %v10435, 0
      %v10485 = vsel %vm1384, %v10436, 0
      %v10488 = vsel %vm1384, %v10437, 0
      %v10491 = vsel %vm1384, %v10438, 0
      %v10494 = vsel %vm1384, %v10439, 0
      %v10497 = vsel %vm1384, %v10440, 0
      %v10500 = vsel %vm1384, %v10441, 0
      %10502 = vmatprep.subr.bf16.mxu0 0
      %10503 = vmatpush1.bf16.msra.mxu0 %v10450
      %10504 = vmatprep.subr.bf16.mxu0 0
      %10505 = vmatpush1.bf16.msra.mxu0 %v10451
      %10506 = vmatprep.subr.bf16.mxu0 0
      %10507 = vmatpush1.bf16.msra.mxu0 0
      %10508 = vmatprep.subr.bf16.mxu0 0
      %10509 = vmatpush1.bf16.msra.mxu0 0
      %10510 = vmatprep.subr.bf16.mxu0 0
      %10511 = vmatpush1.bf16.msra.mxu0 0
      %10512 = vmatprep.subr.bf16.mxu0 0
      %10513 = vmatpush1.bf16.msra.mxu0 0
      %10514 = vmatprep.subr.bf16.mxu0 0
      %10515 = vmatpush1.bf16.msra.mxu0 0
      %10516 = vmatprep.subr.bf16.mxu0 0
      %10517 = vmatpush1.bf16.msra.mxu0 0
      %10518 = vmatprep.subr.bf16.mxu0 0
      %10519 = vmatpush1.bf16.msra.mxu0 0
      %10520 = vmatprep.subr.bf16.mxu0 0
      %10521 = vmatpush1.bf16.msra.mxu0 0
      %10522 = vmatprep.subr.bf16.mxu0 0
      %10523 = vmatpush1.bf16.msra.mxu0 0
      %10524 = vmatprep.subr.bf16.mxu0 0
      %10525 = vmatpush1.bf16.msra.mxu0 0
      %10526 = vmatprep.subr.bf16.mxu0 0
      %10527 = vmatpush1.bf16.msra.mxu0 0
      %10528 = vmatprep.subr.bf16.mxu0 0
      %10529 = vmatpush1.bf16.msra.mxu0 0
      %10530 = vmatprep.subr.bf16.mxu0 0
      %10531 = vmatpush1.bf16.msra.mxu0 0
      %10532 = vmatprep.subr.bf16.mxu0 0
      %10533 = vmatpush1.bf16.msra.mxu0 0
      %10534 = vmatprep.mubr.bf16.mxu0 0
      %10535 = vmatmul.mubr.bf16.gmra.mrb[0].mxu0 %v10455
      %v10536 = vpop.f32.mrb[0].mxu0
      %v10537 = vadd.f32 0.0, %v10536
      %v10538 = vpop.f32.mrb[0].mxu0
      %v10539 = vpop.f32.mrb[0].mxu0
      %v10540 = vadd.f32 0.0, %v10539
      %v10541 = vpop.f32.mrb[0].mxu0
      %10542 = vmatprep.mubr.bf16.mxu0 0
      %10543 = vmatmul.mubr.bf16.gmra.mrb[0].mxu0 %v10458
      %v10544 = vpop.f32.mrb[0].mxu0
      %v10545 = vadd.f32 0.0, %v10544
      %v10546 = vpop.f32.mrb[0].mxu0
      %v10547 = vpop.f32.mrb[0].mxu0
      %v10548 = vadd.f32 0.0, %v10547
      %v10549 = vpop.f32.mrb[0].mxu0
      %10550 = vmatprep.mubr.bf16.mxu0 0
      %10551 = vmatmul.mubr.bf16.gmra.mrb[0].mxu0 %v10461
      %v10552 = vpop.f32.mrb[0].mxu0
      %v10553 = vadd.f32 0.0, %v10552
      %v10554 = vpop.f32.mrb[0].mxu0
      %v10555 = vpop.f32.mrb[0].mxu0
      %v10556 = vadd.f32 0.0, %v10555
      %v10557 = vpop.f32.mrb[0].mxu0
      %10558 = vmatprep.mubr.bf16.mxu0 0
      %10559 = vmatmul.mubr.bf16.gmra.mrb[0].mxu0 %v10464
      %v10560 = vpop.f32.mrb[0].mxu0
      %v10561 = vadd.f32 0.0, %v10560
      %v10562 = vpop.f32.mrb[0].mxu0
      %v10563 = vpop.f32.mrb[0].mxu0
      %v10564 = vadd.f32 0.0, %v10563
      %v10565 = vpop.f32.mrb[0].mxu0
      %10566 = vmatprep.mubr.bf16.mxu0 0
      %10567 = vmatmul.mubr.bf16.gmra.mrb[0].mxu0 %v10467
      %v10568 = vpop.f32.mrb[0].mxu0
      %v10569 = vadd.f32 0.0, %v10568
      %v10570 = vpop.f32.mrb[0].mxu0
      %v10571 = vpop.f32.mrb[0].mxu0
      %v10572 = vadd.f32 0.0, %v10571
      %v10573 = vpop.f32.mrb[0].mxu0
      %10574 = vmatprep.mubr.bf16.mxu0 0
      %10575 = vmatmul.mubr.bf16.gmra.mrb[0].mxu0 %v10470
      %v10576 = vpop.f32.mrb[0].mxu0
      %v10577 = vadd.f32 0.0, %v10576
      %v10578 = vpop.f32.mrb[0].mxu0
      %v10579 = vpop.f32.mrb[0].mxu0
      %v10580 = vadd.f32 0.0, %v10579
      %v10581 = vpop.f32.mrb[0].mxu0
      %10582 = vmatprep.mubr.bf16.mxu0 0
      %10583 = vmatmul.mubr.bf16.gmra.mrb[0].mxu0 %v10473
      %v10584 = vpop.f32.mrb[0].mxu0
      %v10585 = vadd.f32 0.0, %v10584
      %v10586 = vpop.f32.mrb[0].mxu0
      %v10587 = vpop.f32.mrb[0].mxu0
      %v10588 = vadd.f32 0.0, %v10587
      %v10589 = vpop.f32.mrb[0].mxu0
      %10590 = vmatprep.mubr.bf16.mxu0 0
      %10591 = vmatmul.mubr.bf16.gmra.mrb[0].mxu0 %v10476
      %v10592 = vpop.f32.mrb[0].mxu0
      %v10593 = vadd.f32 0.0, %v10592
      %v10594 = vpop.f32.mrb[0].mxu0
      %v10595 = vpop.f32.mrb[0].mxu0
      %v10596 = vadd.f32 0.0, %v10595
      %v10597 = vpop.f32.mrb[0].mxu0
      %10598 = vmatprep.mubr.bf16.mxu0 0
      %10599 = vmatmul.mubr.bf16.gmra.mrb[0].mxu0 %v10479
      %v10600 = vpop.f32.mrb[0].mxu0
      %v10601 = vadd.f32 0.0, %v10600
      %v10602 = vpop.f32.mrb[0].mxu0
      %v10603 = vpop.f32.mrb[0].mxu0
      %v10604 = vadd.f32 0.0, %v10603
      %v10605 = vpop.f32.mrb[0].mxu0
      %10606 = vmatprep.mubr.bf16.mxu0 0
      %10607 = vmatmul.mubr.bf16.gmra.mrb[0].mxu0 %v10482
      %v10608 = vpop.f32.mrb[0].mxu0
      %v10609 = vadd.f32 0.0, %v10608
      %v10610 = vpop.f32.mrb[0].mxu0
      %v10611 = vpop.f32.mrb[0].mxu0
      %v10612 = vadd.f32 0.0, %v10611
      %v10613 = vpop.f32.mrb[0].mxu0
      %10614 = vmatprep.mubr.bf16.mxu0 0
      %10615 = vmatmul.mubr.bf16.gmra.mrb[0].mxu0 %v10485
      %v10616 = vpop.f32.mrb[0].mxu0
      %v10617 = vadd.f32 0.0, %v10616
      %v10618 = vpop.f32.mrb[0].mxu0
      %v10619 = vpop.f32.mrb[0].mxu0
      %v10620 = vadd.f32 0.0, %v10619
      %v10621 = vpop.f32.mrb[0].mxu0
      %10622 = vmatprep.mubr.bf16.mxu0 0
      %10623 = vmatmul.mubr.bf16.gmra.mrb[0].mxu0 %v10488
      %v10624 = vpop.f32.mrb[0].mxu0
      %v10625 = vadd.f32 0.0, %v10624
      %v10626 = vpop.f32.mrb[0].mxu0
      %v10627 = vpop.f32.mrb[0].mxu0
      %v10628 = vadd.f32 0.0, %v10627
      %v10629 = vpop.f32.mrb[0].mxu0
      %10630 = vmatprep.mubr.bf16.mxu0 0
      %10631 = vmatmul.mubr.bf16.gmra.mrb[0].mxu0 %v10491
      %v10632 = vpop.f32.mrb[0].mxu0
      %v10633 = vadd.f32 0.0, %v10632
      %v10634 = vpop.f32.mrb[0].mxu0
      %v10635 = vpop.f32.mrb[0].mxu0
      %v10636 = vadd.f32 0.0, %v10635
      %v10637 = vpop.f32.mrb[0].mxu0
      %10638 = vmatprep.mubr.bf16.mxu0 0
      %10639 = vmatmul.mubr.bf16.gmra.mrb[0].mxu0 %v10494
      %v10640 = vpop.f32.mrb[0].mxu0
      %v10641 = vadd.f32 0.0, %v10640
      %v10642 = vpop.f32.mrb[0].mxu0
      %v10643 = vpop.f32.mrb[0].mxu0
      %v10644 = vadd.f32 0.0, %v10643
      %v10645 = vpop.f32.mrb[0].mxu0
      %10646 = vmatprep.mubr.bf16.mxu0 0
      %10647 = vmatmul.mubr.bf16.gmra.mrb[0].mxu0 %v10497
      %v10648 = vpop.f32.mrb[0].mxu0
      %v10649 = vadd.f32 0.0, %v10648
      %v10650 = vpop.f32.mrb[0].mxu0
      %v10651 = vpop.f32.mrb[0].mxu0
      %v10652 = vadd.f32 0.0, %v10651
      %v10653 = vpop.f32.mrb[0].mxu0
      %10654 = vmatprep.mubr.bf16.mxu0 0
      %10655 = vmatmul.mubr.bf16.gmra.mrb[0].mxu0 %v10500
      %v10656 = vpop.f32.mrb[0].mxu0
      %v10657 = vadd.f32 0.0, %v10656
      %v10658 = vpop.f32.mrb[0].mxu0
      %v10659 = vpop.f32.mrb[0].mxu0
      %v10660 = vadd.f32 0.0, %v10659
      %v10661 = vpop.f32.mrb[0].mxu0
      %10662 = vdwg.mxu0
      %v10663 = vadd.f32 %v9926, %v10537
      %v10664 = vadd.f32 %v9927, %v10540
      %v10665 = vadd.f32 %v9928, %v10545
      %v10666 = vadd.f32 %v9929, %v10548
      %v10667 = vadd.f32 %v9930, %v10553
      %v10668 = vadd.f32 %v9931, %v10556
      %v10669 = vadd.f32 %v9932, %v10561
      %v10670 = vadd.f32 %v9933, %v10564
      %v10671 = vadd.f32 %v9934, %v10569
      %v10672 = vadd.f32 %v9935, %v10572
      %v10673 = vadd.f32 %v9936, %v10577
      %v10674 = vadd.f32 %v9937, %v10580
      %v10675 = vadd.f32 %v9938, %v10585
      %v10676 = vadd.f32 %v9939, %v10588
      %v10677 = vadd.f32 %v9940, %v10593
      %v10678 = vadd.f32 %v9941, %v10596
      %v10679 = vadd.f32 %v9942, %v10601
      %v10680 = vadd.f32 %v9943, %v10604
      %v10681 = vadd.f32 %v9944, %v10609
      %v10682 = vadd.f32 %v9945, %v10612
      %v10683 = vadd.f32 %v9946, %v10617
      %v10684 = vadd.f32 %v9947, %v10620
      %v10685 = vadd.f32 %v9948, %v10625
      %v10686 = vadd.f32 %v9949, %v10628
      %v10687 = vadd.f32 %v9950, %v10633
      %v10688 = vadd.f32 %v9951, %v10636
      %v10689 = vadd.f32 %v9952, %v10641
      %v10690 = vadd.f32 %v9953, %v10644
      %v10691 = vadd.f32 %v9954, %v10649
      %v10692 = vadd.f32 %v9955, %v10652
      %v10693 = vadd.f32 %v9956, %v10657
      %v10694 = vadd.f32 %v9957, %v10660
      %v10695 = vld [vmem:[%s9588] sm:$0xe]
      %v10696 = vld [vmem:[%s9588 + $0xc] sm:$0xe]
      %v10697 = vld [vmem:[%s9588 + $0x18] sm:$0xe]
      %v10698 = vld [vmem:[%s9588 + $0x24] sm:$0xe]
      %v10699 = vld [vmem:[%s9588 + $0x30] sm:$0xe]
      %v10700 = vld [vmem:[%s9588 + $0x3c] sm:$0xe]
      %v10701 = vld [vmem:[%s9588 + $0x48] sm:$0xe]
      %v10702 = vld [vmem:[%s9588 + $0x54] sm:$0xe]
      %v10703 = vld [vmem:[%s9588 + $0x60] sm:$0xe]
      %v10704 = vld [vmem:[%s9588 + $0x6c] sm:$0xe]
      %v10705 = vld [vmem:[%s9588 + $0x78] sm:$0xe]
      %v10706 = vld [vmem:[%s9588 + $0x84] sm:$0xe]
      %v10707 = vld [vmem:[%s9588 + $0x90] sm:$0xe]
      %v10708 = vld [vmem:[%s9588 + $0x9c] sm:$0xe]
      %v10709 = vld [vmem:[%s9588 + $0xa8] sm:$0xe]
      %v10710 = vld [vmem:[%s9588 + $0xb4] sm:$0xe]
      %v10759 = vrot.slane %v10695, 5
      %v10760 = vrot.slane %v10759, 4
      %v10761 = vrot.slane %v9959, 5
      %v10762 = vsel %vm1945, %v10760, %v10761
      %v10763 = vrot.slane %v10761, 4
      %v10764 = vrot.slane %v9960, 5
      %v10765 = vsel %vm1945, %v10763, %v10764
      %v10766 = vrot.slane %v10696, 5
      %v10767 = vrot.slane %v10766, 4
      %v10768 = vrot.slane %v9962, 5
      %v10769 = vsel %vm1945, %v10767, %v10768
      %v10770 = vrot.slane %v10768, 4
      %v10771 = vrot.slane %v9963, 5
      %v10772 = vsel %vm1945, %v10770, %v10771
      %v10773 = vrot.slane %v10697, 5
      %v10774 = vrot.slane %v10773, 4
      %v10775 = vrot.slane %v9965, 5
      %v10776 = vsel %vm1945, %v10774, %v10775
      %v10777 = vrot.slane %v10775, 4
      %v10778 = vrot.slane %v9966, 5
      %v10779 = vsel %vm1945, %v10777, %v10778
      %v10780 = vrot.slane %v10698, 5
      %v10781 = vrot.slane %v10780, 4
      %v10782 = vrot.slane %v9968, 5
      %v10783 = vsel %vm1945, %v10781, %v10782
      %v10784 = vrot.slane %v10782, 4
      %v10785 = vrot.slane %v9969, 5
      %v10786 = vsel %vm1945, %v10784, %v10785
      %v10787 = vrot.slane %v10699, 5
      %v10788 = vrot.slane %v10787, 4
      %v10789 = vrot.slane %v9971, 5
      %v10790 = vsel %vm1945, %v10788, %v10789
      %v10791 = vrot.slane %v10789, 4
      %v10792 = vrot.slane %v9972, 5
      %v10793 = vsel %vm1945, %v10791, %v10792
      %v10794 = vrot.slane %v10700, 5
      %v10795 = vrot.slane %v10794, 4
      %v10796 = vrot.slane %v9974, 5
      %v10797 = vsel %vm1945, %v10795, %v10796
      %v10798 = vrot.slane %v10796, 4
      %v10799 = vrot.slane %v9975, 5
      %v10800 = vsel %vm1945, %v10798, %v10799
      %v10801 = vrot.slane %v10701, 5
      %v10802 = vrot.slane %v10801, 4
      %v10803 = vrot.slane %v9977, 5
      %v10804 = vsel %vm1945, %v10802, %v10803
      %v10805 = vrot.slane %v10803, 4
      %v10806 = vrot.slane %v9978, 5
      %v10807 = vsel %vm1945, %v10805, %v10806
      %v10808 = vrot.slane %v10702, 5
      %v10809 = vrot.slane %v10808, 4
      %v10810 = vrot.slane %v9980, 5
      %v10811 = vsel %vm1945, %v10809, %v10810
      %v10812 = vrot.slane %v10810, 4
      %v10813 = vrot.slane %v9981, 5
      %v10814 = vsel %vm1945, %v10812, %v10813
      %v10815 = vrot.slane %v10703, 5
      %v10816 = vrot.slane %v10815, 4
      %v10817 = vrot.slane %v9983, 5
      %v10818 = vsel %vm1945, %v10816, %v10817
      %v10819 = vrot.slane %v10817, 4
      %v10820 = vrot.slane %v9984, 5
      %v10821 = vsel %vm1945, %v10819, %v10820
      %v10822 = vrot.slane %v10704, 5
      %v10823 = vrot.slane %v10822, 4
      %v10824 = vrot.slane %v9986, 5
      %v10825 = vsel %vm1945, %v10823, %v10824
      %v10826 = vrot.slane %v10824, 4
      %v10827 = vrot.slane %v9987, 5
      %v10828 = vsel %vm1945, %v10826, %v10827
      %v10829 = vrot.slane %v10705, 5
      %v10830 = vrot.slane %v10829, 4
      %v10831 = vrot.slane %v9989, 5
      %v10832 = vsel %vm1945, %v10830, %v10831
      %v10833 = vrot.slane %v10831, 4
      %v10834 = vrot.slane %v9990, 5
      %v10835 = vsel %vm1945, %v10833, %v10834
      %v10836 = vrot.slane %v10706, 5
      %v10837 = vrot.slane %v10836, 4
      %v10838 = vrot.slane %v9992, 5
      %v10839 = vsel %vm1945, %v10837, %v10838
      %v10840 = vrot.slane %v10838, 4
      %v10841 = vrot.slane %v9993, 5
      %v10842 = vsel %vm1945, %v10840, %v10841
      %v10843 = vrot.slane %v10707, 5
      %v10844 = vrot.slane %v10843, 4
      %v10845 = vrot.slane %v9995, 5
      %v10846 = vsel %vm1945, %v10844, %v10845
      %v10847 = vrot.slane %v10845, 4
      %v10848 = vrot.slane %v9996, 5
      %v10849 = vsel %vm1945, %v10847, %v10848
      %v10850 = vrot.slane %v10708, 5
      %v10851 = vrot.slane %v10850, 4
      %v10852 = vrot.slane %v9998, 5
      %v10853 = vsel %vm1945, %v10851, %v10852
      %v10854 = vrot.slane %v10852, 4
      %v10855 = vrot.slane %v9999, 5
      %v10856 = vsel %vm1945, %v10854, %v10855
      %v10857 = vrot.slane %v10709, 5
      %v10858 = vrot.slane %v10857, 4
      %v10859 = vrot.slane %v10001, 5
      %v10860 = vsel %vm1945, %v10858, %v10859
      %v10861 = vrot.slane %v10859, 4
      %v10862 = vrot.slane %v10002, 5
      %v10863 = vsel %vm1945, %v10861, %v10862
      %v10864 = vrot.slane %v10710, 5
      %v10865 = vrot.slane %v10864, 4
      %v10866 = vrot.slane %v10004, 5
      %v10867 = vsel %vm1945, %v10865, %v10866
      %v10868 = vrot.slane %v10866, 4
      %v10869 = vrot.slane %v10005, 5
      %v10870 = vsel %vm1945, %v10868, %v10869
      %v10871 = vld [vmem:[%s5 + $0x80] sm:$0xf]
      %v10872 = vld [vmem:[%s5 + $0x84] sm:$0xf]
      %v10873 = vld [vmem:[%s5 + $0x88] sm:$0xf]
      %v10874 = vld [vmem:[%s5 + $0x8c] sm:$0xf]
      %v10875 = vunpack.c.l.b16 %v10762
      %v10876 = vunpack.c.l.b16 %v10765
      %v10877 = vunpack.c.l.b16 %v10769
      %v10878 = vunpack.c.l.b16 %v10772
      %v10879 = vunpack.c.l.b16 %v10776
      %v10880 = vunpack.c.l.b16 %v10779
      %v10881 = vunpack.c.l.b16 %v10783
      %v10882 = vunpack.c.l.b16 %v10786
      %v10883 = vunpack.c.l.b16 %v10790
      %v10884 = vunpack.c.l.b16 %v10793
      %v10885 = vunpack.c.l.b16 %v10797
      %v10886 = vunpack.c.l.b16 %v10800
      %v10887 = vunpack.c.l.b16 %v10804
      %v10888 = vunpack.c.l.b16 %v10807
      %v10889 = vunpack.c.l.b16 %v10811
      %v10890 = vunpack.c.l.b16 %v10814
      %v10891 = vunpack.c.l.b16 %v10818
      %v10892 = vunpack.c.l.b16 %v10821
      %v10893 = vunpack.c.l.b16 %v10825
      %v10894 = vunpack.c.l.b16 %v10828
      %v10895 = vunpack.c.l.b16 %v10832
      %v10896 = vunpack.c.l.b16 %v10835
      %v10897 = vunpack.c.l.b16 %v10839
      %v10898 = vunpack.c.l.b16 %v10842
      %v10899 = vunpack.c.l.b16 %v10846
      %v10900 = vunpack.c.l.b16 %v10849
      %v10901 = vunpack.c.l.b16 %v10853
      %v10902 = vunpack.c.l.b16 %v10856
      %v10903 = vunpack.c.l.b16 %v10860
      %v10904 = vunpack.c.l.b16 %v10863
      %v10905 = vunpack.c.l.b16 %v10867
      %v10906 = vunpack.c.l.b16 %v10870
      %v10907 = vpack.c.b16 %v10876, %v10875
      %v10908 = vpack.c.b16 %v10878, %v10877
      %v10909 = vpack.c.b16 %v10880, %v10879
      %v10910 = vpack.c.b16 %v10882, %v10881
      %v10911 = vpack.c.b16 %v10884, %v10883
      %v10912 = vpack.c.b16 %v10886, %v10885
      %v10913 = vpack.c.b16 %v10888, %v10887
      %v10914 = vpack.c.b16 %v10890, %v10889
      %v10915 = vpack.c.b16 %v10892, %v10891
      %v10916 = vpack.c.b16 %v10894, %v10893
      %v10917 = vpack.c.b16 %v10896, %v10895
      %v10918 = vpack.c.b16 %v10898, %v10897
      %v10919 = vpack.c.b16 %v10900, %v10899
      %v10920 = vpack.c.b16 %v10902, %v10901
      %v10921 = vpack.c.b16 %v10904, %v10903
      %v10922 = vpack.c.b16 %v10906, %v10905
      %v10927 = vunpack.c.l.b16 %v10871
      %v10928 = vunpack.c.l.b16 %v10872
      %v10929 = vunpack.c.l.b16 %v10873
      %v10930 = vunpack.c.l.b16 %v10874
      %v10931 = vpack.c.b16 %v10928, %v10927
      %v10932 = vpack.c.b16 %v10930, %v10929
      %v10936 = vsel %vm1384, %v10907, 0
      %v10939 = vsel %vm1384, %v10908, 0
      %v10942 = vsel %vm1384, %v10909, 0
      %v10945 = vsel %vm1384, %v10910, 0
      %v10948 = vsel %vm1384, %v10911, 0
      %v10951 = vsel %vm1384, %v10912, 0
      %v10954 = vsel %vm1384, %v10913, 0
      %v10957 = vsel %vm1384, %v10914, 0
      %v10960 = vsel %vm1384, %v10915, 0
      %v10963 = vsel %vm1384, %v10916, 0
      %v10966 = vsel %vm1384, %v10917, 0
      %v10969 = vsel %vm1384, %v10918, 0
      %v10972 = vsel %vm1384, %v10919, 0
      %v10975 = vsel %vm1384, %v10920, 0
      %v10978 = vsel %vm1384, %v10921, 0
      %v10981 = vsel %vm1384, %v10922, 0
      %10983 = vmatprep.subr.bf16.mxu0 0
      %10984 = vmatpush1.bf16.msra.mxu0 %v10931
      %10985 = vmatprep.subr.bf16.mxu0 0
      %10986 = vmatpush1.bf16.msra.mxu0 %v10932
      %10987 = vmatprep.subr.bf16.mxu0 0
      %10988 = vmatpush1.bf16.msra.mxu0 0
      %10989 = vmatprep.subr.bf16.mxu0 0
      %10990 = vmatpush1.bf16.msra.mxu0 0
      %10991 = vmatprep.subr.bf16.mxu0 0
      %10992 = vmatpush1.bf16.msra.mxu0 0
      %10993 = vmatprep.subr.bf16.mxu0 0
      %10994 = vmatpush1.bf16.msra.mxu0 0
      %10995 = vmatprep.subr.bf16.mxu0 0
      %10996 = vmatpush1.bf16.msra.mxu0 0
      %10997 = vmatprep.subr.bf16.mxu0 0
      %10998 = vmatpush1.bf16.msra.mxu0 0
      %10999 = vmatprep.subr.bf16.mxu0 0
      %11000 = vmatpush1.bf16.msra.mxu0 0
      %11001 = vmatprep.subr.bf16.mxu0 0
      %11002 = vmatpush1.bf16.msra.mxu0 0
      %11003 = vmatprep.subr.bf16.mxu0 0
      %11004 = vmatpush1.bf16.msra.mxu0 0
      %11005 = vmatprep.subr.bf16.mxu0 0
      %11006 = vmatpush1.bf16.msra.mxu0 0
      %11007 = vmatprep.subr.bf16.mxu0 0
      %11008 = vmatpush1.bf16.msra.mxu0 0
      %11009 = vmatprep.subr.bf16.mxu0 0
      %11010 = vmatpush1.bf16.msra.mxu0 0
      %11011 = vmatprep.subr.bf16.mxu0 0
      %11012 = vmatpush1.bf16.msra.mxu0 0
      %11013 = vmatprep.subr.bf16.mxu0 0
      %11014 = vmatpush1.bf16.msra.mxu0 0
      %11015 = vmatprep.mubr.bf16.mxu0 0
      %11016 = vmatmul.mubr.bf16.gmra.mrb[0].mxu0 %v10936
      %v11017 = vpop.f32.mrb[0].mxu0
      %v11018 = vadd.f32 0.0, %v11017
      %v11019 = vpop.f32.mrb[0].mxu0
      %v11020 = vpop.f32.mrb[0].mxu0
      %v11021 = vadd.f32 0.0, %v11020
      %v11022 = vpop.f32.mrb[0].mxu0
      %11023 = vmatprep.mubr.bf16.mxu0 0
      %11024 = vmatmul.mubr.bf16.gmra.mrb[0].mxu0 %v10939
      %v11025 = vpop.f32.mrb[0].mxu0
      %v11026 = vadd.f32 0.0, %v11025
      %v11027 = vpop.f32.mrb[0].mxu0
      %v11028 = vpop.f32.mrb[0].mxu0
      %v11029 = vadd.f32 0.0, %v11028
      %v11030 = vpop.f32.mrb[0].mxu0
      %11031 = vmatprep.mubr.bf16.mxu0 0
      %11032 = vmatmul.mubr.bf16.gmra.mrb[0].mxu0 %v10942
      %v11033 = vpop.f32.mrb[0].mxu0
      %v11034 = vadd.f32 0.0, %v11033
      %v11035 = vpop.f32.mrb[0].mxu0
      %v11036 = vpop.f32.mrb[0].mxu0
      %v11037 = vadd.f32 0.0, %v11036
      %v11038 = vpop.f32.mrb[0].mxu0
      %11039 = vmatprep.mubr.bf16.mxu0 0
      %11040 = vmatmul.mubr.bf16.gmra.mrb[0].mxu0 %v10945
      %v11041 = vpop.f32.mrb[0].mxu0
      %v11042 = vadd.f32 0.0, %v11041
      %v11043 = vpop.f32.mrb[0].mxu0
      %v11044 = vpop.f32.mrb[0].mxu0
      %v11045 = vadd.f32 0.0, %v11044
      %v11046 = vpop.f32.mrb[0].mxu0
      %11047 = vmatprep.mubr.bf16.mxu0 0
      %11048 = vmatmul.mubr.bf16.gmra.mrb[0].mxu0 %v10948
      %v11049 = vpop.f32.mrb[0].mxu0
      %v11050 = vadd.f32 0.0, %v11049
      %v11051 = vpop.f32.mrb[0].mxu0
      %v11052 = vpop.f32.mrb[0].mxu0
      %v11053 = vadd.f32 0.0, %v11052
      %v11054 = vpop.f32.mrb[0].mxu0
      %11055 = vmatprep.mubr.bf16.mxu0 0
      %11056 = vmatmul.mubr.bf16.gmra.mrb[0].mxu0 %v10951
      %v11057 = vpop.f32.mrb[0].mxu0
      %v11058 = vadd.f32 0.0, %v11057
      %v11059 = vpop.f32.mrb[0].mxu0
      %v11060 = vpop.f32.mrb[0].mxu0
      %v11061 = vadd.f32 0.0, %v11060
      %v11062 = vpop.f32.mrb[0].mxu0
      %11063 = vmatprep.mubr.bf16.mxu0 0
      %11064 = vmatmul.mubr.bf16.gmra.mrb[0].mxu0 %v10954
      %v11065 = vpop.f32.mrb[0].mxu0
      %v11066 = vadd.f32 0.0, %v11065
      %v11067 = vpop.f32.mrb[0].mxu0
      %v11068 = vpop.f32.mrb[0].mxu0
      %v11069 = vadd.f32 0.0, %v11068
      %v11070 = vpop.f32.mrb[0].mxu0
      %11071 = vmatprep.mubr.bf16.mxu0 0
      %11072 = vmatmul.mubr.bf16.gmra.mrb[0].mxu0 %v10957
      %v11073 = vpop.f32.mrb[0].mxu0
      %v11074 = vadd.f32 0.0, %v11073
      %v11075 = vpop.f32.mrb[0].mxu0
      %v11076 = vpop.f32.mrb[0].mxu0
      %v11077 = vadd.f32 0.0, %v11076
      %v11078 = vpop.f32.mrb[0].mxu0
      %11079 = vmatprep.mubr.bf16.mxu0 0
      %11080 = vmatmul.mubr.bf16.gmra.mrb[0].mxu0 %v10960
      %v11081 = vpop.f32.mrb[0].mxu0
      %v11082 = vadd.f32 0.0, %v11081
      %v11083 = vpop.f32.mrb[0].mxu0
      %v11084 = vpop.f32.mrb[0].mxu0
      %v11085 = vadd.f32 0.0, %v11084
      %v11086 = vpop.f32.mrb[0].mxu0
      %11087 = vmatprep.mubr.bf16.mxu0 0
      %11088 = vmatmul.mubr.bf16.gmra.mrb[0].mxu0 %v10963
      %v11089 = vpop.f32.mrb[0].mxu0
      %v11090 = vadd.f32 0.0, %v11089
      %v11091 = vpop.f32.mrb[0].mxu0
      %v11092 = vpop.f32.mrb[0].mxu0
      %v11093 = vadd.f32 0.0, %v11092
      %v11094 = vpop.f32.mrb[0].mxu0
      %11095 = vmatprep.mubr.bf16.mxu0 0
      %11096 = vmatmul.mubr.bf16.gmra.mrb[0].mxu0 %v10966
      %v11097 = vpop.f32.mrb[0].mxu0
      %v11098 = vadd.f32 0.0, %v11097
      %v11099 = vpop.f32.mrb[0].mxu0
      %v11100 = vpop.f32.mrb[0].mxu0
      %v11101 = vadd.f32 0.0, %v11100
      %v11102 = vpop.f32.mrb[0].mxu0
      %11103 = vmatprep.mubr.bf16.mxu0 0
      %11104 = vmatmul.mubr.bf16.gmra.mrb[0].mxu0 %v10969
      %v11105 = vpop.f32.mrb[0].mxu0
      %v11106 = vadd.f32 0.0, %v11105
      %v11107 = vpop.f32.mrb[0].mxu0
      %v11108 = vpop.f32.mrb[0].mxu0
      %v11109 = vadd.f32 0.0, %v11108
      %v11110 = vpop.f32.mrb[0].mxu0
      %11111 = vmatprep.mubr.bf16.mxu0 0
      %11112 = vmatmul.mubr.bf16.gmra.mrb[0].mxu0 %v10972
      %v11113 = vpop.f32.mrb[0].mxu0
      %v11114 = vadd.f32 0.0, %v11113
      %v11115 = vpop.f32.mrb[0].mxu0
      %v11116 = vpop.f32.mrb[0].mxu0
      %v11117 = vadd.f32 0.0, %v11116
      %v11118 = vpop.f32.mrb[0].mxu0
      %11119 = vmatprep.mubr.bf16.mxu0 0
      %11120 = vmatmul.mubr.bf16.gmra.mrb[0].mxu0 %v10975
      %v11121 = vpop.f32.mrb[0].mxu0
      %v11122 = vadd.f32 0.0, %v11121
      %v11123 = vpop.f32.mrb[0].mxu0
      %v11124 = vpop.f32.mrb[0].mxu0
      %v11125 = vadd.f32 0.0, %v11124
      %v11126 = vpop.f32.mrb[0].mxu0
      %11127 = vmatprep.mubr.bf16.mxu0 0
      %11128 = vmatmul.mubr.bf16.gmra.mrb[0].mxu0 %v10978
      %v11129 = vpop.f32.mrb[0].mxu0
      %v11130 = vadd.f32 0.0, %v11129
      %v11131 = vpop.f32.mrb[0].mxu0
      %v11132 = vpop.f32.mrb[0].mxu0
      %v11133 = vadd.f32 0.0, %v11132
      %v11134 = vpop.f32.mrb[0].mxu0
      %11135 = vmatprep.mubr.bf16.mxu0 0
      %11136 = vmatmul.mubr.bf16.gmra.mrb[0].mxu0 %v10981
      %v11137 = vpop.f32.mrb[0].mxu0
      %v11138 = vadd.f32 0.0, %v11137
      %v11139 = vpop.f32.mrb[0].mxu0
      %v11140 = vpop.f32.mrb[0].mxu0
      %v11141 = vadd.f32 0.0, %v11140
      %v11142 = vpop.f32.mrb[0].mxu0
      %11143 = vdwg.mxu0
      %v11144 = vadd.f32 %v10663, %v11018
      %v11145 = vadd.f32 %v10664, %v11021
      %v11146 = vadd.f32 %v10665, %v11026
      %v11147 = vadd.f32 %v10666, %v11029
      %v11148 = vadd.f32 %v10667, %v11034
      %v11149 = vadd.f32 %v10668, %v11037
      %v11150 = vadd.f32 %v10669, %v11042
      %v11151 = vadd.f32 %v10670, %v11045
      %v11152 = vadd.f32 %v10671, %v11050
      %v11153 = vadd.f32 %v10672, %v11053
      %v11154 = vadd.f32 %v10673, %v11058
      %v11155 = vadd.f32 %v10674, %v11061
      %v11156 = vadd.f32 %v10675, %v11066
      %v11157 = vadd.f32 %v10676, %v11069
      %v11158 = vadd.f32 %v10677, %v11074
      %v11159 = vadd.f32 %v10678, %v11077
      %v11160 = vadd.f32 %v10679, %v11082
      %v11161 = vadd.f32 %v10680, %v11085
      %v11162 = vadd.f32 %v10681, %v11090
      %v11163 = vadd.f32 %v10682, %v11093
      %v11164 = vadd.f32 %v10683, %v11098
      %v11165 = vadd.f32 %v10684, %v11101
      %v11166 = vadd.f32 %v10685, %v11106
      %v11167 = vadd.f32 %v10686, %v11109
      %v11168 = vadd.f32 %v10687, %v11114
      %v11169 = vadd.f32 %v10688, %v11117
      %v11170 = vadd.f32 %v10689, %v11122
      %v11171 = vadd.f32 %v10690, %v11125
      %v11172 = vadd.f32 %v10691, %v11130
      %v11173 = vadd.f32 %v10692, %v11133
      %v11174 = vadd.f32 %v10693, %v11138
      %v11175 = vadd.f32 %v10694, %v11141
      %v11176 = vld [vmem:[%s6] sm:$0x1]
      %v11178 = vlaneseq
      %v11179 = vshrl.u32 %v11178, 7
      %v11180 = vsub.s32 0, %v11179
      %v11181 = vrot.slane %v11176, %v11180
      %v11183 = vadd.f32 %v11144, %v11181
      %v11184 = vadd.f32 %v11145, %v11181
      %v11185 = vadd.f32 %v11146, %v11181
      %v11186 = vadd.f32 %v11147, %v11181
      %v11187 = vadd.f32 %v11148, %v11181
      %v11188 = vadd.f32 %v11149, %v11181
      %v11189 = vadd.f32 %v11150, %v11181
      %v11190 = vadd.f32 %v11151, %v11181
      %v11191 = vadd.f32 %v11152, %v11181
      %v11192 = vadd.f32 %v11153, %v11181
      %v11193 = vadd.f32 %v11154, %v11181
      %v11194 = vadd.f32 %v11155, %v11181
      %v11195 = vadd.f32 %v11156, %v11181
      %v11196 = vadd.f32 %v11157, %v11181
      %v11197 = vadd.f32 %v11158, %v11181
      %v11198 = vadd.f32 %v11159, %v11181
      %v11199 = vadd.f32 %v11160, %v11181
      %v11200 = vadd.f32 %v11161, %v11181
      %v11201 = vadd.f32 %v11162, %v11181
      %v11202 = vadd.f32 %v11163, %v11181
      %v11203 = vadd.f32 %v11164, %v11181
      %v11204 = vadd.f32 %v11165, %v11181
      %v11205 = vadd.f32 %v11166, %v11181
      %v11206 = vadd.f32 %v11167, %v11181
      %v11207 = vadd.f32 %v11168, %v11181
      %v11208 = vadd.f32 %v11169, %v11181
      %v11209 = vadd.f32 %v11170, %v11181
      %v11210 = vadd.f32 %v11171, %v11181
      %v11211 = vadd.f32 %v11172, %v11181
      %v11212 = vadd.f32 %v11173, %v11181
      %v11213 = vadd.f32 %v11174, %v11181
      %v11214 = vadd.f32 %v11175, %v11181
      %v11215 = vld [vmem:[%s7] sm:$0x1]
      %v11216 = vld [vmem:[%s8] sm:$0x1]
      %v11217 = vsel %vm1384, %v11183, 0.0
      %v11218 = vsel %vm1384, %v11184, 0.0
      %v11219 = vadd.f32 %v11217, %v11218
      %v11220 = vsel %vm1384, %v11185, 0.0
      %v11221 = vadd.f32 %v11219, %v11220
      %v11222 = vsel %vm1384, %v11186, 0.0
      %v11223 = vadd.f32 %v11221, %v11222
      %v11224 = vsel %vm1384, %v11187, 0.0
      %v11225 = vadd.f32 %v11223, %v11224
      %v11226 = vsel %vm1384, %v11188, 0.0
      %v11227 = vadd.f32 %v11225, %v11226
      %v11228 = vsel %vm1384, %v11189, 0.0
      %v11229 = vadd.f32 %v11227, %v11228
      %v11230 = vsel %vm1384, %v11190, 0.0
      %v11231 = vadd.f32 %v11229, %v11230
      %v11232 = vsel %vm1384, %v11191, 0.0
      %v11233 = vadd.f32 %v11231, %v11232
      %v11234 = vsel %vm1384, %v11192, 0.0
      %v11235 = vadd.f32 %v11233, %v11234
      %v11236 = vsel %vm1384, %v11193, 0.0
      %v11237 = vadd.f32 %v11235, %v11236
      %v11238 = vsel %vm1384, %v11194, 0.0
      %v11239 = vadd.f32 %v11237, %v11238
      %v11240 = vsel %vm1384, %v11195, 0.0
      %v11241 = vadd.f32 %v11239, %v11240
      %v11242 = vsel %vm1384, %v11196, 0.0
      %v11243 = vadd.f32 %v11241, %v11242
      %v11244 = vsel %vm1384, %v11197, 0.0
      %v11245 = vadd.f32 %v11243, %v11244
      %v11246 = vsel %vm1384, %v11198, 0.0
      %v11247 = vadd.f32 %v11245, %v11246
      %v11248 = vsel %vm1384, %v11199, 0.0
      %v11249 = vadd.f32 %v11247, %v11248
      %v11250 = vsel %vm1384, %v11200, 0.0
      %v11251 = vadd.f32 %v11249, %v11250
      %v11252 = vsel %vm1384, %v11201, 0.0
      %v11253 = vadd.f32 %v11251, %v11252
      %v11254 = vsel %vm1384, %v11202, 0.0
      %v11255 = vadd.f32 %v11253, %v11254
      %v11256 = vsel %vm1384, %v11203, 0.0
      %v11257 = vadd.f32 %v11255, %v11256
      %v11258 = vsel %vm1384, %v11204, 0.0
      %v11259 = vadd.f32 %v11257, %v11258
      %v11260 = vsel %vm1384, %v11205, 0.0
      %v11261 = vadd.f32 %v11259, %v11260
      %v11262 = vsel %vm1384, %v11206, 0.0
      %v11263 = vadd.f32 %v11261, %v11262
      %v11264 = vsel %vm1384, %v11207, 0.0
      %v11265 = vadd.f32 %v11263, %v11264
      %v11266 = vsel %vm1384, %v11208, 0.0
      %v11267 = vadd.f32 %v11265, %v11266
      %v11268 = vsel %vm1384, %v11209, 0.0
      %v11269 = vadd.f32 %v11267, %v11268
      %v11270 = vsel %vm1384, %v11210, 0.0
      %v11271 = vadd.f32 %v11269, %v11270
      %v11272 = vsel %vm1384, %v11211, 0.0
      %v11273 = vadd.f32 %v11271, %v11272
      %v11274 = vsel %vm1384, %v11212, 0.0
      %v11275 = vadd.f32 %v11273, %v11274
      %v11276 = vsel %vm1384, %v11213, 0.0
      %v11277 = vadd.f32 %v11275, %v11276
      %v11278 = vsel %vm1384, %v11214, 0.0
      %v11279 = vadd.f32 %v11277, %v11278
      %v11280 = vrot.slane %v11279, 4
      %v11281 = vadd.f32 %v11279, %v11280
      %v11282 = vrot.slane %v11281, 2
      %v11283 = vadd.f32 %v11281, %v11282
      %v11284 = vrot.slane %v11283, 1
      %v11285 = vadd.f32 %v11283, %v11284
      %v11286 = vmul.f32 %v11285, %v5649
      %v11287 = vsub.f32 %v11183, %v11286
      %v11288 = vsub.f32 %v11184, %v11286
      %v11289 = vsub.f32 %v11185, %v11286
      %v11290 = vsub.f32 %v11186, %v11286
      %v11291 = vsub.f32 %v11187, %v11286
      %v11292 = vsub.f32 %v11188, %v11286
      %v11293 = vsub.f32 %v11189, %v11286
      %v11294 = vsub.f32 %v11190, %v11286
      %v11295 = vsub.f32 %v11191, %v11286
      %v11296 = vsub.f32 %v11192, %v11286
      %v11297 = vsub.f32 %v11193, %v11286
      %v11298 = vsub.f32 %v11194, %v11286
      %v11299 = vsub.f32 %v11195, %v11286
      %v11300 = vsub.f32 %v11196, %v11286
      %v11301 = vsub.f32 %v11197, %v11286
      %v11302 = vsub.f32 %v11198, %v11286
      %v11303 = vsub.f32 %v11199, %v11286
      %v11304 = vsub.f32 %v11200, %v11286
      %v11305 = vsub.f32 %v11201, %v11286
      %v11306 = vsub.f32 %v11202, %v11286
      %v11307 = vsub.f32 %v11203, %v11286
      %v11308 = vsub.f32 %v11204, %v11286
      %v11309 = vsub.f32 %v11205, %v11286
      %v11310 = vsub.f32 %v11206, %v11286
      %v11311 = vsub.f32 %v11207, %v11286
      %v11312 = vsub.f32 %v11208, %v11286
      %v11313 = vsub.f32 %v11209, %v11286
      %v11314 = vsub.f32 %v11210, %v11286
      %v11315 = vsub.f32 %v11211, %v11286
      %v11316 = vsub.f32 %v11212, %v11286
      %v11317 = vsub.f32 %v11213, %v11286
      %v11318 = vsub.f32 %v11214, %v11286
      %v11319 = vmul.f32 %v11287, %v11287
      %v11320 = vmul.f32 %v11288, %v11288
      %v11321 = vmul.f32 %v11289, %v11289
      %v11322 = vmul.f32 %v11290, %v11290
      %v11323 = vmul.f32 %v11291, %v11291
      %v11324 = vmul.f32 %v11292, %v11292
      %v11325 = vmul.f32 %v11293, %v11293
      %v11326 = vmul.f32 %v11294, %v11294
      %v11327 = vmul.f32 %v11295, %v11295
      %v11328 = vmul.f32 %v11296, %v11296
      %v11329 = vmul.f32 %v11297, %v11297
      %v11330 = vmul.f32 %v11298, %v11298
      %v11331 = vmul.f32 %v11299, %v11299
      %v11332 = vmul.f32 %v11300, %v11300
      %v11333 = vmul.f32 %v11301, %v11301
      %v11334 = vmul.f32 %v11302, %v11302
      %v11335 = vmul.f32 %v11303, %v11303
      %v11336 = vmul.f32 %v11304, %v11304
      %v11337 = vmul.f32 %v11305, %v11305
      %v11338 = vmul.f32 %v11306, %v11306
      %v11339 = vmul.f32 %v11307, %v11307
      %v11340 = vmul.f32 %v11308, %v11308
      %v11341 = vmul.f32 %v11309, %v11309
      %v11342 = vmul.f32 %v11310, %v11310
      %v11343 = vmul.f32 %v11311, %v11311
      %v11344 = vmul.f32 %v11312, %v11312
      %v11345 = vmul.f32 %v11313, %v11313
      %v11346 = vmul.f32 %v11314, %v11314
      %v11347 = vmul.f32 %v11315, %v11315
      %v11348 = vmul.f32 %v11316, %v11316
      %v11349 = vmul.f32 %v11317, %v11317
      %v11350 = vmul.f32 %v11318, %v11318
      %v11351 = vsel %vm1384, %v11319, 0.0
      %v11352 = vsel %vm1384, %v11320, 0.0
      %v11353 = vadd.f32 %v11351, %v11352
      %v11354 = vsel %vm1384, %v11321, 0.0
      %v11355 = vadd.f32 %v11353, %v11354
      %v11356 = vsel %vm1384, %v11322, 0.0
      %v11357 = vadd.f32 %v11355, %v11356
      %v11358 = vsel %vm1384, %v11323, 0.0
      %v11359 = vadd.f32 %v11357, %v11358
      %v11360 = vsel %vm1384, %v11324, 0.0
      %v11361 = vadd.f32 %v11359, %v11360
      %v11362 = vsel %vm1384, %v11325, 0.0
      %v11363 = vadd.f32 %v11361, %v11362
      %v11364 = vsel %vm1384, %v11326, 0.0
      %v11365 = vadd.f32 %v11363, %v11364
      %v11366 = vsel %vm1384, %v11327, 0.0
      %v11367 = vadd.f32 %v11365, %v11366
      %v11368 = vsel %vm1384, %v11328, 0.0
      %v11369 = vadd.f32 %v11367, %v11368
      %v11370 = vsel %vm1384, %v11329, 0.0
      %v11371 = vadd.f32 %v11369, %v11370
      %v11372 = vsel %vm1384, %v11330, 0.0
      %v11373 = vadd.f32 %v11371, %v11372
      %v11374 = vsel %vm1384, %v11331, 0.0
      %v11375 = vadd.f32 %v11373, %v11374
      %v11376 = vsel %vm1384, %v11332, 0.0
      %v11377 = vadd.f32 %v11375, %v11376
      %v11378 = vsel %vm1384, %v11333, 0.0
      %v11379 = vadd.f32 %v11377, %v11378
      %v11380 = vsel %vm1384, %v11334, 0.0
      %v11381 = vadd.f32 %v11379, %v11380
      %v11382 = vsel %vm1384, %v11335, 0.0
      %v11383 = vadd.f32 %v11381, %v11382
      %v11384 = vsel %vm1384, %v11336, 0.0
      %v11385 = vadd.f32 %v11383, %v11384
      %v11386 = vsel %vm1384, %v11337, 0.0
      %v11387 = vadd.f32 %v11385, %v11386
      %v11388 = vsel %vm1384, %v11338, 0.0
      %v11389 = vadd.f32 %v11387, %v11388
      %v11390 = vsel %vm1384, %v11339, 0.0
      %v11391 = vadd.f32 %v11389, %v11390
      %v11392 = vsel %vm1384, %v11340, 0.0
      %v11393 = vadd.f32 %v11391, %v11392
      %v11394 = vsel %vm1384, %v11341, 0.0
      %v11395 = vadd.f32 %v11393, %v11394
      %v11396 = vsel %vm1384, %v11342, 0.0
      %v11397 = vadd.f32 %v11395, %v11396
      %v11398 = vsel %vm1384, %v11343, 0.0
      %v11399 = vadd.f32 %v11397, %v11398
      %v11400 = vsel %vm1384, %v11344, 0.0
      %v11401 = vadd.f32 %v11399, %v11400
      %v11402 = vsel %vm1384, %v11345, 0.0
      %v11403 = vadd.f32 %v11401, %v11402
      %v11404 = vsel %vm1384, %v11346, 0.0
      %v11405 = vadd.f32 %v11403, %v11404
      %v11406 = vsel %vm1384, %v11347, 0.0
      %v11407 = vadd.f32 %v11405, %v11406
      %v11408 = vsel %vm1384, %v11348, 0.0
      %v11409 = vadd.f32 %v11407, %v11408
      %v11410 = vsel %vm1384, %v11349, 0.0
      %v11411 = vadd.f32 %v11409, %v11410
      %v11412 = vsel %vm1384, %v11350, 0.0
      %v11413 = vadd.f32 %v11411, %v11412
      %v11414 = vrot.slane %v11413, 4
      %v11415 = vadd.f32 %v11413, %v11414
      %v11416 = vrot.slane %v11415, 2
      %v11417 = vadd.f32 %v11415, %v11416
      %v11418 = vrot.slane %v11417, 1
      %v11419 = vadd.f32 %v11417, %v11418
      %v11420 = vmul.f32 %v11419, %v5649
      %v11421 = vadd.f32 %v11420, 1e-05
      %v11422 = vrsqrt.pop %v11421
      %v11423 = vmul.f32 %v11287, %v11422
      %v11424 = vmul.f32 %v11288, %v11422
      %v11425 = vmul.f32 %v11289, %v11422
      %v11426 = vmul.f32 %v11290, %v11422
      %v11427 = vmul.f32 %v11291, %v11422
      %v11428 = vmul.f32 %v11292, %v11422
      %v11429 = vmul.f32 %v11293, %v11422
      %v11430 = vmul.f32 %v11294, %v11422
      %v11431 = vmul.f32 %v11295, %v11422
      %v11432 = vmul.f32 %v11296, %v11422
      %v11433 = vmul.f32 %v11297, %v11422
      %v11434 = vmul.f32 %v11298, %v11422
      %v11435 = vmul.f32 %v11299, %v11422
      %v11436 = vmul.f32 %v11300, %v11422
      %v11437 = vmul.f32 %v11301, %v11422
      %v11438 = vmul.f32 %v11302, %v11422
      %v11439 = vmul.f32 %v11303, %v11422
      %v11440 = vmul.f32 %v11304, %v11422
      %v11441 = vmul.f32 %v11305, %v11422
      %v11442 = vmul.f32 %v11306, %v11422
      %v11443 = vmul.f32 %v11307, %v11422
      %v11444 = vmul.f32 %v11308, %v11422
      %v11445 = vmul.f32 %v11309, %v11422
      %v11446 = vmul.f32 %v11310, %v11422
      %v11447 = vmul.f32 %v11311, %v11422
      %v11448 = vmul.f32 %v11312, %v11422
      %v11449 = vmul.f32 %v11313, %v11422
      %v11450 = vmul.f32 %v11314, %v11422
      %v11451 = vmul.f32 %v11315, %v11422
      %v11452 = vmul.f32 %v11316, %v11422
      %v11453 = vmul.f32 %v11317, %v11422
      %v11454 = vmul.f32 %v11318, %v11422
      %v11456 = vlaneseq
      %v11457 = vshrl.u32 %v11456, 7
      %v11458 = vsub.s32 0, %v11457
      %v11459 = vrot.slane %v11215, %v11458
      %v11461 = vmul.f32 %v11423, %v11459
      %v11462 = vmul.f32 %v11424, %v11459
      %v11463 = vmul.f32 %v11425, %v11459
      %v11464 = vmul.f32 %v11426, %v11459
      %v11465 = vmul.f32 %v11427, %v11459
      %v11466 = vmul.f32 %v11428, %v11459
      %v11467 = vmul.f32 %v11429, %v11459
      %v11468 = vmul.f32 %v11430, %v11459
      %v11469 = vmul.f32 %v11431, %v11459
      %v11470 = vmul.f32 %v11432, %v11459
      %v11471 = vmul.f32 %v11433, %v11459
      %v11472 = vmul.f32 %v11434, %v11459
      %v11473 = vmul.f32 %v11435, %v11459
      %v11474 = vmul.f32 %v11436, %v11459
      %v11475 = vmul.f32 %v11437, %v11459
      %v11476 = vmul.f32 %v11438, %v11459
      %v11477 = vmul.f32 %v11439, %v11459
      %v11478 = vmul.f32 %v11440, %v11459
      %v11479 = vmul.f32 %v11441, %v11459
      %v11480 = vmul.f32 %v11442, %v11459
      %v11481 = vmul.f32 %v11443, %v11459
      %v11482 = vmul.f32 %v11444, %v11459
      %v11483 = vmul.f32 %v11445, %v11459
      %v11484 = vmul.f32 %v11446, %v11459
      %v11485 = vmul.f32 %v11447, %v11459
      %v11486 = vmul.f32 %v11448, %v11459
      %v11487 = vmul.f32 %v11449, %v11459
      %v11488 = vmul.f32 %v11450, %v11459
      %v11489 = vmul.f32 %v11451, %v11459
      %v11490 = vmul.f32 %v11452, %v11459
      %v11491 = vmul.f32 %v11453, %v11459
      %v11492 = vmul.f32 %v11454, %v11459
      %v11494 = vlaneseq
      %v11495 = vshrl.u32 %v11494, 7
      %v11496 = vsub.s32 0, %v11495
      %v11497 = vrot.slane %v11216, %v11496
      %v11499 = vadd.f32 %v11461, %v11497
      %v11500 = vadd.f32 %v11462, %v11497
      %v11501 = vadd.f32 %v11463, %v11497
      %v11502 = vadd.f32 %v11464, %v11497
      %v11503 = vadd.f32 %v11465, %v11497
      %v11504 = vadd.f32 %v11466, %v11497
      %v11505 = vadd.f32 %v11467, %v11497
      %v11506 = vadd.f32 %v11468, %v11497
      %v11507 = vadd.f32 %v11469, %v11497
      %v11508 = vadd.f32 %v11470, %v11497
      %v11509 = vadd.f32 %v11471, %v11497
      %v11510 = vadd.f32 %v11472, %v11497
      %v11511 = vadd.f32 %v11473, %v11497
      %v11512 = vadd.f32 %v11474, %v11497
      %v11513 = vadd.f32 %v11475, %v11497
      %v11514 = vadd.f32 %v11476, %v11497
      %v11515 = vadd.f32 %v11477, %v11497
      %v11516 = vadd.f32 %v11478, %v11497
      %v11517 = vadd.f32 %v11479, %v11497
      %v11518 = vadd.f32 %v11480, %v11497
      %v11519 = vadd.f32 %v11481, %v11497
      %v11520 = vadd.f32 %v11482, %v11497
      %v11521 = vadd.f32 %v11483, %v11497
      %v11522 = vadd.f32 %v11484, %v11497
      %v11523 = vadd.f32 %v11485, %v11497
      %v11524 = vadd.f32 %v11486, %v11497
      %v11525 = vadd.f32 %v11487, %v11497
      %v11526 = vadd.f32 %v11488, %v11497
      %v11527 = vadd.f32 %v11489, %v11497
      %v11528 = vadd.f32 %v11490, %v11497
      %v11529 = vadd.f32 %v11491, %v11497
      %v11530 = vadd.f32 %v11492, %v11497
      %v11531 = vmul.f32 %v11499, 0.5
      %v11532 = vmul.f32 %v11500, 0.5
      %v11533 = vmul.f32 %v11501, 0.5
      %v11534 = vmul.f32 %v11502, 0.5
      %v11535 = vmul.f32 %v11503, 0.5
      %v11536 = vmul.f32 %v11504, 0.5
      %v11537 = vmul.f32 %v11505, 0.5
      %v11538 = vmul.f32 %v11506, 0.5
      %v11539 = vmul.f32 %v11507, 0.5
      %v11540 = vmul.f32 %v11508, 0.5
      %v11541 = vmul.f32 %v11509, 0.5
      %v11542 = vmul.f32 %v11510, 0.5
      %v11543 = vmul.f32 %v11511, 0.5
      %v11544 = vmul.f32 %v11512, 0.5
      %v11545 = vmul.f32 %v11513, 0.5
      %v11546 = vmul.f32 %v11514, 0.5
      %v11547 = vmul.f32 %v11515, 0.5
      %v11548 = vmul.f32 %v11516, 0.5
      %v11549 = vmul.f32 %v11517, 0.5
      %v11550 = vmul.f32 %v11518, 0.5
      %v11551 = vmul.f32 %v11519, 0.5
      %v11552 = vmul.f32 %v11520, 0.5
      %v11553 = vmul.f32 %v11521, 0.5
      %v11554 = vmul.f32 %v11522, 0.5
      %v11555 = vmul.f32 %v11523, 0.5
      %v11556 = vmul.f32 %v11524, 0.5
      %v11557 = vmul.f32 %v11525, 0.5
      %v11558 = vmul.f32 %v11526, 0.5
      %v11559 = vmul.f32 %v11527, 0.5
      %v11560 = vmul.f32 %v11528, 0.5
      %v11561 = vmul.f32 %v11529, 0.5
      %v11562 = vmul.f32 %v11530, 0.5
      %v11563 = vmul.f32 %v11499, 0.70710677
      %v11564 = vmul.f32 %v11500, 0.70710677
      %v11565 = vmul.f32 %v11501, 0.70710677
      %v11566 = vmul.f32 %v11502, 0.70710677
      %v11567 = vmul.f32 %v11503, 0.70710677
      %v11568 = vmul.f32 %v11504, 0.70710677
      %v11569 = vmul.f32 %v11505, 0.70710677
      %v11570 = vmul.f32 %v11506, 0.70710677
      %v11571 = vmul.f32 %v11507, 0.70710677
      %v11572 = vmul.f32 %v11508, 0.70710677
      %v11573 = vmul.f32 %v11509, 0.70710677
      %v11574 = vmul.f32 %v11510, 0.70710677
      %v11575 = vmul.f32 %v11511, 0.70710677
      %v11576 = vmul.f32 %v11512, 0.70710677
      %v11577 = vmul.f32 %v11513, 0.70710677
      %v11578 = vmul.f32 %v11514, 0.70710677
      %v11579 = vmul.f32 %v11515, 0.70710677
      %v11580 = vmul.f32 %v11516, 0.70710677
      %v11581 = vmul.f32 %v11517, 0.70710677
      %v11582 = vmul.f32 %v11518, 0.70710677
      %v11583 = vmul.f32 %v11519, 0.70710677
      %v11584 = vmul.f32 %v11520, 0.70710677
      %v11585 = vmul.f32 %v11521, 0.70710677
      %v11586 = vmul.f32 %v11522, 0.70710677
      %v11587 = vmul.f32 %v11523, 0.70710677
      %v11588 = vmul.f32 %v11524, 0.70710677
      %v11589 = vmul.f32 %v11525, 0.70710677
      %v11590 = vmul.f32 %v11526, 0.70710677
      %v11591 = vmul.f32 %v11527, 0.70710677
      %v11592 = vmul.f32 %v11528, 0.70710677
      %v11593 = vmul.f32 %v11529, 0.70710677
      %v11594 = vmul.f32 %v11530, 0.70710677
      %v11595 = verf.f32.pop %v11563
      %v11596 = verf.f32.pop %v11564
      %v11597 = verf.f32.pop %v11565
      %v11598 = verf.f32.pop %v11566
      %v11599 = verf.f32.pop %v11567
      %v11600 = verf.f32.pop %v11568
      %v11601 = verf.f32.pop %v11569
      %v11602 = verf.f32.pop %v11570
      %v11603 = verf.f32.pop %v11571
      %v11604 = verf.f32.pop %v11572
      %v11605 = verf.f32.pop %v11573
      %v11606 = verf.f32.pop %v11574
      %v11607 = verf.f32.pop %v11575
      %v11608 = verf.f32.pop %v11576
      %v11609 = verf.f32.pop %v11577
      %v11610 = verf.f32.pop %v11578
      %v11611 = verf.f32.pop %v11579
      %v11612 = verf.f32.pop %v11580
      %v11613 = verf.f32.pop %v11581
      %v11614 = verf.f32.pop %v11582
      %v11615 = verf.f32.pop %v11583
      %v11616 = verf.f32.pop %v11584
      %v11617 = verf.f32.pop %v11585
      %v11618 = verf.f32.pop %v11586
      %v11619 = verf.f32.pop %v11587
      %v11620 = verf.f32.pop %v11588
      %v11621 = verf.f32.pop %v11589
      %v11622 = verf.f32.pop %v11590
      %v11623 = verf.f32.pop %v11591
      %v11624 = verf.f32.pop %v11592
      %v11625 = verf.f32.pop %v11593
      %v11626 = verf.f32.pop %v11594
      %v11627 = vadd.f32 %v11595, 1.0
      %v11628 = vadd.f32 %v11596, 1.0
      %v11629 = vadd.f32 %v11597, 1.0
      %v11630 = vadd.f32 %v11598, 1.0
      %v11631 = vadd.f32 %v11599, 1.0
      %v11632 = vadd.f32 %v11600, 1.0
      %v11633 = vadd.f32 %v11601, 1.0
      %v11634 = vadd.f32 %v11602, 1.0
      %v11635 = vadd.f32 %v11603, 1.0
      %v11636 = vadd.f32 %v11604, 1.0
      %v11637 = vadd.f32 %v11605, 1.0
      %v11638 = vadd.f32 %v11606, 1.0
      %v11639 = vadd.f32 %v11607, 1.0
      %v11640 = vadd.f32 %v11608, 1.0
      %v11641 = vadd.f32 %v11609, 1.0
      %v11642 = vadd.f32 %v11610, 1.0
      %v11643 = vadd.f32 %v11611, 1.0
      %v11644 = vadd.f32 %v11612, 1.0
      %v11645 = vadd.f32 %v11613, 1.0
      %v11646 = vadd.f32 %v11614, 1.0
      %v11647 = vadd.f32 %v11615, 1.0
      %v11648 = vadd.f32 %v11616, 1.0
      %v11649 = vadd.f32 %v11617, 1.0
      %v11650 = vadd.f32 %v11618, 1.0
      %v11651 = vadd.f32 %v11619, 1.0
      %v11652 = vadd.f32 %v11620, 1.0
      %v11653 = vadd.f32 %v11621, 1.0
      %v11654 = vadd.f32 %v11622, 1.0
      %v11655 = vadd.f32 %v11623, 1.0
      %v11656 = vadd.f32 %v11624, 1.0
      %v11657 = vadd.f32 %v11625, 1.0
      %v11658 = vadd.f32 %v11626, 1.0
      %v11659 = vmul.f32 %v11531, %v11627
      %v11660 = vmul.f32 %v11532, %v11628
      %v11661 = vmul.f32 %v11533, %v11629
      %v11662 = vmul.f32 %v11534, %v11630
      %v11663 = vmul.f32 %v11535, %v11631
      %v11664 = vmul.f32 %v11536, %v11632
      %v11665 = vmul.f32 %v11537, %v11633
      %v11666 = vmul.f32 %v11538, %v11634
      %v11667 = vmul.f32 %v11539, %v11635
      %v11668 = vmul.f32 %v11540, %v11636
      %v11669 = vmul.f32 %v11541, %v11637
      %v11670 = vmul.f32 %v11542, %v11638
      %v11671 = vmul.f32 %v11543, %v11639
      %v11672 = vmul.f32 %v11544, %v11640
      %v11673 = vmul.f32 %v11545, %v11641
      %v11674 = vmul.f32 %v11546, %v11642
      %v11675 = vmul.f32 %v11547, %v11643
      %v11676 = vmul.f32 %v11548, %v11644
      %v11677 = vmul.f32 %v11549, %v11645
      %v11678 = vmul.f32 %v11550, %v11646
      %v11679 = vmul.f32 %v11551, %v11647
      %v11680 = vmul.f32 %v11552, %v11648
      %v11681 = vmul.f32 %v11553, %v11649
      %v11682 = vmul.f32 %v11554, %v11650
      %v11683 = vmul.f32 %v11555, %v11651
      %v11684 = vmul.f32 %v11556, %v11652
      %v11685 = vmul.f32 %v11557, %v11653
      %v11686 = vmul.f32 %v11558, %v11654
      %v11687 = vmul.f32 %v11559, %v11655
      %v11688 = vmul.f32 %v11560, %v11656
      %v11689 = vmul.f32 %v11561, %v11657
      %v11690 = vmul.f32 %v11562, %v11658
      %11691 = vxpose.xlu0.b32.start [1/16] %v11659, 128
      %11692 = vxpose.xlu0.b32.cont [2/16] %v11660, 128
      %11693 = vxpose.xlu0.b32.cont [3/16] %v11661, 128
      %11694 = vxpose.xlu0.b32.cont [4/16] %v11662, 128
      %11695 = vxpose.xlu0.b32.cont [5/16] %v11663, 128
      %11696 = vxpose.xlu0.b32.cont [6/16] %v11664, 128
      %11697 = vxpose.xlu0.b32.cont [7/16] %v11665, 128
      %11698 = vxpose.xlu0.b32.cont [8/16] %v11666, 128
      %11699 = vxpose.xlu0.b32.cont [9/16] %v11667, 128
      %11700 = vxpose.xlu0.b32.cont [10/16] %v11668, 128
      %11701 = vxpose.xlu0.b32.cont [11/16] %v11669, 128
      %11702 = vxpose.xlu0.b32.cont [12/16] %v11670, 128
      %11703 = vxpose.xlu0.b32.cont [13/16] %v11671, 128
      %11704 = vxpose.xlu0.b32.cont [14/16] %v11672, 128
      %11705 = vxpose.xlu0.b32.cont [15/16] %v11673, 128
      %11706 = vxpose.xlu0.b32.end [16/16] %v11674, 128
      %v11707 = vpop.trf.xlu0
      %v11708 = vpop.trf.xlu0
      %v11709 = vpop.trf.xlu0
      %v11710 = vpop.trf.xlu0
      %v11711 = vpop.trf.xlu0
      %v11712 = vpop.trf.xlu0
      %v11713 = vpop.trf.xlu0
      %v11714 = vpop.trf.xlu0
      %v11715 = vpop.trf.xlu0
      %v11716 = vpop.trf.xlu0
      %v11717 = vpop.trf.xlu0
      %v11718 = vpop.trf.xlu0
      %v11719 = vpop.trf.xlu0
      %v11720 = vpop.trf.xlu0
      %v11721 = vpop.trf.xlu0
      %v11722 = vpop.trf.xlu0
      %11723 = vxpose.xlu0.b32.start [1/16] %v11675, 128
      %11724 = vxpose.xlu0.b32.cont [2/16] %v11676, 128
      %11725 = vxpose.xlu0.b32.cont [3/16] %v11677, 128
      %11726 = vxpose.xlu0.b32.cont [4/16] %v11678, 128
      %11727 = vxpose.xlu0.b32.cont [5/16] %v11679, 128
      %11728 = vxpose.xlu0.b32.cont [6/16] %v11680, 128
      %11729 = vxpose.xlu0.b32.cont [7/16] %v11681, 128
      %11730 = vxpose.xlu0.b32.cont [8/16] %v11682, 128
      %11731 = vxpose.xlu0.b32.cont [9/16] %v11683, 128
      %11732 = vxpose.xlu0.b32.cont [10/16] %v11684, 128
      %11733 = vxpose.xlu0.b32.cont [11/16] %v11685, 128
      %11734 = vxpose.xlu0.b32.cont [12/16] %v11686, 128
      %11735 = vxpose.xlu0.b32.cont [13/16] %v11687, 128
      %11736 = vxpose.xlu0.b32.cont [14/16] %v11688, 128
      %11737 = vxpose.xlu0.b32.cont [15/16] %v11689, 128
      %11738 = vxpose.xlu0.b32.end [16/16] %v11690, 128
      %v11739 = vpop.trf.xlu0
      %v11740 = vpop.trf.xlu0
      %v11741 = vpop.trf.xlu0
      %v11742 = vpop.trf.xlu0
      %v11743 = vpop.trf.xlu0
      %v11744 = vpop.trf.xlu0
      %v11745 = vpop.trf.xlu0
      %v11746 = vpop.trf.xlu0
      %v11747 = vpop.trf.xlu0
      %v11748 = vpop.trf.xlu0
      %v11749 = vpop.trf.xlu0
      %v11750 = vpop.trf.xlu0
      %v11751 = vpop.trf.xlu0
      %v11752 = vpop.trf.xlu0
      %v11753 = vpop.trf.xlu0
      %v11754 = vpop.trf.xlu0
      %11755 = vst [vmem:[%s332] sm:$0xff] %v11707
      %11756 = vst [vmem:[%s332 + $0x8] sm:$0xff] %v11739
      %11757 = vst [vmem:[%s332 + $0x10] sm:$0xff] %v11708
      %11758 = vst [vmem:[%s332 + $0x18] sm:$0xff] %v11740
      %11759 = vst [vmem:[%s332 + $0x20] sm:$0xff] %v11709
      %11760 = vst [vmem:[%s332 + $0x28] sm:$0xff] %v11741
      %11761 = vst [vmem:[%s332 + $0x30] sm:$0xff] %v11710
      %11762 = vst [vmem:[%s332 + $0x38] sm:$0xff] %v11742
      %p11763 = scmp.lt.s32.totalorder %s20, 1
      %s11764 = scalar_select %p11763, %s20, 1
      %s11765 = smul.addr %s11764, 8
      %s11766 = smul.addr %s11765, 8
      %s11767 = scalar_lea.vmem %s9, %s11766
      // Predicated region
      $region57: #{decoder_block_forward.1} parent=55 // pred_check
        %p11768 = pneg %p232
      $region58: #{decoder_block_forward.1} parent=55 // pred_check_branch
        %11770 = sbr.rel (%p11768) target = $region60
      $region59: #{decoder_block_forward.1} parent=55 // pred_region
        _
      $region60: #{decoder_block_forward.1} parent=55 // pred_fallthru
        _
    $region56: #{decoder_block_forward.1} parent=5 // pred_fallthru
      _
    %p11771 = scmp.le.s32.totalorder 2, %s15
    // Predicated region
    $region61: #{decoder_block_forward.1} parent=5 // pred_check
      %p11772 = pneg %p11771
    $region62: #{decoder_block_forward.1} parent=5 // pred_check_branch
      %11774 = sbr.rel (%p11772) target = $region64
    $region63: #{decoder_block_forward.1} parent=5 // pred_region
      %s11775 = ssub.s32 %s15, 2
      // Predicated region
      $region65: #{decoder_block_forward.1} parent=63 // pred_check
        %p11776 = pneg %p238
      $region66: #{decoder_block_forward.1} parent=63 // pred_check_branch
        %11778 = sbr.rel (%p11776) target = $region68
      $region67: #{decoder_block_forward.1} parent=63 // pred_region
        %p11779 = scmp.lt.s32.totalorder %s21, 1
        %s11780 = scalar_select %p11779, %s21, 1
        %s11781 = smul.addr %s11780, 8
        %s11782 = smul.addr %s11781, 8
        %s11783 = scalar_lea.vmem %s9, %s11782
      $region68: #{decoder_block_forward.1} parent=63 // pred_fallthru
        _
    $region64: #{decoder_block_forward.1} parent=5 // pred_fallthru
      _
  $region6: #{decoder_block_forward.1} parent=0 // loop_footer
    %s19 = sadd.s32 1, %s15
  $region7: #{decoder_block_forward.1} parent=0 // loop_footer_branch
    %14 = sbr.rel target = $region3
  $region8: #{decoder_block_forward.1} parent=0 // loop_exit
    _

</llo_original>
